<compile_context>
chip_gen: v7x
topology: tpu7x:2x2x1
jax: 0.10.0
libtpu: 0.0.40
codegen_flags: <defaults>
</compile_context>

<pallas_src>
import functools

import numpy as np
import jax
import jax.numpy as jnp
from jax import lax
from jax.experimental import pallas as pl
from jax.experimental.pallas import tpu as pltpu


def _round_up(a, b):
    return (a + b - 1) // b * b


def _vmem_limit(block_bytes):
    # Stay below v7x's 64 MiB physical VMEM, above v5e's 16 MiB scoped default.
    return int(min(60 * 2 ** 20, max(16 * 2 ** 20, 6 * int(block_bytes))))


# --------------------------- conv + BN + ReLU -------------------------------

def _conv_bn_relu_kernel(p00_ref, p01_ref, p10_ref, p11_ref, w_ref, scale_ref,
                         bias_ref, o_ref, *, k, stride, Ho, Wo):
    # Parity planes: plane[a,b][c, i, j] = xpad[c, i*stride + a, j*stride + b].
    # Tap (kh, kw) therefore reads plane[kh%s, kw%s] at offset (kh//s, kw//s):
    # fused im2col with only dense (unstrided) in-kernel reads.
    planes = (p00_ref, p01_ref, p10_ref, p11_ref)       # index = (kh%s)*s + (kw%s)
    C = p00_ref.shape[0]
    Cout = o_ref.shape[0]
    acc = jnp.zeros((Cout, Ho, Wo), jnp.float32)
    for kh in range(k):
        for kw in range(k):
            pref = planes[(kh % stride) * stride + (kw % stride)]
            dh, dw = kh // stride, kw // stride
            x_t = pref[:, 0, dh:dh + Ho, dw:dw + Wo]     # (C, Ho, Wo) dense load
            tap = kh * k + kw
            for c in range(C):
                w_c = w_ref[tap * C + c]                 # (Cout, 1, 1)
                acc = acc + w_c * x_t[c][None, :, :]     # VPU broadcast MAC
    y = acc * scale_ref[...] + bias_ref[...]             # folded BatchNorm (eval)
    o_ref[...] = jnp.maximum(y, 0.0)[:, None, :, :]      # ReLU


def conv_bn_relu(x, w_flat, scale, bias, *, k, stride):
    """x: (Cin, B, H, W); w_flat: (k*k*Cin, Cout, 1, 1) -> (Cout, B, Ho, Wo)."""
    Cin, B, H, W = x.shape
    Cout = w_flat.shape[1]
    pad = (k - 1) // 2
    assert stride == 2, "parity-plane conv kernel currently assumes stride == 2"
    Ho = (H - k + 2 * pad) // stride + 1
    Wo = (W - k + 2 * pad) // stride + 1
    max_d = (k - 1) // stride
    Rh, Rw = Ho + max_d, Wo + max_d
    # Pad spatially (plus a little slack so all parity planes slice uniformly).
    xp = jnp.pad(x, ((0, 0), (0, 0), (pad, pad + stride), (pad, pad + stride)))
    planes = [xp[:, :, a::stride, b::stride][:, :, :Rh, :Rw]
              for a in range(stride) for b in range(stride)]

    plane_spec = pl.BlockSpec((Cin, 1, Rh, Rw), lambda bi: (0, bi, 0, 0))
    kernel = functools.partial(_conv_bn_relu_kernel,
                               k=k, stride=stride, Ho=Ho, Wo=Wo)
    block_bytes = (4 * Cin * Rh * Rw + Cout * Ho * Wo + w_flat.size) * 4
    return pl.pallas_call(
        kernel,
        out_shape=jax.ShapeDtypeStruct((Cout, B, Ho, Wo), jnp.float32),
        grid=(B,),
        in_specs=[plane_spec, plane_spec, plane_spec, plane_spec,
                  pl.BlockSpec((k * k * Cin, Cout, 1, 1),
                               lambda bi: (0, 0, 0, 0)),
                  pl.BlockSpec((Cout, 1, 1), lambda bi: (0, 0, 0)),
                  pl.BlockSpec((Cout, 1, 1), lambda bi: (0, 0, 0))],
        out_specs=pl.BlockSpec((Cout, 1, Ho, Wo), lambda bi: (0, bi, 0, 0)),
        compiler_params=pltpu.CompilerParams(
            dimension_semantics=("parallel",),
            vmem_limit_bytes=_vmem_limit(block_bytes)),
    )(*planes, w_flat, scale, bias)


# ------------------- GRU input projection (hoisted, fused) ------------------

def _gi_projection_kernel(x_ref, wih_ref, bih_ref, gi_ref):
    # x: (C, B, T', F') conv activations in NATIVE layout (no HBM transpose);
    # wih: (C, F', 3*Hp) gate-padded; gi out: (T', B, 3*Hp) time-major, packed.
    C, B, Tp, Fp = x_ref.shape
    bih = bih_ref[...]                                   # (1, 3Hp)
    for t in range(Tp):
        acc = jnp.broadcast_to(bih, (B, bih.shape[1]))
        for c in range(C):
            acc = acc + jnp.dot(x_ref[c, :, t, :], wih_ref[c],
                                preferred_element_type=jnp.float32)
        gi_ref[t] = acc


def gi_projection(x, wih_p, bih_p):
    C, B, Tp, Fp = x.shape
    G3 = wih_p.shape[-1]
    block_bytes = (C * B * Tp * Fp + C * Fp * G3 + Tp * B * G3) * 4
    return pl.pallas_call(
        _gi_projection_kernel,
        out_shape=jax.ShapeDtypeStruct((Tp, B, G3), jnp.float32),
        grid=(1,),
        in_specs=[pl.BlockSpec((C, B, Tp, Fp), lambda i: (0, 0, 0, 0)),
                  pl.BlockSpec((C, Fp, G3), lambda i: (0, 0, 0)),
                  pl.BlockSpec((1, G3), lambda i: (0, 0))],
        out_specs=pl.BlockSpec((Tp, B, G3), lambda i: (0, 0, 0)),
        compiler_params=pltpu.CompilerParams(
            dimension_semantics=("arbitrary",),
            vmem_limit_bytes=_vmem_limit(block_bytes)),
    )(x, wih_p, bih_p)


# --------------------------- GRU recurrence ---------------------------------

def _gru_kernel(gi_ref, whh_ref, bhh_ref, h_ref, *, Hp, T_true, unroll):
    @pl.when(pl.program_id(0) == 0)
    def _():
        h_ref[...] = jnp.zeros_like(h_ref)

    whh = whh_ref[...]                    # (Hp, 3Hp): all 3 gates, ONE fused dot
    bhh = bhh_ref[...]                    # (1, 3Hp)
    tile_t = gi_ref.shape[0]
    t0 = pl.program_id(0) * tile_t

    def step(t, h):
        gi = gi_ref[t]                                            # (B, 3Hp)
        gh = jnp.dot(h, whh, preferred_element_type=jnp.float32) + bhh
        r = jax.nn.sigmoid(gi[:, :Hp] + gh[:, :Hp])               # lane-aligned
        z = jax.nn.sigmoid(gi[:, Hp:2 * Hp] + gh[:, Hp:2 * Hp])
        n = jnp.tanh(gi[:, 2 * Hp:] + r * gh[:, 2 * Hp:])
        h_new = (1.0 - z) * n + z * h
        # Padded (>= T_true) steps are identity updates (no magic constants).
        return jnp.where(t0 + t < T_true, h_new, h)

    h_ref[...] = lax.fori_loop(0, tile_t, step, h_ref[...], unroll=unroll)


def gru_last_hidden(gi, whh_p, bhh_p, tile_t=256):
    Tp, B, G3 = gi.shape
    Hp = whh_p.shape[0]
    tile_t = max(1, min(tile_t, Tp))
    Tpad = _round_up(Tp, tile_t)
    if Tpad != Tp:
        gi = jnp.pad(gi, ((0, Tpad - Tp), (0, 0), (0, 0)))
    unroll = max(1, min(4, tile_t))
    kernel = functools.partial(_gru_kernel, Hp=Hp, T_true=Tp, unroll=unroll)
    block_bytes = (2 * tile_t * B * G3 + Hp * G3 + B * Hp) * 4
    return pl.pallas_call(
        kernel,
        out_shape=jax.ShapeDtypeStruct((B, Hp), jnp.float32),
        grid=(Tpad // tile_t,),
        in_specs=[pl.BlockSpec((tile_t, B, G3), lambda t: (t, 0, 0)),
                  pl.BlockSpec((Hp, G3), lambda t: (0, 0)),
                  pl.BlockSpec((1, G3), lambda t: (0, 0))],
        out_specs=pl.BlockSpec((B, Hp), lambda t: (0, 0)),   # resident hidden
        compiler_params=pltpu.CompilerParams(
            dimension_semantics=("arbitrary",),
            vmem_limit_bytes=_vmem_limit(block_bytes)),
    )(gi, whh_p, bhh_p)


# ------------------------------- forward ------------------------------------

def reference_encoder_forward(speech, conv_params, gru_params,
                              k, stride, pad, gru_units):
    """speech: (B, T, F) float32 -> ref_embeddings (B, gru_units)."""
    del pad  # derived from k inside the conv wrapper
    x = speech[None]                                     # (C=1, B, T, F)
    for (w_flat, scale, bias) in conv_params:
        x = conv_bn_relu(x, w_flat, scale, bias, k=k, stride=stride)
    wih_p, whh_p, bih_p, bhh_p = gru_params
    gi = gi_projection(x, wih_p, bih_p)                  # (T', B, 3Hp) packed
    h = gru_last_hidden(gi, whh_p, bhh_p)                # (B, Hp)
    return h[:, :gru_units]                              # single final slice


# -------------------------- pure-JAX reference ------------------------------

def torch_style_reference(speech, raw_conv_params, gru_params_raw, k, stride,
                          pad, gru_units, eps=1e-5):
    x = speech[:, None, :, :]                            # NCHW
    for (w, gamma, beta, rm, rv) in raw_conv_params:
        w_oihw = jnp.transpose(w, (3, 2, 0, 1))          # (Cout, Cin, KH, KW)
        x = lax.conv_general_dilated(
            x, w_oihw, window_strides=(stride, stride),
            padding=[(pad, pad), (pad, pad)],
            dimension_numbers=("NCHW", "OIHW", "NCHW"))
        x = (x - rm[None, :, None, None]) / jnp.sqrt(rv[None, :, None, None] + eps)
        x = x * gamma[None, :, None, None] + beta[None, :, None, None]
        x = jnp.maximum(x, 0.0)
    B, C, Tp, Fp = x.shape
    hs = jnp.transpose(x, (0, 2, 1, 3)).reshape(B, Tp, C * Fp)
    wih, whh, bih, bhh = gru_params_raw
    H = gru_units
    h = jnp.zeros((B, H), jnp.float32)
    for t in range(Tp):
        x_t = hs[:, t, :]
        gi = x_t @ wih + bih
        gh = h @ whh + bhh
        r = jax.nn.sigmoid(gi[:, :H] + gh[:, :H])
        z = jax.nn.sigmoid(gi[:, H:2 * H] + gh[:, H:2 * H])
        n = jnp.tanh(gi[:, 2 * H:] + r * gh[:, 2 * H:])
        h = (1.0 - z) * n + z * h
    return h


# --------------------------------- main --------------------------------------

if __name__ == "__main__":
    # Small config consistent with the module's forward.
    B, T, idim = 2, 8, 16
    conv_layers = 2
    conv_channels_list = (4, 8)
    k, stride = 3, 2
    pad = (k - 1) // 2
    gru_units = 32
    eps = 1e-5

    key = jax.random.PRNGKey(0)
    keys = jax.random.split(key, 20)

    speech = jax.random.normal(keys[0], (B, T, idim), dtype=jnp.float32)

    # Deterministic synthetic parameters.
    raw_conv_params = []   # (w (k,k,Cin,Cout), gamma, beta, running_mean, running_var)
    conv_params = []       # (w_flat (k*k*Cin,Cout,1,1), scale (Cout,1,1), bias (Cout,1,1))
    cin = 1
    ki = 1
    for li in range(conv_layers):
        cout = conv_channels_list[li]
        w = 0.3 * jax.random.normal(keys[ki], (k, k, cin, cout), dtype=jnp.float32); ki += 1
        gamma = 1.0 + 0.1 * jax.random.normal(keys[ki], (cout,), dtype=jnp.float32); ki += 1
        beta = 0.1 * jax.random.normal(keys[ki], (cout,), dtype=jnp.float32); ki += 1
        rm = 0.1 * jax.random.normal(keys[ki], (cout,), dtype=jnp.float32); ki += 1
        rv = 1.0 + 0.1 * jnp.abs(jax.random.normal(keys[ki], (cout,), dtype=jnp.float32)); ki += 1
        scale = gamma / jnp.sqrt(rv + eps)
        bias = beta - rm * scale
        raw_conv_params.append((w, gamma, beta, rm, rv))
        # (kh, kw, ci, co) -> flat tap*Cin + ci, trailing (1,1) for in-kernel broadcast
        w_flat = w.reshape(k * k * cin, cout)[:, :, None, None]
        conv_params.append((w_flat, scale[:, None, None], bias[:, None, None]))
        cin = cout

    # GRU in-units after the conv stack: F' * C_last.
    f_out = idim
    for _ in range(conv_layers):
        f_out = (f_out - k + 2 * pad) // stride + 1
    c_last = conv_channels_list[-1]
    gru_in = f_out * c_last

    H = gru_units
    Hp = _round_up(H, 128)   # 128-lane-aligned gates (lane-dense GRU tensors)

    wih = 0.2 * jax.random.normal(keys[ki], (gru_in, 3 * H), dtype=jnp.float32); ki += 1
    whh = 0.2 * jax.random.normal(keys[ki], (H, 3 * H), dtype=jnp.float32); ki += 1
    bih = 0.1 * jax.random.normal(keys[ki], (1, 3 * H), dtype=jnp.float32); ki += 1
    bhh = 0.1 * jax.random.normal(keys[ki], (1, 3 * H), dtype=jnp.float32); ki += 1
    gru_params_raw = (wih, whh, bih, bhh)

    # Gate-aligned, zero-padded GRU weights (padded lanes provably stay 0).
    wih_r = wih.reshape(c_last, f_out, 3 * H)     # row index was c*F' + f
    wih_p = jnp.zeros((c_last, f_out, 3 * Hp), jnp.float32)
    whh_p = jnp.zeros((Hp, 3 * Hp), jnp.float32)
    bih_p = jnp.zeros((1, 3 * Hp), jnp.float32)
    bhh_p = jnp.zeros((1, 3 * Hp), jnp.float32)
    for g in range(3):
        wih_p = wih_p.at[:, :, g * Hp:g * Hp + H].set(wih_r[:, :, g * H:(g + 1) * H])
        whh_p = whh_p.at[:H, g * Hp:g * Hp + H].set(whh[:, g * H:(g + 1) * H])
        bih_p = bih_p.at[:, g * Hp:g * Hp + H].set(bih[:, g * H:(g + 1) * H])
        bhh_p = bhh_p.at[:, g * Hp:g * Hp + H].set(bhh[:, g * H:(g + 1) * H])
    gru_params = (wih_p, whh_p, bih_p, bhh_p)

    fwd = jax.jit(reference_encoder_forward, static_argnums=(3, 4, 5, 6))
    out = fwd(speech, conv_params, gru_params, k, stride, pad, gru_units)
    out = jax.block_until_ready(out)

    ref = torch_style_reference(speech, raw_conv_params, gru_params_raw,
                                k, stride, pad, gru_units, eps=eps)
    ref = jax.block_until_ready(ref)

    assert out.shape == (B, gru_units), out.shape
    np.testing.assert_allclose(np.asarray(out), np.asarray(ref), rtol=1e-4, atol=1e-4)
    print("KERNEL_OK")
</pallas_src>

<mosaic_0001>
module attributes {stable_mosaic.version = 11 : i64} {
  func.func @_conv_bn_relu_kernel(%arg0: i32, %arg1: memref<1x1x5x9xf32, #tpu.memory_space<vmem>>, %arg2: memref<1x1x5x9xf32, #tpu.memory_space<vmem>>, %arg3: memref<1x1x5x9xf32, #tpu.memory_space<vmem>>, %arg4: memref<1x1x5x9xf32, #tpu.memory_space<vmem>>, %arg5: memref<9x4x1x1xf32, #tpu.memory_space<vmem>>, %arg6: memref<4x1x1xf32, #tpu.memory_space<vmem>>, %arg7: memref<4x1x1xf32, #tpu.memory_space<vmem>>, %arg8: memref<4x1x4x8xf32, #tpu.memory_space<vmem>>) attributes {dimension_semantics = [#tpu.dimension_semantics<parallel>], iteration_bounds = array<i64: 2>, scalar_prefetch = 0 : i64, scratch_operands = 0 : i64, tpu.core_type = #tpu.core_type<tc>, window_params = [{transform_indices = @transform_0, window_bounds = array<i64: 1, 1, 5, 9>}, {transform_indices = @transform_1, window_bounds = array<i64: 1, 1, 5, 9>}, {transform_indices = @transform_2, window_bounds = array<i64: 1, 1, 5, 9>}, {transform_indices = @transform_3, window_bounds = array<i64: 1, 1, 5, 9>}, {pipeline_mode = #tpu.pipeline_mode<synchronous>, transform_indices = @transform_4, window_bounds = array<i64: 9, 4, 1, 1>}, {pipeline_mode = #tpu.pipeline_mode<synchronous>, transform_indices = @transform_5, window_bounds = array<i64: 4, 1, 1>}, {pipeline_mode = #tpu.pipeline_mode<synchronous>, transform_indices = @transform_6, window_bounds = array<i64: 4, 1, 1>}, {transform_indices = @transform_7, window_bounds = array<i64: 4, 1, 4, 8>}]} {
    %cst = arith.constant 0.000000e+00 : f32
    %0 = vector.broadcast %cst : f32 to vector<4x4x8xf32>
    %c0 = arith.constant 0 : index
    %c0_0 = arith.constant 0 : index
    %c0_1 = arith.constant 0 : index
    %c0_2 = arith.constant 0 : index
    %1 = vector.load %arg1[%c0, %c0_0, %c0_1, %c0_2] : memref<1x1x5x9xf32, #tpu.memory_space<vmem>>, vector<1x1x4x8xf32>
    %2 = vector.shape_cast %1 : vector<1x1x4x8xf32> to vector<1x4x8xf32>
    %c0_3 = arith.constant 0 : index
    %c0_4 = arith.constant 0 : index
    %c0_5 = arith.constant 0 : index
    %c0_6 = arith.constant 0 : index
    %3 = vector.load %arg5[%c0_3, %c0_4, %c0_5, %c0_6] : memref<9x4x1x1xf32, #tpu.memory_space<vmem>>, vector<1x4x1x1xf32>
    %4 = vector.shape_cast %3 : vector<1x4x1x1xf32> to vector<4x1x1xf32>
    %5 = vector.shape_cast %2 : vector<1x4x8xf32> to vector<4x8xf32>
    %6 = vector.shape_cast %5 : vector<4x8xf32> to vector<1x4x8xf32>
    %7 = vector.broadcast %4 : vector<4x1x1xf32> to vector<4x4x8xf32>
    %8 = vector.broadcast %6 : vector<1x4x8xf32> to vector<4x4x8xf32>
    %9 = arith.mulf %7, %8 : vector<4x4x8xf32>
    %10 = arith.addf %0, %9 : vector<4x4x8xf32>
    %c0_7 = arith.constant 0 : index
    %c0_8 = arith.constant 0 : index
    %c0_9 = arith.constant 0 : index
    %c0_10 = arith.constant 0 : index
    %11 = vector.load %arg2[%c0_7, %c0_8, %c0_9, %c0_10] : memref<1x1x5x9xf32, #tpu.memory_space<vmem>>, vector<1x1x4x8xf32>
    %12 = vector.shape_cast %11 : vector<1x1x4x8xf32> to vector<1x4x8xf32>
    %c1 = arith.constant 1 : index
    %c0_11 = arith.constant 0 : index
    %c0_12 = arith.constant 0 : index
    %c0_13 = arith.constant 0 : index
    %13 = vector.load %arg5[%c1, %c0_11, %c0_12, %c0_13] : memref<9x4x1x1xf32, #tpu.memory_space<vmem>>, vector<1x4x1x1xf32>
    %14 = vector.shape_cast %13 : vector<1x4x1x1xf32> to vector<4x1x1xf32>
    %15 = vector.shape_cast %12 : vector<1x4x8xf32> to vector<4x8xf32>
    %16 = vector.shape_cast %15 : vector<4x8xf32> to vector<1x4x8xf32>
    %17 = vector.broadcast %14 : vector<4x1x1xf32> to vector<4x4x8xf32>
    %18 = vector.broadcast %16 : vector<1x4x8xf32> to vector<4x4x8xf32>
    %19 = arith.mulf %17, %18 : vector<4x4x8xf32>
    %20 = arith.addf %10, %19 : vector<4x4x8xf32>
    %c0_14 = arith.constant 0 : index
    %c0_15 = arith.constant 0 : index
    %c0_16 = arith.constant 0 : index
    %c1_17 = arith.constant 1 : index
    %21 = vector.load %arg1[%c0_14, %c0_15, %c0_16, %c1_17] : memref<1x1x5x9xf32, #tpu.memory_space<vmem>>, vector<1x1x4x8xf32>
    %22 = vector.shape_cast %21 : vector<1x1x4x8xf32> to vector<1x4x8xf32>
    %c2 = arith.constant 2 : index
    %c0_18 = arith.constant 0 : index
    %c0_19 = arith.constant 0 : index
    %c0_20 = arith.constant 0 : index
    %23 = vector.load %arg5[%c2, %c0_18, %c0_19, %c0_20] : memref<9x4x1x1xf32, #tpu.memory_space<vmem>>, vector<1x4x1x1xf32>
    %24 = vector.shape_cast %23 : vector<1x4x1x1xf32> to vector<4x1x1xf32>
    %25 = vector.shape_cast %22 : vector<1x4x8xf32> to vector<4x8xf32>
    %26 = vector.shape_cast %25 : vector<4x8xf32> to vector<1x4x8xf32>
    %27 = vector.broadcast %24 : vector<4x1x1xf32> to vector<4x4x8xf32>
    %28 = vector.broadcast %26 : vector<1x4x8xf32> to vector<4x4x8xf32>
    %29 = arith.mulf %27, %28 : vector<4x4x8xf32>
    %30 = arith.addf %20, %29 : vector<4x4x8xf32>
    %c0_21 = arith.constant 0 : index
    %c0_22 = arith.constant 0 : index
    %c0_23 = arith.constant 0 : index
    %c0_24 = arith.constant 0 : index
    %31 = vector.load %arg3[%c0_21, %c0_22, %c0_23, %c0_24] : memref<1x1x5x9xf32, #tpu.memory_space<vmem>>, vector<1x1x4x8xf32>
    %32 = vector.shape_cast %31 : vector<1x1x4x8xf32> to vector<1x4x8xf32>
    %c3 = arith.constant 3 : index
    %c0_25 = arith.constant 0 : index
    %c0_26 = arith.constant 0 : index
    %c0_27 = arith.constant 0 : index
    %33 = vector.load %arg5[%c3, %c0_25, %c0_26, %c0_27] : memref<9x4x1x1xf32, #tpu.memory_space<vmem>>, vector<1x4x1x1xf32>
    %34 = vector.shape_cast %33 : vector<1x4x1x1xf32> to vector<4x1x1xf32>
    %35 = vector.shape_cast %32 : vector<1x4x8xf32> to vector<4x8xf32>
    %36 = vector.shape_cast %35 : vector<4x8xf32> to vector<1x4x8xf32>
    %37 = vector.broadcast %34 : vector<4x1x1xf32> to vector<4x4x8xf32>
    %38 = vector.broadcast %36 : vector<1x4x8xf32> to vector<4x4x8xf32>
    %39 = arith.mulf %37, %38 : vector<4x4x8xf32>
    %40 = arith.addf %30, %39 : vector<4x4x8xf32>
    %c0_28 = arith.constant 0 : index
    %c0_29 = arith.constant 0 : index
    %c0_30 = arith.constant 0 : index
    %c0_31 = arith.constant 0 : index
    %41 = vector.load %arg4[%c0_28, %c0_29, %c0_30, %c0_31] : memref<1x1x5x9xf32, #tpu.memory_space<vmem>>, vector<1x1x4x8xf32>
    %42 = vector.shape_cast %41 : vector<1x1x4x8xf32> to vector<1x4x8xf32>
    %c4 = arith.constant 4 : index
    %c0_32 = arith.constant 0 : index
    %c0_33 = arith.constant 0 : index
    %c0_34 = arith.constant 0 : index
    %43 = vector.load %arg5[%c4, %c0_32, %c0_33, %c0_34] : memref<9x4x1x1xf32, #tpu.memory_space<vmem>>, vector<1x4x1x1xf32>
    %44 = vector.shape_cast %43 : vector<1x4x1x1xf32> to vector<4x1x1xf32>
    %45 = vector.shape_cast %42 : vector<1x4x8xf32> to vector<4x8xf32>
    %46 = vector.shape_cast %45 : vector<4x8xf32> to vector<1x4x8xf32>
    %47 = vector.broadcast %44 : vector<4x1x1xf32> to vector<4x4x8xf32>
    %48 = vector.broadcast %46 : vector<1x4x8xf32> to vector<4x4x8xf32>
    %49 = arith.mulf %47, %48 : vector<4x4x8xf32>
    %50 = arith.addf %40, %49 : vector<4x4x8xf32>
    %c0_35 = arith.constant 0 : index
    %c0_36 = arith.constant 0 : index
    %c0_37 = arith.constant 0 : index
    %c1_38 = arith.constant 1 : index
    %51 = vector.load %arg3[%c0_35, %c0_36, %c0_37, %c1_38] : memref<1x1x5x9xf32, #tpu.memory_space<vmem>>, vector<1x1x4x8xf32>
    %52 = vector.shape_cast %51 : vector<1x1x4x8xf32> to vector<1x4x8xf32>
    %c5 = arith.constant 5 : index
    %c0_39 = arith.constant 0 : index
    %c0_40 = arith.constant 0 : index
    %c0_41 = arith.constant 0 : index
    %53 = vector.load %arg5[%c5, %c0_39, %c0_40, %c0_41] : memref<9x4x1x1xf32, #tpu.memory_space<vmem>>, vector<1x4x1x1xf32>
    %54 = vector.shape_cast %53 : vector<1x4x1x1xf32> to vector<4x1x1xf32>
    %55 = vector.shape_cast %52 : vector<1x4x8xf32> to vector<4x8xf32>
    %56 = vector.shape_cast %55 : vector<4x8xf32> to vector<1x4x8xf32>
    %57 = vector.broadcast %54 : vector<4x1x1xf32> to vector<4x4x8xf32>
    %58 = vector.broadcast %56 : vector<1x4x8xf32> to vector<4x4x8xf32>
    %59 = arith.mulf %57, %58 : vector<4x4x8xf32>
    %60 = arith.addf %50, %59 : vector<4x4x8xf32>
    %c0_42 = arith.constant 0 : index
    %c0_43 = arith.constant 0 : index
    %c1_44 = arith.constant 1 : index
    %c0_45 = arith.constant 0 : index
    %61 = vector.load %arg1[%c0_42, %c0_43, %c1_44, %c0_45] : memref<1x1x5x9xf32, #tpu.memory_space<vmem>>, vector<1x1x4x8xf32>
    %62 = vector.shape_cast %61 : vector<1x1x4x8xf32> to vector<1x4x8xf32>
    %c6 = arith.constant 6 : index
    %c0_46 = arith.constant 0 : index
    %c0_47 = arith.constant 0 : index
    %c0_48 = arith.constant 0 : index
    %63 = vector.load %arg5[%c6, %c0_46, %c0_47, %c0_48] : memref<9x4x1x1xf32, #tpu.memory_space<vmem>>, vector<1x4x1x1xf32>
    %64 = vector.shape_cast %63 : vector<1x4x1x1xf32> to vector<4x1x1xf32>
    %65 = vector.shape_cast %62 : vector<1x4x8xf32> to vector<4x8xf32>
    %66 = vector.shape_cast %65 : vector<4x8xf32> to vector<1x4x8xf32>
    %67 = vector.broadcast %64 : vector<4x1x1xf32> to vector<4x4x8xf32>
    %68 = vector.broadcast %66 : vector<1x4x8xf32> to vector<4x4x8xf32>
    %69 = arith.mulf %67, %68 : vector<4x4x8xf32>
    %70 = arith.addf %60, %69 : vector<4x4x8xf32>
    %c0_49 = arith.constant 0 : index
    %c0_50 = arith.constant 0 : index
    %c1_51 = arith.constant 1 : index
    %c0_52 = arith.constant 0 : index
    %71 = vector.load %arg2[%c0_49, %c0_50, %c1_51, %c0_52] : memref<1x1x5x9xf32, #tpu.memory_space<vmem>>, vector<1x1x4x8xf32>
    %72 = vector.shape_cast %71 : vector<1x1x4x8xf32> to vector<1x4x8xf32>
    %c7 = arith.constant 7 : index
    %c0_53 = arith.constant 0 : index
    %c0_54 = arith.constant 0 : index
    %c0_55 = arith.constant 0 : index
    %73 = vector.load %arg5[%c7, %c0_53, %c0_54, %c0_55] : memref<9x4x1x1xf32, #tpu.memory_space<vmem>>, vector<1x4x1x1xf32>
    %74 = vector.shape_cast %73 : vector<1x4x1x1xf32> to vector<4x1x1xf32>
    %75 = vector.shape_cast %72 : vector<1x4x8xf32> to vector<4x8xf32>
    %76 = vector.shape_cast %75 : vector<4x8xf32> to vector<1x4x8xf32>
    %77 = vector.broadcast %74 : vector<4x1x1xf32> to vector<4x4x8xf32>
    %78 = vector.broadcast %76 : vector<1x4x8xf32> to vector<4x4x8xf32>
    %79 = arith.mulf %77, %78 : vector<4x4x8xf32>
    %80 = arith.addf %70, %79 : vector<4x4x8xf32>
    %c0_56 = arith.constant 0 : index
    %c0_57 = arith.constant 0 : index
    %c1_58 = arith.constant 1 : index
    %c1_59 = arith.constant 1 : index
    %81 = vector.load %arg1[%c0_56, %c0_57, %c1_58, %c1_59] : memref<1x1x5x9xf32, #tpu.memory_space<vmem>>, vector<1x1x4x8xf32>
    %82 = vector.shape_cast %81 : vector<1x1x4x8xf32> to vector<1x4x8xf32>
    %c8 = arith.constant 8 : index
    %c0_60 = arith.constant 0 : index
    %c0_61 = arith.constant 0 : index
    %c0_62 = arith.constant 0 : index
    %83 = vector.load %arg5[%c8, %c0_60, %c0_61, %c0_62] : memref<9x4x1x1xf32, #tpu.memory_space<vmem>>, vector<1x4x1x1xf32>
    %84 = vector.shape_cast %83 : vector<1x4x1x1xf32> to vector<4x1x1xf32>
    %85 = vector.shape_cast %82 : vector<1x4x8xf32> to vector<4x8xf32>
    %86 = vector.shape_cast %85 : vector<4x8xf32> to vector<1x4x8xf32>
    %87 = vector.broadcast %84 : vector<4x1x1xf32> to vector<4x4x8xf32>
    %88 = vector.broadcast %86 : vector<1x4x8xf32> to vector<4x4x8xf32>
    %89 = arith.mulf %87, %88 : vector<4x4x8xf32>
    %90 = arith.addf %80, %89 : vector<4x4x8xf32>
    %c0_63 = arith.constant 0 : index
    %c0_64 = arith.constant 0 : index
    %c0_65 = arith.constant 0 : index
    %91 = vector.load %arg6[%c0_63, %c0_64, %c0_65] : memref<4x1x1xf32, #tpu.memory_space<vmem>>, vector<4x1x1xf32>
    %92 = vector.broadcast %91 : vector<4x1x1xf32> to vector<4x4x8xf32>
    %93 = arith.mulf %90, %92 : vector<4x4x8xf32>
    %c0_66 = arith.constant 0 : index
    %c0_67 = arith.constant 0 : index
    %c0_68 = arith.constant 0 : index
    %94 = vector.load %arg7[%c0_66, %c0_67, %c0_68] : memref<4x1x1xf32, #tpu.memory_space<vmem>>, vector<4x1x1xf32>
    %95 = vector.broadcast %94 : vector<4x1x1xf32> to vector<4x4x8xf32>
    %96 = arith.addf %93, %95 : vector<4x4x8xf32>
    %cst_69 = arith.constant 0.000000e+00 : f32
    %97 = vector.broadcast %cst_69 : f32 to vector<4x4x8xf32>
    %98 = arith.maximumf %96, %97 : vector<4x4x8xf32>
    %99 = vector.shape_cast %98 : vector<4x4x8xf32> to vector<4x1x4x8xf32>
    %c0_70 = arith.constant 0 : index
    %c0_71 = arith.constant 0 : index
    %c0_72 = arith.constant 0 : index
    %c0_73 = arith.constant 0 : index
    %100 = vector.load %arg8[%c0_70, %c0_71, %c0_72, %c0_73] : memref<4x1x4x8xf32, #tpu.memory_space<vmem>>, vector<4x1x4x8xf32>
    tpu.vector_store %arg8[%c0_70, %c0_71, %c0_72, %c0_73], %99 {strides = array<i32>} : memref<4x1x4x8xf32, #tpu.memory_space<vmem>>, vector<4x1x4x8xf32>,
    return
  }
  func.func @transform_0(%arg0: i32) -> (i32, i32, i32, i32) {
    %c0_i32 = arith.constant 0 : i32
    %c0_i32_0 = arith.constant 0 : i32
    %c0_i32_1 = arith.constant 0 : i32
    %c0_i32_2 = arith.constant 0 : i32
    return %c0_i32, %arg0, %c0_i32_0, %c0_i32_1 : i32, i32, i32, i32
  }
  func.func @transform_1(%arg0: i32) -> (i32, i32, i32, i32) {
    %c0_i32 = arith.constant 0 : i32
    %c0_i32_0 = arith.constant 0 : i32
    %c0_i32_1 = arith.constant 0 : i32
    %c0_i32_2 = arith.constant 0 : i32
    return %c0_i32, %arg0, %c0_i32_0, %c0_i32_1 : i32, i32, i32, i32
  }
  func.func @transform_2(%arg0: i32) -> (i32, i32, i32, i32) {
    %c0_i32 = arith.constant 0 : i32
    %c0_i32_0 = arith.constant 0 : i32
    %c0_i32_1 = arith.constant 0 : i32
    %c0_i32_2 = arith.constant 0 : i32
    return %c0_i32, %arg0, %c0_i32_0, %c0_i32_1 : i32, i32, i32, i32
  }
  func.func @transform_3(%arg0: i32) -> (i32, i32, i32, i32) {
    %c0_i32 = arith.constant 0 : i32
    %c0_i32_0 = arith.constant 0 : i32
    %c0_i32_1 = arith.constant 0 : i32
    %c0_i32_2 = arith.constant 0 : i32
    return %c0_i32, %arg0, %c0_i32_0, %c0_i32_1 : i32, i32, i32, i32
  }
  func.func @transform_4(%arg0: i32) -> (i32, i32, i32, i32) {
    %c0_i32 = arith.constant 0 : i32
    %c0_i32_0 = arith.constant 0 : i32
    %c0_i32_1 = arith.constant 0 : i32
    %c0_i32_2 = arith.constant 0 : i32
    %c0_i32_3 = arith.constant 0 : i32
    return %c0_i32, %c0_i32_0, %c0_i32_1, %c0_i32_2 : i32, i32, i32, i32
  }
  func.func @transform_5(%arg0: i32) -> (i32, i32, i32) {
    %c0_i32 = arith.constant 0 : i32
    %c0_i32_0 = arith.constant 0 : i32
    %c0_i32_1 = arith.constant 0 : i32
    %c0_i32_2 = arith.constant 0 : i32
    return %c0_i32, %c0_i32_0, %c0_i32_1 : i32, i32, i32
  }
  func.func @transform_6(%arg0: i32) -> (i32, i32, i32) {
    %c0_i32 = arith.constant 0 : i32
    %c0_i32_0 = arith.constant 0 : i32
    %c0_i32_1 = arith.constant 0 : i32
    %c0_i32_2 = arith.constant 0 : i32
    return %c0_i32, %c0_i32_0, %c0_i32_1 : i32, i32, i32
  }
  func.func @transform_7(%arg0: i32) -> (i32, i32, i32, i32) {
    %c0_i32 = arith.constant 0 : i32
    %c0_i32_0 = arith.constant 0 : i32
    %c0_i32_1 = arith.constant 0 : i32
    %c0_i32_2 = arith.constant 0 : i32
    return %c0_i32, %arg0, %c0_i32_0, %c0_i32_1 : i32, i32, i32, i32
  }
}

module attributes {stable_mosaic.version = 11 : i64} {
  func.func @_conv_bn_relu_kernel(%arg0: i32, %arg1: memref<4x1x3x5xf32, #tpu.memory_space<vmem>>, %arg2: memref<4x1x3x5xf32, #tpu.memory_space<vmem>>, %arg3: memref<4x1x3x5xf32, #tpu.memory_space<vmem>>, %arg4: memref<4x1x3x5xf32, #tpu.memory_space<vmem>>, %arg5: memref<36x8x1x1xf32, #tpu.memory_space<vmem>>, %arg6: memref<8x1x1xf32, #tpu.memory_space<vmem>>, %arg7: memref<8x1x1xf32, #tpu.memory_space<vmem>>, %arg8: memref<8x1x2x4xf32, #tpu.memory_space<vmem>>) attributes {dimension_semantics = [#tpu.dimension_semantics<parallel>], iteration_bounds = array<i64: 2>, scalar_prefetch = 0 : i64, scratch_operands = 0 : i64, tpu.core_type = #tpu.core_type<tc>, window_params = [{transform_indices = @transform_0, window_bounds = array<i64: 4, 1, 3, 5>}, {transform_indices = @transform_1, window_bounds = array<i64: 4, 1, 3, 5>}, {transform_indices = @transform_2, window_bounds = array<i64: 4, 1, 3, 5>}, {transform_indices = @transform_3, window_bounds = array<i64: 4, 1, 3, 5>}, {pipeline_mode = #tpu.pipeline_mode<synchronous>, transform_indices = @transform_4, window_bounds = array<i64: 36, 8, 1, 1>}, {pipeline_mode = #tpu.pipeline_mode<synchronous>, transform_indices = @transform_5, window_bounds = array<i64: 8, 1, 1>}, {pipeline_mode = #tpu.pipeline_mode<synchronous>, transform_indices = @transform_6, window_bounds = array<i64: 8, 1, 1>}, {transform_indices = @transform_7, window_bounds = array<i64: 8, 1, 2, 4>}]} {
    %cst = arith.constant 0.000000e+00 : f32
    %0 = vector.broadcast %cst : f32 to vector<8x2x4xf32>
    %c0 = arith.constant 0 : index
    %c0_0 = arith.constant 0 : index
    %c0_1 = arith.constant 0 : index
    %c0_2 = arith.constant 0 : index
    %1 = vector.load %arg1[%c0, %c0_0, %c0_1, %c0_2] : memref<4x1x3x5xf32, #tpu.memory_space<vmem>>, vector<4x1x2x4xf32>
    %2 = vector.shape_cast %1 : vector<4x1x2x4xf32> to vector<4x2x4xf32>
    %c0_3 = arith.constant 0 : index
    %c0_4 = arith.constant 0 : index
    %c0_5 = arith.constant 0 : index
    %c0_6 = arith.constant 0 : index
    %3 = vector.load %arg5[%c0_3, %c0_4, %c0_5, %c0_6] : memref<36x8x1x1xf32, #tpu.memory_space<vmem>>, vector<1x8x1x1xf32>
    %4 = vector.shape_cast %3 : vector<1x8x1x1xf32> to vector<8x1x1xf32>
    %5 = vector.extract_strided_slice %2 {offsets = [0, 0, 0], sizes = [1, 2, 4], strides = [1, 1, 1]} : vector<4x2x4xf32> to vector<1x2x4xf32>
    %6 = vector.shape_cast %5 : vector<1x2x4xf32> to vector<2x4xf32>
    %7 = vector.shape_cast %6 : vector<2x4xf32> to vector<1x2x4xf32>
    %8 = vector.broadcast %4 : vector<8x1x1xf32> to vector<8x2x4xf32>
    %9 = vector.broadcast %7 : vector<1x2x4xf32> to vector<8x2x4xf32>
    %10 = arith.mulf %8, %9 : vector<8x2x4xf32>
    %11 = arith.addf %0, %10 : vector<8x2x4xf32>
    %c1 = arith.constant 1 : index
    %c0_7 = arith.constant 0 : index
    %c0_8 = arith.constant 0 : index
    %c0_9 = arith.constant 0 : index
    %12 = vector.load %arg5[%c1, %c0_7, %c0_8, %c0_9] : memref<36x8x1x1xf32, #tpu.memory_space<vmem>>, vector<1x8x1x1xf32>
    %13 = vector.shape_cast %12 : vector<1x8x1x1xf32> to vector<8x1x1xf32>
    %14 = vector.extract_strided_slice %2 {offsets = [1, 0, 0], sizes = [1, 2, 4], strides = [1, 1, 1]} : vector<4x2x4xf32> to vector<1x2x4xf32>
    %15 = vector.shape_cast %14 : vector<1x2x4xf32> to vector<2x4xf32>
    %16 = vector.shape_cast %15 : vector<2x4xf32> to vector<1x2x4xf32>
    %17 = vector.broadcast %13 : vector<8x1x1xf32> to vector<8x2x4xf32>
    %18 = vector.broadcast %16 : vector<1x2x4xf32> to vector<8x2x4xf32>
    %19 = arith.mulf %17, %18 : vector<8x2x4xf32>
    %20 = arith.addf %11, %19 : vector<8x2x4xf32>
    %c2 = arith.constant 2 : index
    %c0_10 = arith.constant 0 : index
    %c0_11 = arith.constant 0 : index
    %c0_12 = arith.constant 0 : index
    %21 = vector.load %arg5[%c2, %c0_10, %c0_11, %c0_12] : memref<36x8x1x1xf32, #tpu.memory_space<vmem>>, vector<1x8x1x1xf32>
    %22 = vector.shape_cast %21 : vector<1x8x1x1xf32> to vector<8x1x1xf32>
    %23 = vector.extract_strided_slice %2 {offsets = [2, 0, 0], sizes = [1, 2, 4], strides = [1, 1, 1]} : vector<4x2x4xf32> to vector<1x2x4xf32>
    %24 = vector.shape_cast %23 : vector<1x2x4xf32> to vector<2x4xf32>
    %25 = vector.shape_cast %24 : vector<2x4xf32> to vector<1x2x4xf32>
    %26 = vector.broadcast %22 : vector<8x1x1xf32> to vector<8x2x4xf32>
    %27 = vector.broadcast %25 : vector<1x2x4xf32> to vector<8x2x4xf32>
    %28 = arith.mulf %26, %27 : vector<8x2x4xf32>
    %29 = arith.addf %20, %28 : vector<8x2x4xf32>
    %c3 = arith.constant 3 : index
    %c0_13 = arith.constant 0 : index
    %c0_14 = arith.constant 0 : index
    %c0_15 = arith.constant 0 : index
    %30 = vector.load %arg5[%c3, %c0_13, %c0_14, %c0_15] : memref<36x8x1x1xf32, #tpu.memory_space<vmem>>, vector<1x8x1x1xf32>
    %31 = vector.shape_cast %30 : vector<1x8x1x1xf32> to vector<8x1x1xf32>
    %32 = vector.extract_strided_slice %2 {offsets = [3, 0, 0], sizes = [1, 2, 4], strides = [1, 1, 1]} : vector<4x2x4xf32> to vector<1x2x4xf32>
    %33 = vector.shape_cast %32 : vector<1x2x4xf32> to vector<2x4xf32>
    %34 = vector.shape_cast %33 : vector<2x4xf32> to vector<1x2x4xf32>
    %35 = vector.broadcast %31 : vector<8x1x1xf32> to vector<8x2x4xf32>
    %36 = vector.broadcast %34 : vector<1x2x4xf32> to vector<8x2x4xf32>
    %37 = arith.mulf %35, %36 : vector<8x2x4xf32>
    %38 = arith.addf %29, %37 : vector<8x2x4xf32>
    %c0_16 = arith.constant 0 : index
    %c0_17 = arith.constant 0 : index
    %c0_18 = arith.constant 0 : index
    %c0_19 = arith.constant 0 : index
    %39 = vector.load %arg2[%c0_16, %c0_17, %c0_18, %c0_19] : memref<4x1x3x5xf32, #tpu.memory_space<vmem>>, vector<4x1x2x4xf32>
    %40 = vector.shape_cast %39 : vector<4x1x2x4xf32> to vector<4x2x4xf32>
    %c4 = arith.constant 4 : index
    %c0_20 = arith.constant 0 : index
    %c0_21 = arith.constant 0 : index
    %c0_22 = arith.constant 0 : index
    %41 = vector.load %arg5[%c4, %c0_20, %c0_21, %c0_22] : memref<36x8x1x1xf32, #tpu.memory_space<vmem>>, vector<1x8x1x1xf32>
    %42 = vector.shape_cast %41 : vector<1x8x1x1xf32> to vector<8x1x1xf32>
    %43 = vector.extract_strided_slice %40 {offsets = [0, 0, 0], sizes = [1, 2, 4], strides = [1, 1, 1]} : vector<4x2x4xf32> to vector<1x2x4xf32>
    %44 = vector.shape_cast %43 : vector<1x2x4xf32> to vector<2x4xf32>
    %45 = vector.shape_cast %44 : vector<2x4xf32> to vector<1x2x4xf32>
    %46 = vector.broadcast %42 : vector<8x1x1xf32> to vector<8x2x4xf32>
    %47 = vector.broadcast %45 : vector<1x2x4xf32> to vector<8x2x4xf32>
    %48 = arith.mulf %46, %47 : vector<8x2x4xf32>
    %49 = arith.addf %38, %48 : vector<8x2x4xf32>
    %c5 = arith.constant 5 : index
    %c0_23 = arith.constant 0 : index
    %c0_24 = arith.constant 0 : index
    %c0_25 = arith.constant 0 : index
    %50 = vector.load %arg5[%c5, %c0_23, %c0_24, %c0_25] : memref<36x8x1x1xf32, #tpu.memory_space<vmem>>, vector<1x8x1x1xf32>
    %51 = vector.shape_cast %50 : vector<1x8x1x1xf32> to vector<8x1x1xf32>
    %52 = vector.extract_strided_slice %40 {offsets = [1, 0, 0], sizes = [1, 2, 4], strides = [1, 1, 1]} : vector<4x2x4xf32> to vector<1x2x4xf32>
    %53 = vector.shape_cast %52 : vector<1x2x4xf32> to vector<2x4xf32>
    %54 = vector.shape_cast %53 : vector<2x4xf32> to vector<1x2x4xf32>
    %55 = vector.broadcast %51 : vector<8x1x1xf32> to vector<8x2x4xf32>
    %56 = vector.broadcast %54 : vector<1x2x4xf32> to vector<8x2x4xf32>
    %57 = arith.mulf %55, %56 : vector<8x2x4xf32>
    %58 = arith.addf %49, %57 : vector<8x2x4xf32>
    %c6 = arith.constant 6 : index
    %c0_26 = arith.constant 0 : index
    %c0_27 = arith.constant 0 : index
    %c0_28 = arith.constant 0 : index
    %59 = vector.load %arg5[%c6, %c0_26, %c0_27, %c0_28] : memref<36x8x1x1xf32, #tpu.memory_space<vmem>>, vector<1x8x1x1xf32>
    %60 = vector.shape_cast %59 : vector<1x8x1x1xf32> to vector<8x1x1xf32>
    %61 = vector.extract_strided_slice %40 {offsets = [2, 0, 0], sizes = [1, 2, 4], strides = [1, 1, 1]} : vector<4x2x4xf32> to vector<1x2x4xf32>
    %62 = vector.shape_cast %61 : vector<1x2x4xf32> to vector<2x4xf32>
    %63 = vector.shape_cast %62 : vector<2x4xf32> to vector<1x2x4xf32>
    %64 = vector.broadcast %60 : vector<8x1x1xf32> to vector<8x2x4xf32>
    %65 = vector.broadcast %63 : vector<1x2x4xf32> to vector<8x2x4xf32>
    %66 = arith.mulf %64, %65 : vector<8x2x4xf32>
    %67 = arith.addf %58, %66 : vector<8x2x4xf32>
    %c7 = arith.constant 7 : index
    %c0_29 = arith.constant 0 : index
    %c0_30 = arith.constant 0 : index
    %c0_31 = arith.constant 0 : index
    %68 = vector.load %arg5[%c7, %c0_29, %c0_30, %c0_31] : memref<36x8x1x1xf32, #tpu.memory_space<vmem>>, vector<1x8x1x1xf32>
    %69 = vector.shape_cast %68 : vector<1x8x1x1xf32> to vector<8x1x1xf32>
    %70 = vector.extract_strided_slice %40 {offsets = [3, 0, 0], sizes = [1, 2, 4], strides = [1, 1, 1]} : vector<4x2x4xf32> to vector<1x2x4xf32>
    %71 = vector.shape_cast %70 : vector<1x2x4xf32> to vector<2x4xf32>
    %72 = vector.shape_cast %71 : vector<2x4xf32> to vector<1x2x4xf32>
    %73 = vector.broadcast %69 : vector<8x1x1xf32> to vector<8x2x4xf32>
    %74 = vector.broadcast %72 : vector<1x2x4xf32> to vector<8x2x4xf32>
    %75 = arith.mulf %73, %74 : vector<8x2x4xf32>
    %76 = arith.addf %67, %75 : vector<8x2x4xf32>
    %c0_32 = arith.constant 0 : index
    %c0_33 = arith.constant 0 : index
    %c0_34 = arith.constant 0 : index
    %c1_35 = arith.constant 1 : index
    %77 = vector.load %arg1[%c0_32, %c0_33, %c0_34, %c1_35] : memref<4x1x3x5xf32, #tpu.memory_space<vmem>>, vector<4x1x2x4xf32>
    %78 = vector.shape_cast %77 : vector<4x1x2x4xf32> to vector<4x2x4xf32>
    %c8 = arith.constant 8 : index
    %c0_36 = arith.constant 0 : index
    %c0_37 = arith.constant 0 : index
    %c0_38 = arith.constant 0 : index
    %79 = vector.load %arg5[%c8, %c0_36, %c0_37, %c0_38] : memref<36x8x1x1xf32, #tpu.memory_space<vmem>>, vector<1x8x1x1xf32>
    %80 = vector.shape_cast %79 : vector<1x8x1x1xf32> to vector<8x1x1xf32>
    %81 = vector.extract_strided_slice %78 {offsets = [0, 0, 0], sizes = [1, 2, 4], strides = [1, 1, 1]} : vector<4x2x4xf32> to vector<1x2x4xf32>
    %82 = vector.shape_cast %81 : vector<1x2x4xf32> to vector<2x4xf32>
    %83 = vector.shape_cast %82 : vector<2x4xf32> to vector<1x2x4xf32>
    %84 = vector.broadcast %80 : vector<8x1x1xf32> to vector<8x2x4xf32>
    %85 = vector.broadcast %83 : vector<1x2x4xf32> to vector<8x2x4xf32>
    %86 = arith.mulf %84, %85 : vector<8x2x4xf32>
    %87 = arith.addf %76, %86 : vector<8x2x4xf32>
    %c9 = arith.constant 9 : index
    %c0_39 = arith.constant 0 : index
    %c0_40 = arith.constant 0 : index
    %c0_41 = arith.constant 0 : index
    %88 = vector.load %arg5[%c9, %c0_39, %c0_40, %c0_41] : memref<36x8x1x1xf32, #tpu.memory_space<vmem>>, vector<1x8x1x1xf32>
    %89 = vector.shape_cast %88 : vector<1x8x1x1xf32> to vector<8x1x1xf32>
    %90 = vector.extract_strided_slice %78 {offsets = [1, 0, 0], sizes = [1, 2, 4], strides = [1, 1, 1]} : vector<4x2x4xf32> to vector<1x2x4xf32>
    %91 = vector.shape_cast %90 : vector<1x2x4xf32> to vector<2x4xf32>
    %92 = vector.shape_cast %91 : vector<2x4xf32> to vector<1x2x4xf32>
    %93 = vector.broadcast %89 : vector<8x1x1xf32> to vector<8x2x4xf32>
    %94 = vector.broadcast %92 : vector<1x2x4xf32> to vector<8x2x4xf32>
    %95 = arith.mulf %93, %94 : vector<8x2x4xf32>
    %96 = arith.addf %87, %95 : vector<8x2x4xf32>
    %c10 = arith.constant 10 : index
    %c0_42 = arith.constant 0 : index
    %c0_43 = arith.constant 0 : index
    %c0_44 = arith.constant 0 : index
    %97 = vector.load %arg5[%c10, %c0_42, %c0_43, %c0_44] : memref<36x8x1x1xf32, #tpu.memory_space<vmem>>, vector<1x8x1x1xf32>
    %98 = vector.shape_cast %97 : vector<1x8x1x1xf32> to vector<8x1x1xf32>
    %99 = vector.extract_strided_slice %78 {offsets = [2, 0, 0], sizes = [1, 2, 4], strides = [1, 1, 1]} : vector<4x2x4xf32> to vector<1x2x4xf32>
    %100 = vector.shape_cast %99 : vector<1x2x4xf32> to vector<2x4xf32>
    %101 = vector.shape_cast %100 : vector<2x4xf32> to vector<1x2x4xf32>
    %102 = vector.broadcast %98 : vector<8x1x1xf32> to vector<8x2x4xf32>
    %103 = vector.broadcast %101 : vector<1x2x4xf32> to vector<8x2x4xf32>
    %104 = arith.mulf %102, %103 : vector<8x2x4xf32>
    %105 = arith.addf %96, %104 : vector<8x2x4xf32>
    %c11 = arith.constant 11 : index
    %c0_45 = arith.constant 0 : index
    %c0_46 = arith.constant 0 : index
    %c0_47 = arith.constant 0 : index
    %106 = vector.load %arg5[%c11, %c0_45, %c0_46, %c0_47] : memref<36x8x1x1xf32, #tpu.memory_space<vmem>>, vector<1x8x1x1xf32>
    %107 = vector.shape_cast %106 : vector<1x8x1x1xf32> to vector<8x1x1xf32>
    %108 = vector.extract_strided_slice %78 {offsets = [3, 0, 0], sizes = [1, 2, 4], strides = [1, 1, 1]} : vector<4x2x4xf32> to vector<1x2x4xf32>
    %109 = vector.shape_cast %108 : vector<1x2x4xf32> to vector<2x4xf32>
    %110 = vector.shape_cast %109 : vector<2x4xf32> to vector<1x2x4xf32>
    %111 = vector.broadcast %107 : vector<8x1x1xf32> to vector<8x2x4xf32>
    %112 = vector.broadcast %110 : vector<1x2x4xf32> to vector<8x2x4xf32>
    %113 = arith.mulf %111, %112 : vector<8x2x4xf32>
    %114 = arith.addf %105, %113 : vector<8x2x4xf32>
    %c0_48 = arith.constant 0 : index
    %c0_49 = arith.constant 0 : index
    %c0_50 = arith.constant 0 : index
    %c0_51 = arith.constant 0 : index
    %115 = vector.load %arg3[%c0_48, %c0_49, %c0_50, %c0_51] : memref<4x1x3x5xf32, #tpu.memory_space<vmem>>, vector<4x1x2x4xf32>
    %116 = vector.shape_cast %115 : vector<4x1x2x4xf32> to vector<4x2x4xf32>
    %c12 = arith.constant 12 : index
    %c0_52 = arith.constant 0 : index
    %c0_53 = arith.constant 0 : index
    %c0_54 = arith.constant 0 : index
    %117 = vector.load %arg5[%c12, %c0_52, %c0_53, %c0_54] : memref<36x8x1x1xf32, #tpu.memory_space<vmem>>, vector<1x8x1x1xf32>
    %118 = vector.shape_cast %117 : vector<1x8x1x1xf32> to vector<8x1x1xf32>
    %119 = vector.extract_strided_slice %116 {offsets = [0, 0, 0], sizes = [1, 2, 4], strides = [1, 1, 1]} : vector<4x2x4xf32> to vector<1x2x4xf32>
    %120 = vector.shape_cast %119 : vector<1x2x4xf32> to vector<2x4xf32>
    %121 = vector.shape_cast %120 : vector<2x4xf32> to vector<1x2x4xf32>
    %122 = vector.broadcast %118 : vector<8x1x1xf32> to vector<8x2x4xf32>
    %123 = vector.broadcast %121 : vector<1x2x4xf32> to vector<8x2x4xf32>
    %124 = arith.mulf %122, %123 : vector<8x2x4xf32>
    %125 = arith.addf %114, %124 : vector<8x2x4xf32>
    %c13 = arith.constant 13 : index
    %c0_55 = arith.constant 0 : index
    %c0_56 = arith.constant 0 : index
    %c0_57 = arith.constant 0 : index
    %126 = vector.load %arg5[%c13, %c0_55, %c0_56, %c0_57] : memref<36x8x1x1xf32, #tpu.memory_space<vmem>>, vector<1x8x1x1xf32>
    %127 = vector.shape_cast %126 : vector<1x8x1x1xf32> to vector<8x1x1xf32>
    %128 = vector.extract_strided_slice %116 {offsets = [1, 0, 0], sizes = [1, 2, 4], strides = [1, 1, 1]} : vector<4x2x4xf32> to vector<1x2x4xf32>
    %129 = vector.shape_cast %128 : vector<1x2x4xf32> to vector<2x4xf32>
    %130 = vector.shape_cast %129 : vector<2x4xf32> to vector<1x2x4xf32>
    %131 = vector.broadcast %127 : vector<8x1x1xf32> to vector<8x2x4xf32>
    %132 = vector.broadcast %130 : vector<1x2x4xf32> to vector<8x2x4xf32>
    %133 = arith.mulf %131, %132 : vector<8x2x4xf32>
    %134 = arith.addf %125, %133 : vector<8x2x4xf32>
    %c14 = arith.constant 14 : index
    %c0_58 = arith.constant 0 : index
    %c0_59 = arith.constant 0 : index
    %c0_60 = arith.constant 0 : index
    %135 = vector.load %arg5[%c14, %c0_58, %c0_59, %c0_60] : memref<36x8x1x1xf32, #tpu.memory_space<vmem>>, vector<1x8x1x1xf32>
    %136 = vector.shape_cast %135 : vector<1x8x1x1xf32> to vector<8x1x1xf32>
    %137 = vector.extract_strided_slice %116 {offsets = [2, 0, 0], sizes = [1, 2, 4], strides = [1, 1, 1]} : vector<4x2x4xf32> to vector<1x2x4xf32>
    %138 = vector.shape_cast %137 : vector<1x2x4xf32> to vector<2x4xf32>
    %139 = vector.shape_cast %138 : vector<2x4xf32> to vector<1x2x4xf32>
    %140 = vector.broadcast %136 : vector<8x1x1xf32> to vector<8x2x4xf32>
    %141 = vector.broadcast %139 : vector<1x2x4xf32> to vector<8x2x4xf32>
    %142 = arith.mulf %140, %141 : vector<8x2x4xf32>
    %143 = arith.addf %134, %142 : vector<8x2x4xf32>
    %c15 = arith.constant 15 : index
    %c0_61 = arith.constant 0 : index
    %c0_62 = arith.constant 0 : index
    %c0_63 = arith.constant 0 : index
    %144 = vector.load %arg5[%c15, %c0_61, %c0_62, %c0_63] : memref<36x8x1x1xf32, #tpu.memory_space<vmem>>, vector<1x8x1x1xf32>
    %145 = vector.shape_cast %144 : vector<1x8x1x1xf32> to vector<8x1x1xf32>
    %146 = vector.extract_strided_slice %116 {offsets = [3, 0, 0], sizes = [1, 2, 4], strides = [1, 1, 1]} : vector<4x2x4xf32> to vector<1x2x4xf32>
    %147 = vector.shape_cast %146 : vector<1x2x4xf32> to vector<2x4xf32>
    %148 = vector.shape_cast %147 : vector<2x4xf32> to vector<1x2x4xf32>
    %149 = vector.broadcast %145 : vector<8x1x1xf32> to vector<8x2x4xf32>
    %150 = vector.broadcast %148 : vector<1x2x4xf32> to vector<8x2x4xf32>
    %151 = arith.mulf %149, %150 : vector<8x2x4xf32>
    %152 = arith.addf %143, %151 : vector<8x2x4xf32>
    %c0_64 = arith.constant 0 : index
    %c0_65 = arith.constant 0 : index
    %c0_66 = arith.constant 0 : index
    %c0_67 = arith.constant 0 : index
    %153 = vector.load %arg4[%c0_64, %c0_65, %c0_66, %c0_67] : memref<4x1x3x5xf32, #tpu.memory_space<vmem>>, vector<4x1x2x4xf32>
    %154 = vector.shape_cast %153 : vector<4x1x2x4xf32> to vector<4x2x4xf32>
    %c16 = arith.constant 16 : index
    %c0_68 = arith.constant 0 : index
    %c0_69 = arith.constant 0 : index
    %c0_70 = arith.constant 0 : index
    %155 = vector.load %arg5[%c16, %c0_68, %c0_69, %c0_70] : memref<36x8x1x1xf32, #tpu.memory_space<vmem>>, vector<1x8x1x1xf32>
    %156 = vector.shape_cast %155 : vector<1x8x1x1xf32> to vector<8x1x1xf32>
    %157 = vector.extract_strided_slice %154 {offsets = [0, 0, 0], sizes = [1, 2, 4], strides = [1, 1, 1]} : vector<4x2x4xf32> to vector<1x2x4xf32>
    %158 = vector.shape_cast %157 : vector<1x2x4xf32> to vector<2x4xf32>
    %159 = vector.shape_cast %158 : vector<2x4xf32> to vector<1x2x4xf32>
    %160 = vector.broadcast %156 : vector<8x1x1xf32> to vector<8x2x4xf32>
    %161 = vector.broadcast %159 : vector<1x2x4xf32> to vector<8x2x4xf32>
    %162 = arith.mulf %160, %161 : vector<8x2x4xf32>
    %163 = arith.addf %152, %162 : vector<8x2x4xf32>
    %c17 = arith.constant 17 : index
    %c0_71 = arith.constant 0 : index
    %c0_72 = arith.constant 0 : index
    %c0_73 = arith.constant 0 : index
    %164 = vector.load %arg5[%c17, %c0_71, %c0_72, %c0_73] : memref<36x8x1x1xf32, #tpu.memory_space<vmem>>, vector<1x8x1x1xf32>
    %165 = vector.shape_cast %164 : vector<1x8x1x1xf32> to vector<8x1x1xf32>
    %166 = vector.extract_strided_slice %154 {offsets = [1, 0, 0], sizes = [1, 2, 4], strides = [1, 1, 1]} : vector<4x2x4xf32> to vector<1x2x4xf32>
    %167 = vector.shape_cast %166 : vector<1x2x4xf32> to vector<2x4xf32>
    %168 = vector.shape_cast %167 : vector<2x4xf32> to vector<1x2x4xf32>
    %169 = vector.broadcast %165 : vector<8x1x1xf32> to vector<8x2x4xf32>
    %170 = vector.broadcast %168 : vector<1x2x4xf32> to vector<8x2x4xf32>
    %171 = arith.mulf %169, %170 : vector<8x2x4xf32>
    %172 = arith.addf %163, %171 : vector<8x2x4xf32>
    %c18 = arith.constant 18 : index
    %c0_74 = arith.constant 0 : index
    %c0_75 = arith.constant 0 : index
    %c0_76 = arith.constant 0 : index
    %173 = vector.load %arg5[%c18, %c0_74, %c0_75, %c0_76] : memref<36x8x1x1xf32, #tpu.memory_space<vmem>>, vector<1x8x1x1xf32>
    %174 = vector.shape_cast %173 : vector<1x8x1x1xf32> to vector<8x1x1xf32>
    %175 = vector.extract_strided_slice %154 {offsets = [2, 0, 0], sizes = [1, 2, 4], strides = [1, 1, 1]} : vector<4x2x4xf32> to vector<1x2x4xf32>
    %176 = vector.shape_cast %175 : vector<1x2x4xf32> to vector<2x4xf32>
    %177 = vector.shape_cast %176 : vector<2x4xf32> to vector<1x2x4xf32>
    %178 = vector.broadcast %174 : vector<8x1x1xf32> to vector<8x2x4xf32>
    %179 = vector.broadcast %177 : vector<1x2x4xf32> to vector<8x2x4xf32>
    %180 = arith.mulf %178, %179 : vector<8x2x4xf32>
    %181 = arith.addf %172, %180 : vector<8x2x4xf32>
    %c19 = arith.constant 19 : index
    %c0_77 = arith.constant 0 : index
    %c0_78 = arith.constant 0 : index
    %c0_79 = arith.constant 0 : index
    %182 = vector.load %arg5[%c19, %c0_77, %c0_78, %c0_79] : memref<36x8x1x1xf32, #tpu.memory_space<vmem>>, vector<1x8x1x1xf32>
    %183 = vector.shape_cast %182 : vector<1x8x1x1xf32> to vector<8x1x1xf32>
    %184 = vector.extract_strided_slice %154 {offsets = [3, 0, 0], sizes = [1, 2, 4], strides = [1, 1, 1]} : vector<4x2x4xf32> to vector<1x2x4xf32>
    %185 = vector.shape_cast %184 : vector<1x2x4xf32> to vector<2x4xf32>
    %186 = vector.shape_cast %185 : vector<2x4xf32> to vector<1x2x4xf32>
    %187 = vector.broadcast %183 : vector<8x1x1xf32> to vector<8x2x4xf32>
    %188 = vector.broadcast %186 : vector<1x2x4xf32> to vector<8x2x4xf32>
    %189 = arith.mulf %187, %188 : vector<8x2x4xf32>
    %190 = arith.addf %181, %189 : vector<8x2x4xf32>
    %c0_80 = arith.constant 0 : index
    %c0_81 = arith.constant 0 : index
    %c0_82 = arith.constant 0 : index
    %c1_83 = arith.constant 1 : index
    %191 = vector.load %arg3[%c0_80, %c0_81, %c0_82, %c1_83] : memref<4x1x3x5xf32, #tpu.memory_space<vmem>>, vector<4x1x2x4xf32>
    %192 = vector.shape_cast %191 : vector<4x1x2x4xf32> to vector<4x2x4xf32>
    %c20 = arith.constant 20 : index
    %c0_84 = arith.constant 0 : index
    %c0_85 = arith.constant 0 : index
    %c0_86 = arith.constant 0 : index
    %193 = vector.load %arg5[%c20, %c0_84, %c0_85, %c0_86] : memref<36x8x1x1xf32, #tpu.memory_space<vmem>>, vector<1x8x1x1xf32>
    %194 = vector.shape_cast %193 : vector<1x8x1x1xf32> to vector<8x1x1xf32>
    %195 = vector.extract_strided_slice %192 {offsets = [0, 0, 0], sizes = [1, 2, 4], strides = [1, 1, 1]} : vector<4x2x4xf32> to vector<1x2x4xf32>
    %196 = vector.shape_cast %195 : vector<1x2x4xf32> to vector<2x4xf32>
    %197 = vector.shape_cast %196 : vector<2x4xf32> to vector<1x2x4xf32>
    %198 = vector.broadcast %194 : vector<8x1x1xf32> to vector<8x2x4xf32>
    %199 = vector.broadcast %197 : vector<1x2x4xf32> to vector<8x2x4xf32>
    %200 = arith.mulf %198, %199 : vector<8x2x4xf32>
    %201 = arith.addf %190, %200 : vector<8x2x4xf32>
    %c21 = arith.constant 21 : index
    %c0_87 = arith.constant 0 : index
    %c0_88 = arith.constant 0 : index
    %c0_89 = arith.constant 0 : index
    %202 = vector.load %arg5[%c21, %c0_87, %c0_88, %c0_89] : memref<36x8x1x1xf32, #tpu.memory_space<vmem>>, vector<1x8x1x1xf32>
    %203 = vector.shape_cast %202 : vector<1x8x1x1xf32> to vector<8x1x1xf32>
    %204 = vector.extract_strided_slice %192 {offsets = [1, 0, 0], sizes = [1, 2, 4], strides = [1, 1, 1]} : vector<4x2x4xf32> to vector<1x2x4xf32>
    %205 = vector.shape_cast %204 : vector<1x2x4xf32> to vector<2x4xf32>
    %206 = vector.shape_cast %205 : vector<2x4xf32> to vector<1x2x4xf32>
    %207 = vector.broadcast %203 : vector<8x1x1xf32> to vector<8x2x4xf32>
    %208 = vector.broadcast %206 : vector<1x2x4xf32> to vector<8x2x4xf32>
    %209 = arith.mulf %207, %208 : vector<8x2x4xf32>
    %210 = arith.addf %201, %209 : vector<8x2x4xf32>
    %c22 = arith.constant 22 : index
    %c0_90 = arith.constant 0 : index
    %c0_91 = arith.constant 0 : index
    %c0_92 = arith.constant 0 : index
    %211 = vector.load %arg5[%c22, %c0_90, %c0_91, %c0_92] : memref<36x8x1x1xf32, #tpu.memory_space<vmem>>, vector<1x8x1x1xf32>
    %212 = vector.shape_cast %211 : vector<1x8x1x1xf32> to vector<8x1x1xf32>
    %213 = vector.extract_strided_slice %192 {offsets = [2, 0, 0], sizes = [1, 2, 4], strides = [1, 1, 1]} : vector<4x2x4xf32> to vector<1x2x4xf32>
    %214 = vector.shape_cast %213 : vector<1x2x4xf32> to vector<2x4xf32>
    %215 = vector.shape_cast %214 : vector<2x4xf32> to vector<1x2x4xf32>
    %216 = vector.broadcast %212 : vector<8x1x1xf32> to vector<8x2x4xf32>
    %217 = vector.broadcast %215 : vector<1x2x4xf32> to vector<8x2x4xf32>
    %218 = arith.mulf %216, %217 : vector<8x2x4xf32>
    %219 = arith.addf %210, %218 : vector<8x2x4xf32>
    %c23 = arith.constant 23 : index
    %c0_93 = arith.constant 0 : index
    %c0_94 = arith.constant 0 : index
    %c0_95 = arith.constant 0 : index
    %220 = vector.load %arg5[%c23, %c0_93, %c0_94, %c0_95] : memref<36x8x1x1xf32, #tpu.memory_space<vmem>>, vector<1x8x1x1xf32>
    %221 = vector.shape_cast %220 : vector<1x8x1x1xf32> to vector<8x1x1xf32>
    %222 = vector.extract_strided_slice %192 {offsets = [3, 0, 0], sizes = [1, 2, 4], strides = [1, 1, 1]} : vector<4x2x4xf32> to vector<1x2x4xf32>
    %223 = vector.shape_cast %222 : vector<1x2x4xf32> to vector<2x4xf32>
    %224 = vector.shape_cast %223 : vector<2x4xf32> to vector<1x2x4xf32>
    %225 = vector.broadcast %221 : vector<8x1x1xf32> to vector<8x2x4xf32>
    %226 = vector.broadcast %224 : vector<1x2x4xf32> to vector<8x2x4xf32>
    %227 = arith.mulf %225, %226 : vector<8x2x4xf32>
    %228 = arith.addf %219, %227 : vector<8x2x4xf32>
    %c0_96 = arith.constant 0 : index
    %c0_97 = arith.constant 0 : index
    %c1_98 = arith.constant 1 : index
    %c0_99 = arith.constant 0 : index
    %229 = vector.load %arg1[%c0_96, %c0_97, %c1_98, %c0_99] : memref<4x1x3x5xf32, #tpu.memory_space<vmem>>, vector<4x1x2x4xf32>
    %230 = vector.shape_cast %229 : vector<4x1x2x4xf32> to vector<4x2x4xf32>
    %c24 = arith.constant 24 : index
    %c0_100 = arith.constant 0 : index
    %c0_101 = arith.constant 0 : index
    %c0_102 = arith.constant 0 : index
    %231 = vector.load %arg5[%c24, %c0_100, %c0_101, %c0_102] : memref<36x8x1x1xf32, #tpu.memory_space<vmem>>, vector<1x8x1x1xf32>
    %232 = vector.shape_cast %231 : vector<1x8x1x1xf32> to vector<8x1x1xf32>
    %233 = vector.extract_strided_slice %230 {offsets = [0, 0, 0], sizes = [1, 2, 4], strides = [1, 1, 1]} : vector<4x2x4xf32> to vector<1x2x4xf32>
    %234 = vector.shape_cast %233 : vector<1x2x4xf32> to vector<2x4xf32>
    %235 = vector.shape_cast %234 : vector<2x4xf32> to vector<1x2x4xf32>
    %236 = vector.broadcast %232 : vector<8x1x1xf32> to vector<8x2x4xf32>
    %237 = vector.broadcast %235 : vector<1x2x4xf32> to vector<8x2x4xf32>
    %238 = arith.mulf %236, %237 : vector<8x2x4xf32>
    %239 = arith.addf %228, %238 : vector<8x2x4xf32>
    %c25 = arith.constant 25 : index
    %c0_103 = arith.constant 0 : index
    %c0_104 = arith.constant 0 : index
    %c0_105 = arith.constant 0 : index
    %240 = vector.load %arg5[%c25, %c0_103, %c0_104, %c0_105] : memref<36x8x1x1xf32, #tpu.memory_space<vmem>>, vector<1x8x1x1xf32>
    %241 = vector.shape_cast %240 : vector<1x8x1x1xf32> to vector<8x1x1xf32>
    %242 = vector.extract_strided_slice %230 {offsets = [1, 0, 0], sizes = [1, 2, 4], strides = [1, 1, 1]} : vector<4x2x4xf32> to vector<1x2x4xf32>
    %243 = vector.shape_cast %242 : vector<1x2x4xf32> to vector<2x4xf32>
    %244 = vector.shape_cast %243 : vector<2x4xf32> to vector<1x2x4xf32>
    %245 = vector.broadcast %241 : vector<8x1x1xf32> to vector<8x2x4xf32>
    %246 = vector.broadcast %244 : vector<1x2x4xf32> to vector<8x2x4xf32>
    %247 = arith.mulf %245, %246 : vector<8x2x4xf32>
    %248 = arith.addf %239, %247 : vector<8x2x4xf32>
    %c26 = arith.constant 26 : index
    %c0_106 = arith.constant 0 : index
    %c0_107 = arith.constant 0 : index
    %c0_108 = arith.constant 0 : index
    %249 = vector.load %arg5[%c26, %c0_106, %c0_107, %c0_108] : memref<36x8x1x1xf32, #tpu.memory_space<vmem>>, vector<1x8x1x1xf32>
    %250 = vector.shape_cast %249 : vector<1x8x1x1xf32> to vector<8x1x1xf32>
    %251 = vector.extract_strided_slice %230 {offsets = [2, 0, 0], sizes = [1, 2, 4], strides = [1, 1, 1]} : vector<4x2x4xf32> to vector<1x2x4xf32>
    %252 = vector.shape_cast %251 : vector<1x2x4xf32> to vector<2x4xf32>
    %253 = vector.shape_cast %252 : vector<2x4xf32> to vector<1x2x4xf32>
    %254 = vector.broadcast %250 : vector<8x1x1xf32> to vector<8x2x4xf32>
    %255 = vector.broadcast %253 : vector<1x2x4xf32> to vector<8x2x4xf32>
    %256 = arith.mulf %254, %255 : vector<8x2x4xf32>
    %257 = arith.addf %248, %256 : vector<8x2x4xf32>
    %c27 = arith.constant 27 : index
    %c0_109 = arith.constant 0 : index
    %c0_110 = arith.constant 0 : index
    %c0_111 = arith.constant 0 : index
    %258 = vector.load %arg5[%c27, %c0_109, %c0_110, %c0_111] : memref<36x8x1x1xf32, #tpu.memory_space<vmem>>, vector<1x8x1x1xf32>
    %259 = vector.shape_cast %258 : vector<1x8x1x1xf32> to vector<8x1x1xf32>
    %260 = vector.extract_strided_slice %230 {offsets = [3, 0, 0], sizes = [1, 2, 4], strides = [1, 1, 1]} : vector<4x2x4xf32> to vector<1x2x4xf32>
    %261 = vector.shape_cast %260 : vector<1x2x4xf32> to vector<2x4xf32>
    %262 = vector.shape_cast %261 : vector<2x4xf32> to vector<1x2x4xf32>
    %263 = vector.broadcast %259 : vector<8x1x1xf32> to vector<8x2x4xf32>
    %264 = vector.broadcast %262 : vector<1x2x4xf32> to vector<8x2x4xf32>
    %265 = arith.mulf %263, %264 : vector<8x2x4xf32>
    %266 = arith.addf %257, %265 : vector<8x2x4xf32>
    %c0_112 = arith.constant 0 : index
    %c0_113 = arith.constant 0 : index
    %c1_114 = arith.constant 1 : index
    %c0_115 = arith.constant 0 : index
    %267 = vector.load %arg2[%c0_112, %c0_113, %c1_114, %c0_115] : memref<4x1x3x5xf32, #tpu.memory_space<vmem>>, vector<4x1x2x4xf32>
    %268 = vector.shape_cast %267 : vector<4x1x2x4xf32> to vector<4x2x4xf32>
    %c28 = arith.constant 28 : index
    %c0_116 = arith.constant 0 : index
    %c0_117 = arith.constant 0 : index
    %c0_118 = arith.constant 0 : index
    %269 = vector.load %arg5[%c28, %c0_116, %c0_117, %c0_118] : memref<36x8x1x1xf32, #tpu.memory_space<vmem>>, vector<1x8x1x1xf32>
    %270 = vector.shape_cast %269 : vector<1x8x1x1xf32> to vector<8x1x1xf32>
    %271 = vector.extract_strided_slice %268 {offsets = [0, 0, 0], sizes = [1, 2, 4], strides = [1, 1, 1]} : vector<4x2x4xf32> to vector<1x2x4xf32>
    %272 = vector.shape_cast %271 : vector<1x2x4xf32> to vector<2x4xf32>
    %273 = vector.shape_cast %272 : vector<2x4xf32> to vector<1x2x4xf32>
    %274 = vector.broadcast %270 : vector<8x1x1xf32> to vector<8x2x4xf32>
    %275 = vector.broadcast %273 : vector<1x2x4xf32> to vector<8x2x4xf32>
    %276 = arith.mulf %274, %275 : vector<8x2x4xf32>
    %277 = arith.addf %266, %276 : vector<8x2x4xf32>
    %c29 = arith.constant 29 : index
    %c0_119 = arith.constant 0 : index
    %c0_120 = arith.constant 0 : index
    %c0_121 = arith.constant 0 : index
    %278 = vector.load %arg5[%c29, %c0_119, %c0_120, %c0_121] : memref<36x8x1x1xf32, #tpu.memory_space<vmem>>, vector<1x8x1x1xf32>
    %279 = vector.shape_cast %278 : vector<1x8x1x1xf32> to vector<8x1x1xf32>
    %280 = vector.extract_strided_slice %268 {offsets = [1, 0, 0], sizes = [1, 2, 4], strides = [1, 1, 1]} : vector<4x2x4xf32> to vector<1x2x4xf32>
    %281 = vector.shape_cast %280 : vector<1x2x4xf32> to vector<2x4xf32>
    %282 = vector.shape_cast %281 : vector<2x4xf32> to vector<1x2x4xf32>
    %283 = vector.broadcast %279 : vector<8x1x1xf32> to vector<8x2x4xf32>
    %284 = vector.broadcast %282 : vector<1x2x4xf32> to vector<8x2x4xf32>
    %285 = arith.mulf %283, %284 : vector<8x2x4xf32>
    %286 = arith.addf %277, %285 : vector<8x2x4xf32>
    %c30 = arith.constant 30 : index
    %c0_122 = arith.constant 0 : index
    %c0_123 = arith.constant 0 : index
    %c0_124 = arith.constant 0 : index
    %287 = vector.load %arg5[%c30, %c0_122, %c0_123, %c0_124] : memref<36x8x1x1xf32, #tpu.memory_space<vmem>>, vector<1x8x1x1xf32>
    %288 = vector.shape_cast %287 : vector<1x8x1x1xf32> to vector<8x1x1xf32>
    %289 = vector.extract_strided_slice %268 {offsets = [2, 0, 0], sizes = [1, 2, 4], strides = [1, 1, 1]} : vector<4x2x4xf32> to vector<1x2x4xf32>
    %290 = vector.shape_cast %289 : vector<1x2x4xf32> to vector<2x4xf32>
    %291 = vector.shape_cast %290 : vector<2x4xf32> to vector<1x2x4xf32>
    %292 = vector.broadcast %288 : vector<8x1x1xf32> to vector<8x2x4xf32>
    %293 = vector.broadcast %291 : vector<1x2x4xf32> to vector<8x2x4xf32>
    %294 = arith.mulf %292, %293 : vector<8x2x4xf32>
    %295 = arith.addf %286, %294 : vector<8x2x4xf32>
    %c31 = arith.constant 31 : index
    %c0_125 = arith.constant 0 : index
    %c0_126 = arith.constant 0 : index
    %c0_127 = arith.constant 0 : index
    %296 = vector.load %arg5[%c31, %c0_125, %c0_126, %c0_127] : memref<36x8x1x1xf32, #tpu.memory_space<vmem>>, vector<1x8x1x1xf32>
    %297 = vector.shape_cast %296 : vector<1x8x1x1xf32> to vector<8x1x1xf32>
    %298 = vector.extract_strided_slice %268 {offsets = [3, 0, 0], sizes = [1, 2, 4], strides = [1, 1, 1]} : vector<4x2x4xf32> to vector<1x2x4xf32>
    %299 = vector.shape_cast %298 : vector<1x2x4xf32> to vector<2x4xf32>
    %300 = vector.shape_cast %299 : vector<2x4xf32> to vector<1x2x4xf32>
    %301 = vector.broadcast %297 : vector<8x1x1xf32> to vector<8x2x4xf32>
    %302 = vector.broadcast %300 : vector<1x2x4xf32> to vector<8x2x4xf32>
    %303 = arith.mulf %301, %302 : vector<8x2x4xf32>
    %304 = arith.addf %295, %303 : vector<8x2x4xf32>
    %c0_128 = arith.constant 0 : index
    %c0_129 = arith.constant 0 : index
    %c1_130 = arith.constant 1 : index
    %c1_131 = arith.constant 1 : index
    %305 = vector.load %arg1[%c0_128, %c0_129, %c1_130, %c1_131] : memref<4x1x3x5xf32, #tpu.memory_space<vmem>>, vector<4x1x2x4xf32>
    %306 = vector.shape_cast %305 : vector<4x1x2x4xf32> to vector<4x2x4xf32>
    %c32 = arith.constant 32 : index
    %c0_132 = arith.constant 0 : index
    %c0_133 = arith.constant 0 : index
    %c0_134 = arith.constant 0 : index
    %307 = vector.load %arg5[%c32, %c0_132, %c0_133, %c0_134] : memref<36x8x1x1xf32, #tpu.memory_space<vmem>>, vector<1x8x1x1xf32>
    %308 = vector.shape_cast %307 : vector<1x8x1x1xf32> to vector<8x1x1xf32>
    %309 = vector.extract_strided_slice %306 {offsets = [0, 0, 0], sizes = [1, 2, 4], strides = [1, 1, 1]} : vector<4x2x4xf32> to vector<1x2x4xf32>
    %310 = vector.shape_cast %309 : vector<1x2x4xf32> to vector<2x4xf32>
    %311 = vector.shape_cast %310 : vector<2x4xf32> to vector<1x2x4xf32>
    %312 = vector.broadcast %308 : vector<8x1x1xf32> to vector<8x2x4xf32>
    %313 = vector.broadcast %311 : vector<1x2x4xf32> to vector<8x2x4xf32>
    %314 = arith.mulf %312, %313 : vector<8x2x4xf32>
    %315 = arith.addf %304, %314 : vector<8x2x4xf32>
    %c33 = arith.constant 33 : index
    %c0_135 = arith.constant 0 : index
    %c0_136 = arith.constant 0 : index
    %c0_137 = arith.constant 0 : index
    %316 = vector.load %arg5[%c33, %c0_135, %c0_136, %c0_137] : memref<36x8x1x1xf32, #tpu.memory_space<vmem>>, vector<1x8x1x1xf32>
    %317 = vector.shape_cast %316 : vector<1x8x1x1xf32> to vector<8x1x1xf32>
    %318 = vector.extract_strided_slice %306 {offsets = [1, 0, 0], sizes = [1, 2, 4], strides = [1, 1, 1]} : vector<4x2x4xf32> to vector<1x2x4xf32>
    %319 = vector.shape_cast %318 : vector<1x2x4xf32> to vector<2x4xf32>
    %320 = vector.shape_cast %319 : vector<2x4xf32> to vector<1x2x4xf32>
    %321 = vector.broadcast %317 : vector<8x1x1xf32> to vector<8x2x4xf32>
    %322 = vector.broadcast %320 : vector<1x2x4xf32> to vector<8x2x4xf32>
    %323 = arith.mulf %321, %322 : vector<8x2x4xf32>
    %324 = arith.addf %315, %323 : vector<8x2x4xf32>
    %c34 = arith.constant 34 : index
    %c0_138 = arith.constant 0 : index
    %c0_139 = arith.constant 0 : index
    %c0_140 = arith.constant 0 : index
    %325 = vector.load %arg5[%c34, %c0_138, %c0_139, %c0_140] : memref<36x8x1x1xf32, #tpu.memory_space<vmem>>, vector<1x8x1x1xf32>
    %326 = vector.shape_cast %325 : vector<1x8x1x1xf32> to vector<8x1x1xf32>
    %327 = vector.extract_strided_slice %306 {offsets = [2, 0, 0], sizes = [1, 2, 4], strides = [1, 1, 1]} : vector<4x2x4xf32> to vector<1x2x4xf32>
    %328 = vector.shape_cast %327 : vector<1x2x4xf32> to vector<2x4xf32>
    %329 = vector.shape_cast %328 : vector<2x4xf32> to vector<1x2x4xf32>
    %330 = vector.broadcast %326 : vector<8x1x1xf32> to vector<8x2x4xf32>
    %331 = vector.broadcast %329 : vector<1x2x4xf32> to vector<8x2x4xf32>
    %332 = arith.mulf %330, %331 : vector<8x2x4xf32>
    %333 = arith.addf %324, %332 : vector<8x2x4xf32>
    %c35 = arith.constant 35 : index
    %c0_141 = arith.constant 0 : index
    %c0_142 = arith.constant 0 : index
    %c0_143 = arith.constant 0 : index
    %334 = vector.load %arg5[%c35, %c0_141, %c0_142, %c0_143] : memref<36x8x1x1xf32, #tpu.memory_space<vmem>>, vector<1x8x1x1xf32>
    %335 = vector.shape_cast %334 : vector<1x8x1x1xf32> to vector<8x1x1xf32>
    %336 = vector.extract_strided_slice %306 {offsets = [3, 0, 0], sizes = [1, 2, 4], strides = [1, 1, 1]} : vector<4x2x4xf32> to vector<1x2x4xf32>
    %337 = vector.shape_cast %336 : vector<1x2x4xf32> to vector<2x4xf32>
    %338 = vector.shape_cast %337 : vector<2x4xf32> to vector<1x2x4xf32>
    %339 = vector.broadcast %335 : vector<8x1x1xf32> to vector<8x2x4xf32>
    %340 = vector.broadcast %338 : vector<1x2x4xf32> to vector<8x2x4xf32>
    %341 = arith.mulf %339, %340 : vector<8x2x4xf32>
    %342 = arith.addf %333, %341 : vector<8x2x4xf32>
    %c0_144 = arith.constant 0 : index
    %c0_145 = arith.constant 0 : index
    %c0_146 = arith.constant 0 : index
    %343 = vector.load %arg6[%c0_144, %c0_145, %c0_146] : memref<8x1x1xf32, #tpu.memory_space<vmem>>, vector<8x1x1xf32>
    %344 = vector.broadcast %343 : vector<8x1x1xf32> to vector<8x2x4xf32>
    %345 = arith.mulf %342, %344 : vector<8x2x4xf32>
    %c0_147 = arith.constant 0 : index
    %c0_148 = arith.constant 0 : index
    %c0_149 = arith.constant 0 : index
    %346 = vector.load %arg7[%c0_147, %c0_148, %c0_149] : memref<8x1x1xf32, #tpu.memory_space<vmem>>, vector<8x1x1xf32>
    %347 = vector.broadcast %346 : vector<8x1x1xf32> to vector<8x2x4xf32>
    %348 = arith.addf %345, %347 : vector<8x2x4xf32>
    %cst_150 = arith.constant 0.000000e+00 : f32
    %349 = vector.broadcast %cst_150 : f32 to vector<8x2x4xf32>
    %350 = arith.maximumf %348, %349 : vector<8x2x4xf32>
    %351 = vector.shape_cast %350 : vector<8x2x4xf32> to vector<8x1x2x4xf32>
    %c0_151 = arith.constant 0 : index
    %c0_152 = arith.constant 0 : index
    %c0_153 = arith.constant 0 : index
    %c0_154 = arith.constant 0 : index
    %352 = vector.load %arg8[%c0_151, %c0_152, %c0_153, %c0_154] : memref<8x1x2x4xf32, #tpu.memory_space<vmem>>, vector<8x1x2x4xf32>
    tpu.vector_store %arg8[%c0_151, %c0_152, %c0_153, %c0_154], %351 {strides = array<i32>} : memref<8x1x2x4xf32, #tpu.memory_space<vmem>>, vector<8x1x2x4xf32>,
    return
  }
  func.func @transform_0(%arg0: i32) -> (i32, i32, i32, i32) {
    %c0_i32 = arith.constant 0 : i32
    %c0_i32_0 = arith.constant 0 : i32
    %c0_i32_1 = arith.constant 0 : i32
    %c0_i32_2 = arith.constant 0 : i32
    return %c0_i32, %arg0, %c0_i32_0, %c0_i32_1 : i32, i32, i32, i32
  }
  func.func @transform_1(%arg0: i32) -> (i32, i32, i32, i32) {
    %c0_i32 = arith.constant 0 : i32
    %c0_i32_0 = arith.constant 0 : i32
    %c0_i32_1 = arith.constant 0 : i32
    %c0_i32_2 = arith.constant 0 : i32
    return %c0_i32, %arg0, %c0_i32_0, %c0_i32_1 : i32, i32, i32, i32
  }
  func.func @transform_2(%arg0: i32) -> (i32, i32, i32, i32) {
    %c0_i32 = arith.constant 0 : i32
    %c0_i32_0 = arith.constant 0 : i32
    %c0_i32_1 = arith.constant 0 : i32
    %c0_i32_2 = arith.constant 0 : i32
    return %c0_i32, %arg0, %c0_i32_0, %c0_i32_1 : i32, i32, i32, i32
  }
  func.func @transform_3(%arg0: i32) -> (i32, i32, i32, i32) {
    %c0_i32 = arith.constant 0 : i32
    %c0_i32_0 = arith.constant 0 : i32
    %c0_i32_1 = arith.constant 0 : i32
    %c0_i32_2 = arith.constant 0 : i32
    return %c0_i32, %arg0, %c0_i32_0, %c0_i32_1 : i32, i32, i32, i32
  }
  func.func @transform_4(%arg0: i32) -> (i32, i32, i32, i32) {
    %c0_i32 = arith.constant 0 : i32
    %c0_i32_0 = arith.constant 0 : i32
    %c0_i32_1 = arith.constant 0 : i32
    %c0_i32_2 = arith.constant 0 : i32
    %c0_i32_3 = arith.constant 0 : i32
    return %c0_i32, %c0_i32_0, %c0_i32_1, %c0_i32_2 : i32, i32, i32, i32
  }
  func.func @transform_5(%arg0: i32) -> (i32, i32, i32) {
    %c0_i32 = arith.constant 0 : i32
    %c0_i32_0 = arith.constant 0 : i32
    %c0_i32_1 = arith.constant 0 : i32
    %c0_i32_2 = arith.constant 0 : i32
    return %c0_i32, %c0_i32_0, %c0_i32_1 : i32, i32, i32
  }
  func.func @transform_6(%arg0: i32) -> (i32, i32, i32) {
    %c0_i32 = arith.constant 0 : i32
    %c0_i32_0 = arith.constant 0 : i32
    %c0_i32_1 = arith.constant 0 : i32
    %c0_i32_2 = arith.constant 0 : i32
    return %c0_i32, %c0_i32_0, %c0_i32_1 : i32, i32, i32
  }
  func.func @transform_7(%arg0: i32) -> (i32, i32, i32, i32) {
    %c0_i32 = arith.constant 0 : i32
    %c0_i32_0 = arith.constant 0 : i32
    %c0_i32_1 = arith.constant 0 : i32
    %c0_i32_2 = arith.constant 0 : i32
    return %c0_i32, %arg0, %c0_i32_0, %c0_i32_1 : i32, i32, i32, i32
  }
}

module attributes {stable_mosaic.version = 11 : i64} {
  func.func @_gi_projection_kernel(%arg0: i32, %arg1: memref<8x2x2x4xf32, #tpu.memory_space<vmem>>, %arg2: memref<8x4x384xf32, #tpu.memory_space<vmem>>, %arg3: memref<1x384xf32, #tpu.memory_space<vmem>>, %arg4: memref<2x2x384xf32, #tpu.memory_space<vmem>>) attributes {dimension_semantics = [#tpu.dimension_semantics<arbitrary>], iteration_bounds = array<i64: 1>, scalar_prefetch = 0 : i64, scratch_operands = 0 : i64, tpu.core_type = #tpu.core_type<tc>, window_params = [{pipeline_mode = #tpu.pipeline_mode<synchronous>, transform_indices = @transform_0, window_bounds = array<i64: 8, 2, 2, 4>}, {pipeline_mode = #tpu.pipeline_mode<synchronous>, transform_indices = @transform_1, window_bounds = array<i64: 8, 4, 384>}, {pipeline_mode = #tpu.pipeline_mode<synchronous>, transform_indices = @transform_2, window_bounds = array<i64: 1, 384>}, {pipeline_mode = #tpu.pipeline_mode<synchronous>, transform_indices = @transform_3, window_bounds = array<i64: 2, 2, 384>}]} {
    %c0 = arith.constant 0 : index
    %c0_0 = arith.constant 0 : index
    %0 = vector.load %arg3[%c0, %c0_0] : memref<1x384xf32, #tpu.memory_space<vmem>>, vector<1x384xf32>
    %1 = vector.shape_cast %0 : vector<1x384xf32> to vector<1x384xf32>
    %2 = vector.broadcast %1 : vector<1x384xf32> to vector<2x384xf32>
    %c0_1 = arith.constant 0 : index
    %c0_2 = arith.constant 0 : index
    %c0_3 = arith.constant 0 : index
    %c0_4 = arith.constant 0 : index
    %3 = vector.load %arg1[%c0_1, %c0_2, %c0_3, %c0_4] : memref<8x2x2x4xf32, #tpu.memory_space<vmem>>, vector<1x2x1x4xf32>
    %4 = vector.shape_cast %3 : vector<1x2x1x4xf32> to vector<2x4xf32>
    %c0_5 = arith.constant 0 : index
    %c0_6 = arith.constant 0 : index
    %c0_7 = arith.constant 0 : index
    %5 = vector.load %arg2[%c0_5, %c0_6, %c0_7] : memref<8x4x384xf32, #tpu.memory_space<vmem>>, vector<1x4x384xf32>
    %6 = vector.shape_cast %5 : vector<1x4x384xf32> to vector<4x384xf32>
    %cst = arith.constant dense<0.000000e+00> : vector<2x384xf32>
    %7 = tpu.matmul %4, %6, %cst {dimension_numbers = #tpu.dot_dimension_numbers<[1], [0], [0], [1], [0, 0, 1, 1], [], []>} : vector<2x4xf32>, vector<4x384xf32>, vector<2x384xf32> -> vector<2x384xf32>
    %8 = arith.addf %2, %7 : vector<2x384xf32>
    %c1 = arith.constant 1 : index
    %c0_8 = arith.constant 0 : index
    %c0_9 = arith.constant 0 : index
    %c0_10 = arith.constant 0 : index
    %9 = vector.load %arg1[%c1, %c0_8, %c0_9, %c0_10] : memref<8x2x2x4xf32, #tpu.memory_space<vmem>>, vector<1x2x1x4xf32>
    %10 = vector.shape_cast %9 : vector<1x2x1x4xf32> to vector<2x4xf32>
    %c1_11 = arith.constant 1 : index
    %c0_12 = arith.constant 0 : index
    %c0_13 = arith.constant 0 : index
    %11 = vector.load %arg2[%c1_11, %c0_12, %c0_13] : memref<8x4x384xf32, #tpu.memory_space<vmem>>, vector<1x4x384xf32>
    %12 = vector.shape_cast %11 : vector<1x4x384xf32> to vector<4x384xf32>
    %cst_14 = arith.constant dense<0.000000e+00> : vector<2x384xf32>
    %13 = tpu.matmul %10, %12, %cst_14 {dimension_numbers = #tpu.dot_dimension_numbers<[1], [0], [0], [1], [0, 0, 1, 1], [], []>} : vector<2x4xf32>, vector<4x384xf32>, vector<2x384xf32> -> vector<2x384xf32>
    %14 = arith.addf %8, %13 : vector<2x384xf32>
    %c2 = arith.constant 2 : index
    %c0_15 = arith.constant 0 : index
    %c0_16 = arith.constant 0 : index
    %c0_17 = arith.constant 0 : index
    %15 = vector.load %arg1[%c2, %c0_15, %c0_16, %c0_17] : memref<8x2x2x4xf32, #tpu.memory_space<vmem>>, vector<1x2x1x4xf32>
    %16 = vector.shape_cast %15 : vector<1x2x1x4xf32> to vector<2x4xf32>
    %c2_18 = arith.constant 2 : index
    %c0_19 = arith.constant 0 : index
    %c0_20 = arith.constant 0 : index
    %17 = vector.load %arg2[%c2_18, %c0_19, %c0_20] : memref<8x4x384xf32, #tpu.memory_space<vmem>>, vector<1x4x384xf32>
    %18 = vector.shape_cast %17 : vector<1x4x384xf32> to vector<4x384xf32>
    %cst_21 = arith.constant dense<0.000000e+00> : vector<2x384xf32>
    %19 = tpu.matmul %16, %18, %cst_21 {dimension_numbers = #tpu.dot_dimension_numbers<[1], [0], [0], [1], [0, 0, 1, 1], [], []>} : vector<2x4xf32>, vector<4x384xf32>, vector<2x384xf32> -> vector<2x384xf32>
    %20 = arith.addf %14, %19 : vector<2x384xf32>
    %c3 = arith.constant 3 : index
    %c0_22 = arith.constant 0 : index
    %c0_23 = arith.constant 0 : index
    %c0_24 = arith.constant 0 : index
    %21 = vector.load %arg1[%c3, %c0_22, %c0_23, %c0_24] : memref<8x2x2x4xf32, #tpu.memory_space<vmem>>, vector<1x2x1x4xf32>
    %22 = vector.shape_cast %21 : vector<1x2x1x4xf32> to vector<2x4xf32>
    %c3_25 = arith.constant 3 : index
    %c0_26 = arith.constant 0 : index
    %c0_27 = arith.constant 0 : index
    %23 = vector.load %arg2[%c3_25, %c0_26, %c0_27] : memref<8x4x384xf32, #tpu.memory_space<vmem>>, vector<1x4x384xf32>
    %24 = vector.shape_cast %23 : vector<1x4x384xf32> to vector<4x384xf32>
    %cst_28 = arith.constant dense<0.000000e+00> : vector<2x384xf32>
    %25 = tpu.matmul %22, %24, %cst_28 {dimension_numbers = #tpu.dot_dimension_numbers<[1], [0], [0], [1], [0, 0, 1, 1], [], []>} : vector<2x4xf32>, vector<4x384xf32>, vector<2x384xf32> -> vector<2x384xf32>
    %26 = arith.addf %20, %25 : vector<2x384xf32>
    %c4 = arith.constant 4 : index
    %c0_29 = arith.constant 0 : index
    %c0_30 = arith.constant 0 : index
    %c0_31 = arith.constant 0 : index
    %27 = vector.load %arg1[%c4, %c0_29, %c0_30, %c0_31] : memref<8x2x2x4xf32, #tpu.memory_space<vmem>>, vector<1x2x1x4xf32>
    %28 = vector.shape_cast %27 : vector<1x2x1x4xf32> to vector<2x4xf32>
    %c4_32 = arith.constant 4 : index
    %c0_33 = arith.constant 0 : index
    %c0_34 = arith.constant 0 : index
    %29 = vector.load %arg2[%c4_32, %c0_33, %c0_34] : memref<8x4x384xf32, #tpu.memory_space<vmem>>, vector<1x4x384xf32>
    %30 = vector.shape_cast %29 : vector<1x4x384xf32> to vector<4x384xf32>
    %cst_35 = arith.constant dense<0.000000e+00> : vector<2x384xf32>
    %31 = tpu.matmul %28, %30, %cst_35 {dimension_numbers = #tpu.dot_dimension_numbers<[1], [0], [0], [1], [0, 0, 1, 1], [], []>} : vector<2x4xf32>, vector<4x384xf32>, vector<2x384xf32> -> vector<2x384xf32>
    %32 = arith.addf %26, %31 : vector<2x384xf32>
    %c5 = arith.constant 5 : index
    %c0_36 = arith.constant 0 : index
    %c0_37 = arith.constant 0 : index
    %c0_38 = arith.constant 0 : index
    %33 = vector.load %arg1[%c5, %c0_36, %c0_37, %c0_38] : memref<8x2x2x4xf32, #tpu.memory_space<vmem>>, vector<1x2x1x4xf32>
    %34 = vector.shape_cast %33 : vector<1x2x1x4xf32> to vector<2x4xf32>
    %c5_39 = arith.constant 5 : index
    %c0_40 = arith.constant 0 : index
    %c0_41 = arith.constant 0 : index
    %35 = vector.load %arg2[%c5_39, %c0_40, %c0_41] : memref<8x4x384xf32, #tpu.memory_space<vmem>>, vector<1x4x384xf32>
    %36 = vector.shape_cast %35 : vector<1x4x384xf32> to vector<4x384xf32>
    %cst_42 = arith.constant dense<0.000000e+00> : vector<2x384xf32>
    %37 = tpu.matmul %34, %36, %cst_42 {dimension_numbers = #tpu.dot_dimension_numbers<[1], [0], [0], [1], [0, 0, 1, 1], [], []>} : vector<2x4xf32>, vector<4x384xf32>, vector<2x384xf32> -> vector<2x384xf32>
    %38 = arith.addf %32, %37 : vector<2x384xf32>
    %c6 = arith.constant 6 : index
    %c0_43 = arith.constant 0 : index
    %c0_44 = arith.constant 0 : index
    %c0_45 = arith.constant 0 : index
    %39 = vector.load %arg1[%c6, %c0_43, %c0_44, %c0_45] : memref<8x2x2x4xf32, #tpu.memory_space<vmem>>, vector<1x2x1x4xf32>
    %40 = vector.shape_cast %39 : vector<1x2x1x4xf32> to vector<2x4xf32>
    %c6_46 = arith.constant 6 : index
    %c0_47 = arith.constant 0 : index
    %c0_48 = arith.constant 0 : index
    %41 = vector.load %arg2[%c6_46, %c0_47, %c0_48] : memref<8x4x384xf32, #tpu.memory_space<vmem>>, vector<1x4x384xf32>
    %42 = vector.shape_cast %41 : vector<1x4x384xf32> to vector<4x384xf32>
    %cst_49 = arith.constant dense<0.000000e+00> : vector<2x384xf32>
    %43 = tpu.matmul %40, %42, %cst_49 {dimension_numbers = #tpu.dot_dimension_numbers<[1], [0], [0], [1], [0, 0, 1, 1], [], []>} : vector<2x4xf32>, vector<4x384xf32>, vector<2x384xf32> -> vector<2x384xf32>
    %44 = arith.addf %38, %43 : vector<2x384xf32>
    %c7 = arith.constant 7 : index
    %c0_50 = arith.constant 0 : index
    %c0_51 = arith.constant 0 : index
    %c0_52 = arith.constant 0 : index
    %45 = vector.load %arg1[%c7, %c0_50, %c0_51, %c0_52] : memref<8x2x2x4xf32, #tpu.memory_space<vmem>>, vector<1x2x1x4xf32>
    %46 = vector.shape_cast %45 : vector<1x2x1x4xf32> to vector<2x4xf32>
    %c7_53 = arith.constant 7 : index
    %c0_54 = arith.constant 0 : index
    %c0_55 = arith.constant 0 : index
    %47 = vector.load %arg2[%c7_53, %c0_54, %c0_55] : memref<8x4x384xf32, #tpu.memory_space<vmem>>, vector<1x4x384xf32>
    %48 = vector.shape_cast %47 : vector<1x4x384xf32> to vector<4x384xf32>
    %cst_56 = arith.constant dense<0.000000e+00> : vector<2x384xf32>
    %49 = tpu.matmul %46, %48, %cst_56 {dimension_numbers = #tpu.dot_dimension_numbers<[1], [0], [0], [1], [0, 0, 1, 1], [], []>} : vector<2x4xf32>, vector<4x384xf32>, vector<2x384xf32> -> vector<2x384xf32>
    %50 = arith.addf %44, %49 : vector<2x384xf32>
    %c0_57 = arith.constant 0 : index
    %c0_58 = arith.constant 0 : index
    %c0_59 = arith.constant 0 : index
    %51 = vector.load %arg4[%c0_57, %c0_58, %c0_59] : memref<2x2x384xf32, #tpu.memory_space<vmem>>, vector<1x2x384xf32>
    %52 = vector.shape_cast %51 : vector<1x2x384xf32> to vector<2x384xf32>
    %53 = vector.shape_cast %50 : vector<2x384xf32> to vector<1x2x384xf32>
    tpu.vector_store %arg4[%c0_57, %c0_58, %c0_59], %53 {strides = array<i32>} : memref<2x2x384xf32, #tpu.memory_space<vmem>>, vector<1x2x384xf32>,
    %54 = vector.shape_cast %0 : vector<1x384xf32> to vector<1x384xf32>
    %55 = vector.broadcast %54 : vector<1x384xf32> to vector<2x384xf32>
    %c0_60 = arith.constant 0 : index
    %c0_61 = arith.constant 0 : index
    %c1_62 = arith.constant 1 : index
    %c0_63 = arith.constant 0 : index
    %56 = vector.load %arg1[%c0_60, %c0_61, %c1_62, %c0_63] : memref<8x2x2x4xf32, #tpu.memory_space<vmem>>, vector<1x2x1x4xf32>
    %57 = vector.shape_cast %56 : vector<1x2x1x4xf32> to vector<2x4xf32>
    %c0_64 = arith.constant 0 : index
    %c0_65 = arith.constant 0 : index
    %c0_66 = arith.constant 0 : index
    %58 = vector.load %arg2[%c0_64, %c0_65, %c0_66] : memref<8x4x384xf32, #tpu.memory_space<vmem>>, vector<1x4x384xf32>
    %59 = vector.shape_cast %58 : vector<1x4x384xf32> to vector<4x384xf32>
    %cst_67 = arith.constant dense<0.000000e+00> : vector<2x384xf32>
    %60 = tpu.matmul %57, %59, %cst_67 {dimension_numbers = #tpu.dot_dimension_numbers<[1], [0], [0], [1], [0, 0, 1, 1], [], []>} : vector<2x4xf32>, vector<4x384xf32>, vector<2x384xf32> -> vector<2x384xf32>
    %61 = arith.addf %55, %60 : vector<2x384xf32>
    %c1_68 = arith.constant 1 : index
    %c0_69 = arith.constant 0 : index
    %c1_70 = arith.constant 1 : index
    %c0_71 = arith.constant 0 : index
    %62 = vector.load %arg1[%c1_68, %c0_69, %c1_70, %c0_71] : memref<8x2x2x4xf32, #tpu.memory_space<vmem>>, vector<1x2x1x4xf32>
    %63 = vector.shape_cast %62 : vector<1x2x1x4xf32> to vector<2x4xf32>
    %c1_72 = arith.constant 1 : index
    %c0_73 = arith.constant 0 : index
    %c0_74 = arith.constant 0 : index
    %64 = vector.load %arg2[%c1_72, %c0_73, %c0_74] : memref<8x4x384xf32, #tpu.memory_space<vmem>>, vector<1x4x384xf32>
    %65 = vector.shape_cast %64 : vector<1x4x384xf32> to vector<4x384xf32>
    %cst_75 = arith.constant dense<0.000000e+00> : vector<2x384xf32>
    %66 = tpu.matmul %63, %65, %cst_75 {dimension_numbers = #tpu.dot_dimension_numbers<[1], [0], [0], [1], [0, 0, 1, 1], [], []>} : vector<2x4xf32>, vector<4x384xf32>, vector<2x384xf32> -> vector<2x384xf32>
    %67 = arith.addf %61, %66 : vector<2x384xf32>
    %c2_76 = arith.constant 2 : index
    %c0_77 = arith.constant 0 : index
    %c1_78 = arith.constant 1 : index
    %c0_79 = arith.constant 0 : index
    %68 = vector.load %arg1[%c2_76, %c0_77, %c1_78, %c0_79] : memref<8x2x2x4xf32, #tpu.memory_space<vmem>>, vector<1x2x1x4xf32>
    %69 = vector.shape_cast %68 : vector<1x2x1x4xf32> to vector<2x4xf32>
    %c2_80 = arith.constant 2 : index
    %c0_81 = arith.constant 0 : index
    %c0_82 = arith.constant 0 : index
    %70 = vector.load %arg2[%c2_80, %c0_81, %c0_82] : memref<8x4x384xf32, #tpu.memory_space<vmem>>, vector<1x4x384xf32>
    %71 = vector.shape_cast %70 : vector<1x4x384xf32> to vector<4x384xf32>
    %cst_83 = arith.constant dense<0.000000e+00> : vector<2x384xf32>
    %72 = tpu.matmul %69, %71, %cst_83 {dimension_numbers = #tpu.dot_dimension_numbers<[1], [0], [0], [1], [0, 0, 1, 1], [], []>} : vector<2x4xf32>, vector<4x384xf32>, vector<2x384xf32> -> vector<2x384xf32>
    %73 = arith.addf %67, %72 : vector<2x384xf32>
    %c3_84 = arith.constant 3 : index
    %c0_85 = arith.constant 0 : index
    %c1_86 = arith.constant 1 : index
    %c0_87 = arith.constant 0 : index
    %74 = vector.load %arg1[%c3_84, %c0_85, %c1_86, %c0_87] : memref<8x2x2x4xf32, #tpu.memory_space<vmem>>, vector<1x2x1x4xf32>
    %75 = vector.shape_cast %74 : vector<1x2x1x4xf32> to vector<2x4xf32>
    %c3_88 = arith.constant 3 : index
    %c0_89 = arith.constant 0 : index
    %c0_90 = arith.constant 0 : index
    %76 = vector.load %arg2[%c3_88, %c0_89, %c0_90] : memref<8x4x384xf32, #tpu.memory_space<vmem>>, vector<1x4x384xf32>
    %77 = vector.shape_cast %76 : vector<1x4x384xf32> to vector<4x384xf32>
    %cst_91 = arith.constant dense<0.000000e+00> : vector<2x384xf32>
    %78 = tpu.matmul %75, %77, %cst_91 {dimension_numbers = #tpu.dot_dimension_numbers<[1], [0], [0], [1], [0, 0, 1, 1], [], []>} : vector<2x4xf32>, vector<4x384xf32>, vector<2x384xf32> -> vector<2x384xf32>
    %79 = arith.addf %73, %78 : vector<2x384xf32>
    %c4_92 = arith.constant 4 : index
    %c0_93 = arith.constant 0 : index
    %c1_94 = arith.constant 1 : index
    %c0_95 = arith.constant 0 : index
    %80 = vector.load %arg1[%c4_92, %c0_93, %c1_94, %c0_95] : memref<8x2x2x4xf32, #tpu.memory_space<vmem>>, vector<1x2x1x4xf32>
    %81 = vector.shape_cast %80 : vector<1x2x1x4xf32> to vector<2x4xf32>
    %c4_96 = arith.constant 4 : index
    %c0_97 = arith.constant 0 : index
    %c0_98 = arith.constant 0 : index
    %82 = vector.load %arg2[%c4_96, %c0_97, %c0_98] : memref<8x4x384xf32, #tpu.memory_space<vmem>>, vector<1x4x384xf32>
    %83 = vector.shape_cast %82 : vector<1x4x384xf32> to vector<4x384xf32>
    %cst_99 = arith.constant dense<0.000000e+00> : vector<2x384xf32>
    %84 = tpu.matmul %81, %83, %cst_99 {dimension_numbers = #tpu.dot_dimension_numbers<[1], [0], [0], [1], [0, 0, 1, 1], [], []>} : vector<2x4xf32>, vector<4x384xf32>, vector<2x384xf32> -> vector<2x384xf32>
    %85 = arith.addf %79, %84 : vector<2x384xf32>
    %c5_100 = arith.constant 5 : index
    %c0_101 = arith.constant 0 : index
    %c1_102 = arith.constant 1 : index
    %c0_103 = arith.constant 0 : index
    %86 = vector.load %arg1[%c5_100, %c0_101, %c1_102, %c0_103] : memref<8x2x2x4xf32, #tpu.memory_space<vmem>>, vector<1x2x1x4xf32>
    %87 = vector.shape_cast %86 : vector<1x2x1x4xf32> to vector<2x4xf32>
    %c5_104 = arith.constant 5 : index
    %c0_105 = arith.constant 0 : index
    %c0_106 = arith.constant 0 : index
    %88 = vector.load %arg2[%c5_104, %c0_105, %c0_106] : memref<8x4x384xf32, #tpu.memory_space<vmem>>, vector<1x4x384xf32>
    %89 = vector.shape_cast %88 : vector<1x4x384xf32> to vector<4x384xf32>
    %cst_107 = arith.constant dense<0.000000e+00> : vector<2x384xf32>
    %90 = tpu.matmul %87, %89, %cst_107 {dimension_numbers = #tpu.dot_dimension_numbers<[1], [0], [0], [1], [0, 0, 1, 1], [], []>} : vector<2x4xf32>, vector<4x384xf32>, vector<2x384xf32> -> vector<2x384xf32>
    %91 = arith.addf %85, %90 : vector<2x384xf32>
    %c6_108 = arith.constant 6 : index
    %c0_109 = arith.constant 0 : index
    %c1_110 = arith.constant 1 : index
    %c0_111 = arith.constant 0 : index
    %92 = vector.load %arg1[%c6_108, %c0_109, %c1_110, %c0_111] : memref<8x2x2x4xf32, #tpu.memory_space<vmem>>, vector<1x2x1x4xf32>
    %93 = vector.shape_cast %92 : vector<1x2x1x4xf32> to vector<2x4xf32>
    %c6_112 = arith.constant 6 : index
    %c0_113 = arith.constant 0 : index
    %c0_114 = arith.constant 0 : index
    %94 = vector.load %arg2[%c6_112, %c0_113, %c0_114] : memref<8x4x384xf32, #tpu.memory_space<vmem>>, vector<1x4x384xf32>
    %95 = vector.shape_cast %94 : vector<1x4x384xf32> to vector<4x384xf32>
    %cst_115 = arith.constant dense<0.000000e+00> : vector<2x384xf32>
    %96 = tpu.matmul %93, %95, %cst_115 {dimension_numbers = #tpu.dot_dimension_numbers<[1], [0], [0], [1], [0, 0, 1, 1], [], []>} : vector<2x4xf32>, vector<4x384xf32>, vector<2x384xf32> -> vector<2x384xf32>
    %97 = arith.addf %91, %96 : vector<2x384xf32>
    %c7_116 = arith.constant 7 : index
    %c0_117 = arith.constant 0 : index
    %c1_118 = arith.constant 1 : index
    %c0_119 = arith.constant 0 : index
    %98 = vector.load %arg1[%c7_116, %c0_117, %c1_118, %c0_119] : memref<8x2x2x4xf32, #tpu.memory_space<vmem>>, vector<1x2x1x4xf32>
    %99 = vector.shape_cast %98 : vector<1x2x1x4xf32> to vector<2x4xf32>
    %c7_120 = arith.constant 7 : index
    %c0_121 = arith.constant 0 : index
    %c0_122 = arith.constant 0 : index
    %100 = vector.load %arg2[%c7_120, %c0_121, %c0_122] : memref<8x4x384xf32, #tpu.memory_space<vmem>>, vector<1x4x384xf32>
    %101 = vector.shape_cast %100 : vector<1x4x384xf32> to vector<4x384xf32>
    %cst_123 = arith.constant dense<0.000000e+00> : vector<2x384xf32>
    %102 = tpu.matmul %99, %101, %cst_123 {dimension_numbers = #tpu.dot_dimension_numbers<[1], [0], [0], [1], [0, 0, 1, 1], [], []>} : vector<2x4xf32>, vector<4x384xf32>, vector<2x384xf32> -> vector<2x384xf32>
    %103 = arith.addf %97, %102 : vector<2x384xf32>
    %c1_124 = arith.constant 1 : index
    %c0_125 = arith.constant 0 : index
    %c0_126 = arith.constant 0 : index
    %104 = vector.load %arg4[%c1_124, %c0_125, %c0_126] : memref<2x2x384xf32, #tpu.memory_space<vmem>>, vector<1x2x384xf32>
    %105 = vector.shape_cast %104 : vector<1x2x384xf32> to vector<2x384xf32>
    %106 = vector.shape_cast %103 : vector<2x384xf32> to vector<1x2x384xf32>
    tpu.vector_store %arg4[%c1_124, %c0_125, %c0_126], %106 {strides = array<i32>} : memref<2x2x384xf32, #tpu.memory_space<vmem>>, vector<1x2x384xf32>,
    return
  }
  func.func @transform_0(%arg0: i32) -> (i32, i32, i32, i32) {
    %c0_i32 = arith.constant 0 : i32
    %c0_i32_0 = arith.constant 0 : i32
    %c0_i32_1 = arith.constant 0 : i32
    %c0_i32_2 = arith.constant 0 : i32
    %c0_i32_3 = arith.constant 0 : i32
    return %c0_i32, %c0_i32_0, %c0_i32_1, %c0_i32_2 : i32, i32, i32, i32
  }
  func.func @transform_1(%arg0: i32) -> (i32, i32, i32) {
    %c0_i32 = arith.constant 0 : i32
    %c0_i32_0 = arith.constant 0 : i32
    %c0_i32_1 = arith.constant 0 : i32
    %c0_i32_2 = arith.constant 0 : i32
    return %c0_i32, %c0_i32_0, %c0_i32_1 : i32, i32, i32
  }
  func.func @transform_2(%arg0: i32) -> (i32, i32) {
    %c0_i32 = arith.constant 0 : i32
    %c0_i32_0 = arith.constant 0 : i32
    %c0_i32_1 = arith.constant 0 : i32
    return %c0_i32, %c0_i32_0 : i32, i32
  }
  func.func @transform_3(%arg0: i32) -> (i32, i32, i32) {
    %c0_i32 = arith.constant 0 : i32
    %c0_i32_0 = arith.constant 0 : i32
    %c0_i32_1 = arith.constant 0 : i32
    %c0_i32_2 = arith.constant 0 : i32
    return %c0_i32, %c0_i32_0, %c0_i32_1 : i32, i32, i32
  }
}

module attributes {stable_mosaic.version = 11 : i64} {
  func.func @_gru_kernel(%arg0: i32, %arg1: memref<2x2x384xf32, #tpu.memory_space<vmem>>, %arg2: memref<128x384xf32, #tpu.memory_space<vmem>>, %arg3: memref<1x384xf32, #tpu.memory_space<vmem>>, %arg4: memref<2x128xf32, #tpu.memory_space<vmem>>) attributes {dimension_semantics = [#tpu.dimension_semantics<arbitrary>], iteration_bounds = array<i64: 1>, scalar_prefetch = 0 : i64, scratch_operands = 0 : i64, tpu.core_type = #tpu.core_type<tc>, window_params = [{transform_indices = @transform_0, window_bounds = array<i64: 2, 2, 384>}, {pipeline_mode = #tpu.pipeline_mode<synchronous>, transform_indices = @transform_1, window_bounds = array<i64: 128, 384>}, {pipeline_mode = #tpu.pipeline_mode<synchronous>, transform_indices = @transform_2, window_bounds = array<i64: 1, 384>}, {pipeline_mode = #tpu.pipeline_mode<synchronous>, transform_indices = @transform_3, window_bounds = array<i64: 2, 128>}]} {
    %c0_i32 = arith.constant 0 : i32
    %0 = arith.cmpi eq, %arg0, %c0_i32 : i32
    %1 = arith.extui %0 : i1 to i32
    %c0_i32_0 = arith.constant 0 : i32
    %2 = arith.cmpi ne, %1, %c0_i32_0 : i32
    scf.if %2 {
      %cst_23 = arith.constant 0.000000e+00 : f32
      %78 = vector.broadcast %cst_23 : f32 to vector<2x128xf32>
      %c0_24 = arith.constant 0 : index
      %c0_25 = arith.constant 0 : index
      %79 = vector.load %arg4[%c0_24, %c0_25] : memref<2x128xf32, #tpu.memory_space<vmem>>, vector<2x128xf32>
      tpu.vector_store %arg4[%c0_24, %c0_25], %78 {strides = array<i32>} : memref<2x128xf32, #tpu.memory_space<vmem>>, vector<2x128xf32>,
    } else {
    }
    %c0 = arith.constant 0 : index
    %c0_1 = arith.constant 0 : index
    %3 = vector.load %arg2[%c0, %c0_1] : memref<128x384xf32, #tpu.memory_space<vmem>>, vector<128x384xf32>
    %c0_2 = arith.constant 0 : index
    %c0_3 = arith.constant 0 : index
    %4 = vector.load %arg3[%c0_2, %c0_3] : memref<1x384xf32, #tpu.memory_space<vmem>>, vector<1x384xf32>
    %c2_i32 = arith.constant 2 : i32
    %5 = arith.muli %arg0, %c2_i32 : i32
    %c0_4 = arith.constant 0 : index
    %c0_5 = arith.constant 0 : index
    %6 = vector.load %arg4[%c0_4, %c0_5] : memref<2x128xf32, #tpu.memory_space<vmem>>, vector<2x128xf32>
    %c0_i32_6 = arith.constant 0 : i32
    %7 = arith.index_cast %c0_i32_6 : i32 to index
    %c0_7 = arith.constant 0 : index
    %c0_8 = arith.constant 0 : index
    %8 = vector.load %arg1[%7, %c0_7, %c0_8] : memref<2x2x384xf32, #tpu.memory_space<vmem>>, vector<1x2x384xf32>
    %9 = vector.shape_cast %8 : vector<1x2x384xf32> to vector<2x384xf32>
    %cst = arith.constant dense<0.000000e+00> : vector<2x384xf32>
    %10 = tpu.matmul %6, %3, %cst {dimension_numbers = #tpu.dot_dimension_numbers<[1], [0], [0], [1], [0, 0, 1, 1], [], []>} : vector<2x128xf32>, vector<128x384xf32>, vector<2x384xf32> -> vector<2x384xf32>
    %11 = vector.broadcast %4 : vector<1x384xf32> to vector<2x384xf32>
    %12 = arith.addf %10, %11 : vector<2x384xf32>
    %13 = vector.extract_strided_slice %9 {offsets = [0, 0], sizes = [2, 128], strides = [1, 1]} : vector<2x384xf32> to vector<2x128xf32>
    %14 = vector.extract_strided_slice %12 {offsets = [0, 0], sizes = [2, 128], strides = [1, 1]} : vector<2x384xf32> to vector<2x128xf32>
    %15 = arith.addf %13, %14 : vector<2x128xf32>
    %16 = arith.negf %15 : vector<2x128xf32>
    %17 = math.exp %16 : vector<2x128xf32>
    %cst_9 = arith.constant 1.000000e+00 : f32
    %18 = vector.broadcast %cst_9 : f32 to vector<2x128xf32>
    %19 = arith.addf %18, %17 : vector<2x128xf32>
    %20 = arith.divf %18, %19 : vector<2x128xf32>
    %21 = vector.extract_strided_slice %9 {offsets = [0, 128], sizes = [2, 128], strides = [1, 1]} : vector<2x384xf32> to vector<2x128xf32>
    %22 = vector.extract_strided_slice %12 {offsets = [0, 128], sizes = [2, 128], strides = [1, 1]} : vector<2x384xf32> to vector<2x128xf32>
    %23 = arith.addf %21, %22 : vector<2x128xf32>
    %24 = arith.negf %23 : vector<2x128xf32>
    %25 = math.exp %24 : vector<2x128xf32>
    %cst_10 = arith.constant 1.000000e+00 : f32
    %26 = vector.broadcast %cst_10 : f32 to vector<2x128xf32>
    %27 = arith.addf %26, %25 : vector<2x128xf32>
    %28 = arith.divf %26, %27 : vector<2x128xf32>
    %29 = vector.extract_strided_slice %9 {offsets = [0, 256], sizes = [2, 128], strides = [1, 1]} : vector<2x384xf32> to vector<2x128xf32>
    %30 = vector.extract_strided_slice %12 {offsets = [0, 256], sizes = [2, 128], strides = [1, 1]} : vector<2x384xf32> to vector<2x128xf32>
    %31 = arith.mulf %20, %30 : vector<2x128xf32>
    %32 = arith.addf %29, %31 : vector<2x128xf32>
    %33 = math.tanh %32 : vector<2x128xf32>
    %cst_11 = arith.constant 1.000000e+00 : f32
    %34 = vector.broadcast %cst_11 : f32 to vector<2x128xf32>
    %35 = arith.subf %34, %28 : vector<2x128xf32>
    %36 = arith.mulf %35, %33 : vector<2x128xf32>
    %37 = arith.mulf %28, %6 : vector<2x128xf32>
    %38 = arith.addf %36, %37 : vector<2x128xf32>
    %39 = arith.addi %5, %c0_i32_6 : i32
    %c2_i32_12 = arith.constant 2 : i32
    %40 = arith.cmpi slt, %39, %c2_i32_12 : i32
    %41 = arith.select %40, %38, %6 : vector<2x128xf32>
    %c1_i32 = arith.constant 1 : i32
    %42 = arith.index_cast %c1_i32 : i32 to index
    %c0_13 = arith.constant 0 : index
    %c0_14 = arith.constant 0 : index
    %43 = vector.load %arg1[%42, %c0_13, %c0_14] : memref<2x2x384xf32, #tpu.memory_space<vmem>>, vector<1x2x384xf32>
    %44 = vector.shape_cast %43 : vector<1x2x384xf32> to vector<2x384xf32>
    %cst_15 = arith.constant dense<0.000000e+00> : vector<2x384xf32>
    %45 = tpu.matmul %41, %3, %cst_15 {dimension_numbers = #tpu.dot_dimension_numbers<[1], [0], [0], [1], [0, 0, 1, 1], [], []>} : vector<2x128xf32>, vector<128x384xf32>, vector<2x384xf32> -> vector<2x384xf32>
    %46 = vector.broadcast %4 : vector<1x384xf32> to vector<2x384xf32>
    %47 = arith.addf %45, %46 : vector<2x384xf32>
    %48 = vector.extract_strided_slice %44 {offsets = [0, 0], sizes = [2, 128], strides = [1, 1]} : vector<2x384xf32> to vector<2x128xf32>
    %49 = vector.extract_strided_slice %47 {offsets = [0, 0], sizes = [2, 128], strides = [1, 1]} : vector<2x384xf32> to vector<2x128xf32>
    %50 = arith.addf %48, %49 : vector<2x128xf32>
    %51 = arith.negf %50 : vector<2x128xf32>
    %52 = math.exp %51 : vector<2x128xf32>
    %cst_16 = arith.constant 1.000000e+00 : f32
    %53 = vector.broadcast %cst_16 : f32 to vector<2x128xf32>
    %54 = arith.addf %53, %52 : vector<2x128xf32>
    %55 = arith.divf %53, %54 : vector<2x128xf32>
    %56 = vector.extract_strided_slice %44 {offsets = [0, 128], sizes = [2, 128], strides = [1, 1]} : vector<2x384xf32> to vector<2x128xf32>
    %57 = vector.extract_strided_slice %47 {offsets = [0, 128], sizes = [2, 128], strides = [1, 1]} : vector<2x384xf32> to vector<2x128xf32>
    %58 = arith.addf %56, %57 : vector<2x128xf32>
    %59 = arith.negf %58 : vector<2x128xf32>
    %60 = math.exp %59 : vector<2x128xf32>
    %cst_17 = arith.constant 1.000000e+00 : f32
    %61 = vector.broadcast %cst_17 : f32 to vector<2x128xf32>
    %62 = arith.addf %61, %60 : vector<2x128xf32>
    %63 = arith.divf %61, %62 : vector<2x128xf32>
    %64 = vector.extract_strided_slice %44 {offsets = [0, 256], sizes = [2, 128], strides = [1, 1]} : vector<2x384xf32> to vector<2x128xf32>
    %65 = vector.extract_strided_slice %47 {offsets = [0, 256], sizes = [2, 128], strides = [1, 1]} : vector<2x384xf32> to vector<2x128xf32>
    %66 = arith.mulf %55, %65 : vector<2x128xf32>
    %67 = arith.addf %64, %66 : vector<2x128xf32>
    %68 = math.tanh %67 : vector<2x128xf32>
    %cst_18 = arith.constant 1.000000e+00 : f32
    %69 = vector.broadcast %cst_18 : f32 to vector<2x128xf32>
    %70 = arith.subf %69, %63 : vector<2x128xf32>
    %71 = arith.mulf %70, %68 : vector<2x128xf32>
    %72 = arith.mulf %63, %41 : vector<2x128xf32>
    %73 = arith.addf %71, %72 : vector<2x128xf32>
    %74 = arith.addi %5, %c1_i32 : i32
    %c2_i32_19 = arith.constant 2 : i32
    %75 = arith.cmpi slt, %74, %c2_i32_19 : i32
    %76 = arith.select %75, %73, %41 : vector<2x128xf32>
    %c2_i32_20 = arith.constant 2 : i32
    %c0_21 = arith.constant 0 : index
    %c0_22 = arith.constant 0 : index
    %77 = vector.load %arg4[%c0_21, %c0_22] : memref<2x128xf32, #tpu.memory_space<vmem>>, vector<2x128xf32>
    tpu.vector_store %arg4[%c0_21, %c0_22], %76 {strides = array<i32>} : memref<2x128xf32, #tpu.memory_space<vmem>>, vector<2x128xf32>,
    return
  }
  func.func @transform_0(%arg0: i32) -> (i32, i32, i32) {
    %c0_i32 = arith.constant 0 : i32
    %c0_i32_0 = arith.constant 0 : i32
    %c0_i32_1 = arith.constant 0 : i32
    return %arg0, %c0_i32, %c0_i32_0 : i32, i32, i32
  }
  func.func @transform_1(%arg0: i32) -> (i32, i32) {
    %c0_i32 = arith.constant 0 : i32
    %c0_i32_0 = arith.constant 0 : i32
    %c0_i32_1 = arith.constant 0 : i32
    return %c0_i32, %c0_i32_0 : i32, i32
  }
  func.func @transform_2(%arg0: i32) -> (i32, i32) {
    %c0_i32 = arith.constant 0 : i32
    %c0_i32_0 = arith.constant 0 : i32
    %c0_i32_1 = arith.constant 0 : i32
    return %c0_i32, %c0_i32_0 : i32, i32
  }
  func.func @transform_3(%arg0: i32) -> (i32, i32) {
    %c0_i32 = arith.constant 0 : i32
    %c0_i32_0 = arith.constant 0 : i32
    %c0_i32_1 = arith.constant 0 : i32
    return %c0_i32, %c0_i32_0 : i32, i32
  }
}

</mosaic_0001>

<llo_original>
// kernel: reference_encoder_forward.4
$region0: #{reference_encoder_forward.4}
  #allocation0 [shape = 'u32[]', space=smem, size = 0x4, offset = 0x4, fixed_abs, tag = 'smem constant byte address 0x4 - core index']
  #allocation1 [shape = 'u32[144,128]{1,0:T(1,128)}', space=vmem, size = 0x12000, scoped, tag = 'internal scratch']
  %s0 = inlined_call_operand.vmem [shape: f32[1,2,5,9], index: 0, kind: input, shape index: {}]
  %s1 = inlined_call_operand.vmem [shape: f32[1,2,5,9], index: 1, kind: input, shape index: {}]
  %s2 = inlined_call_operand.vmem [shape: f32[1,2,5,9], index: 2, kind: input, shape index: {}]
  %s3 = inlined_call_operand.vmem [shape: f32[1,2,5,9], index: 3, kind: input, shape index: {}]
  %s4 = inlined_call_operand.vmem [shape: f32[9,4,1,1], index: 4, kind: input, shape index: {}]
  %s5 = inlined_call_operand.vmem [shape: f32[4,1,1], index: 5, kind: input, shape index: {}]
  %s6 = inlined_call_operand.vmem [shape: f32[4,1,1], index: 6, kind: input, shape index: {}]
  %s7 = inlined_call_operand.vmem [shape: f32[4,2,4,8], index: 7, kind: output, shape index: {}]
  %s8 = sld [smem:[#allocation0]]
  $region98: #{reference_encoder_forward.4} parent=0
    _
  %s10 = ssub.s32 1, %s8
  %s11 = scalar_select 0, %s10, %s8
  $region1: #{reference_encoder_forward.4} parent=0
    #allocation2 [shape = 'u8[16384]{0}', space=vmem, size = 0x4000, scoped, tag = 'output window, operand 0']
    loop: start=0, step=1, limit=4
    $region2: #{reference_encoder_forward.4} parent=1 // loop_pre_header
      _
    $region3: #{reference_encoder_forward.4} parent=1 // loop_header
      %s13 = sphi 0, %s17
      %p14 = scmp.ge.s32.totalorder %s13, 4
      %s23 = sphi 0, %s25
      %s26 = sphi 0, %s23
      %s27 = sphi 0, %s26
      %s43 = sphi 0, %s27
      %s49 = sphi 0, %s51
      %s52 = sphi 0, %s49
      %s53 = sphi 0, %s52
      %s69 = sphi 0, %s53
      %s75 = sphi 0, %s77
      %s78 = sphi 0, %s75
      %s79 = sphi 0, %s78
      %s95 = sphi 0, %s79
      %s101 = sphi 0, %s103
      %s104 = sphi 0, %s101
      %s105 = sphi 0, %s104
      %s121 = sphi 0, %s105
      %s125 = sphi 0, %s125
      %s127 = sphi 0, %s125
      %s128 = sphi 0, %s127
      %s142 = sphi 0, %s128
      %s146 = sphi 0, %s146
      %s148 = sphi 0, %s146
      %s149 = sphi 0, %s148
      %s163 = sphi 0, %s149
      %s167 = sphi 0, %s167
      %s169 = sphi 0, %s167
      %s170 = sphi 0, %s169
      %s184 = sphi 0, %s170
      %s190 = sphi 0, %s192
      %s193 = sphi 0, %s190
      %s194 = sphi 0, %s193
      %s210 = sphi 0, %s194
    $region4: #{reference_encoder_forward.4} parent=1 // loop_header_branch
      %16 = sbr.rel (%p14) target = $region8
    $region5: #{reference_encoder_forward.4} parent=1 // loop_body
      %s18 = ssub.s32 %s13, 1
      %s19 = ssub.s32 %s13, 2
      %s20 = sadd.s32 %s13, 1
      %s21 = ssub.s32 %s13, %s20
      %p22 = scmp.eq.s32.totalorder %s21, 0
      %s24 = sadd.s32 %s23, 1
      %s25 = scalar_select %p22, %s23, %s24
      %p28 = pneg %p22
      %p29 = scmp.eq.s32.totalorder %s13, 1
      %p30 = por %p28, %p29
      %p31 = scmp.ne.s32.totalorder %s23, %s26
      %p32 = scmp.eq.s32.totalorder %s13, 0
      %p33 = por %p31, %p32
      %p34 = scmp.ne.s32.totalorder %s23, %s26
      %p35 = scmp.eq.s32.totalorder %s18, 1
      %p36 = por %p34, %p35
      %p37 = scmp.ne.s32.totalorder %s26, %s27
      %p38 = scmp.eq.s32.totalorder %s18, 0
      %p39 = por %p37, %p38
      %p40 = scmp.ne.s32.totalorder %s26, %s27
      %p41 = scmp.eq.s32.totalorder %s19, 1
      %p42 = por %p40, %p41
      %p44 = scmp.ne.s32.totalorder %s27, %s43
      %p45 = scmp.eq.s32.totalorder %s19, 0
      %p46 = por %p44, %p45
      %s47 = ssub.s32 %s13, %s20
      %p48 = scmp.eq.s32.totalorder %s47, 0
      %s50 = sadd.s32 %s49, 1
      %s51 = scalar_select %p48, %s49, %s50
      %p54 = pneg %p48
      %p55 = scmp.eq.s32.totalorder %s13, 1
      %p56 = por %p54, %p55
      %p57 = scmp.ne.s32.totalorder %s49, %s52
      %p58 = scmp.eq.s32.totalorder %s13, 0
      %p59 = por %p57, %p58
      %p60 = scmp.ne.s32.totalorder %s49, %s52
      %p61 = scmp.eq.s32.totalorder %s18, 1
      %p62 = por %p60, %p61
      %p63 = scmp.ne.s32.totalorder %s52, %s53
      %p64 = scmp.eq.s32.totalorder %s18, 0
      %p65 = por %p63, %p64
      %p66 = scmp.ne.s32.totalorder %s52, %s53
      %p67 = scmp.eq.s32.totalorder %s19, 1
      %p68 = por %p66, %p67
      %p70 = scmp.ne.s32.totalorder %s53, %s69
      %p71 = scmp.eq.s32.totalorder %s19, 0
      %p72 = por %p70, %p71
      %s73 = ssub.s32 %s13, %s20
      %p74 = scmp.eq.s32.totalorder %s73, 0
      %s76 = sadd.s32 %s75, 1
      %s77 = scalar_select %p74, %s75, %s76
      %p80 = pneg %p74
      %p81 = scmp.eq.s32.totalorder %s13, 1
      %p82 = por %p80, %p81
      %p83 = scmp.ne.s32.totalorder %s75, %s78
      %p84 = scmp.eq.s32.totalorder %s13, 0
      %p85 = por %p83, %p84
      %p86 = scmp.ne.s32.totalorder %s75, %s78
      %p87 = scmp.eq.s32.totalorder %s18, 1
      %p88 = por %p86, %p87
      %p89 = scmp.ne.s32.totalorder %s78, %s79
      %p90 = scmp.eq.s32.totalorder %s18, 0
      %p91 = por %p89, %p90
      %p92 = scmp.ne.s32.totalorder %s78, %s79
      %p93 = scmp.eq.s32.totalorder %s19, 1
      %p94 = por %p92, %p93
      %p96 = scmp.ne.s32.totalorder %s79, %s95
      %p97 = scmp.eq.s32.totalorder %s19, 0
      %p98 = por %p96, %p97
      %s99 = ssub.s32 %s13, %s20
      %p100 = scmp.eq.s32.totalorder %s99, 0
      %s102 = sadd.s32 %s101, 1
      %s103 = scalar_select %p100, %s101, %s102
      %p106 = pneg %p100
      %p107 = scmp.eq.s32.totalorder %s13, 1
      %p108 = por %p106, %p107
      %p109 = scmp.ne.s32.totalorder %s101, %s104
      %p110 = scmp.eq.s32.totalorder %s13, 0
      %p111 = por %p109, %p110
      %p112 = scmp.ne.s32.totalorder %s101, %s104
      %p113 = scmp.eq.s32.totalorder %s18, 1
      %p114 = por %p112, %p113
      %p115 = scmp.ne.s32.totalorder %s104, %s105
      %p116 = scmp.eq.s32.totalorder %s18, 0
      %p117 = por %p115, %p116
      %p118 = scmp.ne.s32.totalorder %s104, %s105
      %p119 = scmp.eq.s32.totalorder %s19, 1
      %p120 = por %p118, %p119
      %p122 = scmp.ne.s32.totalorder %s105, %s121
      %p123 = scmp.eq.s32.totalorder %s19, 0
      %p124 = por %p122, %p123
      %s126 = sadd.s32 %s125, 1
      %p129 = scmp.eq.s32.totalorder %s13, 1
      %p130 = scmp.ne.s32.totalorder %s125, %s127
      %p131 = scmp.eq.s32.totalorder %s13, 0
      %p132 = por %p130, %p131
      %p133 = scmp.ne.s32.totalorder %s125, %s127
      %p134 = scmp.eq.s32.totalorder %s18, 1
      %p135 = por %p133, %p134
      %p136 = scmp.ne.s32.totalorder %s127, %s128
      %p137 = scmp.eq.s32.totalorder %s18, 0
      %p138 = por %p136, %p137
      %p139 = scmp.ne.s32.totalorder %s127, %s128
      %p140 = scmp.eq.s32.totalorder %s19, 1
      %p141 = por %p139, %p140
      %p143 = scmp.ne.s32.totalorder %s128, %s142
      %p144 = scmp.eq.s32.totalorder %s19, 0
      %p145 = por %p143, %p144
      %s147 = sadd.s32 %s146, 1
      %p150 = scmp.eq.s32.totalorder %s13, 1
      %p151 = scmp.ne.s32.totalorder %s146, %s148
      %p152 = scmp.eq.s32.totalorder %s13, 0
      %p153 = por %p151, %p152
      %p154 = scmp.ne.s32.totalorder %s146, %s148
      %p155 = scmp.eq.s32.totalorder %s18, 1
      %p156 = por %p154, %p155
      %p157 = scmp.ne.s32.totalorder %s148, %s149
      %p158 = scmp.eq.s32.totalorder %s18, 0
      %p159 = por %p157, %p158
      %p160 = scmp.ne.s32.totalorder %s148, %s149
      %p161 = scmp.eq.s32.totalorder %s19, 1
      %p162 = por %p160, %p161
      %p164 = scmp.ne.s32.totalorder %s149, %s163
      %p165 = scmp.eq.s32.totalorder %s19, 0
      %p166 = por %p164, %p165
      %s168 = sadd.s32 %s167, 1
      %p171 = scmp.eq.s32.totalorder %s13, 1
      %p172 = scmp.ne.s32.totalorder %s167, %s169
      %p173 = scmp.eq.s32.totalorder %s13, 0
      %p174 = por %p172, %p173
      %p175 = scmp.ne.s32.totalorder %s167, %s169
      %p176 = scmp.eq.s32.totalorder %s18, 1
      %p177 = por %p175, %p176
      %p178 = scmp.ne.s32.totalorder %s169, %s170
      %p179 = scmp.eq.s32.totalorder %s18, 0
      %p180 = por %p178, %p179
      %p181 = scmp.ne.s32.totalorder %s169, %s170
      %p182 = scmp.eq.s32.totalorder %s19, 1
      %p183 = por %p181, %p182
      %p185 = scmp.ne.s32.totalorder %s170, %s184
      %p186 = scmp.eq.s32.totalorder %s19, 0
      %p187 = por %p185, %p186
      %s188 = ssub.s32 %s13, %s20
      %p189 = scmp.eq.s32.totalorder %s188, 0
      %s191 = sadd.s32 %s190, 1
      %s192 = scalar_select %p189, %s190, %s191
      %p195 = pneg %p189
      %p196 = scmp.eq.s32.totalorder %s13, 1
      %p197 = por %p195, %p196
      %p198 = scmp.ne.s32.totalorder %s190, %s193
      %p199 = scmp.eq.s32.totalorder %s13, 0
      %p200 = por %p198, %p199
      %p201 = scmp.ne.s32.totalorder %s190, %s193
      %p202 = scmp.eq.s32.totalorder %s18, 1
      %p203 = por %p201, %p202
      %p204 = scmp.ne.s32.totalorder %s193, %s194
      %p205 = scmp.eq.s32.totalorder %s18, 0
      %p206 = por %p204, %p205
      %p207 = scmp.ne.s32.totalorder %s193, %s194
      %p208 = scmp.eq.s32.totalorder %s19, 1
      %p209 = por %p207, %p208
      %p211 = scmp.ne.s32.totalorder %s194, %s210
      %p212 = scmp.eq.s32.totalorder %s19, 0
      %p213 = por %p211, %p212
      %p214 = scmp.le.s32.totalorder 1, %s13
      %p215 = scmp.lt.s32.totalorder %s13, 3
      %p216 = pnand %p214, %p215
      %p217 = pneg %p216
      // Predicated region
      $region9: #{reference_encoder_forward.4} parent=5 // pred_check
        _
      $region10: #{reference_encoder_forward.4} parent=5 // pred_check_branch
        %219 = sbr.rel (%p216) target = $region12
      $region11: #{reference_encoder_forward.4} parent=5 // pred_region
        %s220 = ssub.s32 %s13, 1
        // Predicated region
        $region13: #{reference_encoder_forward.4} parent=11 // pred_check
          %p221 = pneg %p138
        $region14: #{reference_encoder_forward.4} parent=11 // pred_check_branch
          %223 = sbr.rel (%p221) target = $region16
        $region15: #{reference_encoder_forward.4} parent=11 // pred_region
          _
        $region16: #{reference_encoder_forward.4} parent=11 // pred_fallthru
          _
        // Predicated region
        $region17: #{reference_encoder_forward.4} parent=11 // pred_check
          %p224 = pneg %p159
        $region18: #{reference_encoder_forward.4} parent=11 // pred_check_branch
          %226 = sbr.rel (%p224) target = $region20
        $region19: #{reference_encoder_forward.4} parent=11 // pred_region
          _
        $region20: #{reference_encoder_forward.4} parent=11 // pred_fallthru
          _
        // Predicated region
        $region21: #{reference_encoder_forward.4} parent=11 // pred_check
          %p227 = pneg %p180
        $region22: #{reference_encoder_forward.4} parent=11 // pred_check_branch
          %229 = sbr.rel (%p227) target = $region24
        $region23: #{reference_encoder_forward.4} parent=11 // pred_region
          _
        $region24: #{reference_encoder_forward.4} parent=11 // pred_fallthru
          _
      $region12: #{reference_encoder_forward.4} parent=5 // pred_fallthru
        _
      %p230 = scmp.lt.s32.totalorder %s13, 2
      // Predicated region
      $region25: #{reference_encoder_forward.4} parent=5 // pred_check
        %p231 = pneg %p230
      $region26: #{reference_encoder_forward.4} parent=5 // pred_check_branch
        %233 = sbr.rel (%p231) target = $region28
      $region27: #{reference_encoder_forward.4} parent=5 // pred_region
        // Predicated region
        $region29: #{reference_encoder_forward.4} parent=27 // pred_check
          %p234 = pneg %p33
        $region30: #{reference_encoder_forward.4} parent=27 // pred_check_branch
          %236 = sbr.rel (%p234) target = $region32
        $region31: #{reference_encoder_forward.4} parent=27 // pred_region
          %p237 = scmp.lt.s32.totalorder %s13, 1
          %s238 = scalar_select %p237, %s13, 1
          %s239 = smul.addr %s238, 8
          %s240 = scalar_lea.vmem %s0, %s239
        $region32: #{reference_encoder_forward.4} parent=27 // pred_fallthru
          _
        // Predicated region
        $region33: #{reference_encoder_forward.4} parent=27 // pred_check
          %p241 = pneg %p59
        $region34: #{reference_encoder_forward.4} parent=27 // pred_check_branch
          %243 = sbr.rel (%p241) target = $region36
        $region35: #{reference_encoder_forward.4} parent=27 // pred_region
          %p244 = scmp.lt.s32.totalorder %s13, 1
          %s245 = scalar_select %p244, %s13, 1
          %s246 = smul.addr %s245, 8
          %s247 = scalar_lea.vmem %s1, %s246
        $region36: #{reference_encoder_forward.4} parent=27 // pred_fallthru
          _
        // Predicated region
        $region37: #{reference_encoder_forward.4} parent=27 // pred_check
          %p248 = pneg %p85
        $region38: #{reference_encoder_forward.4} parent=27 // pred_check_branch
          %250 = sbr.rel (%p248) target = $region40
        $region39: #{reference_encoder_forward.4} parent=27 // pred_region
          %p251 = scmp.lt.s32.totalorder %s13, 1
          %s252 = scalar_select %p251, %s13, 1
          %s253 = smul.addr %s252, 8
          %s254 = scalar_lea.vmem %s2, %s253
        $region40: #{reference_encoder_forward.4} parent=27 // pred_fallthru
          _
        // Predicated region
        $region41: #{reference_encoder_forward.4} parent=27 // pred_check
          %p255 = pneg %p111
        $region42: #{reference_encoder_forward.4} parent=27 // pred_check_branch
          %257 = sbr.rel (%p255) target = $region44
        $region43: #{reference_encoder_forward.4} parent=27 // pred_region
          %p258 = scmp.lt.s32.totalorder %s13, 1
          %s259 = scalar_select %p258, %s13, 1
          %s260 = smul.addr %s259, 8
          %s261 = scalar_lea.vmem %s3, %s260
        $region44: #{reference_encoder_forward.4} parent=27 // pred_fallthru
          _
      $region28: #{reference_encoder_forward.4} parent=5 // pred_fallthru
        _
      %p262 = scmp.le.s32.totalorder 1, %s13
      %p263 = scmp.lt.s32.totalorder %s13, 3
      %p264 = pnand %p262, %p263
      %p265 = pneg %p264
      // Predicated region
      $region45: #{reference_encoder_forward.4} parent=5 // pred_check
        _
      $region46: #{reference_encoder_forward.4} parent=5 // pred_check_branch
        %267 = sbr.rel (%p264) target = $region48
      $region47: #{reference_encoder_forward.4} parent=5 // pred_region
        %s268 = ssub.s32 %s13, 1
        %p269 = scmp.lt.s32.totalorder %s18, 1
        %s270 = scalar_select %p269, %s18, 1
        %s271 = smul.addr %s270, 8
        %s272 = scalar_lea.vmem %s0, %s271
        %p273 = pneg %p39
        %p274 = pneg %p36
        %p275 = scmp.lt.s32.totalorder %s18, 1
        %s276 = scalar_select %p275, %s18, 1
        %s277 = smul.addr %s276, 8
        %s278 = scalar_lea.vmem %s1, %s277
        %p279 = pneg %p65
        %p280 = pneg %p62
        %p281 = scmp.lt.s32.totalorder %s18, 1
        %s282 = scalar_select %p281, %s18, 1
        %s283 = smul.addr %s282, 8
        %s284 = scalar_lea.vmem %s2, %s283
        %p285 = pneg %p91
        %p286 = pneg %p88
        %p287 = scmp.lt.s32.totalorder %s18, 1
        %s288 = scalar_select %p287, %s18, 1
        %s289 = smul.addr %s288, 8
        %s290 = scalar_lea.vmem %s3, %s289
        %p291 = pneg %p117
        %p292 = pneg %p114
        %p293 = pneg %p138
        %p294 = pneg %p135
        %p295 = pneg %p159
        %p296 = pneg %p156
        %p297 = pneg %p180
        %p298 = pneg %p177
        %p299 = pneg %p206
        %p300 = pneg %p203
        %s301 = sand.u32 %s193, 1
        %s302 = sand.u32 %s193, 1
        %s303 = smul.addr %s302, 16
        %s304 = scalar_lea.vmem [#allocation2], %s303
        %p305 = scmp.lt.s32.totalorder %s18, 1
        %s306 = scalar_select %p305, %s18, 1
        %s307 = smul.addr %s306, 8
        %s308 = scalar_lea.vmem %s0, %s307
        %p309 = scmp.lt.s32.totalorder %s18, 1
        %s310 = scalar_select %p309, %s18, 1
        %s311 = smul.addr %s310, 8
        %s312 = scalar_lea.vmem %s1, %s311
        %p313 = scmp.lt.s32.totalorder %s18, 1
        %s314 = scalar_select %p313, %s18, 1
        %s315 = smul.addr %s314, 8
        %s316 = scalar_lea.vmem %s2, %s315
        %p317 = scmp.lt.s32.totalorder %s18, 1
        %s318 = scalar_select %p317, %s18, 1
        %s319 = smul.addr %s318, 8
        %s320 = scalar_lea.vmem %s3, %s319
        %v321 = vld [vmem:[%s308] sm:$0xf]
        %v322 = vld [vmem:[%s4] sm:$0x1]
        %v323 = vld [vmem:[%s4 + $0x1] sm:$0x1]
        %v324 = vld [vmem:[%s4 + $0x2] sm:$0x1]
        %v325 = vld [vmem:[%s4 + $0x3] sm:$0x1]
        %v330 = vlaneseq
        %v331 = vshrl.u32 %v330, 7
        %v332 = vsub.s32 0, %v331
        %v333 = vrot.slane %v322, %v332
        %v334 = vlaneseq
        %v335 = vshrl.u32 %v334, 7
        %v336 = vsub.s32 0, %v335
        %v337 = vrot.slane %v323, %v336
        %v338 = vlaneseq
        %v339 = vshrl.u32 %v338, 7
        %v340 = vsub.s32 0, %v339
        %v341 = vrot.slane %v324, %v340
        %v342 = vlaneseq
        %v343 = vshrl.u32 %v342, 7
        %v344 = vsub.s32 0, %v343
        %v345 = vrot.slane %v325, %v344
        %346 = vset.pattern.permute.xlu0 0
        %347 = vperm.xlu0 %346, %v333
        %v348 = vpop.permute.xlu0 %347
        %350 = vset.pattern.permute.xlu0 0
        %351 = vperm.xlu0 %350, %v337
        %v352 = vpop.permute.xlu0 %351
        %354 = vset.pattern.permute.xlu0 0
        %355 = vperm.xlu0 %354, %v341
        %v356 = vpop.permute.xlu0 %355
        %358 = vset.pattern.permute.xlu0 0
        %359 = vperm.xlu0 %358, %v345
        %v360 = vpop.permute.xlu0 %359
        %v362 = vmul.f32 %v348, %v321
        %v363 = vmul.f32 %v352, %v321
        %v364 = vmul.f32 %v356, %v321
        %v365 = vmul.f32 %v360, %v321
        %v366 = vadd.f32 %v362, 0.0
        %v367 = vadd.f32 %v363, 0.0
        %v368 = vadd.f32 %v364, 0.0
        %v369 = vadd.f32 %v365, 0.0
        %v370 = vld [vmem:[%s312] sm:$0xf]
        %s371 = scalar_lea.vmem %s4, 4
        %v372 = vld [vmem:[%s371] sm:$0x1]
        %v373 = vld [vmem:[%s371 + $0x1] sm:$0x1]
        %v374 = vld [vmem:[%s371 + $0x2] sm:$0x1]
        %v375 = vld [vmem:[%s371 + $0x3] sm:$0x1]
        %v380 = vlaneseq
        %v381 = vshrl.u32 %v380, 7
        %v382 = vsub.s32 0, %v381
        %v383 = vrot.slane %v372, %v382
        %v384 = vlaneseq
        %v385 = vshrl.u32 %v384, 7
        %v386 = vsub.s32 0, %v385
        %v387 = vrot.slane %v373, %v386
        %v388 = vlaneseq
        %v389 = vshrl.u32 %v388, 7
        %v390 = vsub.s32 0, %v389
        %v391 = vrot.slane %v374, %v390
        %v392 = vlaneseq
        %v393 = vshrl.u32 %v392, 7
        %v394 = vsub.s32 0, %v393
        %v395 = vrot.slane %v375, %v394
        %396 = vset.pattern.permute.xlu0 0
        %397 = vperm.xlu0 %396, %v383
        %v398 = vpop.permute.xlu0 %397
        %400 = vset.pattern.permute.xlu0 0
        %401 = vperm.xlu0 %400, %v387
        %v402 = vpop.permute.xlu0 %401
        %404 = vset.pattern.permute.xlu0 0
        %405 = vperm.xlu0 %404, %v391
        %v406 = vpop.permute.xlu0 %405
        %408 = vset.pattern.permute.xlu0 0
        %409 = vperm.xlu0 %408, %v395
        %v410 = vpop.permute.xlu0 %409
        %v412 = vmul.f32 %v398, %v370
        %v413 = vmul.f32 %v402, %v370
        %v414 = vmul.f32 %v406, %v370
        %v415 = vmul.f32 %v410, %v370
        %v416 = vadd.f32 %v366, %v412
        %v417 = vadd.f32 %v367, %v413
        %v418 = vadd.f32 %v368, %v414
        %v419 = vadd.f32 %v369, %v415
        %s420 = scalar_lea.vmem %s4, 8
        %v421 = vld [vmem:[%s420] sm:$0x1]
        %v422 = vld [vmem:[%s420 + $0x1] sm:$0x1]
        %v423 = vld [vmem:[%s420 + $0x2] sm:$0x1]
        %v424 = vld [vmem:[%s420 + $0x3] sm:$0x1]
        %v429 = vlaneseq
        %v430 = vshrl.u32 %v429, 7
        %v431 = vsub.s32 0, %v430
        %v432 = vrot.slane %v421, %v431
        %v433 = vlaneseq
        %v434 = vshrl.u32 %v433, 7
        %v435 = vsub.s32 0, %v434
        %v436 = vrot.slane %v422, %v435
        %v437 = vlaneseq
        %v438 = vshrl.u32 %v437, 7
        %v439 = vsub.s32 0, %v438
        %v440 = vrot.slane %v423, %v439
        %v441 = vlaneseq
        %v442 = vshrl.u32 %v441, 7
        %v443 = vsub.s32 0, %v442
        %v444 = vrot.slane %v424, %v443
        %445 = vset.pattern.permute.xlu0 0
        %446 = vperm.xlu0 %445, %v432
        %v447 = vpop.permute.xlu0 %446
        %449 = vset.pattern.permute.xlu0 0
        %450 = vperm.xlu0 %449, %v436
        %v451 = vpop.permute.xlu0 %450
        %453 = vset.pattern.permute.xlu0 0
        %454 = vperm.xlu0 %453, %v440
        %v455 = vpop.permute.xlu0 %454
        %457 = vset.pattern.permute.xlu0 0
        %458 = vperm.xlu0 %457, %v444
        %v459 = vpop.permute.xlu0 %458
        %v461 = vmul.f32 %v447, %v321
        %v462 = vmul.f32 %v451, %v321
        %v463 = vmul.f32 %v455, %v321
        %v464 = vmul.f32 %v459, %v321
        %469 = vrot.lane.b32.xlu0 %v461, 127
        %v470 = vpop.permute.xlu0 %469
        %471 = vrot.lane.b32.xlu0 %v462, 127
        %v472 = vpop.permute.xlu0 %471
        %473 = vrot.lane.b32.xlu0 %v463, 127
        %v474 = vpop.permute.xlu0 %473
        %475 = vrot.lane.b32.xlu0 %v464, 127
        %v476 = vpop.permute.xlu0 %475
        %v481 = vadd.f32 %v416, %v470
        %v482 = vadd.f32 %v417, %v472
        %v483 = vadd.f32 %v418, %v474
        %v484 = vadd.f32 %v419, %v476
        %v485 = vld [vmem:[%s316] sm:$0xf]
        %s486 = scalar_lea.vmem %s4, 12
        %v487 = vld [vmem:[%s486] sm:$0x1]
        %v488 = vld [vmem:[%s486 + $0x1] sm:$0x1]
        %v489 = vld [vmem:[%s486 + $0x2] sm:$0x1]
        %v490 = vld [vmem:[%s486 + $0x3] sm:$0x1]
        %v495 = vlaneseq
        %v496 = vshrl.u32 %v495, 7
        %v497 = vsub.s32 0, %v496
        %v498 = vrot.slane %v487, %v497
        %v499 = vlaneseq
        %v500 = vshrl.u32 %v499, 7
        %v501 = vsub.s32 0, %v500
        %v502 = vrot.slane %v488, %v501
        %v503 = vlaneseq
        %v504 = vshrl.u32 %v503, 7
        %v505 = vsub.s32 0, %v504
        %v506 = vrot.slane %v489, %v505
        %v507 = vlaneseq
        %v508 = vshrl.u32 %v507, 7
        %v509 = vsub.s32 0, %v508
        %v510 = vrot.slane %v490, %v509
        %511 = vset.pattern.permute.xlu0 0
        %512 = vperm.xlu0 %511, %v498
        %v513 = vpop.permute.xlu0 %512
        %515 = vset.pattern.permute.xlu0 0
        %516 = vperm.xlu0 %515, %v502
        %v517 = vpop.permute.xlu0 %516
        %519 = vset.pattern.permute.xlu0 0
        %520 = vperm.xlu0 %519, %v506
        %v521 = vpop.permute.xlu0 %520
        %523 = vset.pattern.permute.xlu0 0
        %524 = vperm.xlu0 %523, %v510
        %v525 = vpop.permute.xlu0 %524
        %v527 = vmul.f32 %v513, %v485
        %v528 = vmul.f32 %v517, %v485
        %v529 = vmul.f32 %v521, %v485
        %v530 = vmul.f32 %v525, %v485
        %v531 = vadd.f32 %v481, %v527
        %v532 = vadd.f32 %v482, %v528
        %v533 = vadd.f32 %v483, %v529
        %v534 = vadd.f32 %v484, %v530
        %v535 = vld [vmem:[%s320] sm:$0xf]
        %s536 = scalar_lea.vmem %s4, 16
        %v537 = vld [vmem:[%s536] sm:$0x1]
        %v538 = vld [vmem:[%s536 + $0x1] sm:$0x1]
        %v539 = vld [vmem:[%s536 + $0x2] sm:$0x1]
        %v540 = vld [vmem:[%s536 + $0x3] sm:$0x1]
        %v545 = vlaneseq
        %v546 = vshrl.u32 %v545, 7
        %v547 = vsub.s32 0, %v546
        %v548 = vrot.slane %v537, %v547
        %v549 = vlaneseq
        %v550 = vshrl.u32 %v549, 7
        %v551 = vsub.s32 0, %v550
        %v552 = vrot.slane %v538, %v551
        %v553 = vlaneseq
        %v554 = vshrl.u32 %v553, 7
        %v555 = vsub.s32 0, %v554
        %v556 = vrot.slane %v539, %v555
        %v557 = vlaneseq
        %v558 = vshrl.u32 %v557, 7
        %v559 = vsub.s32 0, %v558
        %v560 = vrot.slane %v540, %v559
        %561 = vset.pattern.permute.xlu0 0
        %562 = vperm.xlu0 %561, %v548
        %v563 = vpop.permute.xlu0 %562
        %565 = vset.pattern.permute.xlu0 0
        %566 = vperm.xlu0 %565, %v552
        %v567 = vpop.permute.xlu0 %566
        %569 = vset.pattern.permute.xlu0 0
        %570 = vperm.xlu0 %569, %v556
        %v571 = vpop.permute.xlu0 %570
        %573 = vset.pattern.permute.xlu0 0
        %574 = vperm.xlu0 %573, %v560
        %v575 = vpop.permute.xlu0 %574
        %v577 = vmul.f32 %v563, %v535
        %v578 = vmul.f32 %v567, %v535
        %v579 = vmul.f32 %v571, %v535
        %v580 = vmul.f32 %v575, %v535
        %v581 = vadd.f32 %v531, %v577
        %v582 = vadd.f32 %v532, %v578
        %v583 = vadd.f32 %v533, %v579
        %v584 = vadd.f32 %v534, %v580
        %s585 = scalar_lea.vmem %s4, 20
        %v586 = vld [vmem:[%s585] sm:$0x1]
        %v587 = vld [vmem:[%s585 + $0x1] sm:$0x1]
        %v588 = vld [vmem:[%s585 + $0x2] sm:$0x1]
        %v589 = vld [vmem:[%s585 + $0x3] sm:$0x1]
        %v594 = vlaneseq
        %v595 = vshrl.u32 %v594, 7
        %v596 = vsub.s32 0, %v595
        %v597 = vrot.slane %v586, %v596
        %v598 = vlaneseq
        %v599 = vshrl.u32 %v598, 7
        %v600 = vsub.s32 0, %v599
        %v601 = vrot.slane %v587, %v600
        %v602 = vlaneseq
        %v603 = vshrl.u32 %v602, 7
        %v604 = vsub.s32 0, %v603
        %v605 = vrot.slane %v588, %v604
        %v606 = vlaneseq
        %v607 = vshrl.u32 %v606, 7
        %v608 = vsub.s32 0, %v607
        %v609 = vrot.slane %v589, %v608
        %610 = vset.pattern.permute.xlu0 0
        %611 = vperm.xlu0 %610, %v597
        %v612 = vpop.permute.xlu0 %611
        %614 = vset.pattern.permute.xlu0 0
        %615 = vperm.xlu0 %614, %v601
        %v616 = vpop.permute.xlu0 %615
        %618 = vset.pattern.permute.xlu0 0
        %619 = vperm.xlu0 %618, %v605
        %v620 = vpop.permute.xlu0 %619
        %622 = vset.pattern.permute.xlu0 0
        %623 = vperm.xlu0 %622, %v609
        %v624 = vpop.permute.xlu0 %623
        %v626 = vmul.f32 %v612, %v485
        %v627 = vmul.f32 %v616, %v485
        %v628 = vmul.f32 %v620, %v485
        %v629 = vmul.f32 %v624, %v485
        %634 = vrot.lane.b32.xlu0 %v626, 127
        %v635 = vpop.permute.xlu0 %634
        %636 = vrot.lane.b32.xlu0 %v627, 127
        %v637 = vpop.permute.xlu0 %636
        %638 = vrot.lane.b32.xlu0 %v628, 127
        %v639 = vpop.permute.xlu0 %638
        %640 = vrot.lane.b32.xlu0 %v629, 127
        %v641 = vpop.permute.xlu0 %640
        %v646 = vadd.f32 %v581, %v635
        %v647 = vadd.f32 %v582, %v637
        %v648 = vadd.f32 %v583, %v639
        %v649 = vadd.f32 %v584, %v641
        %v650 = vld [vmem:[%s308 + $0x1] sm:$0xf]
        %s651 = scalar_lea.vmem %s4, 24
        %v652 = vld [vmem:[%s651] sm:$0x1]
        %v653 = vld [vmem:[%s651 + $0x1] sm:$0x1]
        %v654 = vld [vmem:[%s651 + $0x2] sm:$0x1]
        %v655 = vld [vmem:[%s651 + $0x3] sm:$0x1]
        %v660 = vlaneseq
        %v661 = vshrl.u32 %v660, 7
        %v662 = vsub.s32 0, %v661
        %v663 = vrot.slane %v652, %v662
        %v664 = vlaneseq
        %v665 = vshrl.u32 %v664, 7
        %v666 = vsub.s32 0, %v665
        %v667 = vrot.slane %v653, %v666
        %v668 = vlaneseq
        %v669 = vshrl.u32 %v668, 7
        %v670 = vsub.s32 0, %v669
        %v671 = vrot.slane %v654, %v670
        %v672 = vlaneseq
        %v673 = vshrl.u32 %v672, 7
        %v674 = vsub.s32 0, %v673
        %v675 = vrot.slane %v655, %v674
        %676 = vset.pattern.permute.xlu0 0
        %677 = vperm.xlu0 %676, %v663
        %v678 = vpop.permute.xlu0 %677
        %680 = vset.pattern.permute.xlu0 0
        %681 = vperm.xlu0 %680, %v667
        %v682 = vpop.permute.xlu0 %681
        %684 = vset.pattern.permute.xlu0 0
        %685 = vperm.xlu0 %684, %v671
        %v686 = vpop.permute.xlu0 %685
        %688 = vset.pattern.permute.xlu0 0
        %689 = vperm.xlu0 %688, %v675
        %v690 = vpop.permute.xlu0 %689
        %v692 = vmul.f32 %v678, %v650
        %v693 = vmul.f32 %v682, %v650
        %v694 = vmul.f32 %v686, %v650
        %v695 = vmul.f32 %v690, %v650
        %v696 = vadd.f32 %v646, %v692
        %v697 = vadd.f32 %v647, %v693
        %v698 = vadd.f32 %v648, %v694
        %v699 = vadd.f32 %v649, %v695
        %v700 = vld [vmem:[%s312 + $0x1] sm:$0xf]
        %s701 = scalar_lea.vmem %s4, 28
        %v702 = vld [vmem:[%s701] sm:$0x1]
        %v703 = vld [vmem:[%s701 + $0x1] sm:$0x1]
        %v704 = vld [vmem:[%s701 + $0x2] sm:$0x1]
        %v705 = vld [vmem:[%s701 + $0x3] sm:$0x1]
        %v710 = vlaneseq
        %v711 = vshrl.u32 %v710, 7
        %v712 = vsub.s32 0, %v711
        %v713 = vrot.slane %v702, %v712
        %v714 = vlaneseq
        %v715 = vshrl.u32 %v714, 7
        %v716 = vsub.s32 0, %v715
        %v717 = vrot.slane %v703, %v716
        %v718 = vlaneseq
        %v719 = vshrl.u32 %v718, 7
        %v720 = vsub.s32 0, %v719
        %v721 = vrot.slane %v704, %v720
        %v722 = vlaneseq
        %v723 = vshrl.u32 %v722, 7
        %v724 = vsub.s32 0, %v723
        %v725 = vrot.slane %v705, %v724
        %726 = vset.pattern.permute.xlu0 0
        %727 = vperm.xlu0 %726, %v713
        %v728 = vpop.permute.xlu0 %727
        %730 = vset.pattern.permute.xlu0 0
        %731 = vperm.xlu0 %730, %v717
        %v732 = vpop.permute.xlu0 %731
        %734 = vset.pattern.permute.xlu0 0
        %735 = vperm.xlu0 %734, %v721
        %v736 = vpop.permute.xlu0 %735
        %738 = vset.pattern.permute.xlu0 0
        %739 = vperm.xlu0 %738, %v725
        %v740 = vpop.permute.xlu0 %739
        %v742 = vmul.f32 %v728, %v700
        %v743 = vmul.f32 %v732, %v700
        %v744 = vmul.f32 %v736, %v700
        %v745 = vmul.f32 %v740, %v700
        %v746 = vadd.f32 %v696, %v742
        %v747 = vadd.f32 %v697, %v743
        %v748 = vadd.f32 %v698, %v744
        %v749 = vadd.f32 %v699, %v745
        %s750 = scalar_lea.vmem %s4, 32
        %v751 = vld [vmem:[%s750] sm:$0x1]
        %v752 = vld [vmem:[%s750 + $0x1] sm:$0x1]
        %v753 = vld [vmem:[%s750 + $0x2] sm:$0x1]
        %v754 = vld [vmem:[%s750 + $0x3] sm:$0x1]
        %v759 = vlaneseq
        %v760 = vshrl.u32 %v759, 7
        %v761 = vsub.s32 0, %v760
        %v762 = vrot.slane %v751, %v761
        %v763 = vlaneseq
        %v764 = vshrl.u32 %v763, 7
        %v765 = vsub.s32 0, %v764
        %v766 = vrot.slane %v752, %v765
        %v767 = vlaneseq
        %v768 = vshrl.u32 %v767, 7
        %v769 = vsub.s32 0, %v768
        %v770 = vrot.slane %v753, %v769
        %v771 = vlaneseq
        %v772 = vshrl.u32 %v771, 7
        %v773 = vsub.s32 0, %v772
        %v774 = vrot.slane %v754, %v773
        %775 = vset.pattern.permute.xlu0 0
        %776 = vperm.xlu0 %775, %v762
        %v777 = vpop.permute.xlu0 %776
        %779 = vset.pattern.permute.xlu0 0
        %780 = vperm.xlu0 %779, %v766
        %v781 = vpop.permute.xlu0 %780
        %783 = vset.pattern.permute.xlu0 0
        %784 = vperm.xlu0 %783, %v770
        %v785 = vpop.permute.xlu0 %784
        %787 = vset.pattern.permute.xlu0 0
        %788 = vperm.xlu0 %787, %v774
        %v789 = vpop.permute.xlu0 %788
        %v791 = vmul.f32 %v777, %v650
        %v792 = vmul.f32 %v781, %v650
        %v793 = vmul.f32 %v785, %v650
        %v794 = vmul.f32 %v789, %v650
        %799 = vrot.lane.b32.xlu0 %v791, 127
        %v800 = vpop.permute.xlu0 %799
        %801 = vrot.lane.b32.xlu0 %v792, 127
        %v802 = vpop.permute.xlu0 %801
        %803 = vrot.lane.b32.xlu0 %v793, 127
        %v804 = vpop.permute.xlu0 %803
        %805 = vrot.lane.b32.xlu0 %v794, 127
        %v806 = vpop.permute.xlu0 %805
        %v811 = vadd.f32 %v746, %v800
        %v812 = vadd.f32 %v747, %v802
        %v813 = vadd.f32 %v748, %v804
        %v814 = vadd.f32 %v749, %v806
        %v815 = vld [vmem:[%s5] sm:$0x1]
        %v816 = vld [vmem:[%s5 + $0x1] sm:$0x1]
        %v817 = vld [vmem:[%s5 + $0x2] sm:$0x1]
        %v818 = vld [vmem:[%s5 + $0x3] sm:$0x1]
        %v823 = vlaneseq
        %v824 = vshrl.u32 %v823, 7
        %v825 = vsub.s32 0, %v824
        %v826 = vrot.slane %v815, %v825
        %v827 = vlaneseq
        %v828 = vshrl.u32 %v827, 7
        %v829 = vsub.s32 0, %v828
        %v830 = vrot.slane %v816, %v829
        %v831 = vlaneseq
        %v832 = vshrl.u32 %v831, 7
        %v833 = vsub.s32 0, %v832
        %v834 = vrot.slane %v817, %v833
        %v835 = vlaneseq
        %v836 = vshrl.u32 %v835, 7
        %v837 = vsub.s32 0, %v836
        %v838 = vrot.slane %v818, %v837
        %839 = vset.pattern.permute.xlu0 0
        %840 = vperm.xlu0 %839, %v826
        %v841 = vpop.permute.xlu0 %840
        %843 = vset.pattern.permute.xlu0 0
        %844 = vperm.xlu0 %843, %v830
        %v845 = vpop.permute.xlu0 %844
        %847 = vset.pattern.permute.xlu0 0
        %848 = vperm.xlu0 %847, %v834
        %v849 = vpop.permute.xlu0 %848
        %851 = vset.pattern.permute.xlu0 0
        %852 = vperm.xlu0 %851, %v838
        %v853 = vpop.permute.xlu0 %852
        %v855 = vmul.f32 %v811, %v841
        %v856 = vmul.f32 %v812, %v845
        %v857 = vmul.f32 %v813, %v849
        %v858 = vmul.f32 %v814, %v853
        %v859 = vld [vmem:[%s6] sm:$0x1]
        %v860 = vld [vmem:[%s6 + $0x1] sm:$0x1]
        %v861 = vld [vmem:[%s6 + $0x2] sm:$0x1]
        %v862 = vld [vmem:[%s6 + $0x3] sm:$0x1]
        %v867 = vlaneseq
        %v868 = vshrl.u32 %v867, 7
        %v869 = vsub.s32 0, %v868
        %v870 = vrot.slane %v859, %v869
        %v871 = vlaneseq
        %v872 = vshrl.u32 %v871, 7
        %v873 = vsub.s32 0, %v872
        %v874 = vrot.slane %v860, %v873
        %v875 = vlaneseq
        %v876 = vshrl.u32 %v875, 7
        %v877 = vsub.s32 0, %v876
        %v878 = vrot.slane %v861, %v877
        %v879 = vlaneseq
        %v880 = vshrl.u32 %v879, 7
        %v881 = vsub.s32 0, %v880
        %v882 = vrot.slane %v862, %v881
        %883 = vset.pattern.permute.xlu0 0
        %884 = vperm.xlu0 %883, %v870
        %v885 = vpop.permute.xlu0 %884
        %887 = vset.pattern.permute.xlu0 0
        %888 = vperm.xlu0 %887, %v874
        %v889 = vpop.permute.xlu0 %888
        %891 = vset.pattern.permute.xlu0 0
        %892 = vperm.xlu0 %891, %v878
        %v893 = vpop.permute.xlu0 %892
        %895 = vset.pattern.permute.xlu0 0
        %896 = vperm.xlu0 %895, %v882
        %v897 = vpop.permute.xlu0 %896
        %v899 = vadd.f32 %v855, %v885
        %v900 = vadd.f32 %v856, %v889
        %v901 = vadd.f32 %v857, %v893
        %v902 = vadd.f32 %v858, %v897
        %v903 = vmax.f32 %v899, 0.0
        %v904 = vmax.f32 %v900, 0.0
        %v905 = vmax.f32 %v901, 0.0
        %v906 = vmax.f32 %v902, 0.0
        %vm907 = vcmask 60416
        %908 = vst.msk [vmem:[%s304] sm:$0xf] %vm907, %v903
        %909 = vst.msk [vmem:[%s304 + $0x4] sm:$0xf] %vm907, %v904
        %910 = vst.msk [vmem:[%s304 + $0x8] sm:$0xf] %vm907, %v905
        %911 = vst.msk [vmem:[%s304 + $0xc] sm:$0xf] %vm907, %v906
        %s912 = sand.u32 %s193, 1
        %s913 = sand.u32 %s193, 1
        %s914 = smul.addr %s913, 16
        %s915 = scalar_lea.vmem [#allocation2], %s914
        // Predicated region
        $region49: #{reference_encoder_forward.4} parent=47 // pred_check
          %p916 = pneg %p203
        $region50: #{reference_encoder_forward.4} parent=47 // pred_check_branch
          %918 = sbr.rel (%p916) target = $region52
        $region51: #{reference_encoder_forward.4} parent=47 // pred_region
          %s919 = smul.addr %s18, 4
          %s920 = scalar_lea.vmem %s7, %s919
          // Predicated region
          $region53: #{reference_encoder_forward.4} parent=51 // pred_check
            _
          $region54: #{reference_encoder_forward.4} parent=51 // pred_check_branch
            %922 = sbr.rel (0) target = $region56
          $region55: #{reference_encoder_forward.4} parent=51 // pred_region
            // Predicated region
            $region57: #{reference_encoder_forward.4} parent=55 // pred_check
              _
            $region58: #{reference_encoder_forward.4} parent=55 // pred_check_branch
              %924 = sbr.rel target = $region60
            $region59: #{reference_encoder_forward.4} parent=55 // pred_region
              // Predicated region
              $region72: #{reference_encoder_forward.4} parent=59 // pred_check
                _
              $region73: #{reference_encoder_forward.4} parent=59 // pred_check_branch
                %945 = sbr.rel (0) target = $region75
              $region74: #{reference_encoder_forward.4} parent=59 // pred_region
                loop: start=0, step=1, limit=1
                $region76: #{reference_encoder_forward.4} parent=74 // loop_pre_header
                  _
                $region77: #{reference_encoder_forward.4} parent=74 // loop_header
                  %s947 = sphi 0, %s951
                  %p948 = scmp.ge.s32.totalorder %s947, 1
                  %s952 = sphi %s915, %s915
                  %s953 = sphi %s920, %s920
                $region78: #{reference_encoder_forward.4} parent=74 // loop_header_branch
                  %950 = sbr.rel (%p948) target = $region82
                $region79: #{reference_encoder_forward.4} parent=74 // loop_body
                  _
                $region80: #{reference_encoder_forward.4} parent=74 // loop_footer
                  %s951 = sadd.s32 1, %s947
                $region81: #{reference_encoder_forward.4} parent=74 // loop_footer_branch
                  %946 = sbr.rel target = $region77
                $region82: #{reference_encoder_forward.4} parent=74 // loop_exit
                  _
                loop: start=0, step=1, limit=1
                $region83: #{reference_encoder_forward.4} parent=74 // loop_pre_header
                  _
                $region84: #{reference_encoder_forward.4} parent=74 // loop_header
                  %s956 = sphi 0, %s960
                  %p957 = scmp.ge.s32.totalorder %s956, 1
                  %s961 = sphi %s915, %s915
                  %s962 = sphi %s920, %s920
                $region85: #{reference_encoder_forward.4} parent=74 // loop_header_branch
                  %959 = sbr.rel (%p957) target = $region89
                $region86: #{reference_encoder_forward.4} parent=74 // loop_body
                  %v963 = vld [vmem:[%s961] sm:$0xf]
                  %964 = vst [vmem:[%s962] sm:$0xf] %v963
                  %v965 = vld [vmem:[%s961 + $0x4] sm:$0xf]
                  %966 = vst [vmem:[%s962 + $0x8] sm:$0xf] %v965
                  %v967 = vld [vmem:[%s961 + $0x8] sm:$0xf]
                  %968 = vst [vmem:[%s962 + $0x10] sm:$0xf] %v967
                  %v969 = vld [vmem:[%s961 + $0xc] sm:$0xf]
                  %970 = vst [vmem:[%s962 + $0x18] sm:$0xf] %v969
                $region87: #{reference_encoder_forward.4} parent=74 // loop_footer
                  %s960 = sadd.s32 1, %s956
                $region88: #{reference_encoder_forward.4} parent=74 // loop_footer_branch
                  %955 = sbr.rel target = $region84
                $region89: #{reference_encoder_forward.4} parent=74 // loop_exit
                  _
              $region75: #{reference_encoder_forward.4} parent=59 // pred_fallthru
                _
            $region60: #{reference_encoder_forward.4} parent=55 // pred_fallthru
              _
            // Predicated region
            $region61: #{reference_encoder_forward.4} parent=55 // pred_check
              _
            $region62: #{reference_encoder_forward.4} parent=55 // pred_check_branch
              %926 = sbr.rel (0) target = $region64
            $region63: #{reference_encoder_forward.4} parent=55 // pred_region
              loop: start=0, step=1, limit=1
              $region65: #{reference_encoder_forward.4} parent=63 // loop_pre_header
                _
              $region66: #{reference_encoder_forward.4} parent=63 // loop_header
                %s929 = sphi 0, %s933
                %p930 = scmp.ge.s32.totalorder %s929, 1
                %s934 = sphi %s915, %s915
                %s935 = sphi %s920, %s920
              $region67: #{reference_encoder_forward.4} parent=63 // loop_header_branch
                %932 = sbr.rel (%p930) target = $region71
              $region68: #{reference_encoder_forward.4} parent=63 // loop_body
                %v936 = vld [vmem:[%s934] sm:$0xf]
                %937 = vst [vmem:[%s935] sm:$0xf] %v936
                %v938 = vld [vmem:[%s934 + $0x4] sm:$0xf]
                %939 = vst [vmem:[%s935 + $0x8] sm:$0xf] %v938
                %v940 = vld [vmem:[%s934 + $0x8] sm:$0xf]
                %941 = vst [vmem:[%s935 + $0x10] sm:$0xf] %v940
                %v942 = vld [vmem:[%s934 + $0xc] sm:$0xf]
                %943 = vst [vmem:[%s935 + $0x18] sm:$0xf] %v942
              $region69: #{reference_encoder_forward.4} parent=63 // loop_footer
                %s933 = sadd.s32 1, %s929
              $region70: #{reference_encoder_forward.4} parent=63 // loop_footer_branch
                %928 = sbr.rel target = $region66
              $region71: #{reference_encoder_forward.4} parent=63 // loop_exit
                _
            $region64: #{reference_encoder_forward.4} parent=55 // pred_fallthru
              _
          $region56: #{reference_encoder_forward.4} parent=51 // pred_fallthru
            _
          %971 = vnop
        $region52: #{reference_encoder_forward.4} parent=47 // pred_fallthru
          _
      $region48: #{reference_encoder_forward.4} parent=5 // pred_fallthru
        _
      %p972 = scmp.le.s32.totalorder 2, %s13
      // Predicated region
      $region90: #{reference_encoder_forward.4} parent=5 // pred_check
        %p973 = pneg %p972
      $region91: #{reference_encoder_forward.4} parent=5 // pred_check_branch
        %975 = sbr.rel (%p973) target = $region93
      $region92: #{reference_encoder_forward.4} parent=5 // pred_region
        %s976 = ssub.s32 %s13, 2
        // Predicated region
        $region94: #{reference_encoder_forward.4} parent=92 // pred_check
          %p977 = pneg %p209
        $region95: #{reference_encoder_forward.4} parent=92 // pred_check_branch
          %979 = sbr.rel (%p977) target = $region97
        $region96: #{reference_encoder_forward.4} parent=92 // pred_region
          %s980 = sand.u32 %s194, 1
          %s981 = sand.u32 %s194, 1
          %s982 = smul.addr %s981, 16
          %s983 = scalar_lea.vmem [#allocation2], %s982
        $region97: #{reference_encoder_forward.4} parent=92 // pred_fallthru
          _
      $region93: #{reference_encoder_forward.4} parent=5 // pred_fallthru
        _
    $region6: #{reference_encoder_forward.4} parent=1 // loop_footer
      %s17 = sadd.s32 1, %s13
    $region7: #{reference_encoder_forward.4} parent=1 // loop_footer_branch
      %12 = sbr.rel target = $region3
    $region8: #{reference_encoder_forward.4} parent=1 // loop_exit
      _

// kernel: reference_encoder_forward.7
$region0: #{reference_encoder_forward.7}
  #allocation0 [shape = 'u32[]', space=smem, size = 0x4, offset = 0x4, fixed_abs, tag = 'smem constant byte address 0x4 - core index']
  #allocation1 [shape = 'u32[144,128]{1,0:T(1,128)}', space=vmem, size = 0x12000, scoped, tag = 'internal scratch']
  %s0 = inlined_call_operand.vmem [shape: f32[2,2,384], index: 0, kind: input, shape index: {}]
  %s1 = inlined_call_operand.vmem [shape: f32[128,384], index: 1, kind: input, shape index: {}]
  %s2 = inlined_call_operand.vmem [shape: f32[1,384], index: 2, kind: input, shape index: {}]
  %s3 = inlined_call_operand.hbm [shape: f32[2,128], index: 3, kind: output, shape index: {}]
  %s4 = sld [smem:[#allocation0]]
  $region26: #{reference_encoder_forward.7} parent=0
    _
  %s6 = ssub.s32 1, %s4
  %s7 = scalar_select 0, %s6, %s4
  $region1: #{reference_encoder_forward.7} parent=0
    #allocation2 [shape = 'u8[1024]{0}', space=vmem, size = 0x400, scoped, tag = 'output window, operand 0, single buffered']
    #allocation3 [shape = 's32[1]{0}', space=sflag, size = 0x4, scoped, tag = 'scoped memory for reference_encoder_forward.7']
    %8 = vsyncpa [#allocation3], 0
    // Predicated region
    $region2: #{reference_encoder_forward.7} parent=1 // pred_check
      _
    $region3: #{reference_encoder_forward.7} parent=1 // pred_check_branch
      %10 = sbr.rel (0) target = $region5
    $region4: #{reference_encoder_forward.7} parent=1 // pred_region
      _
    $region5: #{reference_encoder_forward.7} parent=1 // pred_fallthru
      _
    // Predicated region
    $region6: #{reference_encoder_forward.7} parent=1 // pred_check
      _
    $region7: #{reference_encoder_forward.7} parent=1 // pred_check_branch
      %12 = sbr.rel (0) target = $region9
    $region8: #{reference_encoder_forward.7} parent=1 // pred_region
      _
    $region9: #{reference_encoder_forward.7} parent=1 // pred_fallthru
      _
    // Predicated region
    $region10: #{reference_encoder_forward.7} parent=1 // pred_check
      _
    $region11: #{reference_encoder_forward.7} parent=1 // pred_check_branch
      %14 = sbr.rel (0) target = $region13
    $region12: #{reference_encoder_forward.7} parent=1 // pred_region
      _
    $region13: #{reference_encoder_forward.7} parent=1 // pred_fallthru
      _
    %p15 = scmp.eq.s32.totalorder 0, 0
    // Predicated region
    $region14: #{reference_encoder_forward.7} parent=1 // pred_check
      %p16 = pneg %p15
    $region15: #{reference_encoder_forward.7} parent=1 // pred_check_branch
      %18 = sbr.rel (%p16) target = $region17
    $region16: #{reference_encoder_forward.7} parent=1 // pred_region
      %19 = vst [vmem:[#allocation2] sm:$0x3] 0.0
    $region17: #{reference_encoder_forward.7} parent=1 // pred_fallthru
      _
    %v20 = vld [vmem:[%s1] sm:$0xff]
    %v21 = vld [vmem:[%s1 + $0x8] sm:$0xff]
    %v22 = vld [vmem:[%s1 + $0x10] sm:$0xff]
    %v23 = vld [vmem:[%s1 + $0x18] sm:$0xff]
    %v24 = vld [vmem:[%s1 + $0x20] sm:$0xff]
    %v25 = vld [vmem:[%s1 + $0x28] sm:$0xff]
    %v26 = vld [vmem:[%s1 + $0x30] sm:$0xff]
    %v27 = vld [vmem:[%s1 + $0x38] sm:$0xff]
    %v28 = vld [vmem:[%s1 + $0x40] sm:$0xff]
    %v29 = vld [vmem:[%s1 + $0x48] sm:$0xff]
    %v30 = vld [vmem:[%s1 + $0x50] sm:$0xff]
    %v31 = vld [vmem:[%s1 + $0x58] sm:$0xff]
    %v32 = vld [vmem:[%s1 + $0x60] sm:$0xff]
    %v33 = vld [vmem:[%s1 + $0x68] sm:$0xff]
    %v34 = vld [vmem:[%s1 + $0x70] sm:$0xff]
    %v35 = vld [vmem:[%s1 + $0x78] sm:$0xff]
    %v36 = vld [vmem:[%s1 + $0x80] sm:$0xff]
    %v37 = vld [vmem:[%s1 + $0x88] sm:$0xff]
    %v38 = vld [vmem:[%s1 + $0x90] sm:$0xff]
    %v39 = vld [vmem:[%s1 + $0x98] sm:$0xff]
    %v40 = vld [vmem:[%s1 + $0xa0] sm:$0xff]
    %v41 = vld [vmem:[%s1 + $0xa8] sm:$0xff]
    %v42 = vld [vmem:[%s1 + $0xb0] sm:$0xff]
    %v43 = vld [vmem:[%s1 + $0xb8] sm:$0xff]
    %v44 = vld [vmem:[%s1 + $0xc0] sm:$0xff]
    %v45 = vld [vmem:[%s1 + $0xc8] sm:$0xff]
    %v46 = vld [vmem:[%s1 + $0xd0] sm:$0xff]
    %v47 = vld [vmem:[%s1 + $0xd8] sm:$0xff]
    %v48 = vld [vmem:[%s1 + $0xe0] sm:$0xff]
    %v49 = vld [vmem:[%s1 + $0xe8] sm:$0xff]
    %v50 = vld [vmem:[%s1 + $0xf0] sm:$0xff]
    %v51 = vld [vmem:[%s1 + $0xf8] sm:$0xff]
    %v52 = vld [vmem:[%s1 + $0x100] sm:$0xff]
    %v53 = vld [vmem:[%s1 + $0x108] sm:$0xff]
    %v54 = vld [vmem:[%s1 + $0x110] sm:$0xff]
    %v55 = vld [vmem:[%s1 + $0x118] sm:$0xff]
    %v56 = vld [vmem:[%s1 + $0x120] sm:$0xff]
    %v57 = vld [vmem:[%s1 + $0x128] sm:$0xff]
    %v58 = vld [vmem:[%s1 + $0x130] sm:$0xff]
    %v59 = vld [vmem:[%s1 + $0x138] sm:$0xff]
    %v60 = vld [vmem:[%s1 + $0x140] sm:$0xff]
    %v61 = vld [vmem:[%s1 + $0x148] sm:$0xff]
    %v62 = vld [vmem:[%s1 + $0x150] sm:$0xff]
    %v63 = vld [vmem:[%s1 + $0x158] sm:$0xff]
    %v64 = vld [vmem:[%s1 + $0x160] sm:$0xff]
    %v65 = vld [vmem:[%s1 + $0x168] sm:$0xff]
    %v66 = vld [vmem:[%s1 + $0x170] sm:$0xff]
    %v67 = vld [vmem:[%s1 + $0x178] sm:$0xff]
    %v68 = vld [vmem:[%s2] sm:$0x7]
    %s69 = smul.u32 0, 2
    %v70 = vld [vmem:[#allocation2] sm:$0x3]
    %v71 = vld [vmem:[%s0] sm:$0x3f]
    %v73 = vlaneseq
    %v74 = vshrl.u32 %v73, 7
    %v75 = vsub.s32 0, %v74
    %v76 = vrot.slane %v68, %v75
    %v77 = vlaneseq
    %v78 = vshrl.u32 %v77, 7
    %v79 = vsub.s32 1, %v78
    %v80 = vrot.slane %v68, %v79
    %v81 = vlaneseq
    %v82 = vshrl.u32 %v81, 7
    %v83 = vsub.s32 2, %v82
    %v84 = vrot.slane %v68, %v83
    %88 = vmatprep.subr.mxu0 %v21
    %89 = vmatpush1.msra.mxu0 %v20
    %90 = vmatprep.subr.mxu0 %v24
    %91 = vmatpush1.msra.mxu0 %v23
    %92 = vmatprep.subr.mxu0 %v27
    %93 = vmatpush1.msra.mxu0 %v26
    %94 = vmatprep.subr.mxu0 %v30
    %95 = vmatpush1.msra.mxu0 %v29
    %96 = vmatprep.subr.mxu0 %v33
    %97 = vmatpush1.msra.mxu0 %v32
    %98 = vmatprep.subr.mxu0 %v36
    %99 = vmatpush1.msra.mxu0 %v35
    %100 = vmatprep.subr.mxu0 %v39
    %101 = vmatpush1.msra.mxu0 %v38
    %102 = vmatprep.subr.mxu0 %v42
    %103 = vmatpush1.msra.mxu0 %v41
    %104 = vmatprep.subr.mxu0 %v45
    %105 = vmatpush1.msra.mxu0 %v44
    %106 = vmatprep.subr.mxu0 %v48
    %107 = vmatpush1.msra.mxu0 %v47
    %108 = vmatprep.subr.mxu0 %v51
    %109 = vmatpush1.msra.mxu0 %v50
    %110 = vmatprep.subr.mxu0 %v54
    %111 = vmatpush1.msra.mxu0 %v53
    %112 = vmatprep.subr.mxu0 %v57
    %113 = vmatpush1.msra.mxu0 %v56
    %114 = vmatprep.subr.mxu0 %v60
    %115 = vmatpush1.msra.mxu0 %v59
    %116 = vmatprep.subr.mxu0 %v63
    %117 = vmatpush1.msra.mxu0 %v62
    %118 = vmatprep.subr.mxu0 %v66
    %119 = vmatpush1.msra.mxu0 %v65
    %120 = vmatprep.subr.mxu0 0.0
    %121 = vmatpush1.msra.mxu0 0.0
    %122 = vmatprep.subr.mxu0 0.0
    %123 = vmatpush1.msra.mxu0 0.0
    %124 = vmatprep.subr.mxu0 0.0
    %125 = vmatpush1.msra.mxu0 0.0
    %126 = vmatprep.subr.mxu0 0.0
    %127 = vmatpush1.msra.mxu0 0.0
    %128 = vmatprep.subr.mxu0 0.0
    %129 = vmatpush1.msra.mxu0 0.0
    %130 = vmatprep.subr.mxu0 0.0
    %131 = vmatpush1.msra.mxu0 0.0
    %132 = vmatprep.subr.mxu0 0.0
    %133 = vmatpush1.msra.mxu0 0.0
    %134 = vmatprep.subr.mxu0 0.0
    %135 = vmatpush1.msra.mxu0 0.0
    %136 = vmatprep.subr.mxu0 0.0
    %137 = vmatpush1.msra.mxu0 0.0
    %138 = vmatprep.subr.mxu0 0.0
    %139 = vmatpush1.msra.mxu0 0.0
    %140 = vmatprep.subr.mxu0 0.0
    %141 = vmatpush1.msra.mxu0 0.0
    %142 = vmatprep.subr.mxu0 0.0
    %143 = vmatpush1.msra.mxu0 0.0
    %144 = vmatprep.subr.mxu0 0.0
    %145 = vmatpush1.msra.mxu0 0.0
    %146 = vmatprep.subr.mxu0 0.0
    %147 = vmatpush1.msra.mxu0 0.0
    %148 = vmatprep.subr.mxu0 0.0
    %149 = vmatpush1.msra.mxu0 0.0
    %150 = vmatprep.subr.mxu0 0.0
    %151 = vmatpush1.msra.mxu0 0.0
    %152 = vmatprep.mubr.f32.mxu0 0.0
    %153 = vmatmul.mubr.f32.gmra.mrb[0].mxu0 %v70
    %v154 = vpop.f32.mrb[0].mxu0
    %v155 = vadd.f32 %v76, %v154
    %v156 = vpop.f32.mrb[0].mxu0
    %v157 = vadd.f32 %v80, %v156
    %158 = vdwg.mxu0
    %159 = vmatprep.subr.mxu0 0.0
    %160 = vmatpush1.msra.mxu0 %v22
    %161 = vmatprep.subr.mxu0 0.0
    %162 = vmatpush1.msra.mxu0 %v25
    %163 = vmatprep.subr.mxu0 0.0
    %164 = vmatpush1.msra.mxu0 %v28
    %165 = vmatprep.subr.mxu0 0.0
    %166 = vmatpush1.msra.mxu0 %v31
    %167 = vmatprep.subr.mxu0 0.0
    %168 = vmatpush1.msra.mxu0 %v34
    %169 = vmatprep.subr.mxu0 0.0
    %170 = vmatpush1.msra.mxu0 %v37
    %171 = vmatprep.subr.mxu0 0.0
    %172 = vmatpush1.msra.mxu0 %v40
    %173 = vmatprep.subr.mxu0 0.0
    %174 = vmatpush1.msra.mxu0 %v43
    %175 = vmatprep.subr.mxu0 0.0
    %176 = vmatpush1.msra.mxu0 %v46
    %177 = vmatprep.subr.mxu0 0.0
    %178 = vmatpush1.msra.mxu0 %v49
    %179 = vmatprep.subr.mxu0 0.0
    %180 = vmatpush1.msra.mxu0 %v52
    %181 = vmatprep.subr.mxu0 0.0
    %182 = vmatpush1.msra.mxu0 %v55
    %183 = vmatprep.subr.mxu0 0.0
    %184 = vmatpush1.msra.mxu0 %v58
    %185 = vmatprep.subr.mxu0 0.0
    %186 = vmatpush1.msra.mxu0 %v61
    %187 = vmatprep.subr.mxu0 0.0
    %188 = vmatpush1.msra.mxu0 %v64
    %189 = vmatprep.subr.mxu0 0.0
    %190 = vmatpush1.msra.mxu0 %v67
    %191 = vmatprep.subr.mxu0 0.0
    %192 = vmatpush1.msra.mxu0 0.0
    %193 = vmatprep.subr.mxu0 0.0
    %194 = vmatpush1.msra.mxu0 0.0
    %195 = vmatprep.subr.mxu0 0.0
    %196 = vmatpush1.msra.mxu0 0.0
    %197 = vmatprep.subr.mxu0 0.0
    %198 = vmatpush1.msra.mxu0 0.0
    %199 = vmatprep.subr.mxu0 0.0
    %200 = vmatpush1.msra.mxu0 0.0
    %201 = vmatprep.subr.mxu0 0.0
    %202 = vmatpush1.msra.mxu0 0.0
    %203 = vmatprep.subr.mxu0 0.0
    %204 = vmatpush1.msra.mxu0 0.0
    %205 = vmatprep.subr.mxu0 0.0
    %206 = vmatpush1.msra.mxu0 0.0
    %207 = vmatprep.subr.mxu0 0.0
    %208 = vmatpush1.msra.mxu0 0.0
    %209 = vmatprep.subr.mxu0 0.0
    %210 = vmatpush1.msra.mxu0 0.0
    %211 = vmatprep.subr.mxu0 0.0
    %212 = vmatpush1.msra.mxu0 0.0
    %213 = vmatprep.subr.mxu0 0.0
    %214 = vmatpush1.msra.mxu0 0.0
    %215 = vmatprep.subr.mxu0 0.0
    %216 = vmatpush1.msra.mxu0 0.0
    %217 = vmatprep.subr.mxu0 0.0
    %218 = vmatpush1.msra.mxu0 0.0
    %219 = vmatprep.subr.mxu0 0.0
    %220 = vmatpush1.msra.mxu0 0.0
    %221 = vmatprep.subr.mxu0 0.0
    %222 = vmatpush1.msra.mxu0 0.0
    %223 = vmatprep.mubr.f32.mxu0 0.0
    %224 = vmatmul.mubr.f32.gmra.mrb[0].mxu0 %v70
    %v225 = vpop.f32.mrb[0].mxu0
    %v226 = vadd.f32 %v84, %v225
    %v227 = vpop.f32.mrb[0].mxu0
    %228 = vdwg.mxu0
    %v229 = vadd.f32 %v71, %v155
    %v230 = vxor.u32 %v229, 2147483648
    %v231 = vmul.f32 %v230, 1.442695
    %v232 = vpow.pop %v231
    %v233 = vadd.f32 %v232, 1.0
    %v234 = vrcp.pop %v233
    %v235 = vmul.f32 1.0, %v234
    %v237 = vrot.slane %v71, 2
    %v239 = vadd.f32 %v237, %v157
    %v240 = vxor.u32 %v239, 2147483648
    %v241 = vmul.f32 %v240, 1.442695
    %v242 = vpow.pop %v241
    %v243 = vadd.f32 %v242, 1.0
    %v244 = vrcp.pop %v243
    %v245 = vmul.f32 1.0, %v244
    %v246 = vmul.f32 %v235, %v226
    %v247 = vrot.slane %v71, 4
    %v249 = vadd.f32 %v247, %v246
    %v250 = vtanh.pop %v249
    %v251 = vsub.f32 1.0, %v245
    %v252 = vmul.f32 %v251, %v250
    %v253 = vmul.f32 %v245, %v70
    %v254 = vadd.f32 %v252, %v253
    %p255 = scmp.lt.s32.totalorder %s69, 2
    %s256 = scalar_select %p255, 1, 0
    %v257 = vstv %s256
    %vm258 = vcmp.eq.s32.totalorder %v257, 1
    %v259 = vsel %vm258, %v254, %v70
    %s260 = scalar_lea.vmem %s0, 6
    %v261 = vld [vmem:[%s260] sm:$0x3f]
    %262 = vmatprep.subr.mxu0 %v21
    %263 = vmatpush1.msra.mxu0 %v20
    %264 = vmatprep.subr.mxu0 %v24
    %265 = vmatpush1.msra.mxu0 %v23
    %266 = vmatprep.subr.mxu0 %v27
    %267 = vmatpush1.msra.mxu0 %v26
    %268 = vmatprep.subr.mxu0 %v30
    %269 = vmatpush1.msra.mxu0 %v29
    %270 = vmatprep.subr.mxu0 %v33
    %271 = vmatpush1.msra.mxu0 %v32
    %272 = vmatprep.subr.mxu0 %v36
    %273 = vmatpush1.msra.mxu0 %v35
    %274 = vmatprep.subr.mxu0 %v39
    %275 = vmatpush1.msra.mxu0 %v38
    %276 = vmatprep.subr.mxu0 %v42
    %277 = vmatpush1.msra.mxu0 %v41
    %278 = vmatprep.subr.mxu0 %v45
    %279 = vmatpush1.msra.mxu0 %v44
    %280 = vmatprep.subr.mxu0 %v48
    %281 = vmatpush1.msra.mxu0 %v47
    %282 = vmatprep.subr.mxu0 %v51
    %283 = vmatpush1.msra.mxu0 %v50
    %284 = vmatprep.subr.mxu0 %v54
    %285 = vmatpush1.msra.mxu0 %v53
    %286 = vmatprep.subr.mxu0 %v57
    %287 = vmatpush1.msra.mxu0 %v56
    %288 = vmatprep.subr.mxu0 %v60
    %289 = vmatpush1.msra.mxu0 %v59
    %290 = vmatprep.subr.mxu0 %v63
    %291 = vmatpush1.msra.mxu0 %v62
    %292 = vmatprep.subr.mxu0 %v66
    %293 = vmatpush1.msra.mxu0 %v65
    %294 = vmatprep.subr.mxu0 0.0
    %295 = vmatpush1.msra.mxu0 0.0
    %296 = vmatprep.subr.mxu0 0.0
    %297 = vmatpush1.msra.mxu0 0.0
    %298 = vmatprep.subr.mxu0 0.0
    %299 = vmatpush1.msra.mxu0 0.0
    %300 = vmatprep.subr.mxu0 0.0
    %301 = vmatpush1.msra.mxu0 0.0
    %302 = vmatprep.subr.mxu0 0.0
    %303 = vmatpush1.msra.mxu0 0.0
    %304 = vmatprep.subr.mxu0 0.0
    %305 = vmatpush1.msra.mxu0 0.0
    %306 = vmatprep.subr.mxu0 0.0
    %307 = vmatpush1.msra.mxu0 0.0
    %308 = vmatprep.subr.mxu0 0.0
    %309 = vmatpush1.msra.mxu0 0.0
    %310 = vmatprep.subr.mxu0 0.0
    %311 = vmatpush1.msra.mxu0 0.0
    %312 = vmatprep.subr.mxu0 0.0
    %313 = vmatpush1.msra.mxu0 0.0
    %314 = vmatprep.subr.mxu0 0.0
    %315 = vmatpush1.msra.mxu0 0.0
    %316 = vmatprep.subr.mxu0 0.0
    %317 = vmatpush1.msra.mxu0 0.0
    %318 = vmatprep.subr.mxu0 0.0
    %319 = vmatpush1.msra.mxu0 0.0
    %320 = vmatprep.subr.mxu0 0.0
    %321 = vmatpush1.msra.mxu0 0.0
    %322 = vmatprep.subr.mxu0 0.0
    %323 = vmatpush1.msra.mxu0 0.0
    %324 = vmatprep.subr.mxu0 0.0
    %325 = vmatpush1.msra.mxu0 0.0
    %326 = vmatprep.mubr.f32.mxu0 0.0
    %327 = vmatmul.mubr.f32.gmra.mrb[0].mxu0 %v259
    %v328 = vpop.f32.mrb[0].mxu0
    %v329 = vadd.f32 %v76, %v328
    %v330 = vpop.f32.mrb[0].mxu0
    %v331 = vadd.f32 %v80, %v330
    %332 = vdwg.mxu0
    %333 = vmatprep.subr.mxu0 0.0
    %334 = vmatpush1.msra.mxu0 %v22
    %335 = vmatprep.subr.mxu0 0.0
    %336 = vmatpush1.msra.mxu0 %v25
    %337 = vmatprep.subr.mxu0 0.0
    %338 = vmatpush1.msra.mxu0 %v28
    %339 = vmatprep.subr.mxu0 0.0
    %340 = vmatpush1.msra.mxu0 %v31
    %341 = vmatprep.subr.mxu0 0.0
    %342 = vmatpush1.msra.mxu0 %v34
    %343 = vmatprep.subr.mxu0 0.0
    %344 = vmatpush1.msra.mxu0 %v37
    %345 = vmatprep.subr.mxu0 0.0
    %346 = vmatpush1.msra.mxu0 %v40
    %347 = vmatprep.subr.mxu0 0.0
    %348 = vmatpush1.msra.mxu0 %v43
    %349 = vmatprep.subr.mxu0 0.0
    %350 = vmatpush1.msra.mxu0 %v46
    %351 = vmatprep.subr.mxu0 0.0
    %352 = vmatpush1.msra.mxu0 %v49
    %353 = vmatprep.subr.mxu0 0.0
    %354 = vmatpush1.msra.mxu0 %v52
    %355 = vmatprep.subr.mxu0 0.0
    %356 = vmatpush1.msra.mxu0 %v55
    %357 = vmatprep.subr.mxu0 0.0
    %358 = vmatpush1.msra.mxu0 %v58
    %359 = vmatprep.subr.mxu0 0.0
    %360 = vmatpush1.msra.mxu0 %v61
    %361 = vmatprep.subr.mxu0 0.0
    %362 = vmatpush1.msra.mxu0 %v64
    %363 = vmatprep.subr.mxu0 0.0
    %364 = vmatpush1.msra.mxu0 %v67
    %365 = vmatprep.subr.mxu0 0.0
    %366 = vmatpush1.msra.mxu0 0.0
    %367 = vmatprep.subr.mxu0 0.0
    %368 = vmatpush1.msra.mxu0 0.0
    %369 = vmatprep.subr.mxu0 0.0
    %370 = vmatpush1.msra.mxu0 0.0
    %371 = vmatprep.subr.mxu0 0.0
    %372 = vmatpush1.msra.mxu0 0.0
    %373 = vmatprep.subr.mxu0 0.0
    %374 = vmatpush1.msra.mxu0 0.0
    %375 = vmatprep.subr.mxu0 0.0
    %376 = vmatpush1.msra.mxu0 0.0
    %377 = vmatprep.subr.mxu0 0.0
    %378 = vmatpush1.msra.mxu0 0.0
    %379 = vmatprep.subr.mxu0 0.0
    %380 = vmatpush1.msra.mxu0 0.0
    %381 = vmatprep.subr.mxu0 0.0
    %382 = vmatpush1.msra.mxu0 0.0
    %383 = vmatprep.subr.mxu0 0.0
    %384 = vmatpush1.msra.mxu0 0.0
    %385 = vmatprep.subr.mxu0 0.0
    %386 = vmatpush1.msra.mxu0 0.0
    %387 = vmatprep.subr.mxu0 0.0
    %388 = vmatpush1.msra.mxu0 0.0
    %389 = vmatprep.subr.mxu0 0.0
    %390 = vmatpush1.msra.mxu0 0.0
    %391 = vmatprep.subr.mxu0 0.0
    %392 = vmatpush1.msra.mxu0 0.0
    %393 = vmatprep.subr.mxu0 0.0
    %394 = vmatpush1.msra.mxu0 0.0
    %395 = vmatprep.subr.mxu0 0.0
    %396 = vmatpush1.msra.mxu0 0.0
    %397 = vmatprep.mubr.f32.mxu0 0.0
    %398 = vmatmul.mubr.f32.gmra.mrb[0].mxu0 %v259
    %v399 = vpop.f32.mrb[0].mxu0
    %v400 = vadd.f32 %v84, %v399
    %v401 = vpop.f32.mrb[0].mxu0
    %402 = vdwg.mxu0
    %v403 = vadd.f32 %v261, %v329
    %v404 = vxor.u32 %v403, 2147483648
    %v405 = vmul.f32 %v404, 1.442695
    %v406 = vpow.pop %v405
    %v407 = vadd.f32 %v406, 1.0
    %v408 = vrcp.pop %v407
    %v409 = vmul.f32 1.0, %v408
    %v411 = vrot.slane %v261, 2
    %v413 = vadd.f32 %v411, %v331
    %v414 = vxor.u32 %v413, 2147483648
    %v415 = vmul.f32 %v414, 1.442695
    %v416 = vpow.pop %v415
    %v417 = vadd.f32 %v416, 1.0
    %v418 = vrcp.pop %v417
    %v419 = vmul.f32 1.0, %v418
    %v420 = vmul.f32 %v409, %v400
    %v421 = vrot.slane %v261, 4
    %v423 = vadd.f32 %v421, %v420
    %v424 = vtanh.pop %v423
    %v425 = vsub.f32 1.0, %v419
    %v426 = vmul.f32 %v425, %v424
    %v427 = vmul.f32 %v419, %v259
    %v428 = vadd.f32 %v426, %v427
    %s429 = sadd.s32 %s69, 1
    %p430 = scmp.lt.s32.totalorder %s429, 2
    %s431 = scalar_select %p430, 1, 0
    %v432 = vstv %s431
    %vm433 = vcmp.eq.s32.totalorder %v432, 1
    %v434 = vsel %vm433, %v428, %v259
    %435 = vst [vmem:[#allocation2] sm:$0x3] %v434
    // Predicated region
    $region18: #{reference_encoder_forward.7} parent=1 // pred_check
      _
    $region19: #{reference_encoder_forward.7} parent=1 // pred_check_branch
      %437 = sbr.rel (0) target = $region21
    $region20: #{reference_encoder_forward.7} parent=1 // pred_region
      %s439 = ssub.s32 32, 32
      %440 = vsyncadd [#allocation3], %s439
      %s442 = sshll.u32 [#allocation2], 4
      %s443 = int_to_ptr.vmem [resolvable:$true] %s442
      %445 = dma.vmem_to_hbm [thread:$0]  %s443, 32, %s3, [#allocation3]
    $region21: #{reference_encoder_forward.7} parent=1 // pred_fallthru
      _
    // Predicated region
    $region22: #{reference_encoder_forward.7} parent=1 // pred_check
      _
    $region23: #{reference_encoder_forward.7} parent=1 // pred_check_branch
      %447 = sbr.rel (0) target = $region25
    $region24: #{reference_encoder_forward.7} parent=1 // pred_region
      %448 = dma.done [#allocation3], 32
    $region25: #{reference_encoder_forward.7} parent=1 // pred_fallthru
      _
    %449 = vsyncpa [#allocation3], 1

// kernel: reference_encoder_forward.6
$region0: #{reference_encoder_forward.6}
  #allocation0 [shape = 'u32[]', space=smem, size = 0x4, offset = 0x4, fixed_abs, tag = 'smem constant byte address 0x4 - core index']
  #allocation1 [shape = 'u32[144,128]{1,0:T(1,128)}', space=vmem, size = 0x12000, scoped, tag = 'internal scratch']
  %s0 = inlined_call_operand.vmem [shape: f32[8,2,2,4], index: 0, kind: input, shape index: {}]
  %s1 = inlined_call_operand.vmem [shape: f32[8,4,384], index: 1, kind: input, shape index: {}]
  %s2 = inlined_call_operand.vmem [shape: f32[1,384], index: 2, kind: input, shape index: {}]
  %s3 = inlined_call_operand.vmem [shape: f32[2,2,384], index: 3, kind: output, shape index: {}]
  %s4 = sld [smem:[#allocation0]]
  $region22: #{reference_encoder_forward.6} parent=0
    _
  %s6 = ssub.s32 1, %s4
  %s7 = scalar_select 0, %s6, %s4
  // Predicated region
  $region2: #{reference_encoder_forward.6} parent=0 // pred_check
    _
  $region3: #{reference_encoder_forward.6} parent=0 // pred_check_branch
    %9 = sbr.rel (0) target = $region5
  $region4: #{reference_encoder_forward.6} parent=0 // pred_region
    _
  $region5: #{reference_encoder_forward.6} parent=0 // pred_fallthru
    _
  // Predicated region
  $region6: #{reference_encoder_forward.6} parent=0 // pred_check
    _
  $region7: #{reference_encoder_forward.6} parent=0 // pred_check_branch
    %11 = sbr.rel (0) target = $region9
  $region8: #{reference_encoder_forward.6} parent=0 // pred_region
    _
  $region9: #{reference_encoder_forward.6} parent=0 // pred_fallthru
    _
  // Predicated region
  $region10: #{reference_encoder_forward.6} parent=0 // pred_check
    _
  $region11: #{reference_encoder_forward.6} parent=0 // pred_check_branch
    %13 = sbr.rel (0) target = $region13
  $region12: #{reference_encoder_forward.6} parent=0 // pred_region
    _
  $region13: #{reference_encoder_forward.6} parent=0 // pred_fallthru
    _
  %v14 = vld [vmem:[%s2] sm:$0x7]
  %v16 = vlaneseq
  %v17 = vshrl.u32 %v16, 7
  %v18 = vsub.s32 0, %v17
  %v19 = vrot.slane %v14, %v18
  %v20 = vlaneseq
  %v21 = vshrl.u32 %v20, 7
  %v22 = vsub.s32 1, %v21
  %v23 = vrot.slane %v14, %v22
  %v24 = vlaneseq
  %v25 = vshrl.u32 %v24, 7
  %v26 = vsub.s32 2, %v25
  %v27 = vrot.slane %v14, %v26
  %v31 = vld [vmem:[%s0] sm:$0x1]
  %v32 = vld [vmem:[%s0 + $0x2] sm:$0x1]
  %v33 = vld [vmem:[%s1] sm:$0xff]
  %v34 = vld [vmem:[%s1 + $0x8] sm:$0xf]
  %v37 = vrot.slane %v32, 7
  %vm38 = vcmask 1041409
  %v39 = vsel %vm38, %v37, %v31
  %v42 = vcombine.high %v33, %v33
  %vm43 = vcmask 31744
  %v44 = vsel %vm43, %v39, 0
  %vm46 = vcmask 1043456
  %v47 = vsel %vm46, %v33, 0
  %v49 = vsel %vm46, %v42, 0
  %v51 = vsel %vm46, %v34, 0
  %53 = vmatprep.subr.mxu0 %v49
  %54 = vmatpush1.msra.mxu0 %v47
  %55 = vmatprep.subr.mxu0 0.0
  %56 = vmatpush1.msra.mxu0 0.0
  %57 = vmatprep.subr.mxu0 0.0
  %58 = vmatpush1.msra.mxu0 0.0
  %59 = vmatprep.subr.mxu0 0.0
  %60 = vmatpush1.msra.mxu0 0.0
  %61 = vmatprep.subr.mxu0 0.0
  %62 = vmatpush1.msra.mxu0 0.0
  %63 = vmatprep.subr.mxu0 0.0
  %64 = vmatpush1.msra.mxu0 0.0
  %65 = vmatprep.subr.mxu0 0.0
  %66 = vmatpush1.msra.mxu0 0.0
  %67 = vmatprep.subr.mxu0 0.0
  %68 = vmatpush1.msra.mxu0 0.0
  %69 = vmatprep.subr.mxu0 0.0
  %70 = vmatpush1.msra.mxu0 0.0
  %71 = vmatprep.subr.mxu0 0.0
  %72 = vmatpush1.msra.mxu0 0.0
  %73 = vmatprep.subr.mxu0 0.0
  %74 = vmatpush1.msra.mxu0 0.0
  %75 = vmatprep.subr.mxu0 0.0
  %76 = vmatpush1.msra.mxu0 0.0
  %77 = vmatprep.subr.mxu0 0.0
  %78 = vmatpush1.msra.mxu0 0.0
  %79 = vmatprep.subr.mxu0 0.0
  %80 = vmatpush1.msra.mxu0 0.0
  %81 = vmatprep.subr.mxu0 0.0
  %82 = vmatpush1.msra.mxu0 0.0
  %83 = vmatprep.subr.mxu0 0.0
  %84 = vmatpush1.msra.mxu0 0.0
  %85 = vmatprep.subr.mxu0 0.0
  %86 = vmatpush1.msra.mxu0 0.0
  %87 = vmatprep.subr.mxu0 0.0
  %88 = vmatpush1.msra.mxu0 0.0
  %89 = vmatprep.subr.mxu0 0.0
  %90 = vmatpush1.msra.mxu0 0.0
  %91 = vmatprep.subr.mxu0 0.0
  %92 = vmatpush1.msra.mxu0 0.0
  %93 = vmatprep.subr.mxu0 0.0
  %94 = vmatpush1.msra.mxu0 0.0
  %95 = vmatprep.subr.mxu0 0.0
  %96 = vmatpush1.msra.mxu0 0.0
  %97 = vmatprep.subr.mxu0 0.0
  %98 = vmatpush1.msra.mxu0 0.0
  %99 = vmatprep.subr.mxu0 0.0
  %100 = vmatpush1.msra.mxu0 0.0
  %101 = vmatprep.subr.mxu0 0.0
  %102 = vmatpush1.msra.mxu0 0.0
  %103 = vmatprep.subr.mxu0 0.0
  %104 = vmatpush1.msra.mxu0 0.0
  %105 = vmatprep.subr.mxu0 0.0
  %106 = vmatpush1.msra.mxu0 0.0
  %107 = vmatprep.subr.mxu0 0.0
  %108 = vmatpush1.msra.mxu0 0.0
  %109 = vmatprep.subr.mxu0 0.0
  %110 = vmatpush1.msra.mxu0 0.0
  %111 = vmatprep.subr.mxu0 0.0
  %112 = vmatpush1.msra.mxu0 0.0
  %113 = vmatprep.subr.mxu0 0.0
  %114 = vmatpush1.msra.mxu0 0.0
  %115 = vmatprep.subr.mxu0 0.0
  %116 = vmatpush1.msra.mxu0 0.0
  %117 = vmatprep.mubr.f32.mxu0 0.0
  %118 = vmatmul.mubr.f32.gmra.mrb[0].mxu0 %v44
  %v119 = vpop.f32.mrb[0].mxu0
  %v120 = vadd.f32 0.0, %v119
  %v121 = vpop.f32.mrb[0].mxu0
  %v122 = vadd.f32 0.0, %v121
  %123 = vdwg.mxu0
  %124 = vmatprep.subr.mxu0 0.0
  %125 = vmatpush1.msra.mxu0 %v51
  %126 = vmatprep.subr.mxu0 0.0
  %127 = vmatpush1.msra.mxu0 0.0
  %128 = vmatprep.subr.mxu0 0.0
  %129 = vmatpush1.msra.mxu0 0.0
  %130 = vmatprep.subr.mxu0 0.0
  %131 = vmatpush1.msra.mxu0 0.0
  %132 = vmatprep.subr.mxu0 0.0
  %133 = vmatpush1.msra.mxu0 0.0
  %134 = vmatprep.subr.mxu0 0.0
  %135 = vmatpush1.msra.mxu0 0.0
  %136 = vmatprep.subr.mxu0 0.0
  %137 = vmatpush1.msra.mxu0 0.0
  %138 = vmatprep.subr.mxu0 0.0
  %139 = vmatpush1.msra.mxu0 0.0
  %140 = vmatprep.subr.mxu0 0.0
  %141 = vmatpush1.msra.mxu0 0.0
  %142 = vmatprep.subr.mxu0 0.0
  %143 = vmatpush1.msra.mxu0 0.0
  %144 = vmatprep.subr.mxu0 0.0
  %145 = vmatpush1.msra.mxu0 0.0
  %146 = vmatprep.subr.mxu0 0.0
  %147 = vmatpush1.msra.mxu0 0.0
  %148 = vmatprep.subr.mxu0 0.0
  %149 = vmatpush1.msra.mxu0 0.0
  %150 = vmatprep.subr.mxu0 0.0
  %151 = vmatpush1.msra.mxu0 0.0
  %152 = vmatprep.subr.mxu0 0.0
  %153 = vmatpush1.msra.mxu0 0.0
  %154 = vmatprep.subr.mxu0 0.0
  %155 = vmatpush1.msra.mxu0 0.0
  %156 = vmatprep.subr.mxu0 0.0
  %157 = vmatpush1.msra.mxu0 0.0
  %158 = vmatprep.subr.mxu0 0.0
  %159 = vmatpush1.msra.mxu0 0.0
  %160 = vmatprep.subr.mxu0 0.0
  %161 = vmatpush1.msra.mxu0 0.0
  %162 = vmatprep.subr.mxu0 0.0
  %163 = vmatpush1.msra.mxu0 0.0
  %164 = vmatprep.subr.mxu0 0.0
  %165 = vmatpush1.msra.mxu0 0.0
  %166 = vmatprep.subr.mxu0 0.0
  %167 = vmatpush1.msra.mxu0 0.0
  %168 = vmatprep.subr.mxu0 0.0
  %169 = vmatpush1.msra.mxu0 0.0
  %170 = vmatprep.subr.mxu0 0.0
  %171 = vmatpush1.msra.mxu0 0.0
  %172 = vmatprep.subr.mxu0 0.0
  %173 = vmatpush1.msra.mxu0 0.0
  %174 = vmatprep.subr.mxu0 0.0
  %175 = vmatpush1.msra.mxu0 0.0
  %176 = vmatprep.subr.mxu0 0.0
  %177 = vmatpush1.msra.mxu0 0.0
  %178 = vmatprep.subr.mxu0 0.0
  %179 = vmatpush1.msra.mxu0 0.0
  %180 = vmatprep.subr.mxu0 0.0
  %181 = vmatpush1.msra.mxu0 0.0
  %182 = vmatprep.subr.mxu0 0.0
  %183 = vmatpush1.msra.mxu0 0.0
  %184 = vmatprep.subr.mxu0 0.0
  %185 = vmatpush1.msra.mxu0 0.0
  %186 = vmatprep.subr.mxu0 0.0
  %187 = vmatpush1.msra.mxu0 0.0
  %188 = vmatprep.mubr.f32.mxu0 0.0
  %189 = vmatmul.mubr.f32.gmra.mrb[0].mxu0 %v44
  %v190 = vpop.f32.mrb[0].mxu0
  %v191 = vadd.f32 0.0, %v190
  %v192 = vpop.f32.mrb[0].mxu0
  %193 = vdwg.mxu0
  %v194 = vadd.f32 %v19, %v120
  %v195 = vadd.f32 %v23, %v122
  %v196 = vadd.f32 %v27, %v191
  %s197 = scalar_lea.vmem %s0, 4
  %v198 = vld [vmem:[%s197] sm:$0x1]
  %v199 = vld [vmem:[%s197 + $0x2] sm:$0x1]
  %s200 = scalar_lea.vmem %s1, 12
  %v201 = vld [vmem:[%s200] sm:$0xff]
  %v202 = vld [vmem:[%s200 + $0x8] sm:$0xf]
  %v205 = vrot.slane %v199, 7
  %v206 = vsel %vm38, %v205, %v198
  %v209 = vcombine.high %v201, %v201
  %v210 = vsel %vm43, %v206, 0
  %v212 = vsel %vm46, %v201, 0
  %v214 = vsel %vm46, %v209, 0
  %v216 = vsel %vm46, %v202, 0
  %218 = vmatprep.subr.mxu0 %v214
  %219 = vmatpush1.msra.mxu0 %v212
  %220 = vmatprep.subr.mxu0 0.0
  %221 = vmatpush1.msra.mxu0 0.0
  %222 = vmatprep.subr.mxu0 0.0
  %223 = vmatpush1.msra.mxu0 0.0
  %224 = vmatprep.subr.mxu0 0.0
  %225 = vmatpush1.msra.mxu0 0.0
  %226 = vmatprep.subr.mxu0 0.0
  %227 = vmatpush1.msra.mxu0 0.0
  %228 = vmatprep.subr.mxu0 0.0
  %229 = vmatpush1.msra.mxu0 0.0
  %230 = vmatprep.subr.mxu0 0.0
  %231 = vmatpush1.msra.mxu0 0.0
  %232 = vmatprep.subr.mxu0 0.0
  %233 = vmatpush1.msra.mxu0 0.0
  %234 = vmatprep.subr.mxu0 0.0
  %235 = vmatpush1.msra.mxu0 0.0
  %236 = vmatprep.subr.mxu0 0.0
  %237 = vmatpush1.msra.mxu0 0.0
  %238 = vmatprep.subr.mxu0 0.0
  %239 = vmatpush1.msra.mxu0 0.0
  %240 = vmatprep.subr.mxu0 0.0
  %241 = vmatpush1.msra.mxu0 0.0
  %242 = vmatprep.subr.mxu0 0.0
  %243 = vmatpush1.msra.mxu0 0.0
  %244 = vmatprep.subr.mxu0 0.0
  %245 = vmatpush1.msra.mxu0 0.0
  %246 = vmatprep.subr.mxu0 0.0
  %247 = vmatpush1.msra.mxu0 0.0
  %248 = vmatprep.subr.mxu0 0.0
  %249 = vmatpush1.msra.mxu0 0.0
  %250 = vmatprep.subr.mxu0 0.0
  %251 = vmatpush1.msra.mxu0 0.0
  %252 = vmatprep.subr.mxu0 0.0
  %253 = vmatpush1.msra.mxu0 0.0
  %254 = vmatprep.subr.mxu0 0.0
  %255 = vmatpush1.msra.mxu0 0.0
  %256 = vmatprep.subr.mxu0 0.0
  %257 = vmatpush1.msra.mxu0 0.0
  %258 = vmatprep.subr.mxu0 0.0
  %259 = vmatpush1.msra.mxu0 0.0
  %260 = vmatprep.subr.mxu0 0.0
  %261 = vmatpush1.msra.mxu0 0.0
  %262 = vmatprep.subr.mxu0 0.0
  %263 = vmatpush1.msra.mxu0 0.0
  %264 = vmatprep.subr.mxu0 0.0
  %265 = vmatpush1.msra.mxu0 0.0
  %266 = vmatprep.subr.mxu0 0.0
  %267 = vmatpush1.msra.mxu0 0.0
  %268 = vmatprep.subr.mxu0 0.0
  %269 = vmatpush1.msra.mxu0 0.0
  %270 = vmatprep.subr.mxu0 0.0
  %271 = vmatpush1.msra.mxu0 0.0
  %272 = vmatprep.subr.mxu0 0.0
  %273 = vmatpush1.msra.mxu0 0.0
  %274 = vmatprep.subr.mxu0 0.0
  %275 = vmatpush1.msra.mxu0 0.0
  %276 = vmatprep.subr.mxu0 0.0
  %277 = vmatpush1.msra.mxu0 0.0
  %278 = vmatprep.subr.mxu0 0.0
  %279 = vmatpush1.msra.mxu0 0.0
  %280 = vmatprep.subr.mxu0 0.0
  %281 = vmatpush1.msra.mxu0 0.0
  %282 = vmatprep.mubr.f32.mxu0 0.0
  %283 = vmatmul.mubr.f32.gmra.mrb[0].mxu0 %v210
  %v284 = vpop.f32.mrb[0].mxu0
  %v285 = vadd.f32 0.0, %v284
  %v286 = vpop.f32.mrb[0].mxu0
  %v287 = vadd.f32 0.0, %v286
  %288 = vdwg.mxu0
  %289 = vmatprep.subr.mxu0 0.0
  %290 = vmatpush1.msra.mxu0 %v216
  %291 = vmatprep.subr.mxu0 0.0
  %292 = vmatpush1.msra.mxu0 0.0
  %293 = vmatprep.subr.mxu0 0.0
  %294 = vmatpush1.msra.mxu0 0.0
  %295 = vmatprep.subr.mxu0 0.0
  %296 = vmatpush1.msra.mxu0 0.0
  %297 = vmatprep.subr.mxu0 0.0
  %298 = vmatpush1.msra.mxu0 0.0
  %299 = vmatprep.subr.mxu0 0.0
  %300 = vmatpush1.msra.mxu0 0.0
  %301 = vmatprep.subr.mxu0 0.0
  %302 = vmatpush1.msra.mxu0 0.0
  %303 = vmatprep.subr.mxu0 0.0
  %304 = vmatpush1.msra.mxu0 0.0
  %305 = vmatprep.subr.mxu0 0.0
  %306 = vmatpush1.msra.mxu0 0.0
  %307 = vmatprep.subr.mxu0 0.0
  %308 = vmatpush1.msra.mxu0 0.0
  %309 = vmatprep.subr.mxu0 0.0
  %310 = vmatpush1.msra.mxu0 0.0
  %311 = vmatprep.subr.mxu0 0.0
  %312 = vmatpush1.msra.mxu0 0.0
  %313 = vmatprep.subr.mxu0 0.0
  %314 = vmatpush1.msra.mxu0 0.0
  %315 = vmatprep.subr.mxu0 0.0
  %316 = vmatpush1.msra.mxu0 0.0
  %317 = vmatprep.subr.mxu0 0.0
  %318 = vmatpush1.msra.mxu0 0.0
  %319 = vmatprep.subr.mxu0 0.0
  %320 = vmatpush1.msra.mxu0 0.0
  %321 = vmatprep.subr.mxu0 0.0
  %322 = vmatpush1.msra.mxu0 0.0
  %323 = vmatprep.subr.mxu0 0.0
  %324 = vmatpush1.msra.mxu0 0.0
  %325 = vmatprep.subr.mxu0 0.0
  %326 = vmatpush1.msra.mxu0 0.0
  %327 = vmatprep.subr.mxu0 0.0
  %328 = vmatpush1.msra.mxu0 0.0
  %329 = vmatprep.subr.mxu0 0.0
  %330 = vmatpush1.msra.mxu0 0.0
  %331 = vmatprep.subr.mxu0 0.0
  %332 = vmatpush1.msra.mxu0 0.0
  %333 = vmatprep.subr.mxu0 0.0
  %334 = vmatpush1.msra.mxu0 0.0
  %335 = vmatprep.subr.mxu0 0.0
  %336 = vmatpush1.msra.mxu0 0.0
  %337 = vmatprep.subr.mxu0 0.0
  %338 = vmatpush1.msra.mxu0 0.0
  %339 = vmatprep.subr.mxu0 0.0
  %340 = vmatpush1.msra.mxu0 0.0
  %341 = vmatprep.subr.mxu0 0.0
  %342 = vmatpush1.msra.mxu0 0.0
  %343 = vmatprep.subr.mxu0 0.0
  %344 = vmatpush1.msra.mxu0 0.0
  %345 = vmatprep.subr.mxu0 0.0
  %346 = vmatpush1.msra.mxu0 0.0
  %347 = vmatprep.subr.mxu0 0.0
  %348 = vmatpush1.msra.mxu0 0.0
  %349 = vmatprep.subr.mxu0 0.0
  %350 = vmatpush1.msra.mxu0 0.0
  %351 = vmatprep.subr.mxu0 0.0
  %352 = vmatpush1.msra.mxu0 0.0
  %353 = vmatprep.mubr.f32.mxu0 0.0
  %354 = vmatmul.mubr.f32.gmra.mrb[0].mxu0 %v210
  %v355 = vpop.f32.mrb[0].mxu0
  %v356 = vadd.f32 0.0, %v355
  %v357 = vpop.f32.mrb[0].mxu0
  %358 = vdwg.mxu0
  %v359 = vadd.f32 %v194, %v285
  %v360 = vadd.f32 %v195, %v287
  %v361 = vadd.f32 %v196, %v356
  %s362 = scalar_lea.vmem %s0, 8
  %v363 = vld [vmem:[%s362] sm:$0x1]
  %v364 = vld [vmem:[%s362 + $0x2] sm:$0x1]
  %s365 = scalar_lea.vmem %s1, 24
  %v366 = vld [vmem:[%s365] sm:$0xff]
  %v367 = vld [vmem:[%s365 + $0x8] sm:$0xf]
  %v370 = vrot.slane %v364, 7
  %v371 = vsel %vm38, %v370, %v363
  %v374 = vcombine.high %v366, %v366
  %v375 = vsel %vm43, %v371, 0
  %v377 = vsel %vm46, %v366, 0
  %v379 = vsel %vm46, %v374, 0
  %v381 = vsel %vm46, %v367, 0
  %383 = vmatprep.subr.mxu0 %v379
  %384 = vmatpush1.msra.mxu0 %v377
  %385 = vmatprep.subr.mxu0 0.0
  %386 = vmatpush1.msra.mxu0 0.0
  %387 = vmatprep.subr.mxu0 0.0
  %388 = vmatpush1.msra.mxu0 0.0
  %389 = vmatprep.subr.mxu0 0.0
  %390 = vmatpush1.msra.mxu0 0.0
  %391 = vmatprep.subr.mxu0 0.0
  %392 = vmatpush1.msra.mxu0 0.0
  %393 = vmatprep.subr.mxu0 0.0
  %394 = vmatpush1.msra.mxu0 0.0
  %395 = vmatprep.subr.mxu0 0.0
  %396 = vmatpush1.msra.mxu0 0.0
  %397 = vmatprep.subr.mxu0 0.0
  %398 = vmatpush1.msra.mxu0 0.0
  %399 = vmatprep.subr.mxu0 0.0
  %400 = vmatpush1.msra.mxu0 0.0
  %401 = vmatprep.subr.mxu0 0.0
  %402 = vmatpush1.msra.mxu0 0.0
  %403 = vmatprep.subr.mxu0 0.0
  %404 = vmatpush1.msra.mxu0 0.0
  %405 = vmatprep.subr.mxu0 0.0
  %406 = vmatpush1.msra.mxu0 0.0
  %407 = vmatprep.subr.mxu0 0.0
  %408 = vmatpush1.msra.mxu0 0.0
  %409 = vmatprep.subr.mxu0 0.0
  %410 = vmatpush1.msra.mxu0 0.0
  %411 = vmatprep.subr.mxu0 0.0
  %412 = vmatpush1.msra.mxu0 0.0
  %413 = vmatprep.subr.mxu0 0.0
  %414 = vmatpush1.msra.mxu0 0.0
  %415 = vmatprep.subr.mxu0 0.0
  %416 = vmatpush1.msra.mxu0 0.0
  %417 = vmatprep.subr.mxu0 0.0
  %418 = vmatpush1.msra.mxu0 0.0
  %419 = vmatprep.subr.mxu0 0.0
  %420 = vmatpush1.msra.mxu0 0.0
  %421 = vmatprep.subr.mxu0 0.0
  %422 = vmatpush1.msra.mxu0 0.0
  %423 = vmatprep.subr.mxu0 0.0
  %424 = vmatpush1.msra.mxu0 0.0
  %425 = vmatprep.subr.mxu0 0.0
  %426 = vmatpush1.msra.mxu0 0.0
  %427 = vmatprep.subr.mxu0 0.0
  %428 = vmatpush1.msra.mxu0 0.0
  %429 = vmatprep.subr.mxu0 0.0
  %430 = vmatpush1.msra.mxu0 0.0
  %431 = vmatprep.subr.mxu0 0.0
  %432 = vmatpush1.msra.mxu0 0.0
  %433 = vmatprep.subr.mxu0 0.0
  %434 = vmatpush1.msra.mxu0 0.0
  %435 = vmatprep.subr.mxu0 0.0
  %436 = vmatpush1.msra.mxu0 0.0
  %437 = vmatprep.subr.mxu0 0.0
  %438 = vmatpush1.msra.mxu0 0.0
  %439 = vmatprep.subr.mxu0 0.0
  %440 = vmatpush1.msra.mxu0 0.0
  %441 = vmatprep.subr.mxu0 0.0
  %442 = vmatpush1.msra.mxu0 0.0
  %443 = vmatprep.subr.mxu0 0.0
  %444 = vmatpush1.msra.mxu0 0.0
  %445 = vmatprep.subr.mxu0 0.0
  %446 = vmatpush1.msra.mxu0 0.0
  %447 = vmatprep.mubr.f32.mxu0 0.0
  %448 = vmatmul.mubr.f32.gmra.mrb[0].mxu0 %v375
  %v449 = vpop.f32.mrb[0].mxu0
  %v450 = vadd.f32 0.0, %v449
  %v451 = vpop.f32.mrb[0].mxu0
  %v452 = vadd.f32 0.0, %v451
  %453 = vdwg.mxu0
  %454 = vmatprep.subr.mxu0 0.0
  %455 = vmatpush1.msra.mxu0 %v381
  %456 = vmatprep.subr.mxu0 0.0
  %457 = vmatpush1.msra.mxu0 0.0
  %458 = vmatprep.subr.mxu0 0.0
  %459 = vmatpush1.msra.mxu0 0.0
  %460 = vmatprep.subr.mxu0 0.0
  %461 = vmatpush1.msra.mxu0 0.0
  %462 = vmatprep.subr.mxu0 0.0
  %463 = vmatpush1.msra.mxu0 0.0
  %464 = vmatprep.subr.mxu0 0.0
  %465 = vmatpush1.msra.mxu0 0.0
  %466 = vmatprep.subr.mxu0 0.0
  %467 = vmatpush1.msra.mxu0 0.0
  %468 = vmatprep.subr.mxu0 0.0
  %469 = vmatpush1.msra.mxu0 0.0
  %470 = vmatprep.subr.mxu0 0.0
  %471 = vmatpush1.msra.mxu0 0.0
  %472 = vmatprep.subr.mxu0 0.0
  %473 = vmatpush1.msra.mxu0 0.0
  %474 = vmatprep.subr.mxu0 0.0
  %475 = vmatpush1.msra.mxu0 0.0
  %476 = vmatprep.subr.mxu0 0.0
  %477 = vmatpush1.msra.mxu0 0.0
  %478 = vmatprep.subr.mxu0 0.0
  %479 = vmatpush1.msra.mxu0 0.0
  %480 = vmatprep.subr.mxu0 0.0
  %481 = vmatpush1.msra.mxu0 0.0
  %482 = vmatprep.subr.mxu0 0.0
  %483 = vmatpush1.msra.mxu0 0.0
  %484 = vmatprep.subr.mxu0 0.0
  %485 = vmatpush1.msra.mxu0 0.0
  %486 = vmatprep.subr.mxu0 0.0
  %487 = vmatpush1.msra.mxu0 0.0
  %488 = vmatprep.subr.mxu0 0.0
  %489 = vmatpush1.msra.mxu0 0.0
  %490 = vmatprep.subr.mxu0 0.0
  %491 = vmatpush1.msra.mxu0 0.0
  %492 = vmatprep.subr.mxu0 0.0
  %493 = vmatpush1.msra.mxu0 0.0
  %494 = vmatprep.subr.mxu0 0.0
  %495 = vmatpush1.msra.mxu0 0.0
  %496 = vmatprep.subr.mxu0 0.0
  %497 = vmatpush1.msra.mxu0 0.0
  %498 = vmatprep.subr.mxu0 0.0
  %499 = vmatpush1.msra.mxu0 0.0
  %500 = vmatprep.subr.mxu0 0.0
  %501 = vmatpush1.msra.mxu0 0.0
  %502 = vmatprep.subr.mxu0 0.0
  %503 = vmatpush1.msra.mxu0 0.0
  %504 = vmatprep.subr.mxu0 0.0
  %505 = vmatpush1.msra.mxu0 0.0
  %506 = vmatprep.subr.mxu0 0.0
  %507 = vmatpush1.msra.mxu0 0.0
  %508 = vmatprep.subr.mxu0 0.0
  %509 = vmatpush1.msra.mxu0 0.0
  %510 = vmatprep.subr.mxu0 0.0
  %511 = vmatpush1.msra.mxu0 0.0
  %512 = vmatprep.subr.mxu0 0.0
  %513 = vmatpush1.msra.mxu0 0.0
  %514 = vmatprep.subr.mxu0 0.0
  %515 = vmatpush1.msra.mxu0 0.0
  %516 = vmatprep.subr.mxu0 0.0
  %517 = vmatpush1.msra.mxu0 0.0
  %518 = vmatprep.mubr.f32.mxu0 0.0
  %519 = vmatmul.mubr.f32.gmra.mrb[0].mxu0 %v375
  %v520 = vpop.f32.mrb[0].mxu0
  %v521 = vadd.f32 0.0, %v520
  %v522 = vpop.f32.mrb[0].mxu0
  %523 = vdwg.mxu0
  %v524 = vadd.f32 %v359, %v450
  %v525 = vadd.f32 %v360, %v452
  %v526 = vadd.f32 %v361, %v521
  %s527 = scalar_lea.vmem %s0, 12
  %v528 = vld [vmem:[%s527] sm:$0x1]
  %v529 = vld [vmem:[%s527 + $0x2] sm:$0x1]
  %s530 = scalar_lea.vmem %s1, 36
  %v531 = vld [vmem:[%s530] sm:$0xff]
  %v532 = vld [vmem:[%s530 + $0x8] sm:$0xf]
  %v535 = vrot.slane %v529, 7
  %v536 = vsel %vm38, %v535, %v528
  %v539 = vcombine.high %v531, %v531
  %v540 = vsel %vm43, %v536, 0
  %v542 = vsel %vm46, %v531, 0
  %v544 = vsel %vm46, %v539, 0
  %v546 = vsel %vm46, %v532, 0
  %548 = vmatprep.subr.mxu0 %v544
  %549 = vmatpush1.msra.mxu0 %v542
  %550 = vmatprep.subr.mxu0 0.0
  %551 = vmatpush1.msra.mxu0 0.0
  %552 = vmatprep.subr.mxu0 0.0
  %553 = vmatpush1.msra.mxu0 0.0
  %554 = vmatprep.subr.mxu0 0.0
  %555 = vmatpush1.msra.mxu0 0.0
  %556 = vmatprep.subr.mxu0 0.0
  %557 = vmatpush1.msra.mxu0 0.0
  %558 = vmatprep.subr.mxu0 0.0
  %559 = vmatpush1.msra.mxu0 0.0
  %560 = vmatprep.subr.mxu0 0.0
  %561 = vmatpush1.msra.mxu0 0.0
  %562 = vmatprep.subr.mxu0 0.0
  %563 = vmatpush1.msra.mxu0 0.0
  %564 = vmatprep.subr.mxu0 0.0
  %565 = vmatpush1.msra.mxu0 0.0
  %566 = vmatprep.subr.mxu0 0.0
  %567 = vmatpush1.msra.mxu0 0.0
  %568 = vmatprep.subr.mxu0 0.0
  %569 = vmatpush1.msra.mxu0 0.0
  %570 = vmatprep.subr.mxu0 0.0
  %571 = vmatpush1.msra.mxu0 0.0
  %572 = vmatprep.subr.mxu0 0.0
  %573 = vmatpush1.msra.mxu0 0.0
  %574 = vmatprep.subr.mxu0 0.0
  %575 = vmatpush1.msra.mxu0 0.0
  %576 = vmatprep.subr.mxu0 0.0
  %577 = vmatpush1.msra.mxu0 0.0
  %578 = vmatprep.subr.mxu0 0.0
  %579 = vmatpush1.msra.mxu0 0.0
  %580 = vmatprep.subr.mxu0 0.0
  %581 = vmatpush1.msra.mxu0 0.0
  %582 = vmatprep.subr.mxu0 0.0
  %583 = vmatpush1.msra.mxu0 0.0
  %584 = vmatprep.subr.mxu0 0.0
  %585 = vmatpush1.msra.mxu0 0.0
  %586 = vmatprep.subr.mxu0 0.0
  %587 = vmatpush1.msra.mxu0 0.0
  %588 = vmatprep.subr.mxu0 0.0
  %589 = vmatpush1.msra.mxu0 0.0
  %590 = vmatprep.subr.mxu0 0.0
  %591 = vmatpush1.msra.mxu0 0.0
  %592 = vmatprep.subr.mxu0 0.0
  %593 = vmatpush1.msra.mxu0 0.0
  %594 = vmatprep.subr.mxu0 0.0
  %595 = vmatpush1.msra.mxu0 0.0
  %596 = vmatprep.subr.mxu0 0.0
  %597 = vmatpush1.msra.mxu0 0.0
  %598 = vmatprep.subr.mxu0 0.0
  %599 = vmatpush1.msra.mxu0 0.0
  %600 = vmatprep.subr.mxu0 0.0
  %601 = vmatpush1.msra.mxu0 0.0
  %602 = vmatprep.subr.mxu0 0.0
  %603 = vmatpush1.msra.mxu0 0.0
  %604 = vmatprep.subr.mxu0 0.0
  %605 = vmatpush1.msra.mxu0 0.0
  %606 = vmatprep.subr.mxu0 0.0
  %607 = vmatpush1.msra.mxu0 0.0
  %608 = vmatprep.subr.mxu0 0.0
  %609 = vmatpush1.msra.mxu0 0.0
  %610 = vmatprep.subr.mxu0 0.0
  %611 = vmatpush1.msra.mxu0 0.0
  %612 = vmatprep.mubr.f32.mxu0 0.0
  %613 = vmatmul.mubr.f32.gmra.mrb[0].mxu0 %v540
  %v614 = vpop.f32.mrb[0].mxu0
  %v615 = vadd.f32 0.0, %v614
  %v616 = vpop.f32.mrb[0].mxu0
  %v617 = vadd.f32 0.0, %v616
  %618 = vdwg.mxu0
  %619 = vmatprep.subr.mxu0 0.0
  %620 = vmatpush1.msra.mxu0 %v546
  %621 = vmatprep.subr.mxu0 0.0
  %622 = vmatpush1.msra.mxu0 0.0
  %623 = vmatprep.subr.mxu0 0.0
  %624 = vmatpush1.msra.mxu0 0.0
  %625 = vmatprep.subr.mxu0 0.0
  %626 = vmatpush1.msra.mxu0 0.0
  %627 = vmatprep.subr.mxu0 0.0
  %628 = vmatpush1.msra.mxu0 0.0
  %629 = vmatprep.subr.mxu0 0.0
  %630 = vmatpush1.msra.mxu0 0.0
  %631 = vmatprep.subr.mxu0 0.0
  %632 = vmatpush1.msra.mxu0 0.0
  %633 = vmatprep.subr.mxu0 0.0
  %634 = vmatpush1.msra.mxu0 0.0
  %635 = vmatprep.subr.mxu0 0.0
  %636 = vmatpush1.msra.mxu0 0.0
  %637 = vmatprep.subr.mxu0 0.0
  %638 = vmatpush1.msra.mxu0 0.0
  %639 = vmatprep.subr.mxu0 0.0
  %640 = vmatpush1.msra.mxu0 0.0
  %641 = vmatprep.subr.mxu0 0.0
  %642 = vmatpush1.msra.mxu0 0.0
  %643 = vmatprep.subr.mxu0 0.0
  %644 = vmatpush1.msra.mxu0 0.0
  %645 = vmatprep.subr.mxu0 0.0
  %646 = vmatpush1.msra.mxu0 0.0
  %647 = vmatprep.subr.mxu0 0.0
  %648 = vmatpush1.msra.mxu0 0.0
  %649 = vmatprep.subr.mxu0 0.0
  %650 = vmatpush1.msra.mxu0 0.0
  %651 = vmatprep.subr.mxu0 0.0
  %652 = vmatpush1.msra.mxu0 0.0
  %653 = vmatprep.subr.mxu0 0.0
  %654 = vmatpush1.msra.mxu0 0.0
  %655 = vmatprep.subr.mxu0 0.0
  %656 = vmatpush1.msra.mxu0 0.0
  %657 = vmatprep.subr.mxu0 0.0
  %658 = vmatpush1.msra.mxu0 0.0
  %659 = vmatprep.subr.mxu0 0.0
  %660 = vmatpush1.msra.mxu0 0.0
  %661 = vmatprep.subr.mxu0 0.0
  %662 = vmatpush1.msra.mxu0 0.0
  %663 = vmatprep.subr.mxu0 0.0
  %664 = vmatpush1.msra.mxu0 0.0
  %665 = vmatprep.subr.mxu0 0.0
  %666 = vmatpush1.msra.mxu0 0.0
  %667 = vmatprep.subr.mxu0 0.0
  %668 = vmatpush1.msra.mxu0 0.0
  %669 = vmatprep.subr.mxu0 0.0
  %670 = vmatpush1.msra.mxu0 0.0
  %671 = vmatprep.subr.mxu0 0.0
  %672 = vmatpush1.msra.mxu0 0.0
  %673 = vmatprep.subr.mxu0 0.0
  %674 = vmatpush1.msra.mxu0 0.0
  %675 = vmatprep.subr.mxu0 0.0
  %676 = vmatpush1.msra.mxu0 0.0
  %677 = vmatprep.subr.mxu0 0.0
  %678 = vmatpush1.msra.mxu0 0.0
  %679 = vmatprep.subr.mxu0 0.0
  %680 = vmatpush1.msra.mxu0 0.0
  %681 = vmatprep.subr.mxu0 0.0
  %682 = vmatpush1.msra.mxu0 0.0
  %683 = vmatprep.mubr.f32.mxu0 0.0
  %684 = vmatmul.mubr.f32.gmra.mrb[0].mxu0 %v540
  %v685 = vpop.f32.mrb[0].mxu0
  %v686 = vadd.f32 0.0, %v685
  %v687 = vpop.f32.mrb[0].mxu0
  %688 = vdwg.mxu0
  %v689 = vadd.f32 %v524, %v615
  %v690 = vadd.f32 %v525, %v617
  %v691 = vadd.f32 %v526, %v686
  %s692 = scalar_lea.vmem %s0, 16
  %v693 = vld [vmem:[%s692] sm:$0x1]
  %v694 = vld [vmem:[%s692 + $0x2] sm:$0x1]
  %s695 = scalar_lea.vmem %s1, 48
  %v696 = vld [vmem:[%s695] sm:$0xff]
  %v697 = vld [vmem:[%s695 + $0x8] sm:$0xf]
  %v700 = vrot.slane %v694, 7
  %v701 = vsel %vm38, %v700, %v693
  %v704 = vcombine.high %v696, %v696
  %v705 = vsel %vm43, %v701, 0
  %v707 = vsel %vm46, %v696, 0
  %v709 = vsel %vm46, %v704, 0
  %v711 = vsel %vm46, %v697, 0
  %713 = vmatprep.subr.mxu0 %v709
  %714 = vmatpush1.msra.mxu0 %v707
  %715 = vmatprep.subr.mxu0 0.0
  %716 = vmatpush1.msra.mxu0 0.0
  %717 = vmatprep.subr.mxu0 0.0
  %718 = vmatpush1.msra.mxu0 0.0
  %719 = vmatprep.subr.mxu0 0.0
  %720 = vmatpush1.msra.mxu0 0.0
  %721 = vmatprep.subr.mxu0 0.0
  %722 = vmatpush1.msra.mxu0 0.0
  %723 = vmatprep.subr.mxu0 0.0
  %724 = vmatpush1.msra.mxu0 0.0
  %725 = vmatprep.subr.mxu0 0.0
  %726 = vmatpush1.msra.mxu0 0.0
  %727 = vmatprep.subr.mxu0 0.0
  %728 = vmatpush1.msra.mxu0 0.0
  %729 = vmatprep.subr.mxu0 0.0
  %730 = vmatpush1.msra.mxu0 0.0
  %731 = vmatprep.subr.mxu0 0.0
  %732 = vmatpush1.msra.mxu0 0.0
  %733 = vmatprep.subr.mxu0 0.0
  %734 = vmatpush1.msra.mxu0 0.0
  %735 = vmatprep.subr.mxu0 0.0
  %736 = vmatpush1.msra.mxu0 0.0
  %737 = vmatprep.subr.mxu0 0.0
  %738 = vmatpush1.msra.mxu0 0.0
  %739 = vmatprep.subr.mxu0 0.0
  %740 = vmatpush1.msra.mxu0 0.0
  %741 = vmatprep.subr.mxu0 0.0
  %742 = vmatpush1.msra.mxu0 0.0
  %743 = vmatprep.subr.mxu0 0.0
  %744 = vmatpush1.msra.mxu0 0.0
  %745 = vmatprep.subr.mxu0 0.0
  %746 = vmatpush1.msra.mxu0 0.0
  %747 = vmatprep.subr.mxu0 0.0
  %748 = vmatpush1.msra.mxu0 0.0
  %749 = vmatprep.subr.mxu0 0.0
  %750 = vmatpush1.msra.mxu0 0.0
  %751 = vmatprep.subr.mxu0 0.0
  %752 = vmatpush1.msra.mxu0 0.0
  %753 = vmatprep.subr.mxu0 0.0
  %754 = vmatpush1.msra.mxu0 0.0
  %755 = vmatprep.subr.mxu0 0.0
  %756 = vmatpush1.msra.mxu0 0.0
  %757 = vmatprep.subr.mxu0 0.0
  %758 = vmatpush1.msra.mxu0 0.0
  %759 = vmatprep.subr.mxu0 0.0
  %760 = vmatpush1.msra.mxu0 0.0
  %761 = vmatprep.subr.mxu0 0.0
  %762 = vmatpush1.msra.mxu0 0.0
  %763 = vmatprep.subr.mxu0 0.0
  %764 = vmatpush1.msra.mxu0 0.0
  %765 = vmatprep.subr.mxu0 0.0
  %766 = vmatpush1.msra.mxu0 0.0
  %767 = vmatprep.subr.mxu0 0.0
  %768 = vmatpush1.msra.mxu0 0.0
  %769 = vmatprep.subr.mxu0 0.0
  %770 = vmatpush1.msra.mxu0 0.0
  %771 = vmatprep.subr.mxu0 0.0
  %772 = vmatpush1.msra.mxu0 0.0
  %773 = vmatprep.subr.mxu0 0.0
  %774 = vmatpush1.msra.mxu0 0.0
  %775 = vmatprep.subr.mxu0 0.0
  %776 = vmatpush1.msra.mxu0 0.0
  %777 = vmatprep.mubr.f32.mxu0 0.0
  %778 = vmatmul.mubr.f32.gmra.mrb[0].mxu0 %v705
  %v779 = vpop.f32.mrb[0].mxu0
  %v780 = vadd.f32 0.0, %v779
  %v781 = vpop.f32.mrb[0].mxu0
  %v782 = vadd.f32 0.0, %v781
  %783 = vdwg.mxu0
  %784 = vmatprep.subr.mxu0 0.0
  %785 = vmatpush1.msra.mxu0 %v711
  %786 = vmatprep.subr.mxu0 0.0
  %787 = vmatpush1.msra.mxu0 0.0
  %788 = vmatprep.subr.mxu0 0.0
  %789 = vmatpush1.msra.mxu0 0.0
  %790 = vmatprep.subr.mxu0 0.0
  %791 = vmatpush1.msra.mxu0 0.0
  %792 = vmatprep.subr.mxu0 0.0
  %793 = vmatpush1.msra.mxu0 0.0
  %794 = vmatprep.subr.mxu0 0.0
  %795 = vmatpush1.msra.mxu0 0.0
  %796 = vmatprep.subr.mxu0 0.0
  %797 = vmatpush1.msra.mxu0 0.0
  %798 = vmatprep.subr.mxu0 0.0
  %799 = vmatpush1.msra.mxu0 0.0
  %800 = vmatprep.subr.mxu0 0.0
  %801 = vmatpush1.msra.mxu0 0.0
  %802 = vmatprep.subr.mxu0 0.0
  %803 = vmatpush1.msra.mxu0 0.0
  %804 = vmatprep.subr.mxu0 0.0
  %805 = vmatpush1.msra.mxu0 0.0
  %806 = vmatprep.subr.mxu0 0.0
  %807 = vmatpush1.msra.mxu0 0.0
  %808 = vmatprep.subr.mxu0 0.0
  %809 = vmatpush1.msra.mxu0 0.0
  %810 = vmatprep.subr.mxu0 0.0
  %811 = vmatpush1.msra.mxu0 0.0
  %812 = vmatprep.subr.mxu0 0.0
  %813 = vmatpush1.msra.mxu0 0.0
  %814 = vmatprep.subr.mxu0 0.0
  %815 = vmatpush1.msra.mxu0 0.0
  %816 = vmatprep.subr.mxu0 0.0
  %817 = vmatpush1.msra.mxu0 0.0
  %818 = vmatprep.subr.mxu0 0.0
  %819 = vmatpush1.msra.mxu0 0.0
  %820 = vmatprep.subr.mxu0 0.0
  %821 = vmatpush1.msra.mxu0 0.0
  %822 = vmatprep.subr.mxu0 0.0
  %823 = vmatpush1.msra.mxu0 0.0
  %824 = vmatprep.subr.mxu0 0.0
  %825 = vmatpush1.msra.mxu0 0.0
  %826 = vmatprep.subr.mxu0 0.0
  %827 = vmatpush1.msra.mxu0 0.0
  %828 = vmatprep.subr.mxu0 0.0
  %829 = vmatpush1.msra.mxu0 0.0
  %830 = vmatprep.subr.mxu0 0.0
  %831 = vmatpush1.msra.mxu0 0.0
  %832 = vmatprep.subr.mxu0 0.0
  %833 = vmatpush1.msra.mxu0 0.0
  %834 = vmatprep.subr.mxu0 0.0
  %835 = vmatpush1.msra.mxu0 0.0
  %836 = vmatprep.subr.mxu0 0.0
  %837 = vmatpush1.msra.mxu0 0.0
  %838 = vmatprep.subr.mxu0 0.0
  %839 = vmatpush1.msra.mxu0 0.0
  %840 = vmatprep.subr.mxu0 0.0
  %841 = vmatpush1.msra.mxu0 0.0
  %842 = vmatprep.subr.mxu0 0.0
  %843 = vmatpush1.msra.mxu0 0.0
  %844 = vmatprep.subr.mxu0 0.0
  %845 = vmatpush1.msra.mxu0 0.0
  %846 = vmatprep.subr.mxu0 0.0
  %847 = vmatpush1.msra.mxu0 0.0
  %848 = vmatprep.mubr.f32.mxu0 0.0
  %849 = vmatmul.mubr.f32.gmra.mrb[0].mxu0 %v705
  %v850 = vpop.f32.mrb[0].mxu0
  %v851 = vadd.f32 0.0, %v850
  %v852 = vpop.f32.mrb[0].mxu0
  %853 = vdwg.mxu0
  %v854 = vadd.f32 %v689, %v780
  %v855 = vadd.f32 %v690, %v782
  %v856 = vadd.f32 %v691, %v851
  %s857 = scalar_lea.vmem %s0, 20
  %v858 = vld [vmem:[%s857] sm:$0x1]
  %v859 = vld [vmem:[%s857 + $0x2] sm:$0x1]
  %s860 = scalar_lea.vmem %s1, 60
  %v861 = vld [vmem:[%s860] sm:$0xff]
  %v862 = vld [vmem:[%s860 + $0x8] sm:$0xf]
  %v865 = vrot.slane %v859, 7
  %v866 = vsel %vm38, %v865, %v858
  %v869 = vcombine.high %v861, %v861
  %v870 = vsel %vm43, %v866, 0
  %v872 = vsel %vm46, %v861, 0
  %v874 = vsel %vm46, %v869, 0
  %v876 = vsel %vm46, %v862, 0
  %878 = vmatprep.subr.mxu0 %v874
  %879 = vmatpush1.msra.mxu0 %v872
  %880 = vmatprep.subr.mxu0 0.0
  %881 = vmatpush1.msra.mxu0 0.0
  %882 = vmatprep.subr.mxu0 0.0
  %883 = vmatpush1.msra.mxu0 0.0
  %884 = vmatprep.subr.mxu0 0.0
  %885 = vmatpush1.msra.mxu0 0.0
  %886 = vmatprep.subr.mxu0 0.0
  %887 = vmatpush1.msra.mxu0 0.0
  %888 = vmatprep.subr.mxu0 0.0
  %889 = vmatpush1.msra.mxu0 0.0
  %890 = vmatprep.subr.mxu0 0.0
  %891 = vmatpush1.msra.mxu0 0.0
  %892 = vmatprep.subr.mxu0 0.0
  %893 = vmatpush1.msra.mxu0 0.0
  %894 = vmatprep.subr.mxu0 0.0
  %895 = vmatpush1.msra.mxu0 0.0
  %896 = vmatprep.subr.mxu0 0.0
  %897 = vmatpush1.msra.mxu0 0.0
  %898 = vmatprep.subr.mxu0 0.0
  %899 = vmatpush1.msra.mxu0 0.0
  %900 = vmatprep.subr.mxu0 0.0
  %901 = vmatpush1.msra.mxu0 0.0
  %902 = vmatprep.subr.mxu0 0.0
  %903 = vmatpush1.msra.mxu0 0.0
  %904 = vmatprep.subr.mxu0 0.0
  %905 = vmatpush1.msra.mxu0 0.0
  %906 = vmatprep.subr.mxu0 0.0
  %907 = vmatpush1.msra.mxu0 0.0
  %908 = vmatprep.subr.mxu0 0.0
  %909 = vmatpush1.msra.mxu0 0.0
  %910 = vmatprep.subr.mxu0 0.0
  %911 = vmatpush1.msra.mxu0 0.0
  %912 = vmatprep.subr.mxu0 0.0
  %913 = vmatpush1.msra.mxu0 0.0
  %914 = vmatprep.subr.mxu0 0.0
  %915 = vmatpush1.msra.mxu0 0.0
  %916 = vmatprep.subr.mxu0 0.0
  %917 = vmatpush1.msra.mxu0 0.0
  %918 = vmatprep.subr.mxu0 0.0
  %919 = vmatpush1.msra.mxu0 0.0
  %920 = vmatprep.subr.mxu0 0.0
  %921 = vmatpush1.msra.mxu0 0.0
  %922 = vmatprep.subr.mxu0 0.0
  %923 = vmatpush1.msra.mxu0 0.0
  %924 = vmatprep.subr.mxu0 0.0
  %925 = vmatpush1.msra.mxu0 0.0
  %926 = vmatprep.subr.mxu0 0.0
  %927 = vmatpush1.msra.mxu0 0.0
  %928 = vmatprep.subr.mxu0 0.0
  %929 = vmatpush1.msra.mxu0 0.0
  %930 = vmatprep.subr.mxu0 0.0
  %931 = vmatpush1.msra.mxu0 0.0
  %932 = vmatprep.subr.mxu0 0.0
  %933 = vmatpush1.msra.mxu0 0.0
  %934 = vmatprep.subr.mxu0 0.0
  %935 = vmatpush1.msra.mxu0 0.0
  %936 = vmatprep.subr.mxu0 0.0
  %937 = vmatpush1.msra.mxu0 0.0
  %938 = vmatprep.subr.mxu0 0.0
  %939 = vmatpush1.msra.mxu0 0.0
  %940 = vmatprep.subr.mxu0 0.0
  %941 = vmatpush1.msra.mxu0 0.0
  %942 = vmatprep.mubr.f32.mxu0 0.0
  %943 = vmatmul.mubr.f32.gmra.mrb[0].mxu0 %v870
  %v944 = vpop.f32.mrb[0].mxu0
  %v945 = vadd.f32 0.0, %v944
  %v946 = vpop.f32.mrb[0].mxu0
  %v947 = vadd.f32 0.0, %v946
  %948 = vdwg.mxu0
  %949 = vmatprep.subr.mxu0 0.0
  %950 = vmatpush1.msra.mxu0 %v876
  %951 = vmatprep.subr.mxu0 0.0
  %952 = vmatpush1.msra.mxu0 0.0
  %953 = vmatprep.subr.mxu0 0.0
  %954 = vmatpush1.msra.mxu0 0.0
  %955 = vmatprep.subr.mxu0 0.0
  %956 = vmatpush1.msra.mxu0 0.0
  %957 = vmatprep.subr.mxu0 0.0
  %958 = vmatpush1.msra.mxu0 0.0
  %959 = vmatprep.subr.mxu0 0.0
  %960 = vmatpush1.msra.mxu0 0.0
  %961 = vmatprep.subr.mxu0 0.0
  %962 = vmatpush1.msra.mxu0 0.0
  %963 = vmatprep.subr.mxu0 0.0
  %964 = vmatpush1.msra.mxu0 0.0
  %965 = vmatprep.subr.mxu0 0.0
  %966 = vmatpush1.msra.mxu0 0.0
  %967 = vmatprep.subr.mxu0 0.0
  %968 = vmatpush1.msra.mxu0 0.0
  %969 = vmatprep.subr.mxu0 0.0
  %970 = vmatpush1.msra.mxu0 0.0
  %971 = vmatprep.subr.mxu0 0.0
  %972 = vmatpush1.msra.mxu0 0.0
  %973 = vmatprep.subr.mxu0 0.0
  %974 = vmatpush1.msra.mxu0 0.0
  %975 = vmatprep.subr.mxu0 0.0
  %976 = vmatpush1.msra.mxu0 0.0
  %977 = vmatprep.subr.mxu0 0.0
  %978 = vmatpush1.msra.mxu0 0.0
  %979 = vmatprep.subr.mxu0 0.0
  %980 = vmatpush1.msra.mxu0 0.0
  %981 = vmatprep.subr.mxu0 0.0
  %982 = vmatpush1.msra.mxu0 0.0
  %983 = vmatprep.subr.mxu0 0.0
  %984 = vmatpush1.msra.mxu0 0.0
  %985 = vmatprep.subr.mxu0 0.0
  %986 = vmatpush1.msra.mxu0 0.0
  %987 = vmatprep.subr.mxu0 0.0
  %988 = vmatpush1.msra.mxu0 0.0
  %989 = vmatprep.subr.mxu0 0.0
  %990 = vmatpush1.msra.mxu0 0.0
  %991 = vmatprep.subr.mxu0 0.0
  %992 = vmatpush1.msra.mxu0 0.0
  %993 = vmatprep.subr.mxu0 0.0
  %994 = vmatpush1.msra.mxu0 0.0
  %995 = vmatprep.subr.mxu0 0.0
  %996 = vmatpush1.msra.mxu0 0.0
  %997 = vmatprep.subr.mxu0 0.0
  %998 = vmatpush1.msra.mxu0 0.0
  %999 = vmatprep.subr.mxu0 0.0
  %1000 = vmatpush1.msra.mxu0 0.0
  %1001 = vmatprep.subr.mxu0 0.0
  %1002 = vmatpush1.msra.mxu0 0.0
  %1003 = vmatprep.subr.mxu0 0.0
  %1004 = vmatpush1.msra.mxu0 0.0
  %1005 = vmatprep.subr.mxu0 0.0
  %1006 = vmatpush1.msra.mxu0 0.0
  %1007 = vmatprep.subr.mxu0 0.0
  %1008 = vmatpush1.msra.mxu0 0.0
  %1009 = vmatprep.subr.mxu0 0.0
  %1010 = vmatpush1.msra.mxu0 0.0
  %1011 = vmatprep.subr.mxu0 0.0
  %1012 = vmatpush1.msra.mxu0 0.0
  %1013 = vmatprep.mubr.f32.mxu0 0.0
  %1014 = vmatmul.mubr.f32.gmra.mrb[0].mxu0 %v870
  %v1015 = vpop.f32.mrb[0].mxu0
  %v1016 = vadd.f32 0.0, %v1015
  %v1017 = vpop.f32.mrb[0].mxu0
  %1018 = vdwg.mxu0
  %v1019 = vadd.f32 %v854, %v945
  %v1020 = vadd.f32 %v855, %v947
  %v1021 = vadd.f32 %v856, %v1016
  %s1022 = scalar_lea.vmem %s0, 24
  %v1023 = vld [vmem:[%s1022] sm:$0x1]
  %v1024 = vld [vmem:[%s1022 + $0x2] sm:$0x1]
  %s1025 = scalar_lea.vmem %s1, 72
  %v1026 = vld [vmem:[%s1025] sm:$0xff]
  %v1027 = vld [vmem:[%s1025 + $0x8] sm:$0xf]
  %v1030 = vrot.slane %v1024, 7
  %v1031 = vsel %vm38, %v1030, %v1023
  %v1034 = vcombine.high %v1026, %v1026
  %v1035 = vsel %vm43, %v1031, 0
  %v1037 = vsel %vm46, %v1026, 0
  %v1039 = vsel %vm46, %v1034, 0
  %v1041 = vsel %vm46, %v1027, 0
  %1043 = vmatprep.subr.mxu0 %v1039
  %1044 = vmatpush1.msra.mxu0 %v1037
  %1045 = vmatprep.subr.mxu0 0.0
  %1046 = vmatpush1.msra.mxu0 0.0
  %1047 = vmatprep.subr.mxu0 0.0
  %1048 = vmatpush1.msra.mxu0 0.0
  %1049 = vmatprep.subr.mxu0 0.0
  %1050 = vmatpush1.msra.mxu0 0.0
  %1051 = vmatprep.subr.mxu0 0.0
  %1052 = vmatpush1.msra.mxu0 0.0
  %1053 = vmatprep.subr.mxu0 0.0
  %1054 = vmatpush1.msra.mxu0 0.0
  %1055 = vmatprep.subr.mxu0 0.0
  %1056 = vmatpush1.msra.mxu0 0.0
  %1057 = vmatprep.subr.mxu0 0.0
  %1058 = vmatpush1.msra.mxu0 0.0
  %1059 = vmatprep.subr.mxu0 0.0
  %1060 = vmatpush1.msra.mxu0 0.0
  %1061 = vmatprep.subr.mxu0 0.0
  %1062 = vmatpush1.msra.mxu0 0.0
  %1063 = vmatprep.subr.mxu0 0.0
  %1064 = vmatpush1.msra.mxu0 0.0
  %1065 = vmatprep.subr.mxu0 0.0
  %1066 = vmatpush1.msra.mxu0 0.0
  %1067 = vmatprep.subr.mxu0 0.0
  %1068 = vmatpush1.msra.mxu0 0.0
  %1069 = vmatprep.subr.mxu0 0.0
  %1070 = vmatpush1.msra.mxu0 0.0
  %1071 = vmatprep.subr.mxu0 0.0
  %1072 = vmatpush1.msra.mxu0 0.0
  %1073 = vmatprep.subr.mxu0 0.0
  %1074 = vmatpush1.msra.mxu0 0.0
  %1075 = vmatprep.subr.mxu0 0.0
  %1076 = vmatpush1.msra.mxu0 0.0
  %1077 = vmatprep.subr.mxu0 0.0
  %1078 = vmatpush1.msra.mxu0 0.0
  %1079 = vmatprep.subr.mxu0 0.0
  %1080 = vmatpush1.msra.mxu0 0.0
  %1081 = vmatprep.subr.mxu0 0.0
  %1082 = vmatpush1.msra.mxu0 0.0
  %1083 = vmatprep.subr.mxu0 0.0
  %1084 = vmatpush1.msra.mxu0 0.0
  %1085 = vmatprep.subr.mxu0 0.0
  %1086 = vmatpush1.msra.mxu0 0.0
  %1087 = vmatprep.subr.mxu0 0.0
  %1088 = vmatpush1.msra.mxu0 0.0
  %1089 = vmatprep.subr.mxu0 0.0
  %1090 = vmatpush1.msra.mxu0 0.0
  %1091 = vmatprep.subr.mxu0 0.0
  %1092 = vmatpush1.msra.mxu0 0.0
  %1093 = vmatprep.subr.mxu0 0.0
  %1094 = vmatpush1.msra.mxu0 0.0
  %1095 = vmatprep.subr.mxu0 0.0
  %1096 = vmatpush1.msra.mxu0 0.0
  %1097 = vmatprep.subr.mxu0 0.0
  %1098 = vmatpush1.msra.mxu0 0.0
  %1099 = vmatprep.subr.mxu0 0.0
  %1100 = vmatpush1.msra.mxu0 0.0
  %1101 = vmatprep.subr.mxu0 0.0
  %1102 = vmatpush1.msra.mxu0 0.0
  %1103 = vmatprep.subr.mxu0 0.0
  %1104 = vmatpush1.msra.mxu0 0.0
  %1105 = vmatprep.subr.mxu0 0.0
  %1106 = vmatpush1.msra.mxu0 0.0
  %1107 = vmatprep.mubr.f32.mxu0 0.0
  %1108 = vmatmul.mubr.f32.gmra.mrb[0].mxu0 %v1035
  %v1109 = vpop.f32.mrb[0].mxu0
  %v1110 = vadd.f32 0.0, %v1109
  %v1111 = vpop.f32.mrb[0].mxu0
  %v1112 = vadd.f32 0.0, %v1111
  %1113 = vdwg.mxu0
  %1114 = vmatprep.subr.mxu0 0.0
  %1115 = vmatpush1.msra.mxu0 %v1041
  %1116 = vmatprep.subr.mxu0 0.0
  %1117 = vmatpush1.msra.mxu0 0.0
  %1118 = vmatprep.subr.mxu0 0.0
  %1119 = vmatpush1.msra.mxu0 0.0
  %1120 = vmatprep.subr.mxu0 0.0
  %1121 = vmatpush1.msra.mxu0 0.0
  %1122 = vmatprep.subr.mxu0 0.0
  %1123 = vmatpush1.msra.mxu0 0.0
  %1124 = vmatprep.subr.mxu0 0.0
  %1125 = vmatpush1.msra.mxu0 0.0
  %1126 = vmatprep.subr.mxu0 0.0
  %1127 = vmatpush1.msra.mxu0 0.0
  %1128 = vmatprep.subr.mxu0 0.0
  %1129 = vmatpush1.msra.mxu0 0.0
  %1130 = vmatprep.subr.mxu0 0.0
  %1131 = vmatpush1.msra.mxu0 0.0
  %1132 = vmatprep.subr.mxu0 0.0
  %1133 = vmatpush1.msra.mxu0 0.0
  %1134 = vmatprep.subr.mxu0 0.0
  %1135 = vmatpush1.msra.mxu0 0.0
  %1136 = vmatprep.subr.mxu0 0.0
  %1137 = vmatpush1.msra.mxu0 0.0
  %1138 = vmatprep.subr.mxu0 0.0
  %1139 = vmatpush1.msra.mxu0 0.0
  %1140 = vmatprep.subr.mxu0 0.0
  %1141 = vmatpush1.msra.mxu0 0.0
  %1142 = vmatprep.subr.mxu0 0.0
  %1143 = vmatpush1.msra.mxu0 0.0
  %1144 = vmatprep.subr.mxu0 0.0
  %1145 = vmatpush1.msra.mxu0 0.0
  %1146 = vmatprep.subr.mxu0 0.0
  %1147 = vmatpush1.msra.mxu0 0.0
  %1148 = vmatprep.subr.mxu0 0.0
  %1149 = vmatpush1.msra.mxu0 0.0
  %1150 = vmatprep.subr.mxu0 0.0
  %1151 = vmatpush1.msra.mxu0 0.0
  %1152 = vmatprep.subr.mxu0 0.0
  %1153 = vmatpush1.msra.mxu0 0.0
  %1154 = vmatprep.subr.mxu0 0.0
  %1155 = vmatpush1.msra.mxu0 0.0
  %1156 = vmatprep.subr.mxu0 0.0
  %1157 = vmatpush1.msra.mxu0 0.0
  %1158 = vmatprep.subr.mxu0 0.0
  %1159 = vmatpush1.msra.mxu0 0.0
  %1160 = vmatprep.subr.mxu0 0.0
  %1161 = vmatpush1.msra.mxu0 0.0
  %1162 = vmatprep.subr.mxu0 0.0
  %1163 = vmatpush1.msra.mxu0 0.0
  %1164 = vmatprep.subr.mxu0 0.0
  %1165 = vmatpush1.msra.mxu0 0.0
  %1166 = vmatprep.subr.mxu0 0.0
  %1167 = vmatpush1.msra.mxu0 0.0
  %1168 = vmatprep.subr.mxu0 0.0
  %1169 = vmatpush1.msra.mxu0 0.0
  %1170 = vmatprep.subr.mxu0 0.0
  %1171 = vmatpush1.msra.mxu0 0.0
  %1172 = vmatprep.subr.mxu0 0.0
  %1173 = vmatpush1.msra.mxu0 0.0
  %1174 = vmatprep.subr.mxu0 0.0
  %1175 = vmatpush1.msra.mxu0 0.0
  %1176 = vmatprep.subr.mxu0 0.0
  %1177 = vmatpush1.msra.mxu0 0.0
  %1178 = vmatprep.mubr.f32.mxu0 0.0
  %1179 = vmatmul.mubr.f32.gmra.mrb[0].mxu0 %v1035
  %v1180 = vpop.f32.mrb[0].mxu0
  %v1181 = vadd.f32 0.0, %v1180
  %v1182 = vpop.f32.mrb[0].mxu0
  %1183 = vdwg.mxu0
  %v1184 = vadd.f32 %v1019, %v1110
  %v1185 = vadd.f32 %v1020, %v1112
  %v1186 = vadd.f32 %v1021, %v1181
  %s1187 = scalar_lea.vmem %s0, 28
  %v1188 = vld [vmem:[%s1187] sm:$0x1]
  %v1189 = vld [vmem:[%s1187 + $0x2] sm:$0x1]
  %s1190 = scalar_lea.vmem %s1, 84
  %v1191 = vld [vmem:[%s1190] sm:$0xff]
  %v1192 = vld [vmem:[%s1190 + $0x8] sm:$0xf]
  %v1195 = vrot.slane %v1189, 7
  %v1196 = vsel %vm38, %v1195, %v1188
  %v1199 = vcombine.high %v1191, %v1191
  %v1200 = vsel %vm43, %v1196, 0
  %v1202 = vsel %vm46, %v1191, 0
  %v1204 = vsel %vm46, %v1199, 0
  %v1206 = vsel %vm46, %v1192, 0
  %1208 = vmatprep.subr.mxu0 %v1204
  %1209 = vmatpush1.msra.mxu0 %v1202
  %1210 = vmatprep.subr.mxu0 0.0
  %1211 = vmatpush1.msra.mxu0 0.0
  %1212 = vmatprep.subr.mxu0 0.0
  %1213 = vmatpush1.msra.mxu0 0.0
  %1214 = vmatprep.subr.mxu0 0.0
  %1215 = vmatpush1.msra.mxu0 0.0
  %1216 = vmatprep.subr.mxu0 0.0
  %1217 = vmatpush1.msra.mxu0 0.0
  %1218 = vmatprep.subr.mxu0 0.0
  %1219 = vmatpush1.msra.mxu0 0.0
  %1220 = vmatprep.subr.mxu0 0.0
  %1221 = vmatpush1.msra.mxu0 0.0
  %1222 = vmatprep.subr.mxu0 0.0
  %1223 = vmatpush1.msra.mxu0 0.0
  %1224 = vmatprep.subr.mxu0 0.0
  %1225 = vmatpush1.msra.mxu0 0.0
  %1226 = vmatprep.subr.mxu0 0.0
  %1227 = vmatpush1.msra.mxu0 0.0
  %1228 = vmatprep.subr.mxu0 0.0
  %1229 = vmatpush1.msra.mxu0 0.0
  %1230 = vmatprep.subr.mxu0 0.0
  %1231 = vmatpush1.msra.mxu0 0.0
  %1232 = vmatprep.subr.mxu0 0.0
  %1233 = vmatpush1.msra.mxu0 0.0
  %1234 = vmatprep.subr.mxu0 0.0
  %1235 = vmatpush1.msra.mxu0 0.0
  %1236 = vmatprep.subr.mxu0 0.0
  %1237 = vmatpush1.msra.mxu0 0.0
  %1238 = vmatprep.subr.mxu0 0.0
  %1239 = vmatpush1.msra.mxu0 0.0
  %1240 = vmatprep.subr.mxu0 0.0
  %1241 = vmatpush1.msra.mxu0 0.0
  %1242 = vmatprep.subr.mxu0 0.0
  %1243 = vmatpush1.msra.mxu0 0.0
  %1244 = vmatprep.subr.mxu0 0.0
  %1245 = vmatpush1.msra.mxu0 0.0
  %1246 = vmatprep.subr.mxu0 0.0
  %1247 = vmatpush1.msra.mxu0 0.0
  %1248 = vmatprep.subr.mxu0 0.0
  %1249 = vmatpush1.msra.mxu0 0.0
  %1250 = vmatprep.subr.mxu0 0.0
  %1251 = vmatpush1.msra.mxu0 0.0
  %1252 = vmatprep.subr.mxu0 0.0
  %1253 = vmatpush1.msra.mxu0 0.0
  %1254 = vmatprep.subr.mxu0 0.0
  %1255 = vmatpush1.msra.mxu0 0.0
  %1256 = vmatprep.subr.mxu0 0.0
  %1257 = vmatpush1.msra.mxu0 0.0
  %1258 = vmatprep.subr.mxu0 0.0
  %1259 = vmatpush1.msra.mxu0 0.0
  %1260 = vmatprep.subr.mxu0 0.0
  %1261 = vmatpush1.msra.mxu0 0.0
  %1262 = vmatprep.subr.mxu0 0.0
  %1263 = vmatpush1.msra.mxu0 0.0
  %1264 = vmatprep.subr.mxu0 0.0
  %1265 = vmatpush1.msra.mxu0 0.0
  %1266 = vmatprep.subr.mxu0 0.0
  %1267 = vmatpush1.msra.mxu0 0.0
  %1268 = vmatprep.subr.mxu0 0.0
  %1269 = vmatpush1.msra.mxu0 0.0
  %1270 = vmatprep.subr.mxu0 0.0
  %1271 = vmatpush1.msra.mxu0 0.0
  %1272 = vmatprep.mubr.f32.mxu0 0.0
  %1273 = vmatmul.mubr.f32.gmra.mrb[0].mxu0 %v1200
  %v1274 = vpop.f32.mrb[0].mxu0
  %v1275 = vadd.f32 0.0, %v1274
  %v1276 = vpop.f32.mrb[0].mxu0
  %v1277 = vadd.f32 0.0, %v1276
  %1278 = vdwg.mxu0
  %1279 = vmatprep.subr.mxu0 0.0
  %1280 = vmatpush1.msra.mxu0 %v1206
  %1281 = vmatprep.subr.mxu0 0.0
  %1282 = vmatpush1.msra.mxu0 0.0
  %1283 = vmatprep.subr.mxu0 0.0
  %1284 = vmatpush1.msra.mxu0 0.0
  %1285 = vmatprep.subr.mxu0 0.0
  %1286 = vmatpush1.msra.mxu0 0.0
  %1287 = vmatprep.subr.mxu0 0.0
  %1288 = vmatpush1.msra.mxu0 0.0
  %1289 = vmatprep.subr.mxu0 0.0
  %1290 = vmatpush1.msra.mxu0 0.0
  %1291 = vmatprep.subr.mxu0 0.0
  %1292 = vmatpush1.msra.mxu0 0.0
  %1293 = vmatprep.subr.mxu0 0.0
  %1294 = vmatpush1.msra.mxu0 0.0
  %1295 = vmatprep.subr.mxu0 0.0
  %1296 = vmatpush1.msra.mxu0 0.0
  %1297 = vmatprep.subr.mxu0 0.0
  %1298 = vmatpush1.msra.mxu0 0.0
  %1299 = vmatprep.subr.mxu0 0.0
  %1300 = vmatpush1.msra.mxu0 0.0
  %1301 = vmatprep.subr.mxu0 0.0
  %1302 = vmatpush1.msra.mxu0 0.0
  %1303 = vmatprep.subr.mxu0 0.0
  %1304 = vmatpush1.msra.mxu0 0.0
  %1305 = vmatprep.subr.mxu0 0.0
  %1306 = vmatpush1.msra.mxu0 0.0
  %1307 = vmatprep.subr.mxu0 0.0
  %1308 = vmatpush1.msra.mxu0 0.0
  %1309 = vmatprep.subr.mxu0 0.0
  %1310 = vmatpush1.msra.mxu0 0.0
  %1311 = vmatprep.subr.mxu0 0.0
  %1312 = vmatpush1.msra.mxu0 0.0
  %1313 = vmatprep.subr.mxu0 0.0
  %1314 = vmatpush1.msra.mxu0 0.0
  %1315 = vmatprep.subr.mxu0 0.0
  %1316 = vmatpush1.msra.mxu0 0.0
  %1317 = vmatprep.subr.mxu0 0.0
  %1318 = vmatpush1.msra.mxu0 0.0
  %1319 = vmatprep.subr.mxu0 0.0
  %1320 = vmatpush1.msra.mxu0 0.0
  %1321 = vmatprep.subr.mxu0 0.0
  %1322 = vmatpush1.msra.mxu0 0.0
  %1323 = vmatprep.subr.mxu0 0.0
  %1324 = vmatpush1.msra.mxu0 0.0
  %1325 = vmatprep.subr.mxu0 0.0
  %1326 = vmatpush1.msra.mxu0 0.0
  %1327 = vmatprep.subr.mxu0 0.0
  %1328 = vmatpush1.msra.mxu0 0.0
  %1329 = vmatprep.subr.mxu0 0.0
  %1330 = vmatpush1.msra.mxu0 0.0
  %1331 = vmatprep.subr.mxu0 0.0
  %1332 = vmatpush1.msra.mxu0 0.0
  %1333 = vmatprep.subr.mxu0 0.0
  %1334 = vmatpush1.msra.mxu0 0.0
  %1335 = vmatprep.subr.mxu0 0.0
  %1336 = vmatpush1.msra.mxu0 0.0
  %1337 = vmatprep.subr.mxu0 0.0
  %1338 = vmatpush1.msra.mxu0 0.0
  %1339 = vmatprep.subr.mxu0 0.0
  %1340 = vmatpush1.msra.mxu0 0.0
  %1341 = vmatprep.subr.mxu0 0.0
  %1342 = vmatpush1.msra.mxu0 0.0
  %1343 = vmatprep.mubr.f32.mxu0 0.0
  %1344 = vmatmul.mubr.f32.gmra.mrb[0].mxu0 %v1200
  %v1345 = vpop.f32.mrb[0].mxu0
  %v1346 = vadd.f32 0.0, %v1345
  %v1347 = vpop.f32.mrb[0].mxu0
  %1348 = vdwg.mxu0
  %v1349 = vadd.f32 %v1184, %v1275
  %v1350 = vadd.f32 %v1185, %v1277
  %v1351 = vadd.f32 %v1186, %v1346
  %v1355 = vcombine.low %v1349, %v1350
  %v1357 = vunpack.c.l.s4 1983009808
  %v1358 = vunpack.c.0.s8 %v1357
  %v1359 = vlaneseq
  %v1360 = vshrl.u32 %v1359, 7
  %v1361 = vsub.s32 %v1358, %v1360
  %v1362 = vrot.slane %v1355, %v1361
  %v1364 = vunpack.c.l.s4 1983009808
  %v1365 = vunpack.c.0.s8 %v1364
  %v1366 = vlaneseq
  %v1367 = vshrl.u32 %v1366, 7
  %v1368 = vsub.s32 %v1365, %v1367
  %v1369 = vrot.slane %v1351, %v1368
  %v1370 = vcombine.low %v1362, %v1369
  %1372 = vst [vmem:[%s3] sm:$0x3f] %v1370
  %v1373 = vld [vmem:[%s0 + $0x1] sm:$0x1]
  %v1374 = vld [vmem:[%s0 + $0x3] sm:$0x1]
  %v1375 = vld [vmem:[%s1] sm:$0xff]
  %v1376 = vld [vmem:[%s1 + $0x8] sm:$0xf]
  %v1379 = vrot.slane %v1374, 7
  %v1380 = vsel %vm38, %v1379, %v1373
  %v1383 = vcombine.high %v1375, %v1375
  %v1384 = vsel %vm43, %v1380, 0
  %v1386 = vsel %vm46, %v1375, 0
  %v1388 = vsel %vm46, %v1383, 0
  %v1390 = vsel %vm46, %v1376, 0
  %1392 = vmatprep.subr.mxu0 %v1388
  %1393 = vmatpush1.msra.mxu0 %v1386
  %1394 = vmatprep.subr.mxu0 0.0
  %1395 = vmatpush1.msra.mxu0 0.0
  %1396 = vmatprep.subr.mxu0 0.0
  %1397 = vmatpush1.msra.mxu0 0.0
  %1398 = vmatprep.subr.mxu0 0.0
  %1399 = vmatpush1.msra.mxu0 0.0
  %1400 = vmatprep.subr.mxu0 0.0
  %1401 = vmatpush1.msra.mxu0 0.0
  %1402 = vmatprep.subr.mxu0 0.0
  %1403 = vmatpush1.msra.mxu0 0.0
  %1404 = vmatprep.subr.mxu0 0.0
  %1405 = vmatpush1.msra.mxu0 0.0
  %1406 = vmatprep.subr.mxu0 0.0
  %1407 = vmatpush1.msra.mxu0 0.0
  %1408 = vmatprep.subr.mxu0 0.0
  %1409 = vmatpush1.msra.mxu0 0.0
  %1410 = vmatprep.subr.mxu0 0.0
  %1411 = vmatpush1.msra.mxu0 0.0
  %1412 = vmatprep.subr.mxu0 0.0
  %1413 = vmatpush1.msra.mxu0 0.0
  %1414 = vmatprep.subr.mxu0 0.0
  %1415 = vmatpush1.msra.mxu0 0.0
  %1416 = vmatprep.subr.mxu0 0.0
  %1417 = vmatpush1.msra.mxu0 0.0
  %1418 = vmatprep.subr.mxu0 0.0
  %1419 = vmatpush1.msra.mxu0 0.0
  %1420 = vmatprep.subr.mxu0 0.0
  %1421 = vmatpush1.msra.mxu0 0.0
  %1422 = vmatprep.subr.mxu0 0.0
  %1423 = vmatpush1.msra.mxu0 0.0
  %1424 = vmatprep.subr.mxu0 0.0
  %1425 = vmatpush1.msra.mxu0 0.0
  %1426 = vmatprep.subr.mxu0 0.0
  %1427 = vmatpush1.msra.mxu0 0.0
  %1428 = vmatprep.subr.mxu0 0.0
  %1429 = vmatpush1.msra.mxu0 0.0
  %1430 = vmatprep.subr.mxu0 0.0
  %1431 = vmatpush1.msra.mxu0 0.0
  %1432 = vmatprep.subr.mxu0 0.0
  %1433 = vmatpush1.msra.mxu0 0.0
  %1434 = vmatprep.subr.mxu0 0.0
  %1435 = vmatpush1.msra.mxu0 0.0
  %1436 = vmatprep.subr.mxu0 0.0
  %1437 = vmatpush1.msra.mxu0 0.0
  %1438 = vmatprep.subr.mxu0 0.0
  %1439 = vmatpush1.msra.mxu0 0.0
  %1440 = vmatprep.subr.mxu0 0.0
  %1441 = vmatpush1.msra.mxu0 0.0
  %1442 = vmatprep.subr.mxu0 0.0
  %1443 = vmatpush1.msra.mxu0 0.0
  %1444 = vmatprep.subr.mxu0 0.0
  %1445 = vmatpush1.msra.mxu0 0.0
  %1446 = vmatprep.subr.mxu0 0.0
  %1447 = vmatpush1.msra.mxu0 0.0
  %1448 = vmatprep.subr.mxu0 0.0
  %1449 = vmatpush1.msra.mxu0 0.0
  %1450 = vmatprep.subr.mxu0 0.0
  %1451 = vmatpush1.msra.mxu0 0.0
  %1452 = vmatprep.subr.mxu0 0.0
  %1453 = vmatpush1.msra.mxu0 0.0
  %1454 = vmatprep.subr.mxu0 0.0
  %1455 = vmatpush1.msra.mxu0 0.0
  %1456 = vmatprep.mubr.f32.mxu0 0.0
  %1457 = vmatmul.mubr.f32.gmra.mrb[0].mxu0 %v1384
  %v1458 = vpop.f32.mrb[0].mxu0
  %v1459 = vadd.f32 0.0, %v1458
  %v1460 = vpop.f32.mrb[0].mxu0
  %v1461 = vadd.f32 0.0, %v1460
  %1462 = vdwg.mxu0
  %1463 = vmatprep.subr.mxu0 0.0
  %1464 = vmatpush1.msra.mxu0 %v1390
  %1465 = vmatprep.subr.mxu0 0.0
  %1466 = vmatpush1.msra.mxu0 0.0
  %1467 = vmatprep.subr.mxu0 0.0
  %1468 = vmatpush1.msra.mxu0 0.0
  %1469 = vmatprep.subr.mxu0 0.0
  %1470 = vmatpush1.msra.mxu0 0.0
  %1471 = vmatprep.subr.mxu0 0.0
  %1472 = vmatpush1.msra.mxu0 0.0
  %1473 = vmatprep.subr.mxu0 0.0
  %1474 = vmatpush1.msra.mxu0 0.0
  %1475 = vmatprep.subr.mxu0 0.0
  %1476 = vmatpush1.msra.mxu0 0.0
  %1477 = vmatprep.subr.mxu0 0.0
  %1478 = vmatpush1.msra.mxu0 0.0
  %1479 = vmatprep.subr.mxu0 0.0
  %1480 = vmatpush1.msra.mxu0 0.0
  %1481 = vmatprep.subr.mxu0 0.0
  %1482 = vmatpush1.msra.mxu0 0.0
  %1483 = vmatprep.subr.mxu0 0.0
  %1484 = vmatpush1.msra.mxu0 0.0
  %1485 = vmatprep.subr.mxu0 0.0
  %1486 = vmatpush1.msra.mxu0 0.0
  %1487 = vmatprep.subr.mxu0 0.0
  %1488 = vmatpush1.msra.mxu0 0.0
  %1489 = vmatprep.subr.mxu0 0.0
  %1490 = vmatpush1.msra.mxu0 0.0
  %1491 = vmatprep.subr.mxu0 0.0
  %1492 = vmatpush1.msra.mxu0 0.0
  %1493 = vmatprep.subr.mxu0 0.0
  %1494 = vmatpush1.msra.mxu0 0.0
  %1495 = vmatprep.subr.mxu0 0.0
  %1496 = vmatpush1.msra.mxu0 0.0
  %1497 = vmatprep.subr.mxu0 0.0
  %1498 = vmatpush1.msra.mxu0 0.0
  %1499 = vmatprep.subr.mxu0 0.0
  %1500 = vmatpush1.msra.mxu0 0.0
  %1501 = vmatprep.subr.mxu0 0.0
  %1502 = vmatpush1.msra.mxu0 0.0
  %1503 = vmatprep.subr.mxu0 0.0
  %1504 = vmatpush1.msra.mxu0 0.0
  %1505 = vmatprep.subr.mxu0 0.0
  %1506 = vmatpush1.msra.mxu0 0.0
  %1507 = vmatprep.subr.mxu0 0.0
  %1508 = vmatpush1.msra.mxu0 0.0
  %1509 = vmatprep.subr.mxu0 0.0
  %1510 = vmatpush1.msra.mxu0 0.0
  %1511 = vmatprep.subr.mxu0 0.0
  %1512 = vmatpush1.msra.mxu0 0.0
  %1513 = vmatprep.subr.mxu0 0.0
  %1514 = vmatpush1.msra.mxu0 0.0
  %1515 = vmatprep.subr.mxu0 0.0
  %1516 = vmatpush1.msra.mxu0 0.0
  %1517 = vmatprep.subr.mxu0 0.0
  %1518 = vmatpush1.msra.mxu0 0.0
  %1519 = vmatprep.subr.mxu0 0.0
  %1520 = vmatpush1.msra.mxu0 0.0
  %1521 = vmatprep.subr.mxu0 0.0
  %1522 = vmatpush1.msra.mxu0 0.0
  %1523 = vmatprep.subr.mxu0 0.0
  %1524 = vmatpush1.msra.mxu0 0.0
  %1525 = vmatprep.subr.mxu0 0.0
  %1526 = vmatpush1.msra.mxu0 0.0
  %1527 = vmatprep.mubr.f32.mxu0 0.0
  %1528 = vmatmul.mubr.f32.gmra.mrb[0].mxu0 %v1384
  %v1529 = vpop.f32.mrb[0].mxu0
  %v1530 = vadd.f32 0.0, %v1529
  %v1531 = vpop.f32.mrb[0].mxu0
  %1532 = vdwg.mxu0
  %v1533 = vadd.f32 %v19, %v1459
  %v1534 = vadd.f32 %v23, %v1461
  %v1535 = vadd.f32 %v27, %v1530
  %v1536 = vld [vmem:[%s197 + $0x1] sm:$0x1]
  %v1537 = vld [vmem:[%s197 + $0x3] sm:$0x1]
  %v1538 = vld [vmem:[%s200] sm:$0xff]
  %v1539 = vld [vmem:[%s200 + $0x8] sm:$0xf]
  %v1542 = vrot.slane %v1537, 7
  %v1543 = vsel %vm38, %v1542, %v1536
  %v1546 = vcombine.high %v1538, %v1538
  %v1547 = vsel %vm43, %v1543, 0
  %v1549 = vsel %vm46, %v1538, 0
  %v1551 = vsel %vm46, %v1546, 0
  %v1553 = vsel %vm46, %v1539, 0
  %1555 = vmatprep.subr.mxu0 %v1551
  %1556 = vmatpush1.msra.mxu0 %v1549
  %1557 = vmatprep.subr.mxu0 0.0
  %1558 = vmatpush1.msra.mxu0 0.0
  %1559 = vmatprep.subr.mxu0 0.0
  %1560 = vmatpush1.msra.mxu0 0.0
  %1561 = vmatprep.subr.mxu0 0.0
  %1562 = vmatpush1.msra.mxu0 0.0
  %1563 = vmatprep.subr.mxu0 0.0
  %1564 = vmatpush1.msra.mxu0 0.0
  %1565 = vmatprep.subr.mxu0 0.0
  %1566 = vmatpush1.msra.mxu0 0.0
  %1567 = vmatprep.subr.mxu0 0.0
  %1568 = vmatpush1.msra.mxu0 0.0
  %1569 = vmatprep.subr.mxu0 0.0
  %1570 = vmatpush1.msra.mxu0 0.0
  %1571 = vmatprep.subr.mxu0 0.0
  %1572 = vmatpush1.msra.mxu0 0.0
  %1573 = vmatprep.subr.mxu0 0.0
  %1574 = vmatpush1.msra.mxu0 0.0
  %1575 = vmatprep.subr.mxu0 0.0
  %1576 = vmatpush1.msra.mxu0 0.0
  %1577 = vmatprep.subr.mxu0 0.0
  %1578 = vmatpush1.msra.mxu0 0.0
  %1579 = vmatprep.subr.mxu0 0.0
  %1580 = vmatpush1.msra.mxu0 0.0
  %1581 = vmatprep.subr.mxu0 0.0
  %1582 = vmatpush1.msra.mxu0 0.0
  %1583 = vmatprep.subr.mxu0 0.0
  %1584 = vmatpush1.msra.mxu0 0.0
  %1585 = vmatprep.subr.mxu0 0.0
  %1586 = vmatpush1.msra.mxu0 0.0
  %1587 = vmatprep.subr.mxu0 0.0
  %1588 = vmatpush1.msra.mxu0 0.0
  %1589 = vmatprep.subr.mxu0 0.0
  %1590 = vmatpush1.msra.mxu0 0.0
  %1591 = vmatprep.subr.mxu0 0.0
  %1592 = vmatpush1.msra.mxu0 0.0
  %1593 = vmatprep.subr.mxu0 0.0
  %1594 = vmatpush1.msra.mxu0 0.0
  %1595 = vmatprep.subr.mxu0 0.0
  %1596 = vmatpush1.msra.mxu0 0.0
  %1597 = vmatprep.subr.mxu0 0.0
  %1598 = vmatpush1.msra.mxu0 0.0
  %1599 = vmatprep.subr.mxu0 0.0
  %1600 = vmatpush1.msra.mxu0 0.0
  %1601 = vmatprep.subr.mxu0 0.0
  %1602 = vmatpush1.msra.mxu0 0.0
  %1603 = vmatprep.subr.mxu0 0.0
  %1604 = vmatpush1.msra.mxu0 0.0
  %1605 = vmatprep.subr.mxu0 0.0
  %1606 = vmatpush1.msra.mxu0 0.0
  %1607 = vmatprep.subr.mxu0 0.0
  %1608 = vmatpush1.msra.mxu0 0.0
  %1609 = vmatprep.subr.mxu0 0.0
  %1610 = vmatpush1.msra.mxu0 0.0
  %1611 = vmatprep.subr.mxu0 0.0
  %1612 = vmatpush1.msra.mxu0 0.0
  %1613 = vmatprep.subr.mxu0 0.0
  %1614 = vmatpush1.msra.mxu0 0.0
  %1615 = vmatprep.subr.mxu0 0.0
  %1616 = vmatpush1.msra.mxu0 0.0
  %1617 = vmatprep.subr.mxu0 0.0
  %1618 = vmatpush1.msra.mxu0 0.0
  %1619 = vmatprep.mubr.f32.mxu0 0.0
  %1620 = vmatmul.mubr.f32.gmra.mrb[0].mxu0 %v1547
  %v1621 = vpop.f32.mrb[0].mxu0
  %v1622 = vadd.f32 0.0, %v1621
  %v1623 = vpop.f32.mrb[0].mxu0
  %v1624 = vadd.f32 0.0, %v1623
  %1625 = vdwg.mxu0
  %1626 = vmatprep.subr.mxu0 0.0
  %1627 = vmatpush1.msra.mxu0 %v1553
  %1628 = vmatprep.subr.mxu0 0.0
  %1629 = vmatpush1.msra.mxu0 0.0
  %1630 = vmatprep.subr.mxu0 0.0
  %1631 = vmatpush1.msra.mxu0 0.0
  %1632 = vmatprep.subr.mxu0 0.0
  %1633 = vmatpush1.msra.mxu0 0.0
  %1634 = vmatprep.subr.mxu0 0.0
  %1635 = vmatpush1.msra.mxu0 0.0
  %1636 = vmatprep.subr.mxu0 0.0
  %1637 = vmatpush1.msra.mxu0 0.0
  %1638 = vmatprep.subr.mxu0 0.0
  %1639 = vmatpush1.msra.mxu0 0.0
  %1640 = vmatprep.subr.mxu0 0.0
  %1641 = vmatpush1.msra.mxu0 0.0
  %1642 = vmatprep.subr.mxu0 0.0
  %1643 = vmatpush1.msra.mxu0 0.0
  %1644 = vmatprep.subr.mxu0 0.0
  %1645 = vmatpush1.msra.mxu0 0.0
  %1646 = vmatprep.subr.mxu0 0.0
  %1647 = vmatpush1.msra.mxu0 0.0
  %1648 = vmatprep.subr.mxu0 0.0
  %1649 = vmatpush1.msra.mxu0 0.0
  %1650 = vmatprep.subr.mxu0 0.0
  %1651 = vmatpush1.msra.mxu0 0.0
  %1652 = vmatprep.subr.mxu0 0.0
  %1653 = vmatpush1.msra.mxu0 0.0
  %1654 = vmatprep.subr.mxu0 0.0
  %1655 = vmatpush1.msra.mxu0 0.0
  %1656 = vmatprep.subr.mxu0 0.0
  %1657 = vmatpush1.msra.mxu0 0.0
  %1658 = vmatprep.subr.mxu0 0.0
  %1659 = vmatpush1.msra.mxu0 0.0
  %1660 = vmatprep.subr.mxu0 0.0
  %1661 = vmatpush1.msra.mxu0 0.0
  %1662 = vmatprep.subr.mxu0 0.0
  %1663 = vmatpush1.msra.mxu0 0.0
  %1664 = vmatprep.subr.mxu0 0.0
  %1665 = vmatpush1.msra.mxu0 0.0
  %1666 = vmatprep.subr.mxu0 0.0
  %1667 = vmatpush1.msra.mxu0 0.0
  %1668 = vmatprep.subr.mxu0 0.0
  %1669 = vmatpush1.msra.mxu0 0.0
  %1670 = vmatprep.subr.mxu0 0.0
  %1671 = vmatpush1.msra.mxu0 0.0
  %1672 = vmatprep.subr.mxu0 0.0
  %1673 = vmatpush1.msra.mxu0 0.0
  %1674 = vmatprep.subr.mxu0 0.0
  %1675 = vmatpush1.msra.mxu0 0.0
  %1676 = vmatprep.subr.mxu0 0.0
  %1677 = vmatpush1.msra.mxu0 0.0
  %1678 = vmatprep.subr.mxu0 0.0
  %1679 = vmatpush1.msra.mxu0 0.0
  %1680 = vmatprep.subr.mxu0 0.0
  %1681 = vmatpush1.msra.mxu0 0.0
  %1682 = vmatprep.subr.mxu0 0.0
  %1683 = vmatpush1.msra.mxu0 0.0
  %1684 = vmatprep.subr.mxu0 0.0
  %1685 = vmatpush1.msra.mxu0 0.0
  %1686 = vmatprep.subr.mxu0 0.0
  %1687 = vmatpush1.msra.mxu0 0.0
  %1688 = vmatprep.subr.mxu0 0.0
  %1689 = vmatpush1.msra.mxu0 0.0
  %1690 = vmatprep.mubr.f32.mxu0 0.0
  %1691 = vmatmul.mubr.f32.gmra.mrb[0].mxu0 %v1547
  %v1692 = vpop.f32.mrb[0].mxu0
  %v1693 = vadd.f32 0.0, %v1692
  %v1694 = vpop.f32.mrb[0].mxu0
  %1695 = vdwg.mxu0
  %v1696 = vadd.f32 %v1533, %v1622
  %v1697 = vadd.f32 %v1534, %v1624
  %v1698 = vadd.f32 %v1535, %v1693
  %v1699 = vld [vmem:[%s362 + $0x1] sm:$0x1]
  %v1700 = vld [vmem:[%s362 + $0x3] sm:$0x1]
  %v1701 = vld [vmem:[%s365] sm:$0xff]
  %v1702 = vld [vmem:[%s365 + $0x8] sm:$0xf]
  %v1705 = vrot.slane %v1700, 7
  %v1706 = vsel %vm38, %v1705, %v1699
  %v1709 = vcombine.high %v1701, %v1701
  %v1710 = vsel %vm43, %v1706, 0
  %v1712 = vsel %vm46, %v1701, 0
  %v1714 = vsel %vm46, %v1709, 0
  %v1716 = vsel %vm46, %v1702, 0
  %1718 = vmatprep.subr.mxu0 %v1714
  %1719 = vmatpush1.msra.mxu0 %v1712
  %1720 = vmatprep.subr.mxu0 0.0
  %1721 = vmatpush1.msra.mxu0 0.0
  %1722 = vmatprep.subr.mxu0 0.0
  %1723 = vmatpush1.msra.mxu0 0.0
  %1724 = vmatprep.subr.mxu0 0.0
  %1725 = vmatpush1.msra.mxu0 0.0
  %1726 = vmatprep.subr.mxu0 0.0
  %1727 = vmatpush1.msra.mxu0 0.0
  %1728 = vmatprep.subr.mxu0 0.0
  %1729 = vmatpush1.msra.mxu0 0.0
  %1730 = vmatprep.subr.mxu0 0.0
  %1731 = vmatpush1.msra.mxu0 0.0
  %1732 = vmatprep.subr.mxu0 0.0
  %1733 = vmatpush1.msra.mxu0 0.0
  %1734 = vmatprep.subr.mxu0 0.0
  %1735 = vmatpush1.msra.mxu0 0.0
  %1736 = vmatprep.subr.mxu0 0.0
  %1737 = vmatpush1.msra.mxu0 0.0
  %1738 = vmatprep.subr.mxu0 0.0
  %1739 = vmatpush1.msra.mxu0 0.0
  %1740 = vmatprep.subr.mxu0 0.0
  %1741 = vmatpush1.msra.mxu0 0.0
  %1742 = vmatprep.subr.mxu0 0.0
  %1743 = vmatpush1.msra.mxu0 0.0
  %1744 = vmatprep.subr.mxu0 0.0
  %1745 = vmatpush1.msra.mxu0 0.0
  %1746 = vmatprep.subr.mxu0 0.0
  %1747 = vmatpush1.msra.mxu0 0.0
  %1748 = vmatprep.subr.mxu0 0.0
  %1749 = vmatpush1.msra.mxu0 0.0
  %1750 = vmatprep.subr.mxu0 0.0
  %1751 = vmatpush1.msra.mxu0 0.0
  %1752 = vmatprep.subr.mxu0 0.0
  %1753 = vmatpush1.msra.mxu0 0.0
  %1754 = vmatprep.subr.mxu0 0.0
  %1755 = vmatpush1.msra.mxu0 0.0
  %1756 = vmatprep.subr.mxu0 0.0
  %1757 = vmatpush1.msra.mxu0 0.0
  %1758 = vmatprep.subr.mxu0 0.0
  %1759 = vmatpush1.msra.mxu0 0.0
  %1760 = vmatprep.subr.mxu0 0.0
  %1761 = vmatpush1.msra.mxu0 0.0
  %1762 = vmatprep.subr.mxu0 0.0
  %1763 = vmatpush1.msra.mxu0 0.0
  %1764 = vmatprep.subr.mxu0 0.0
  %1765 = vmatpush1.msra.mxu0 0.0
  %1766 = vmatprep.subr.mxu0 0.0
  %1767 = vmatpush1.msra.mxu0 0.0
  %1768 = vmatprep.subr.mxu0 0.0
  %1769 = vmatpush1.msra.mxu0 0.0
  %1770 = vmatprep.subr.mxu0 0.0
  %1771 = vmatpush1.msra.mxu0 0.0
  %1772 = vmatprep.subr.mxu0 0.0
  %1773 = vmatpush1.msra.mxu0 0.0
  %1774 = vmatprep.subr.mxu0 0.0
  %1775 = vmatpush1.msra.mxu0 0.0
  %1776 = vmatprep.subr.mxu0 0.0
  %1777 = vmatpush1.msra.mxu0 0.0
  %1778 = vmatprep.subr.mxu0 0.0
  %1779 = vmatpush1.msra.mxu0 0.0
  %1780 = vmatprep.subr.mxu0 0.0
  %1781 = vmatpush1.msra.mxu0 0.0
  %1782 = vmatprep.mubr.f32.mxu0 0.0
  %1783 = vmatmul.mubr.f32.gmra.mrb[0].mxu0 %v1710
  %v1784 = vpop.f32.mrb[0].mxu0
  %v1785 = vadd.f32 0.0, %v1784
  %v1786 = vpop.f32.mrb[0].mxu0
  %v1787 = vadd.f32 0.0, %v1786
  %1788 = vdwg.mxu0
  %1789 = vmatprep.subr.mxu0 0.0
  %1790 = vmatpush1.msra.mxu0 %v1716
  %1791 = vmatprep.subr.mxu0 0.0
  %1792 = vmatpush1.msra.mxu0 0.0
  %1793 = vmatprep.subr.mxu0 0.0
  %1794 = vmatpush1.msra.mxu0 0.0
  %1795 = vmatprep.subr.mxu0 0.0
  %1796 = vmatpush1.msra.mxu0 0.0
  %1797 = vmatprep.subr.mxu0 0.0
  %1798 = vmatpush1.msra.mxu0 0.0
  %1799 = vmatprep.subr.mxu0 0.0
  %1800 = vmatpush1.msra.mxu0 0.0
  %1801 = vmatprep.subr.mxu0 0.0
  %1802 = vmatpush1.msra.mxu0 0.0
  %1803 = vmatprep.subr.mxu0 0.0
  %1804 = vmatpush1.msra.mxu0 0.0
  %1805 = vmatprep.subr.mxu0 0.0
  %1806 = vmatpush1.msra.mxu0 0.0
  %1807 = vmatprep.subr.mxu0 0.0
  %1808 = vmatpush1.msra.mxu0 0.0
  %1809 = vmatprep.subr.mxu0 0.0
  %1810 = vmatpush1.msra.mxu0 0.0
  %1811 = vmatprep.subr.mxu0 0.0
  %1812 = vmatpush1.msra.mxu0 0.0
  %1813 = vmatprep.subr.mxu0 0.0
  %1814 = vmatpush1.msra.mxu0 0.0
  %1815 = vmatprep.subr.mxu0 0.0
  %1816 = vmatpush1.msra.mxu0 0.0
  %1817 = vmatprep.subr.mxu0 0.0
  %1818 = vmatpush1.msra.mxu0 0.0
  %1819 = vmatprep.subr.mxu0 0.0
  %1820 = vmatpush1.msra.mxu0 0.0
  %1821 = vmatprep.subr.mxu0 0.0
  %1822 = vmatpush1.msra.mxu0 0.0
  %1823 = vmatprep.subr.mxu0 0.0
  %1824 = vmatpush1.msra.mxu0 0.0
  %1825 = vmatprep.subr.mxu0 0.0
  %1826 = vmatpush1.msra.mxu0 0.0
  %1827 = vmatprep.subr.mxu0 0.0
  %1828 = vmatpush1.msra.mxu0 0.0
  %1829 = vmatprep.subr.mxu0 0.0
  %1830 = vmatpush1.msra.mxu0 0.0
  %1831 = vmatprep.subr.mxu0 0.0
  %1832 = vmatpush1.msra.mxu0 0.0
  %1833 = vmatprep.subr.mxu0 0.0
  %1834 = vmatpush1.msra.mxu0 0.0
  %1835 = vmatprep.subr.mxu0 0.0
  %1836 = vmatpush1.msra.mxu0 0.0
  %1837 = vmatprep.subr.mxu0 0.0
  %1838 = vmatpush1.msra.mxu0 0.0
  %1839 = vmatprep.subr.mxu0 0.0
  %1840 = vmatpush1.msra.mxu0 0.0
  %1841 = vmatprep.subr.mxu0 0.0
  %1842 = vmatpush1.msra.mxu0 0.0
  %1843 = vmatprep.subr.mxu0 0.0
  %1844 = vmatpush1.msra.mxu0 0.0
  %1845 = vmatprep.subr.mxu0 0.0
  %1846 = vmatpush1.msra.mxu0 0.0
  %1847 = vmatprep.subr.mxu0 0.0
  %1848 = vmatpush1.msra.mxu0 0.0
  %1849 = vmatprep.subr.mxu0 0.0
  %1850 = vmatpush1.msra.mxu0 0.0
  %1851 = vmatprep.subr.mxu0 0.0
  %1852 = vmatpush1.msra.mxu0 0.0
  %1853 = vmatprep.mubr.f32.mxu0 0.0
  %1854 = vmatmul.mubr.f32.gmra.mrb[0].mxu0 %v1710
  %v1855 = vpop.f32.mrb[0].mxu0
  %v1856 = vadd.f32 0.0, %v1855
  %v1857 = vpop.f32.mrb[0].mxu0
  %1858 = vdwg.mxu0
  %v1859 = vadd.f32 %v1696, %v1785
  %v1860 = vadd.f32 %v1697, %v1787
  %v1861 = vadd.f32 %v1698, %v1856
  %v1862 = vld [vmem:[%s527 + $0x1] sm:$0x1]
  %v1863 = vld [vmem:[%s527 + $0x3] sm:$0x1]
  %v1864 = vld [vmem:[%s530] sm:$0xff]
  %v1865 = vld [vmem:[%s530 + $0x8] sm:$0xf]
  %v1868 = vrot.slane %v1863, 7
  %v1869 = vsel %vm38, %v1868, %v1862
  %v1872 = vcombine.high %v1864, %v1864
  %v1873 = vsel %vm43, %v1869, 0
  %v1875 = vsel %vm46, %v1864, 0
  %v1877 = vsel %vm46, %v1872, 0
  %v1879 = vsel %vm46, %v1865, 0
  %1881 = vmatprep.subr.mxu0 %v1877
  %1882 = vmatpush1.msra.mxu0 %v1875
  %1883 = vmatprep.subr.mxu0 0.0
  %1884 = vmatpush1.msra.mxu0 0.0
  %1885 = vmatprep.subr.mxu0 0.0
  %1886 = vmatpush1.msra.mxu0 0.0
  %1887 = vmatprep.subr.mxu0 0.0
  %1888 = vmatpush1.msra.mxu0 0.0
  %1889 = vmatprep.subr.mxu0 0.0
  %1890 = vmatpush1.msra.mxu0 0.0
  %1891 = vmatprep.subr.mxu0 0.0
  %1892 = vmatpush1.msra.mxu0 0.0
  %1893 = vmatprep.subr.mxu0 0.0
  %1894 = vmatpush1.msra.mxu0 0.0
  %1895 = vmatprep.subr.mxu0 0.0
  %1896 = vmatpush1.msra.mxu0 0.0
  %1897 = vmatprep.subr.mxu0 0.0
  %1898 = vmatpush1.msra.mxu0 0.0
  %1899 = vmatprep.subr.mxu0 0.0
  %1900 = vmatpush1.msra.mxu0 0.0
  %1901 = vmatprep.subr.mxu0 0.0
  %1902 = vmatpush1.msra.mxu0 0.0
  %1903 = vmatprep.subr.mxu0 0.0
  %1904 = vmatpush1.msra.mxu0 0.0
  %1905 = vmatprep.subr.mxu0 0.0
  %1906 = vmatpush1.msra.mxu0 0.0
  %1907 = vmatprep.subr.mxu0 0.0
  %1908 = vmatpush1.msra.mxu0 0.0
  %1909 = vmatprep.subr.mxu0 0.0
  %1910 = vmatpush1.msra.mxu0 0.0
  %1911 = vmatprep.subr.mxu0 0.0
  %1912 = vmatpush1.msra.mxu0 0.0
  %1913 = vmatprep.subr.mxu0 0.0
  %1914 = vmatpush1.msra.mxu0 0.0
  %1915 = vmatprep.subr.mxu0 0.0
  %1916 = vmatpush1.msra.mxu0 0.0
  %1917 = vmatprep.subr.mxu0 0.0
  %1918 = vmatpush1.msra.mxu0 0.0
  %1919 = vmatprep.subr.mxu0 0.0
  %1920 = vmatpush1.msra.mxu0 0.0
  %1921 = vmatprep.subr.mxu0 0.0
  %1922 = vmatpush1.msra.mxu0 0.0
  %1923 = vmatprep.subr.mxu0 0.0
  %1924 = vmatpush1.msra.mxu0 0.0
  %1925 = vmatprep.subr.mxu0 0.0
  %1926 = vmatpush1.msra.mxu0 0.0
  %1927 = vmatprep.subr.mxu0 0.0
  %1928 = vmatpush1.msra.mxu0 0.0
  %1929 = vmatprep.subr.mxu0 0.0
  %1930 = vmatpush1.msra.mxu0 0.0
  %1931 = vmatprep.subr.mxu0 0.0
  %1932 = vmatpush1.msra.mxu0 0.0
  %1933 = vmatprep.subr.mxu0 0.0
  %1934 = vmatpush1.msra.mxu0 0.0
  %1935 = vmatprep.subr.mxu0 0.0
  %1936 = vmatpush1.msra.mxu0 0.0
  %1937 = vmatprep.subr.mxu0 0.0
  %1938 = vmatpush1.msra.mxu0 0.0
  %1939 = vmatprep.subr.mxu0 0.0
  %1940 = vmatpush1.msra.mxu0 0.0
  %1941 = vmatprep.subr.mxu0 0.0
  %1942 = vmatpush1.msra.mxu0 0.0
  %1943 = vmatprep.subr.mxu0 0.0
  %1944 = vmatpush1.msra.mxu0 0.0
  %1945 = vmatprep.mubr.f32.mxu0 0.0
  %1946 = vmatmul.mubr.f32.gmra.mrb[0].mxu0 %v1873
  %v1947 = vpop.f32.mrb[0].mxu0
  %v1948 = vadd.f32 0.0, %v1947
  %v1949 = vpop.f32.mrb[0].mxu0
  %v1950 = vadd.f32 0.0, %v1949
  %1951 = vdwg.mxu0
  %1952 = vmatprep.subr.mxu0 0.0
  %1953 = vmatpush1.msra.mxu0 %v1879
  %1954 = vmatprep.subr.mxu0 0.0
  %1955 = vmatpush1.msra.mxu0 0.0
  %1956 = vmatprep.subr.mxu0 0.0
  %1957 = vmatpush1.msra.mxu0 0.0
  %1958 = vmatprep.subr.mxu0 0.0
  %1959 = vmatpush1.msra.mxu0 0.0
  %1960 = vmatprep.subr.mxu0 0.0
  %1961 = vmatpush1.msra.mxu0 0.0
  %1962 = vmatprep.subr.mxu0 0.0
  %1963 = vmatpush1.msra.mxu0 0.0
  %1964 = vmatprep.subr.mxu0 0.0
  %1965 = vmatpush1.msra.mxu0 0.0
  %1966 = vmatprep.subr.mxu0 0.0
  %1967 = vmatpush1.msra.mxu0 0.0
  %1968 = vmatprep.subr.mxu0 0.0
  %1969 = vmatpush1.msra.mxu0 0.0
  %1970 = vmatprep.subr.mxu0 0.0
  %1971 = vmatpush1.msra.mxu0 0.0
  %1972 = vmatprep.subr.mxu0 0.0
  %1973 = vmatpush1.msra.mxu0 0.0
  %1974 = vmatprep.subr.mxu0 0.0
  %1975 = vmatpush1.msra.mxu0 0.0
  %1976 = vmatprep.subr.mxu0 0.0
  %1977 = vmatpush1.msra.mxu0 0.0
  %1978 = vmatprep.subr.mxu0 0.0
  %1979 = vmatpush1.msra.mxu0 0.0
  %1980 = vmatprep.subr.mxu0 0.0
  %1981 = vmatpush1.msra.mxu0 0.0
  %1982 = vmatprep.subr.mxu0 0.0
  %1983 = vmatpush1.msra.mxu0 0.0
  %1984 = vmatprep.subr.mxu0 0.0
  %1985 = vmatpush1.msra.mxu0 0.0
  %1986 = vmatprep.subr.mxu0 0.0
  %1987 = vmatpush1.msra.mxu0 0.0
  %1988 = vmatprep.subr.mxu0 0.0
  %1989 = vmatpush1.msra.mxu0 0.0
  %1990 = vmatprep.subr.mxu0 0.0
  %1991 = vmatpush1.msra.mxu0 0.0
  %1992 = vmatprep.subr.mxu0 0.0
  %1993 = vmatpush1.msra.mxu0 0.0
  %1994 = vmatprep.subr.mxu0 0.0
  %1995 = vmatpush1.msra.mxu0 0.0
  %1996 = vmatprep.subr.mxu0 0.0
  %1997 = vmatpush1.msra.mxu0 0.0
  %1998 = vmatprep.subr.mxu0 0.0
  %1999 = vmatpush1.msra.mxu0 0.0
  %2000 = vmatprep.subr.mxu0 0.0
  %2001 = vmatpush1.msra.mxu0 0.0
  %2002 = vmatprep.subr.mxu0 0.0
  %2003 = vmatpush1.msra.mxu0 0.0
  %2004 = vmatprep.subr.mxu0 0.0
  %2005 = vmatpush1.msra.mxu0 0.0
  %2006 = vmatprep.subr.mxu0 0.0
  %2007 = vmatpush1.msra.mxu0 0.0
  %2008 = vmatprep.subr.mxu0 0.0
  %2009 = vmatpush1.msra.mxu0 0.0
  %2010 = vmatprep.subr.mxu0 0.0
  %2011 = vmatpush1.msra.mxu0 0.0
  %2012 = vmatprep.subr.mxu0 0.0
  %2013 = vmatpush1.msra.mxu0 0.0
  %2014 = vmatprep.subr.mxu0 0.0
  %2015 = vmatpush1.msra.mxu0 0.0
  %2016 = vmatprep.mubr.f32.mxu0 0.0
  %2017 = vmatmul.mubr.f32.gmra.mrb[0].mxu0 %v1873
  %v2018 = vpop.f32.mrb[0].mxu0
  %v2019 = vadd.f32 0.0, %v2018
  %v2020 = vpop.f32.mrb[0].mxu0
  %2021 = vdwg.mxu0
  %v2022 = vadd.f32 %v1859, %v1948
  %v2023 = vadd.f32 %v1860, %v1950
  %v2024 = vadd.f32 %v1861, %v2019
  %v2025 = vld [vmem:[%s692 + $0x1] sm:$0x1]
  %v2026 = vld [vmem:[%s692 + $0x3] sm:$0x1]
  %v2027 = vld [vmem:[%s695] sm:$0xff]
  %v2028 = vld [vmem:[%s695 + $0x8] sm:$0xf]
  %v2031 = vrot.slane %v2026, 7
  %v2032 = vsel %vm38, %v2031, %v2025
  %v2035 = vcombine.high %v2027, %v2027
  %v2036 = vsel %vm43, %v2032, 0
  %v2038 = vsel %vm46, %v2027, 0
  %v2040 = vsel %vm46, %v2035, 0
  %v2042 = vsel %vm46, %v2028, 0
  %2044 = vmatprep.subr.mxu0 %v2040
  %2045 = vmatpush1.msra.mxu0 %v2038
  %2046 = vmatprep.subr.mxu0 0.0
  %2047 = vmatpush1.msra.mxu0 0.0
  %2048 = vmatprep.subr.mxu0 0.0
  %2049 = vmatpush1.msra.mxu0 0.0
  %2050 = vmatprep.subr.mxu0 0.0
  %2051 = vmatpush1.msra.mxu0 0.0
  %2052 = vmatprep.subr.mxu0 0.0
  %2053 = vmatpush1.msra.mxu0 0.0
  %2054 = vmatprep.subr.mxu0 0.0
  %2055 = vmatpush1.msra.mxu0 0.0
  %2056 = vmatprep.subr.mxu0 0.0
  %2057 = vmatpush1.msra.mxu0 0.0
  %2058 = vmatprep.subr.mxu0 0.0
  %2059 = vmatpush1.msra.mxu0 0.0
  %2060 = vmatprep.subr.mxu0 0.0
  %2061 = vmatpush1.msra.mxu0 0.0
  %2062 = vmatprep.subr.mxu0 0.0
  %2063 = vmatpush1.msra.mxu0 0.0
  %2064 = vmatprep.subr.mxu0 0.0
  %2065 = vmatpush1.msra.mxu0 0.0
  %2066 = vmatprep.subr.mxu0 0.0
  %2067 = vmatpush1.msra.mxu0 0.0
  %2068 = vmatprep.subr.mxu0 0.0
  %2069 = vmatpush1.msra.mxu0 0.0
  %2070 = vmatprep.subr.mxu0 0.0
  %2071 = vmatpush1.msra.mxu0 0.0
  %2072 = vmatprep.subr.mxu0 0.0
  %2073 = vmatpush1.msra.mxu0 0.0
  %2074 = vmatprep.subr.mxu0 0.0
  %2075 = vmatpush1.msra.mxu0 0.0
  %2076 = vmatprep.subr.mxu0 0.0
  %2077 = vmatpush1.msra.mxu0 0.0
  %2078 = vmatprep.subr.mxu0 0.0
  %2079 = vmatpush1.msra.mxu0 0.0
  %2080 = vmatprep.subr.mxu0 0.0
  %2081 = vmatpush1.msra.mxu0 0.0
  %2082 = vmatprep.subr.mxu0 0.0
  %2083 = vmatpush1.msra.mxu0 0.0
  %2084 = vmatprep.subr.mxu0 0.0
  %2085 = vmatpush1.msra.mxu0 0.0
  %2086 = vmatprep.subr.mxu0 0.0
  %2087 = vmatpush1.msra.mxu0 0.0
  %2088 = vmatprep.subr.mxu0 0.0
  %2089 = vmatpush1.msra.mxu0 0.0
  %2090 = vmatprep.subr.mxu0 0.0
  %2091 = vmatpush1.msra.mxu0 0.0
  %2092 = vmatprep.subr.mxu0 0.0
  %2093 = vmatpush1.msra.mxu0 0.0
  %2094 = vmatprep.subr.mxu0 0.0
  %2095 = vmatpush1.msra.mxu0 0.0
  %2096 = vmatprep.subr.mxu0 0.0
  %2097 = vmatpush1.msra.mxu0 0.0
  %2098 = vmatprep.subr.mxu0 0.0
  %2099 = vmatpush1.msra.mxu0 0.0
  %2100 = vmatprep.subr.mxu0 0.0
  %2101 = vmatpush1.msra.mxu0 0.0
  %2102 = vmatprep.subr.mxu0 0.0
  %2103 = vmatpush1.msra.mxu0 0.0
  %2104 = vmatprep.subr.mxu0 0.0
  %2105 = vmatpush1.msra.mxu0 0.0
  %2106 = vmatprep.subr.mxu0 0.0
  %2107 = vmatpush1.msra.mxu0 0.0
  %2108 = vmatprep.mubr.f32.mxu0 0.0
  %2109 = vmatmul.mubr.f32.gmra.mrb[0].mxu0 %v2036
  %v2110 = vpop.f32.mrb[0].mxu0
  %v2111 = vadd.f32 0.0, %v2110
  %v2112 = vpop.f32.mrb[0].mxu0
  %v2113 = vadd.f32 0.0, %v2112
  %2114 = vdwg.mxu0
  %2115 = vmatprep.subr.mxu0 0.0
  %2116 = vmatpush1.msra.mxu0 %v2042
  %2117 = vmatprep.subr.mxu0 0.0
  %2118 = vmatpush1.msra.mxu0 0.0
  %2119 = vmatprep.subr.mxu0 0.0
  %2120 = vmatpush1.msra.mxu0 0.0
  %2121 = vmatprep.subr.mxu0 0.0
  %2122 = vmatpush1.msra.mxu0 0.0
  %2123 = vmatprep.subr.mxu0 0.0
  %2124 = vmatpush1.msra.mxu0 0.0
  %2125 = vmatprep.subr.mxu0 0.0
  %2126 = vmatpush1.msra.mxu0 0.0
  %2127 = vmatprep.subr.mxu0 0.0
  %2128 = vmatpush1.msra.mxu0 0.0
  %2129 = vmatprep.subr.mxu0 0.0
  %2130 = vmatpush1.msra.mxu0 0.0
  %2131 = vmatprep.subr.mxu0 0.0
  %2132 = vmatpush1.msra.mxu0 0.0
  %2133 = vmatprep.subr.mxu0 0.0
  %2134 = vmatpush1.msra.mxu0 0.0
  %2135 = vmatprep.subr.mxu0 0.0
  %2136 = vmatpush1.msra.mxu0 0.0
  %2137 = vmatprep.subr.mxu0 0.0
  %2138 = vmatpush1.msra.mxu0 0.0
  %2139 = vmatprep.subr.mxu0 0.0
  %2140 = vmatpush1.msra.mxu0 0.0
  %2141 = vmatprep.subr.mxu0 0.0
  %2142 = vmatpush1.msra.mxu0 0.0
  %2143 = vmatprep.subr.mxu0 0.0
  %2144 = vmatpush1.msra.mxu0 0.0
  %2145 = vmatprep.subr.mxu0 0.0
  %2146 = vmatpush1.msra.mxu0 0.0
  %2147 = vmatprep.subr.mxu0 0.0
  %2148 = vmatpush1.msra.mxu0 0.0
  %2149 = vmatprep.subr.mxu0 0.0
  %2150 = vmatpush1.msra.mxu0 0.0
  %2151 = vmatprep.subr.mxu0 0.0
  %2152 = vmatpush1.msra.mxu0 0.0
  %2153 = vmatprep.subr.mxu0 0.0
  %2154 = vmatpush1.msra.mxu0 0.0
  %2155 = vmatprep.subr.mxu0 0.0
  %2156 = vmatpush1.msra.mxu0 0.0
  %2157 = vmatprep.subr.mxu0 0.0
  %2158 = vmatpush1.msra.mxu0 0.0
  %2159 = vmatprep.subr.mxu0 0.0
  %2160 = vmatpush1.msra.mxu0 0.0
  %2161 = vmatprep.subr.mxu0 0.0
  %2162 = vmatpush1.msra.mxu0 0.0
  %2163 = vmatprep.subr.mxu0 0.0
  %2164 = vmatpush1.msra.mxu0 0.0
  %2165 = vmatprep.subr.mxu0 0.0
  %2166 = vmatpush1.msra.mxu0 0.0
  %2167 = vmatprep.subr.mxu0 0.0
  %2168 = vmatpush1.msra.mxu0 0.0
  %2169 = vmatprep.subr.mxu0 0.0
  %2170 = vmatpush1.msra.mxu0 0.0
  %2171 = vmatprep.subr.mxu0 0.0
  %2172 = vmatpush1.msra.mxu0 0.0
  %2173 = vmatprep.subr.mxu0 0.0
  %2174 = vmatpush1.msra.mxu0 0.0
  %2175 = vmatprep.subr.mxu0 0.0
  %2176 = vmatpush1.msra.mxu0 0.0
  %2177 = vmatprep.subr.mxu0 0.0
  %2178 = vmatpush1.msra.mxu0 0.0
  %2179 = vmatprep.mubr.f32.mxu0 0.0
  %2180 = vmatmul.mubr.f32.gmra.mrb[0].mxu0 %v2036
  %v2181 = vpop.f32.mrb[0].mxu0
  %v2182 = vadd.f32 0.0, %v2181
  %v2183 = vpop.f32.mrb[0].mxu0
  %2184 = vdwg.mxu0
  %v2185 = vadd.f32 %v2022, %v2111
  %v2186 = vadd.f32 %v2023, %v2113
  %v2187 = vadd.f32 %v2024, %v2182
  %v2188 = vld [vmem:[%s857 + $0x1] sm:$0x1]
  %v2189 = vld [vmem:[%s857 + $0x3] sm:$0x1]
  %v2190 = vld [vmem:[%s860] sm:$0xff]
  %v2191 = vld [vmem:[%s860 + $0x8] sm:$0xf]
  %v2194 = vrot.slane %v2189, 7
  %v2195 = vsel %vm38, %v2194, %v2188
  %v2198 = vcombine.high %v2190, %v2190
  %v2199 = vsel %vm43, %v2195, 0
  %v2201 = vsel %vm46, %v2190, 0
  %v2203 = vsel %vm46, %v2198, 0
  %v2205 = vsel %vm46, %v2191, 0
  %2207 = vmatprep.subr.mxu0 %v2203
  %2208 = vmatpush1.msra.mxu0 %v2201
  %2209 = vmatprep.subr.mxu0 0.0
  %2210 = vmatpush1.msra.mxu0 0.0
  %2211 = vmatprep.subr.mxu0 0.0
  %2212 = vmatpush1.msra.mxu0 0.0
  %2213 = vmatprep.subr.mxu0 0.0
  %2214 = vmatpush1.msra.mxu0 0.0
  %2215 = vmatprep.subr.mxu0 0.0
  %2216 = vmatpush1.msra.mxu0 0.0
  %2217 = vmatprep.subr.mxu0 0.0
  %2218 = vmatpush1.msra.mxu0 0.0
  %2219 = vmatprep.subr.mxu0 0.0
  %2220 = vmatpush1.msra.mxu0 0.0
  %2221 = vmatprep.subr.mxu0 0.0
  %2222 = vmatpush1.msra.mxu0 0.0
  %2223 = vmatprep.subr.mxu0 0.0
  %2224 = vmatpush1.msra.mxu0 0.0
  %2225 = vmatprep.subr.mxu0 0.0
  %2226 = vmatpush1.msra.mxu0 0.0
  %2227 = vmatprep.subr.mxu0 0.0
  %2228 = vmatpush1.msra.mxu0 0.0
  %2229 = vmatprep.subr.mxu0 0.0
  %2230 = vmatpush1.msra.mxu0 0.0
  %2231 = vmatprep.subr.mxu0 0.0
  %2232 = vmatpush1.msra.mxu0 0.0
  %2233 = vmatprep.subr.mxu0 0.0
  %2234 = vmatpush1.msra.mxu0 0.0
  %2235 = vmatprep.subr.mxu0 0.0
  %2236 = vmatpush1.msra.mxu0 0.0
  %2237 = vmatprep.subr.mxu0 0.0
  %2238 = vmatpush1.msra.mxu0 0.0
  %2239 = vmatprep.subr.mxu0 0.0
  %2240 = vmatpush1.msra.mxu0 0.0
  %2241 = vmatprep.subr.mxu0 0.0
  %2242 = vmatpush1.msra.mxu0 0.0
  %2243 = vmatprep.subr.mxu0 0.0
  %2244 = vmatpush1.msra.mxu0 0.0
  %2245 = vmatprep.subr.mxu0 0.0
  %2246 = vmatpush1.msra.mxu0 0.0
  %2247 = vmatprep.subr.mxu0 0.0
  %2248 = vmatpush1.msra.mxu0 0.0
  %2249 = vmatprep.subr.mxu0 0.0
  %2250 = vmatpush1.msra.mxu0 0.0
  %2251 = vmatprep.subr.mxu0 0.0
  %2252 = vmatpush1.msra.mxu0 0.0
  %2253 = vmatprep.subr.mxu0 0.0
  %2254 = vmatpush1.msra.mxu0 0.0
  %2255 = vmatprep.subr.mxu0 0.0
  %2256 = vmatpush1.msra.mxu0 0.0
  %2257 = vmatprep.subr.mxu0 0.0
  %2258 = vmatpush1.msra.mxu0 0.0
  %2259 = vmatprep.subr.mxu0 0.0
  %2260 = vmatpush1.msra.mxu0 0.0
  %2261 = vmatprep.subr.mxu0 0.0
  %2262 = vmatpush1.msra.mxu0 0.0
  %2263 = vmatprep.subr.mxu0 0.0
  %2264 = vmatpush1.msra.mxu0 0.0
  %2265 = vmatprep.subr.mxu0 0.0
  %2266 = vmatpush1.msra.mxu0 0.0
  %2267 = vmatprep.subr.mxu0 0.0
  %2268 = vmatpush1.msra.mxu0 0.0
  %2269 = vmatprep.subr.mxu0 0.0
  %2270 = vmatpush1.msra.mxu0 0.0
  %2271 = vmatprep.mubr.f32.mxu0 0.0
  %2272 = vmatmul.mubr.f32.gmra.mrb[0].mxu0 %v2199
  %v2273 = vpop.f32.mrb[0].mxu0
  %v2274 = vadd.f32 0.0, %v2273
  %v2275 = vpop.f32.mrb[0].mxu0
  %v2276 = vadd.f32 0.0, %v2275
  %2277 = vdwg.mxu0
  %2278 = vmatprep.subr.mxu0 0.0
  %2279 = vmatpush1.msra.mxu0 %v2205
  %2280 = vmatprep.subr.mxu0 0.0
  %2281 = vmatpush1.msra.mxu0 0.0
  %2282 = vmatprep.subr.mxu0 0.0
  %2283 = vmatpush1.msra.mxu0 0.0
  %2284 = vmatprep.subr.mxu0 0.0
  %2285 = vmatpush1.msra.mxu0 0.0
  %2286 = vmatprep.subr.mxu0 0.0
  %2287 = vmatpush1.msra.mxu0 0.0
  %2288 = vmatprep.subr.mxu0 0.0
  %2289 = vmatpush1.msra.mxu0 0.0
  %2290 = vmatprep.subr.mxu0 0.0
  %2291 = vmatpush1.msra.mxu0 0.0
  %2292 = vmatprep.subr.mxu0 0.0
  %2293 = vmatpush1.msra.mxu0 0.0
  %2294 = vmatprep.subr.mxu0 0.0
  %2295 = vmatpush1.msra.mxu0 0.0
  %2296 = vmatprep.subr.mxu0 0.0
  %2297 = vmatpush1.msra.mxu0 0.0
  %2298 = vmatprep.subr.mxu0 0.0
  %2299 = vmatpush1.msra.mxu0 0.0
  %2300 = vmatprep.subr.mxu0 0.0
  %2301 = vmatpush1.msra.mxu0 0.0
  %2302 = vmatprep.subr.mxu0 0.0
  %2303 = vmatpush1.msra.mxu0 0.0
  %2304 = vmatprep.subr.mxu0 0.0
  %2305 = vmatpush1.msra.mxu0 0.0
  %2306 = vmatprep.subr.mxu0 0.0
  %2307 = vmatpush1.msra.mxu0 0.0
  %2308 = vmatprep.subr.mxu0 0.0
  %2309 = vmatpush1.msra.mxu0 0.0
  %2310 = vmatprep.subr.mxu0 0.0
  %2311 = vmatpush1.msra.mxu0 0.0
  %2312 = vmatprep.subr.mxu0 0.0
  %2313 = vmatpush1.msra.mxu0 0.0
  %2314 = vmatprep.subr.mxu0 0.0
  %2315 = vmatpush1.msra.mxu0 0.0
  %2316 = vmatprep.subr.mxu0 0.0
  %2317 = vmatpush1.msra.mxu0 0.0
  %2318 = vmatprep.subr.mxu0 0.0
  %2319 = vmatpush1.msra.mxu0 0.0
  %2320 = vmatprep.subr.mxu0 0.0
  %2321 = vmatpush1.msra.mxu0 0.0
  %2322 = vmatprep.subr.mxu0 0.0
  %2323 = vmatpush1.msra.mxu0 0.0
  %2324 = vmatprep.subr.mxu0 0.0
  %2325 = vmatpush1.msra.mxu0 0.0
  %2326 = vmatprep.subr.mxu0 0.0
  %2327 = vmatpush1.msra.mxu0 0.0
  %2328 = vmatprep.subr.mxu0 0.0
  %2329 = vmatpush1.msra.mxu0 0.0
  %2330 = vmatprep.subr.mxu0 0.0
  %2331 = vmatpush1.msra.mxu0 0.0
  %2332 = vmatprep.subr.mxu0 0.0
  %2333 = vmatpush1.msra.mxu0 0.0
  %2334 = vmatprep.subr.mxu0 0.0
  %2335 = vmatpush1.msra.mxu0 0.0
  %2336 = vmatprep.subr.mxu0 0.0
  %2337 = vmatpush1.msra.mxu0 0.0
  %2338 = vmatprep.subr.mxu0 0.0
  %2339 = vmatpush1.msra.mxu0 0.0
  %2340 = vmatprep.subr.mxu0 0.0
  %2341 = vmatpush1.msra.mxu0 0.0
  %2342 = vmatprep.mubr.f32.mxu0 0.0
  %2343 = vmatmul.mubr.f32.gmra.mrb[0].mxu0 %v2199
  %v2344 = vpop.f32.mrb[0].mxu0
  %v2345 = vadd.f32 0.0, %v2344
  %v2346 = vpop.f32.mrb[0].mxu0
  %2347 = vdwg.mxu0
  %v2348 = vadd.f32 %v2185, %v2274
  %v2349 = vadd.f32 %v2186, %v2276
  %v2350 = vadd.f32 %v2187, %v2345
  %v2351 = vld [vmem:[%s1022 + $0x1] sm:$0x1]
  %v2352 = vld [vmem:[%s1022 + $0x3] sm:$0x1]
  %v2353 = vld [vmem:[%s1025] sm:$0xff]
  %v2354 = vld [vmem:[%s1025 + $0x8] sm:$0xf]
  %v2357 = vrot.slane %v2352, 7
  %v2358 = vsel %vm38, %v2357, %v2351
  %v2361 = vcombine.high %v2353, %v2353
  %v2362 = vsel %vm43, %v2358, 0
  %v2364 = vsel %vm46, %v2353, 0
  %v2366 = vsel %vm46, %v2361, 0
  %v2368 = vsel %vm46, %v2354, 0
  %2370 = vmatprep.subr.mxu0 %v2366
  %2371 = vmatpush1.msra.mxu0 %v2364
  %2372 = vmatprep.subr.mxu0 0.0
  %2373 = vmatpush1.msra.mxu0 0.0
  %2374 = vmatprep.subr.mxu0 0.0
  %2375 = vmatpush1.msra.mxu0 0.0
  %2376 = vmatprep.subr.mxu0 0.0
  %2377 = vmatpush1.msra.mxu0 0.0
  %2378 = vmatprep.subr.mxu0 0.0
  %2379 = vmatpush1.msra.mxu0 0.0
  %2380 = vmatprep.subr.mxu0 0.0
  %2381 = vmatpush1.msra.mxu0 0.0
  %2382 = vmatprep.subr.mxu0 0.0
  %2383 = vmatpush1.msra.mxu0 0.0
  %2384 = vmatprep.subr.mxu0 0.0
  %2385 = vmatpush1.msra.mxu0 0.0
  %2386 = vmatprep.subr.mxu0 0.0
  %2387 = vmatpush1.msra.mxu0 0.0
  %2388 = vmatprep.subr.mxu0 0.0
  %2389 = vmatpush1.msra.mxu0 0.0
  %2390 = vmatprep.subr.mxu0 0.0
  %2391 = vmatpush1.msra.mxu0 0.0
  %2392 = vmatprep.subr.mxu0 0.0
  %2393 = vmatpush1.msra.mxu0 0.0
  %2394 = vmatprep.subr.mxu0 0.0
  %2395 = vmatpush1.msra.mxu0 0.0
  %2396 = vmatprep.subr.mxu0 0.0
  %2397 = vmatpush1.msra.mxu0 0.0
  %2398 = vmatprep.subr.mxu0 0.0
  %2399 = vmatpush1.msra.mxu0 0.0
  %2400 = vmatprep.subr.mxu0 0.0
  %2401 = vmatpush1.msra.mxu0 0.0
  %2402 = vmatprep.subr.mxu0 0.0
  %2403 = vmatpush1.msra.mxu0 0.0
  %2404 = vmatprep.subr.mxu0 0.0
  %2405 = vmatpush1.msra.mxu0 0.0
  %2406 = vmatprep.subr.mxu0 0.0
  %2407 = vmatpush1.msra.mxu0 0.0
  %2408 = vmatprep.subr.mxu0 0.0
  %2409 = vmatpush1.msra.mxu0 0.0
  %2410 = vmatprep.subr.mxu0 0.0
  %2411 = vmatpush1.msra.mxu0 0.0
  %2412 = vmatprep.subr.mxu0 0.0
  %2413 = vmatpush1.msra.mxu0 0.0
  %2414 = vmatprep.subr.mxu0 0.0
  %2415 = vmatpush1.msra.mxu0 0.0
  %2416 = vmatprep.subr.mxu0 0.0
  %2417 = vmatpush1.msra.mxu0 0.0
  %2418 = vmatprep.subr.mxu0 0.0
  %2419 = vmatpush1.msra.mxu0 0.0
  %2420 = vmatprep.subr.mxu0 0.0
  %2421 = vmatpush1.msra.mxu0 0.0
  %2422 = vmatprep.subr.mxu0 0.0
  %2423 = vmatpush1.msra.mxu0 0.0
  %2424 = vmatprep.subr.mxu0 0.0
  %2425 = vmatpush1.msra.mxu0 0.0
  %2426 = vmatprep.subr.mxu0 0.0
  %2427 = vmatpush1.msra.mxu0 0.0
  %2428 = vmatprep.subr.mxu0 0.0
  %2429 = vmatpush1.msra.mxu0 0.0
  %2430 = vmatprep.subr.mxu0 0.0
  %2431 = vmatpush1.msra.mxu0 0.0
  %2432 = vmatprep.subr.mxu0 0.0
  %2433 = vmatpush1.msra.mxu0 0.0
  %2434 = vmatprep.mubr.f32.mxu0 0.0
  %2435 = vmatmul.mubr.f32.gmra.mrb[0].mxu0 %v2362
  %v2436 = vpop.f32.mrb[0].mxu0
  %v2437 = vadd.f32 0.0, %v2436
  %v2438 = vpop.f32.mrb[0].mxu0
  %v2439 = vadd.f32 0.0, %v2438
  %2440 = vdwg.mxu0
  %2441 = vmatprep.subr.mxu0 0.0
  %2442 = vmatpush1.msra.mxu0 %v2368
  %2443 = vmatprep.subr.mxu0 0.0
  %2444 = vmatpush1.msra.mxu0 0.0
  %2445 = vmatprep.subr.mxu0 0.0
  %2446 = vmatpush1.msra.mxu0 0.0
  %2447 = vmatprep.subr.mxu0 0.0
  %2448 = vmatpush1.msra.mxu0 0.0
  %2449 = vmatprep.subr.mxu0 0.0
  %2450 = vmatpush1.msra.mxu0 0.0
  %2451 = vmatprep.subr.mxu0 0.0
  %2452 = vmatpush1.msra.mxu0 0.0
  %2453 = vmatprep.subr.mxu0 0.0
  %2454 = vmatpush1.msra.mxu0 0.0
  %2455 = vmatprep.subr.mxu0 0.0
  %2456 = vmatpush1.msra.mxu0 0.0
  %2457 = vmatprep.subr.mxu0 0.0
  %2458 = vmatpush1.msra.mxu0 0.0
  %2459 = vmatprep.subr.mxu0 0.0
  %2460 = vmatpush1.msra.mxu0 0.0
  %2461 = vmatprep.subr.mxu0 0.0
  %2462 = vmatpush1.msra.mxu0 0.0
  %2463 = vmatprep.subr.mxu0 0.0
  %2464 = vmatpush1.msra.mxu0 0.0
  %2465 = vmatprep.subr.mxu0 0.0
  %2466 = vmatpush1.msra.mxu0 0.0
  %2467 = vmatprep.subr.mxu0 0.0
  %2468 = vmatpush1.msra.mxu0 0.0
  %2469 = vmatprep.subr.mxu0 0.0
  %2470 = vmatpush1.msra.mxu0 0.0
  %2471 = vmatprep.subr.mxu0 0.0
  %2472 = vmatpush1.msra.mxu0 0.0
  %2473 = vmatprep.subr.mxu0 0.0
  %2474 = vmatpush1.msra.mxu0 0.0
  %2475 = vmatprep.subr.mxu0 0.0
  %2476 = vmatpush1.msra.mxu0 0.0
  %2477 = vmatprep.subr.mxu0 0.0
  %2478 = vmatpush1.msra.mxu0 0.0
  %2479 = vmatprep.subr.mxu0 0.0
  %2480 = vmatpush1.msra.mxu0 0.0
  %2481 = vmatprep.subr.mxu0 0.0
  %2482 = vmatpush1.msra.mxu0 0.0
  %2483 = vmatprep.subr.mxu0 0.0
  %2484 = vmatpush1.msra.mxu0 0.0
  %2485 = vmatprep.subr.mxu0 0.0
  %2486 = vmatpush1.msra.mxu0 0.0
  %2487 = vmatprep.subr.mxu0 0.0
  %2488 = vmatpush1.msra.mxu0 0.0
  %2489 = vmatprep.subr.mxu0 0.0
  %2490 = vmatpush1.msra.mxu0 0.0
  %2491 = vmatprep.subr.mxu0 0.0
  %2492 = vmatpush1.msra.mxu0 0.0
  %2493 = vmatprep.subr.mxu0 0.0
  %2494 = vmatpush1.msra.mxu0 0.0
  %2495 = vmatprep.subr.mxu0 0.0
  %2496 = vmatpush1.msra.mxu0 0.0
  %2497 = vmatprep.subr.mxu0 0.0
  %2498 = vmatpush1.msra.mxu0 0.0
  %2499 = vmatprep.subr.mxu0 0.0
  %2500 = vmatpush1.msra.mxu0 0.0
  %2501 = vmatprep.subr.mxu0 0.0
  %2502 = vmatpush1.msra.mxu0 0.0
  %2503 = vmatprep.subr.mxu0 0.0
  %2504 = vmatpush1.msra.mxu0 0.0
  %2505 = vmatprep.mubr.f32.mxu0 0.0
  %2506 = vmatmul.mubr.f32.gmra.mrb[0].mxu0 %v2362
  %v2507 = vpop.f32.mrb[0].mxu0
  %v2508 = vadd.f32 0.0, %v2507
  %v2509 = vpop.f32.mrb[0].mxu0
  %2510 = vdwg.mxu0
  %v2511 = vadd.f32 %v2348, %v2437
  %v2512 = vadd.f32 %v2349, %v2439
  %v2513 = vadd.f32 %v2350, %v2508
  %v2514 = vld [vmem:[%s1187 + $0x1] sm:$0x1]
  %v2515 = vld [vmem:[%s1187 + $0x3] sm:$0x1]
  %v2516 = vld [vmem:[%s1190] sm:$0xff]
  %v2517 = vld [vmem:[%s1190 + $0x8] sm:$0xf]
  %v2520 = vrot.slane %v2515, 7
  %v2521 = vsel %vm38, %v2520, %v2514
  %v2524 = vcombine.high %v2516, %v2516
  %v2525 = vsel %vm43, %v2521, 0
  %v2527 = vsel %vm46, %v2516, 0
  %v2529 = vsel %vm46, %v2524, 0
  %v2531 = vsel %vm46, %v2517, 0
  %2533 = vmatprep.subr.mxu0 %v2529
  %2534 = vmatpush1.msra.mxu0 %v2527
  %2535 = vmatprep.subr.mxu0 0.0
  %2536 = vmatpush1.msra.mxu0 0.0
  %2537 = vmatprep.subr.mxu0 0.0
  %2538 = vmatpush1.msra.mxu0 0.0
  %2539 = vmatprep.subr.mxu0 0.0
  %2540 = vmatpush1.msra.mxu0 0.0
  %2541 = vmatprep.subr.mxu0 0.0
  %2542 = vmatpush1.msra.mxu0 0.0
  %2543 = vmatprep.subr.mxu0 0.0
  %2544 = vmatpush1.msra.mxu0 0.0
  %2545 = vmatprep.subr.mxu0 0.0
  %2546 = vmatpush1.msra.mxu0 0.0
  %2547 = vmatprep.subr.mxu0 0.0
  %2548 = vmatpush1.msra.mxu0 0.0
  %2549 = vmatprep.subr.mxu0 0.0
  %2550 = vmatpush1.msra.mxu0 0.0
  %2551 = vmatprep.subr.mxu0 0.0
  %2552 = vmatpush1.msra.mxu0 0.0
  %2553 = vmatprep.subr.mxu0 0.0
  %2554 = vmatpush1.msra.mxu0 0.0
  %2555 = vmatprep.subr.mxu0 0.0
  %2556 = vmatpush1.msra.mxu0 0.0
  %2557 = vmatprep.subr.mxu0 0.0
  %2558 = vmatpush1.msra.mxu0 0.0
  %2559 = vmatprep.subr.mxu0 0.0
  %2560 = vmatpush1.msra.mxu0 0.0
  %2561 = vmatprep.subr.mxu0 0.0
  %2562 = vmatpush1.msra.mxu0 0.0
  %2563 = vmatprep.subr.mxu0 0.0
  %2564 = vmatpush1.msra.mxu0 0.0
  %2565 = vmatprep.subr.mxu0 0.0
  %2566 = vmatpush1.msra.mxu0 0.0
  %2567 = vmatprep.subr.mxu0 0.0
  %2568 = vmatpush1.msra.mxu0 0.0
  %2569 = vmatprep.subr.mxu0 0.0
  %2570 = vmatpush1.msra.mxu0 0.0
  %2571 = vmatprep.subr.mxu0 0.0
  %2572 = vmatpush1.msra.mxu0 0.0
  %2573 = vmatprep.subr.mxu0 0.0
  %2574 = vmatpush1.msra.mxu0 0.0
  %2575 = vmatprep.subr.mxu0 0.0
  %2576 = vmatpush1.msra.mxu0 0.0
  %2577 = vmatprep.subr.mxu0 0.0
  %2578 = vmatpush1.msra.mxu0 0.0
  %2579 = vmatprep.subr.mxu0 0.0
  %2580 = vmatpush1.msra.mxu0 0.0
  %2581 = vmatprep.subr.mxu0 0.0
  %2582 = vmatpush1.msra.mxu0 0.0
  %2583 = vmatprep.subr.mxu0 0.0
  %2584 = vmatpush1.msra.mxu0 0.0
  %2585 = vmatprep.subr.mxu0 0.0
  %2586 = vmatpush1.msra.mxu0 0.0
  %2587 = vmatprep.subr.mxu0 0.0
  %2588 = vmatpush1.msra.mxu0 0.0
  %2589 = vmatprep.subr.mxu0 0.0
  %2590 = vmatpush1.msra.mxu0 0.0
  %2591 = vmatprep.subr.mxu0 0.0
  %2592 = vmatpush1.msra.mxu0 0.0
  %2593 = vmatprep.subr.mxu0 0.0
  %2594 = vmatpush1.msra.mxu0 0.0
  %2595 = vmatprep.subr.mxu0 0.0
  %2596 = vmatpush1.msra.mxu0 0.0
  %2597 = vmatprep.mubr.f32.mxu0 0.0
  %2598 = vmatmul.mubr.f32.gmra.mrb[0].mxu0 %v2525
  %v2599 = vpop.f32.mrb[0].mxu0
  %v2600 = vadd.f32 0.0, %v2599
  %v2601 = vpop.f32.mrb[0].mxu0
  %v2602 = vadd.f32 0.0, %v2601
  %2603 = vdwg.mxu0
  %2604 = vmatprep.subr.mxu0 0.0
  %2605 = vmatpush1.msra.mxu0 %v2531
  %2606 = vmatprep.subr.mxu0 0.0
  %2607 = vmatpush1.msra.mxu0 0.0
  %2608 = vmatprep.subr.mxu0 0.0
  %2609 = vmatpush1.msra.mxu0 0.0
  %2610 = vmatprep.subr.mxu0 0.0
  %2611 = vmatpush1.msra.mxu0 0.0
  %2612 = vmatprep.subr.mxu0 0.0
  %2613 = vmatpush1.msra.mxu0 0.0
  %2614 = vmatprep.subr.mxu0 0.0
  %2615 = vmatpush1.msra.mxu0 0.0
  %2616 = vmatprep.subr.mxu0 0.0
  %2617 = vmatpush1.msra.mxu0 0.0
  %2618 = vmatprep.subr.mxu0 0.0
  %2619 = vmatpush1.msra.mxu0 0.0
  %2620 = vmatprep.subr.mxu0 0.0
  %2621 = vmatpush1.msra.mxu0 0.0
  %2622 = vmatprep.subr.mxu0 0.0
  %2623 = vmatpush1.msra.mxu0 0.0
  %2624 = vmatprep.subr.mxu0 0.0
  %2625 = vmatpush1.msra.mxu0 0.0
  %2626 = vmatprep.subr.mxu0 0.0
  %2627 = vmatpush1.msra.mxu0 0.0
  %2628 = vmatprep.subr.mxu0 0.0
  %2629 = vmatpush1.msra.mxu0 0.0
  %2630 = vmatprep.subr.mxu0 0.0
  %2631 = vmatpush1.msra.mxu0 0.0
  %2632 = vmatprep.subr.mxu0 0.0
  %2633 = vmatpush1.msra.mxu0 0.0
  %2634 = vmatprep.subr.mxu0 0.0
  %2635 = vmatpush1.msra.mxu0 0.0
  %2636 = vmatprep.subr.mxu0 0.0
  %2637 = vmatpush1.msra.mxu0 0.0
  %2638 = vmatprep.subr.mxu0 0.0
  %2639 = vmatpush1.msra.mxu0 0.0
  %2640 = vmatprep.subr.mxu0 0.0
  %2641 = vmatpush1.msra.mxu0 0.0
  %2642 = vmatprep.subr.mxu0 0.0
  %2643 = vmatpush1.msra.mxu0 0.0
  %2644 = vmatprep.subr.mxu0 0.0
  %2645 = vmatpush1.msra.mxu0 0.0
  %2646 = vmatprep.subr.mxu0 0.0
  %2647 = vmatpush1.msra.mxu0 0.0
  %2648 = vmatprep.subr.mxu0 0.0
  %2649 = vmatpush1.msra.mxu0 0.0
  %2650 = vmatprep.subr.mxu0 0.0
  %2651 = vmatpush1.msra.mxu0 0.0
  %2652 = vmatprep.subr.mxu0 0.0
  %2653 = vmatpush1.msra.mxu0 0.0
  %2654 = vmatprep.subr.mxu0 0.0
  %2655 = vmatpush1.msra.mxu0 0.0
  %2656 = vmatprep.subr.mxu0 0.0
  %2657 = vmatpush1.msra.mxu0 0.0
  %2658 = vmatprep.subr.mxu0 0.0
  %2659 = vmatpush1.msra.mxu0 0.0
  %2660 = vmatprep.subr.mxu0 0.0
  %2661 = vmatpush1.msra.mxu0 0.0
  %2662 = vmatprep.subr.mxu0 0.0
  %2663 = vmatpush1.msra.mxu0 0.0
  %2664 = vmatprep.subr.mxu0 0.0
  %2665 = vmatpush1.msra.mxu0 0.0
  %2666 = vmatprep.subr.mxu0 0.0
  %2667 = vmatpush1.msra.mxu0 0.0
  %2668 = vmatprep.mubr.f32.mxu0 0.0
  %2669 = vmatmul.mubr.f32.gmra.mrb[0].mxu0 %v2525
  %v2670 = vpop.f32.mrb[0].mxu0
  %v2671 = vadd.f32 0.0, %v2670
  %v2672 = vpop.f32.mrb[0].mxu0
  %2673 = vdwg.mxu0
  %v2674 = vadd.f32 %v2511, %v2600
  %v2675 = vadd.f32 %v2512, %v2602
  %v2676 = vadd.f32 %v2513, %v2671
  %v2680 = vcombine.low %v2674, %v2675
  %v2682 = vunpack.c.l.s4 1983009808
  %v2683 = vunpack.c.0.s8 %v2682
  %v2684 = vlaneseq
  %v2685 = vshrl.u32 %v2684, 7
  %v2686 = vsub.s32 %v2683, %v2685
  %v2687 = vrot.slane %v2680, %v2686
  %v2689 = vunpack.c.l.s4 1983009808
  %v2690 = vunpack.c.0.s8 %v2689
  %v2691 = vlaneseq
  %v2692 = vshrl.u32 %v2691, 7
  %v2693 = vsub.s32 %v2690, %v2692
  %v2694 = vrot.slane %v2676, %v2693
  %v2695 = vcombine.low %v2687, %v2694
  %s2697 = scalar_lea.vmem %s3, 6
  %2698 = vst [vmem:[%s2697] sm:$0x3f] %v2695
  // Predicated region
  $region14: #{reference_encoder_forward.6} parent=0 // pred_check
    _
  $region15: #{reference_encoder_forward.6} parent=0 // pred_check_branch
    %2700 = sbr.rel (0) target = $region17
  $region16: #{reference_encoder_forward.6} parent=0 // pred_region
    _
  $region17: #{reference_encoder_forward.6} parent=0 // pred_fallthru
    _
  // Predicated region
  $region18: #{reference_encoder_forward.6} parent=0 // pred_check
    _
  $region19: #{reference_encoder_forward.6} parent=0 // pred_check_branch
    %2702 = sbr.rel (0) target = $region21
  $region20: #{reference_encoder_forward.6} parent=0 // pred_region
    _
  $region21: #{reference_encoder_forward.6} parent=0 // pred_fallthru
    _

// kernel: reference_encoder_forward.5
$region0: #{reference_encoder_forward.5}
  #allocation0 [shape = 'u32[]', space=smem, size = 0x4, offset = 0x4, fixed_abs, tag = 'smem constant byte address 0x4 - core index']
  #allocation1 [shape = 'u32[144,128]{1,0:T(1,128)}', space=vmem, size = 0x12000, scoped, tag = 'internal scratch']
  %s0 = inlined_call_operand.vmem [shape: f32[4,2,3,5], index: 0, kind: input, shape index: {}]
  %s1 = inlined_call_operand.vmem [shape: f32[4,2,3,5], index: 1, kind: input, shape index: {}]
  %s2 = inlined_call_operand.vmem [shape: f32[4,2,3,5], index: 2, kind: input, shape index: {}]
  %s3 = inlined_call_operand.vmem [shape: f32[4,2,3,5], index: 3, kind: input, shape index: {}]
  %s4 = inlined_call_operand.vmem [shape: f32[36,8,1,1], index: 4, kind: input, shape index: {}]
  %s5 = inlined_call_operand.vmem [shape: f32[8,1,1], index: 5, kind: input, shape index: {}]
  %s6 = inlined_call_operand.vmem [shape: f32[8,1,1], index: 6, kind: input, shape index: {}]
  %s7 = inlined_call_operand.vmem [shape: f32[8,2,2,4], index: 7, kind: output, shape index: {}]
  %s8 = sld [smem:[#allocation0]]
  $region262: #{reference_encoder_forward.5} parent=0
    _
  %s10 = ssub.s32 1, %s8
  %s11 = scalar_select 0, %s10, %s8
  $region1: #{reference_encoder_forward.5} parent=0
    #allocation2 [shape = 'u8[16384]{0}', space=vmem, size = 0x4000, scoped, tag = 'input window, operand 0']
    #allocation3 [shape = 'u8[16384]{0}', space=vmem, size = 0x4000, scoped, tag = 'input window, operand 1']
    #allocation4 [shape = 'u8[16384]{0}', space=vmem, size = 0x4000, scoped, tag = 'input window, operand 2']
    #allocation5 [shape = 'u8[16384]{0}', space=vmem, size = 0x4000, scoped, tag = 'input window, operand 3']
    #allocation6 [shape = 'u8[16384]{0}', space=vmem, size = 0x4000, scoped, tag = 'output window, operand 0']
    loop: start=0, step=1, limit=4
    $region2: #{reference_encoder_forward.5} parent=1 // loop_pre_header
      _
    $region3: #{reference_encoder_forward.5} parent=1 // loop_header
      %s13 = sphi 0, %s17
      %p14 = scmp.ge.s32.totalorder %s13, 4
      %s23 = sphi 0, %s25
      %s26 = sphi 0, %s23
      %s27 = sphi 0, %s26
      %s43 = sphi 0, %s27
      %s49 = sphi 0, %s51
      %s52 = sphi 0, %s49
      %s53 = sphi 0, %s52
      %s69 = sphi 0, %s53
      %s75 = sphi 0, %s77
      %s78 = sphi 0, %s75
      %s79 = sphi 0, %s78
      %s95 = sphi 0, %s79
      %s101 = sphi 0, %s103
      %s104 = sphi 0, %s101
      %s105 = sphi 0, %s104
      %s121 = sphi 0, %s105
      %s125 = sphi 0, %s125
      %s127 = sphi 0, %s125
      %s128 = sphi 0, %s127
      %s142 = sphi 0, %s128
      %s146 = sphi 0, %s146
      %s148 = sphi 0, %s146
      %s149 = sphi 0, %s148
      %s163 = sphi 0, %s149
      %s167 = sphi 0, %s167
      %s169 = sphi 0, %s167
      %s170 = sphi 0, %s169
      %s184 = sphi 0, %s170
      %s190 = sphi 0, %s192
      %s193 = sphi 0, %s190
      %s194 = sphi 0, %s193
      %s210 = sphi 0, %s194
    $region4: #{reference_encoder_forward.5} parent=1 // loop_header_branch
      %16 = sbr.rel (%p14) target = $region8
    $region5: #{reference_encoder_forward.5} parent=1 // loop_body
      %s18 = ssub.s32 %s13, 1
      %s19 = ssub.s32 %s13, 2
      %s20 = sadd.s32 %s13, 1
      %s21 = ssub.s32 %s13, %s20
      %p22 = scmp.eq.s32.totalorder %s21, 0
      %s24 = sadd.s32 %s23, 1
      %s25 = scalar_select %p22, %s23, %s24
      %p28 = pneg %p22
      %p29 = scmp.eq.s32.totalorder %s13, 1
      %p30 = por %p28, %p29
      %p31 = scmp.ne.s32.totalorder %s23, %s26
      %p32 = scmp.eq.s32.totalorder %s13, 0
      %p33 = por %p31, %p32
      %p34 = scmp.ne.s32.totalorder %s23, %s26
      %p35 = scmp.eq.s32.totalorder %s18, 1
      %p36 = por %p34, %p35
      %p37 = scmp.ne.s32.totalorder %s26, %s27
      %p38 = scmp.eq.s32.totalorder %s18, 0
      %p39 = por %p37, %p38
      %p40 = scmp.ne.s32.totalorder %s26, %s27
      %p41 = scmp.eq.s32.totalorder %s19, 1
      %p42 = por %p40, %p41
      %p44 = scmp.ne.s32.totalorder %s27, %s43
      %p45 = scmp.eq.s32.totalorder %s19, 0
      %p46 = por %p44, %p45
      %s47 = ssub.s32 %s13, %s20
      %p48 = scmp.eq.s32.totalorder %s47, 0
      %s50 = sadd.s32 %s49, 1
      %s51 = scalar_select %p48, %s49, %s50
      %p54 = pneg %p48
      %p55 = scmp.eq.s32.totalorder %s13, 1
      %p56 = por %p54, %p55
      %p57 = scmp.ne.s32.totalorder %s49, %s52
      %p58 = scmp.eq.s32.totalorder %s13, 0
      %p59 = por %p57, %p58
      %p60 = scmp.ne.s32.totalorder %s49, %s52
      %p61 = scmp.eq.s32.totalorder %s18, 1
      %p62 = por %p60, %p61
      %p63 = scmp.ne.s32.totalorder %s52, %s53
      %p64 = scmp.eq.s32.totalorder %s18, 0
      %p65 = por %p63, %p64
      %p66 = scmp.ne.s32.totalorder %s52, %s53
      %p67 = scmp.eq.s32.totalorder %s19, 1
      %p68 = por %p66, %p67
      %p70 = scmp.ne.s32.totalorder %s53, %s69
      %p71 = scmp.eq.s32.totalorder %s19, 0
      %p72 = por %p70, %p71
      %s73 = ssub.s32 %s13, %s20
      %p74 = scmp.eq.s32.totalorder %s73, 0
      %s76 = sadd.s32 %s75, 1
      %s77 = scalar_select %p74, %s75, %s76
      %p80 = pneg %p74
      %p81 = scmp.eq.s32.totalorder %s13, 1
      %p82 = por %p80, %p81
      %p83 = scmp.ne.s32.totalorder %s75, %s78
      %p84 = scmp.eq.s32.totalorder %s13, 0
      %p85 = por %p83, %p84
      %p86 = scmp.ne.s32.totalorder %s75, %s78
      %p87 = scmp.eq.s32.totalorder %s18, 1
      %p88 = por %p86, %p87
      %p89 = scmp.ne.s32.totalorder %s78, %s79
      %p90 = scmp.eq.s32.totalorder %s18, 0
      %p91 = por %p89, %p90
      %p92 = scmp.ne.s32.totalorder %s78, %s79
      %p93 = scmp.eq.s32.totalorder %s19, 1
      %p94 = por %p92, %p93
      %p96 = scmp.ne.s32.totalorder %s79, %s95
      %p97 = scmp.eq.s32.totalorder %s19, 0
      %p98 = por %p96, %p97
      %s99 = ssub.s32 %s13, %s20
      %p100 = scmp.eq.s32.totalorder %s99, 0
      %s102 = sadd.s32 %s101, 1
      %s103 = scalar_select %p100, %s101, %s102
      %p106 = pneg %p100
      %p107 = scmp.eq.s32.totalorder %s13, 1
      %p108 = por %p106, %p107
      %p109 = scmp.ne.s32.totalorder %s101, %s104
      %p110 = scmp.eq.s32.totalorder %s13, 0
      %p111 = por %p109, %p110
      %p112 = scmp.ne.s32.totalorder %s101, %s104
      %p113 = scmp.eq.s32.totalorder %s18, 1
      %p114 = por %p112, %p113
      %p115 = scmp.ne.s32.totalorder %s104, %s105
      %p116 = scmp.eq.s32.totalorder %s18, 0
      %p117 = por %p115, %p116
      %p118 = scmp.ne.s32.totalorder %s104, %s105
      %p119 = scmp.eq.s32.totalorder %s19, 1
      %p120 = por %p118, %p119
      %p122 = scmp.ne.s32.totalorder %s105, %s121
      %p123 = scmp.eq.s32.totalorder %s19, 0
      %p124 = por %p122, %p123
      %s126 = sadd.s32 %s125, 1
      %p129 = scmp.eq.s32.totalorder %s13, 1
      %p130 = scmp.ne.s32.totalorder %s125, %s127
      %p131 = scmp.eq.s32.totalorder %s13, 0
      %p132 = por %p130, %p131
      %p133 = scmp.ne.s32.totalorder %s125, %s127
      %p134 = scmp.eq.s32.totalorder %s18, 1
      %p135 = por %p133, %p134
      %p136 = scmp.ne.s32.totalorder %s127, %s128
      %p137 = scmp.eq.s32.totalorder %s18, 0
      %p138 = por %p136, %p137
      %p139 = scmp.ne.s32.totalorder %s127, %s128
      %p140 = scmp.eq.s32.totalorder %s19, 1
      %p141 = por %p139, %p140
      %p143 = scmp.ne.s32.totalorder %s128, %s142
      %p144 = scmp.eq.s32.totalorder %s19, 0
      %p145 = por %p143, %p144
      %s147 = sadd.s32 %s146, 1
      %p150 = scmp.eq.s32.totalorder %s13, 1
      %p151 = scmp.ne.s32.totalorder %s146, %s148
      %p152 = scmp.eq.s32.totalorder %s13, 0
      %p153 = por %p151, %p152
      %p154 = scmp.ne.s32.totalorder %s146, %s148
      %p155 = scmp.eq.s32.totalorder %s18, 1
      %p156 = por %p154, %p155
      %p157 = scmp.ne.s32.totalorder %s148, %s149
      %p158 = scmp.eq.s32.totalorder %s18, 0
      %p159 = por %p157, %p158
      %p160 = scmp.ne.s32.totalorder %s148, %s149
      %p161 = scmp.eq.s32.totalorder %s19, 1
      %p162 = por %p160, %p161
      %p164 = scmp.ne.s32.totalorder %s149, %s163
      %p165 = scmp.eq.s32.totalorder %s19, 0
      %p166 = por %p164, %p165
      %s168 = sadd.s32 %s167, 1
      %p171 = scmp.eq.s32.totalorder %s13, 1
      %p172 = scmp.ne.s32.totalorder %s167, %s169
      %p173 = scmp.eq.s32.totalorder %s13, 0
      %p174 = por %p172, %p173
      %p175 = scmp.ne.s32.totalorder %s167, %s169
      %p176 = scmp.eq.s32.totalorder %s18, 1
      %p177 = por %p175, %p176
      %p178 = scmp.ne.s32.totalorder %s169, %s170
      %p179 = scmp.eq.s32.totalorder %s18, 0
      %p180 = por %p178, %p179
      %p181 = scmp.ne.s32.totalorder %s169, %s170
      %p182 = scmp.eq.s32.totalorder %s19, 1
      %p183 = por %p181, %p182
      %p185 = scmp.ne.s32.totalorder %s170, %s184
      %p186 = scmp.eq.s32.totalorder %s19, 0
      %p187 = por %p185, %p186
      %s188 = ssub.s32 %s13, %s20
      %p189 = scmp.eq.s32.totalorder %s188, 0
      %s191 = sadd.s32 %s190, 1
      %s192 = scalar_select %p189, %s190, %s191
      %p195 = pneg %p189
      %p196 = scmp.eq.s32.totalorder %s13, 1
      %p197 = por %p195, %p196
      %p198 = scmp.ne.s32.totalorder %s190, %s193
      %p199 = scmp.eq.s32.totalorder %s13, 0
      %p200 = por %p198, %p199
      %p201 = scmp.ne.s32.totalorder %s190, %s193
      %p202 = scmp.eq.s32.totalorder %s18, 1
      %p203 = por %p201, %p202
      %p204 = scmp.ne.s32.totalorder %s193, %s194
      %p205 = scmp.eq.s32.totalorder %s18, 0
      %p206 = por %p204, %p205
      %p207 = scmp.ne.s32.totalorder %s193, %s194
      %p208 = scmp.eq.s32.totalorder %s19, 1
      %p209 = por %p207, %p208
      %p211 = scmp.ne.s32.totalorder %s194, %s210
      %p212 = scmp.eq.s32.totalorder %s19, 0
      %p213 = por %p211, %p212
      %p214 = scmp.le.s32.totalorder 1, %s13
      %p215 = scmp.lt.s32.totalorder %s13, 3
      %p216 = pnand %p214, %p215
      %p217 = pneg %p216
      // Predicated region
      $region9: #{reference_encoder_forward.5} parent=5 // pred_check
        _
      $region10: #{reference_encoder_forward.5} parent=5 // pred_check_branch
        %219 = sbr.rel (%p216) target = $region12
      $region11: #{reference_encoder_forward.5} parent=5 // pred_region
        %s220 = ssub.s32 %s13, 1
        // Predicated region
        $region13: #{reference_encoder_forward.5} parent=11 // pred_check
          %p221 = pneg %p138
        $region14: #{reference_encoder_forward.5} parent=11 // pred_check_branch
          %223 = sbr.rel (%p221) target = $region16
        $region15: #{reference_encoder_forward.5} parent=11 // pred_region
          _
        $region16: #{reference_encoder_forward.5} parent=11 // pred_fallthru
          _
        // Predicated region
        $region17: #{reference_encoder_forward.5} parent=11 // pred_check
          %p224 = pneg %p159
        $region18: #{reference_encoder_forward.5} parent=11 // pred_check_branch
          %226 = sbr.rel (%p224) target = $region20
        $region19: #{reference_encoder_forward.5} parent=11 // pred_region
          _
        $region20: #{reference_encoder_forward.5} parent=11 // pred_fallthru
          _
        // Predicated region
        $region21: #{reference_encoder_forward.5} parent=11 // pred_check
          %p227 = pneg %p180
        $region22: #{reference_encoder_forward.5} parent=11 // pred_check_branch
          %229 = sbr.rel (%p227) target = $region24
        $region23: #{reference_encoder_forward.5} parent=11 // pred_region
          _
        $region24: #{reference_encoder_forward.5} parent=11 // pred_fallthru
          _
      $region12: #{reference_encoder_forward.5} parent=5 // pred_fallthru
        _
      %p230 = scmp.lt.s32.totalorder %s13, 2
      // Predicated region
      $region25: #{reference_encoder_forward.5} parent=5 // pred_check
        %p231 = pneg %p230
      $region26: #{reference_encoder_forward.5} parent=5 // pred_check_branch
        %233 = sbr.rel (%p231) target = $region28
      $region27: #{reference_encoder_forward.5} parent=5 // pred_region
        // Predicated region
        $region29: #{reference_encoder_forward.5} parent=27 // pred_check
          %p234 = pneg %p33
        $region30: #{reference_encoder_forward.5} parent=27 // pred_check_branch
          %236 = sbr.rel (%p234) target = $region32
        $region31: #{reference_encoder_forward.5} parent=27 // pred_region
          %s237 = sand.u32 %s23, 1
          %s238 = sand.u32 %s23, 1
          %s239 = smul.addr %s238, 16
          %s240 = scalar_lea.vmem [#allocation2], %s239
          %s241 = smul.addr %s13, 4
          %s242 = scalar_lea.vmem %s0, %s241
          // Predicated region
          $region33: #{reference_encoder_forward.5} parent=31 // pred_check
            _
          $region34: #{reference_encoder_forward.5} parent=31 // pred_check_branch
            %244 = sbr.rel (0) target = $region36
          $region35: #{reference_encoder_forward.5} parent=31 // pred_region
            // Predicated region
            $region37: #{reference_encoder_forward.5} parent=35 // pred_check
              _
            $region38: #{reference_encoder_forward.5} parent=35 // pred_check_branch
              %246 = sbr.rel target = $region40
            $region39: #{reference_encoder_forward.5} parent=35 // pred_region
              // Predicated region
              $region52: #{reference_encoder_forward.5} parent=39 // pred_check
                _
              $region53: #{reference_encoder_forward.5} parent=39 // pred_check_branch
                %267 = sbr.rel (0) target = $region55
              $region54: #{reference_encoder_forward.5} parent=39 // pred_region
                loop: start=0, step=1, limit=1
                $region56: #{reference_encoder_forward.5} parent=54 // loop_pre_header
                  _
                $region57: #{reference_encoder_forward.5} parent=54 // loop_header
                  %s269 = sphi 0, %s273
                  %p270 = scmp.ge.s32.totalorder %s269, 1
                  %s274 = sphi %s242, %s242
                  %s275 = sphi %s240, %s240
                $region58: #{reference_encoder_forward.5} parent=54 // loop_header_branch
                  %272 = sbr.rel (%p270) target = $region62
                $region59: #{reference_encoder_forward.5} parent=54 // loop_body
                  _
                $region60: #{reference_encoder_forward.5} parent=54 // loop_footer
                  %s273 = sadd.s32 1, %s269
                $region61: #{reference_encoder_forward.5} parent=54 // loop_footer_branch
                  %268 = sbr.rel target = $region57
                $region62: #{reference_encoder_forward.5} parent=54 // loop_exit
                  _
                loop: start=0, step=1, limit=1
                $region63: #{reference_encoder_forward.5} parent=54 // loop_pre_header
                  _
                $region64: #{reference_encoder_forward.5} parent=54 // loop_header
                  %s278 = sphi 0, %s282
                  %p279 = scmp.ge.s32.totalorder %s278, 1
                  %s283 = sphi %s242, %s242
                  %s284 = sphi %s240, %s240
                $region65: #{reference_encoder_forward.5} parent=54 // loop_header_branch
                  %281 = sbr.rel (%p279) target = $region69
                $region66: #{reference_encoder_forward.5} parent=54 // loop_body
                  %v285 = vld [vmem:[%s283] sm:$0xf]
                  %286 = vst [vmem:[%s284] sm:$0xf] %v285
                  %v287 = vld [vmem:[%s283 + $0x8] sm:$0xf]
                  %288 = vst [vmem:[%s284 + $0x4] sm:$0xf] %v287
                  %v289 = vld [vmem:[%s283 + $0x10] sm:$0xf]
                  %290 = vst [vmem:[%s284 + $0x8] sm:$0xf] %v289
                  %v291 = vld [vmem:[%s283 + $0x18] sm:$0xf]
                  %292 = vst [vmem:[%s284 + $0xc] sm:$0xf] %v291
                $region67: #{reference_encoder_forward.5} parent=54 // loop_footer
                  %s282 = sadd.s32 1, %s278
                $region68: #{reference_encoder_forward.5} parent=54 // loop_footer_branch
                  %277 = sbr.rel target = $region64
                $region69: #{reference_encoder_forward.5} parent=54 // loop_exit
                  _
              $region55: #{reference_encoder_forward.5} parent=39 // pred_fallthru
                _
            $region40: #{reference_encoder_forward.5} parent=35 // pred_fallthru
              _
            // Predicated region
            $region41: #{reference_encoder_forward.5} parent=35 // pred_check
              _
            $region42: #{reference_encoder_forward.5} parent=35 // pred_check_branch
              %248 = sbr.rel (0) target = $region44
            $region43: #{reference_encoder_forward.5} parent=35 // pred_region
              loop: start=0, step=1, limit=1
              $region45: #{reference_encoder_forward.5} parent=43 // loop_pre_header
                _
              $region46: #{reference_encoder_forward.5} parent=43 // loop_header
                %s251 = sphi 0, %s255
                %p252 = scmp.ge.s32.totalorder %s251, 1
                %s256 = sphi %s242, %s242
                %s257 = sphi %s240, %s240
              $region47: #{reference_encoder_forward.5} parent=43 // loop_header_branch
                %254 = sbr.rel (%p252) target = $region51
              $region48: #{reference_encoder_forward.5} parent=43 // loop_body
                %v258 = vld [vmem:[%s256] sm:$0xf]
                %259 = vst [vmem:[%s257] sm:$0xf] %v258
                %v260 = vld [vmem:[%s256 + $0x8] sm:$0xf]
                %261 = vst [vmem:[%s257 + $0x4] sm:$0xf] %v260
                %v262 = vld [vmem:[%s256 + $0x10] sm:$0xf]
                %263 = vst [vmem:[%s257 + $0x8] sm:$0xf] %v262
                %v264 = vld [vmem:[%s256 + $0x18] sm:$0xf]
                %265 = vst [vmem:[%s257 + $0xc] sm:$0xf] %v264
              $region49: #{reference_encoder_forward.5} parent=43 // loop_footer
                %s255 = sadd.s32 1, %s251
              $region50: #{reference_encoder_forward.5} parent=43 // loop_footer_branch
                %250 = sbr.rel target = $region46
              $region51: #{reference_encoder_forward.5} parent=43 // loop_exit
                _
            $region44: #{reference_encoder_forward.5} parent=35 // pred_fallthru
              _
          $region36: #{reference_encoder_forward.5} parent=31 // pred_fallthru
            _
          %293 = vnop
        $region32: #{reference_encoder_forward.5} parent=27 // pred_fallthru
          _
        // Predicated region
        $region70: #{reference_encoder_forward.5} parent=27 // pred_check
          %p294 = pneg %p59
        $region71: #{reference_encoder_forward.5} parent=27 // pred_check_branch
          %296 = sbr.rel (%p294) target = $region73
        $region72: #{reference_encoder_forward.5} parent=27 // pred_region
          %s297 = sand.u32 %s49, 1
          %s298 = sand.u32 %s49, 1
          %s299 = smul.addr %s298, 16
          %s300 = scalar_lea.vmem [#allocation3], %s299
          %s301 = smul.addr %s13, 4
          %s302 = scalar_lea.vmem %s1, %s301
          // Predicated region
          $region74: #{reference_encoder_forward.5} parent=72 // pred_check
            _
          $region75: #{reference_encoder_forward.5} parent=72 // pred_check_branch
            %304 = sbr.rel (0) target = $region77
          $region76: #{reference_encoder_forward.5} parent=72 // pred_region
            // Predicated region
            $region78: #{reference_encoder_forward.5} parent=76 // pred_check
              _
            $region79: #{reference_encoder_forward.5} parent=76 // pred_check_branch
              %306 = sbr.rel target = $region81
            $region80: #{reference_encoder_forward.5} parent=76 // pred_region
              // Predicated region
              $region93: #{reference_encoder_forward.5} parent=80 // pred_check
                _
              $region94: #{reference_encoder_forward.5} parent=80 // pred_check_branch
                %327 = sbr.rel (0) target = $region96
              $region95: #{reference_encoder_forward.5} parent=80 // pred_region
                loop: start=0, step=1, limit=1
                $region97: #{reference_encoder_forward.5} parent=95 // loop_pre_header
                  _
                $region98: #{reference_encoder_forward.5} parent=95 // loop_header
                  %s329 = sphi 0, %s333
                  %p330 = scmp.ge.s32.totalorder %s329, 1
                  %s334 = sphi %s302, %s302
                  %s335 = sphi %s300, %s300
                $region99: #{reference_encoder_forward.5} parent=95 // loop_header_branch
                  %332 = sbr.rel (%p330) target = $region103
                $region100: #{reference_encoder_forward.5} parent=95 // loop_body
                  _
                $region101: #{reference_encoder_forward.5} parent=95 // loop_footer
                  %s333 = sadd.s32 1, %s329
                $region102: #{reference_encoder_forward.5} parent=95 // loop_footer_branch
                  %328 = sbr.rel target = $region98
                $region103: #{reference_encoder_forward.5} parent=95 // loop_exit
                  _
                loop: start=0, step=1, limit=1
                $region104: #{reference_encoder_forward.5} parent=95 // loop_pre_header
                  _
                $region105: #{reference_encoder_forward.5} parent=95 // loop_header
                  %s338 = sphi 0, %s342
                  %p339 = scmp.ge.s32.totalorder %s338, 1
                  %s343 = sphi %s302, %s302
                  %s344 = sphi %s300, %s300
                $region106: #{reference_encoder_forward.5} parent=95 // loop_header_branch
                  %341 = sbr.rel (%p339) target = $region110
                $region107: #{reference_encoder_forward.5} parent=95 // loop_body
                  %v345 = vld [vmem:[%s343] sm:$0xf]
                  %346 = vst [vmem:[%s344] sm:$0xf] %v345
                  %v347 = vld [vmem:[%s343 + $0x8] sm:$0xf]
                  %348 = vst [vmem:[%s344 + $0x4] sm:$0xf] %v347
                  %v349 = vld [vmem:[%s343 + $0x10] sm:$0xf]
                  %350 = vst [vmem:[%s344 + $0x8] sm:$0xf] %v349
                  %v351 = vld [vmem:[%s343 + $0x18] sm:$0xf]
                  %352 = vst [vmem:[%s344 + $0xc] sm:$0xf] %v351
                $region108: #{reference_encoder_forward.5} parent=95 // loop_footer
                  %s342 = sadd.s32 1, %s338
                $region109: #{reference_encoder_forward.5} parent=95 // loop_footer_branch
                  %337 = sbr.rel target = $region105
                $region110: #{reference_encoder_forward.5} parent=95 // loop_exit
                  _
              $region96: #{reference_encoder_forward.5} parent=80 // pred_fallthru
                _
            $region81: #{reference_encoder_forward.5} parent=76 // pred_fallthru
              _
            // Predicated region
            $region82: #{reference_encoder_forward.5} parent=76 // pred_check
              _
            $region83: #{reference_encoder_forward.5} parent=76 // pred_check_branch
              %308 = sbr.rel (0) target = $region85
            $region84: #{reference_encoder_forward.5} parent=76 // pred_region
              loop: start=0, step=1, limit=1
              $region86: #{reference_encoder_forward.5} parent=84 // loop_pre_header
                _
              $region87: #{reference_encoder_forward.5} parent=84 // loop_header
                %s311 = sphi 0, %s315
                %p312 = scmp.ge.s32.totalorder %s311, 1
                %s316 = sphi %s302, %s302
                %s317 = sphi %s300, %s300
              $region88: #{reference_encoder_forward.5} parent=84 // loop_header_branch
                %314 = sbr.rel (%p312) target = $region92
              $region89: #{reference_encoder_forward.5} parent=84 // loop_body
                %v318 = vld [vmem:[%s316] sm:$0xf]
                %319 = vst [vmem:[%s317] sm:$0xf] %v318
                %v320 = vld [vmem:[%s316 + $0x8] sm:$0xf]
                %321 = vst [vmem:[%s317 + $0x4] sm:$0xf] %v320
                %v322 = vld [vmem:[%s316 + $0x10] sm:$0xf]
                %323 = vst [vmem:[%s317 + $0x8] sm:$0xf] %v322
                %v324 = vld [vmem:[%s316 + $0x18] sm:$0xf]
                %325 = vst [vmem:[%s317 + $0xc] sm:$0xf] %v324
              $region90: #{reference_encoder_forward.5} parent=84 // loop_footer
                %s315 = sadd.s32 1, %s311
              $region91: #{reference_encoder_forward.5} parent=84 // loop_footer_branch
                %310 = sbr.rel target = $region87
              $region92: #{reference_encoder_forward.5} parent=84 // loop_exit
                _
            $region85: #{reference_encoder_forward.5} parent=76 // pred_fallthru
              _
          $region77: #{reference_encoder_forward.5} parent=72 // pred_fallthru
            _
          %353 = vnop
        $region73: #{reference_encoder_forward.5} parent=27 // pred_fallthru
          _
        // Predicated region
        $region111: #{reference_encoder_forward.5} parent=27 // pred_check
          %p354 = pneg %p85
        $region112: #{reference_encoder_forward.5} parent=27 // pred_check_branch
          %356 = sbr.rel (%p354) target = $region114
        $region113: #{reference_encoder_forward.5} parent=27 // pred_region
          %s357 = sand.u32 %s75, 1
          %s358 = sand.u32 %s75, 1
          %s359 = smul.addr %s358, 16
          %s360 = scalar_lea.vmem [#allocation4], %s359
          %s361 = smul.addr %s13, 4
          %s362 = scalar_lea.vmem %s2, %s361
          // Predicated region
          $region115: #{reference_encoder_forward.5} parent=113 // pred_check
            _
          $region116: #{reference_encoder_forward.5} parent=113 // pred_check_branch
            %364 = sbr.rel (0) target = $region118
          $region117: #{reference_encoder_forward.5} parent=113 // pred_region
            // Predicated region
            $region119: #{reference_encoder_forward.5} parent=117 // pred_check
              _
            $region120: #{reference_encoder_forward.5} parent=117 // pred_check_branch
              %366 = sbr.rel target = $region122
            $region121: #{reference_encoder_forward.5} parent=117 // pred_region
              // Predicated region
              $region134: #{reference_encoder_forward.5} parent=121 // pred_check
                _
              $region135: #{reference_encoder_forward.5} parent=121 // pred_check_branch
                %387 = sbr.rel (0) target = $region137
              $region136: #{reference_encoder_forward.5} parent=121 // pred_region
                loop: start=0, step=1, limit=1
                $region138: #{reference_encoder_forward.5} parent=136 // loop_pre_header
                  _
                $region139: #{reference_encoder_forward.5} parent=136 // loop_header
                  %s389 = sphi 0, %s393
                  %p390 = scmp.ge.s32.totalorder %s389, 1
                  %s394 = sphi %s362, %s362
                  %s395 = sphi %s360, %s360
                $region140: #{reference_encoder_forward.5} parent=136 // loop_header_branch
                  %392 = sbr.rel (%p390) target = $region144
                $region141: #{reference_encoder_forward.5} parent=136 // loop_body
                  _
                $region142: #{reference_encoder_forward.5} parent=136 // loop_footer
                  %s393 = sadd.s32 1, %s389
                $region143: #{reference_encoder_forward.5} parent=136 // loop_footer_branch
                  %388 = sbr.rel target = $region139
                $region144: #{reference_encoder_forward.5} parent=136 // loop_exit
                  _
                loop: start=0, step=1, limit=1
                $region145: #{reference_encoder_forward.5} parent=136 // loop_pre_header
                  _
                $region146: #{reference_encoder_forward.5} parent=136 // loop_header
                  %s398 = sphi 0, %s402
                  %p399 = scmp.ge.s32.totalorder %s398, 1
                  %s403 = sphi %s362, %s362
                  %s404 = sphi %s360, %s360
                $region147: #{reference_encoder_forward.5} parent=136 // loop_header_branch
                  %401 = sbr.rel (%p399) target = $region151
                $region148: #{reference_encoder_forward.5} parent=136 // loop_body
                  %v405 = vld [vmem:[%s403] sm:$0xf]
                  %406 = vst [vmem:[%s404] sm:$0xf] %v405
                  %v407 = vld [vmem:[%s403 + $0x8] sm:$0xf]
                  %408 = vst [vmem:[%s404 + $0x4] sm:$0xf] %v407
                  %v409 = vld [vmem:[%s403 + $0x10] sm:$0xf]
                  %410 = vst [vmem:[%s404 + $0x8] sm:$0xf] %v409
                  %v411 = vld [vmem:[%s403 + $0x18] sm:$0xf]
                  %412 = vst [vmem:[%s404 + $0xc] sm:$0xf] %v411
                $region149: #{reference_encoder_forward.5} parent=136 // loop_footer
                  %s402 = sadd.s32 1, %s398
                $region150: #{reference_encoder_forward.5} parent=136 // loop_footer_branch
                  %397 = sbr.rel target = $region146
                $region151: #{reference_encoder_forward.5} parent=136 // loop_exit
                  _
              $region137: #{reference_encoder_forward.5} parent=121 // pred_fallthru
                _
            $region122: #{reference_encoder_forward.5} parent=117 // pred_fallthru
              _
            // Predicated region
            $region123: #{reference_encoder_forward.5} parent=117 // pred_check
              _
            $region124: #{reference_encoder_forward.5} parent=117 // pred_check_branch
              %368 = sbr.rel (0) target = $region126
            $region125: #{reference_encoder_forward.5} parent=117 // pred_region
              loop: start=0, step=1, limit=1
              $region127: #{reference_encoder_forward.5} parent=125 // loop_pre_header
                _
              $region128: #{reference_encoder_forward.5} parent=125 // loop_header
                %s371 = sphi 0, %s375
                %p372 = scmp.ge.s32.totalorder %s371, 1
                %s376 = sphi %s362, %s362
                %s377 = sphi %s360, %s360
              $region129: #{reference_encoder_forward.5} parent=125 // loop_header_branch
                %374 = sbr.rel (%p372) target = $region133
              $region130: #{reference_encoder_forward.5} parent=125 // loop_body
                %v378 = vld [vmem:[%s376] sm:$0xf]
                %379 = vst [vmem:[%s377] sm:$0xf] %v378
                %v380 = vld [vmem:[%s376 + $0x8] sm:$0xf]
                %381 = vst [vmem:[%s377 + $0x4] sm:$0xf] %v380
                %v382 = vld [vmem:[%s376 + $0x10] sm:$0xf]
                %383 = vst [vmem:[%s377 + $0x8] sm:$0xf] %v382
                %v384 = vld [vmem:[%s376 + $0x18] sm:$0xf]
                %385 = vst [vmem:[%s377 + $0xc] sm:$0xf] %v384
              $region131: #{reference_encoder_forward.5} parent=125 // loop_footer
                %s375 = sadd.s32 1, %s371
              $region132: #{reference_encoder_forward.5} parent=125 // loop_footer_branch
                %370 = sbr.rel target = $region128
              $region133: #{reference_encoder_forward.5} parent=125 // loop_exit
                _
            $region126: #{reference_encoder_forward.5} parent=117 // pred_fallthru
              _
          $region118: #{reference_encoder_forward.5} parent=113 // pred_fallthru
            _
          %413 = vnop
        $region114: #{reference_encoder_forward.5} parent=27 // pred_fallthru
          _
        // Predicated region
        $region152: #{reference_encoder_forward.5} parent=27 // pred_check
          %p414 = pneg %p111
        $region153: #{reference_encoder_forward.5} parent=27 // pred_check_branch
          %416 = sbr.rel (%p414) target = $region155
        $region154: #{reference_encoder_forward.5} parent=27 // pred_region
          %s417 = sand.u32 %s101, 1
          %s418 = sand.u32 %s101, 1
          %s419 = smul.addr %s418, 16
          %s420 = scalar_lea.vmem [#allocation5], %s419
          %s421 = smul.addr %s13, 4
          %s422 = scalar_lea.vmem %s3, %s421
          // Predicated region
          $region156: #{reference_encoder_forward.5} parent=154 // pred_check
            _
          $region157: #{reference_encoder_forward.5} parent=154 // pred_check_branch
            %424 = sbr.rel (0) target = $region159
          $region158: #{reference_encoder_forward.5} parent=154 // pred_region
            // Predicated region
            $region160: #{reference_encoder_forward.5} parent=158 // pred_check
              _
            $region161: #{reference_encoder_forward.5} parent=158 // pred_check_branch
              %426 = sbr.rel target = $region163
            $region162: #{reference_encoder_forward.5} parent=158 // pred_region
              // Predicated region
              $region175: #{reference_encoder_forward.5} parent=162 // pred_check
                _
              $region176: #{reference_encoder_forward.5} parent=162 // pred_check_branch
                %447 = sbr.rel (0) target = $region178
              $region177: #{reference_encoder_forward.5} parent=162 // pred_region
                loop: start=0, step=1, limit=1
                $region179: #{reference_encoder_forward.5} parent=177 // loop_pre_header
                  _
                $region180: #{reference_encoder_forward.5} parent=177 // loop_header
                  %s449 = sphi 0, %s453
                  %p450 = scmp.ge.s32.totalorder %s449, 1
                  %s454 = sphi %s422, %s422
                  %s455 = sphi %s420, %s420
                $region181: #{reference_encoder_forward.5} parent=177 // loop_header_branch
                  %452 = sbr.rel (%p450) target = $region185
                $region182: #{reference_encoder_forward.5} parent=177 // loop_body
                  _
                $region183: #{reference_encoder_forward.5} parent=177 // loop_footer
                  %s453 = sadd.s32 1, %s449
                $region184: #{reference_encoder_forward.5} parent=177 // loop_footer_branch
                  %448 = sbr.rel target = $region180
                $region185: #{reference_encoder_forward.5} parent=177 // loop_exit
                  _
                loop: start=0, step=1, limit=1
                $region186: #{reference_encoder_forward.5} parent=177 // loop_pre_header
                  _
                $region187: #{reference_encoder_forward.5} parent=177 // loop_header
                  %s458 = sphi 0, %s462
                  %p459 = scmp.ge.s32.totalorder %s458, 1
                  %s463 = sphi %s422, %s422
                  %s464 = sphi %s420, %s420
                $region188: #{reference_encoder_forward.5} parent=177 // loop_header_branch
                  %461 = sbr.rel (%p459) target = $region192
                $region189: #{reference_encoder_forward.5} parent=177 // loop_body
                  %v465 = vld [vmem:[%s463] sm:$0xf]
                  %466 = vst [vmem:[%s464] sm:$0xf] %v465
                  %v467 = vld [vmem:[%s463 + $0x8] sm:$0xf]
                  %468 = vst [vmem:[%s464 + $0x4] sm:$0xf] %v467
                  %v469 = vld [vmem:[%s463 + $0x10] sm:$0xf]
                  %470 = vst [vmem:[%s464 + $0x8] sm:$0xf] %v469
                  %v471 = vld [vmem:[%s463 + $0x18] sm:$0xf]
                  %472 = vst [vmem:[%s464 + $0xc] sm:$0xf] %v471
                $region190: #{reference_encoder_forward.5} parent=177 // loop_footer
                  %s462 = sadd.s32 1, %s458
                $region191: #{reference_encoder_forward.5} parent=177 // loop_footer_branch
                  %457 = sbr.rel target = $region187
                $region192: #{reference_encoder_forward.5} parent=177 // loop_exit
                  _
              $region178: #{reference_encoder_forward.5} parent=162 // pred_fallthru
                _
            $region163: #{reference_encoder_forward.5} parent=158 // pred_fallthru
              _
            // Predicated region
            $region164: #{reference_encoder_forward.5} parent=158 // pred_check
              _
            $region165: #{reference_encoder_forward.5} parent=158 // pred_check_branch
              %428 = sbr.rel (0) target = $region167
            $region166: #{reference_encoder_forward.5} parent=158 // pred_region
              loop: start=0, step=1, limit=1
              $region168: #{reference_encoder_forward.5} parent=166 // loop_pre_header
                _
              $region169: #{reference_encoder_forward.5} parent=166 // loop_header
                %s431 = sphi 0, %s435
                %p432 = scmp.ge.s32.totalorder %s431, 1
                %s436 = sphi %s422, %s422
                %s437 = sphi %s420, %s420
              $region170: #{reference_encoder_forward.5} parent=166 // loop_header_branch
                %434 = sbr.rel (%p432) target = $region174
              $region171: #{reference_encoder_forward.5} parent=166 // loop_body
                %v438 = vld [vmem:[%s436] sm:$0xf]
                %439 = vst [vmem:[%s437] sm:$0xf] %v438
                %v440 = vld [vmem:[%s436 + $0x8] sm:$0xf]
                %441 = vst [vmem:[%s437 + $0x4] sm:$0xf] %v440
                %v442 = vld [vmem:[%s436 + $0x10] sm:$0xf]
                %443 = vst [vmem:[%s437 + $0x8] sm:$0xf] %v442
                %v444 = vld [vmem:[%s436 + $0x18] sm:$0xf]
                %445 = vst [vmem:[%s437 + $0xc] sm:$0xf] %v444
              $region172: #{reference_encoder_forward.5} parent=166 // loop_footer
                %s435 = sadd.s32 1, %s431
              $region173: #{reference_encoder_forward.5} parent=166 // loop_footer_branch
                %430 = sbr.rel target = $region169
              $region174: #{reference_encoder_forward.5} parent=166 // loop_exit
                _
            $region167: #{reference_encoder_forward.5} parent=158 // pred_fallthru
              _
          $region159: #{reference_encoder_forward.5} parent=154 // pred_fallthru
            _
          %473 = vnop
        $region155: #{reference_encoder_forward.5} parent=27 // pred_fallthru
          _
      $region28: #{reference_encoder_forward.5} parent=5 // pred_fallthru
        _
      %p474 = scmp.le.s32.totalorder 1, %s13
      %p475 = scmp.lt.s32.totalorder %s13, 3
      %p476 = pnand %p474, %p475
      %p477 = pneg %p476
      // Predicated region
      $region193: #{reference_encoder_forward.5} parent=5 // pred_check
        _
      $region194: #{reference_encoder_forward.5} parent=5 // pred_check_branch
        %479 = sbr.rel (%p476) target = $region196
      $region195: #{reference_encoder_forward.5} parent=5 // pred_region
        %s480 = ssub.s32 %s13, 1
        %s481 = sand.u32 %s26, 1
        %s482 = sand.u32 %s26, 1
        %s483 = smul.addr %s482, 16
        %s484 = scalar_lea.vmem [#allocation2], %s483
        // Predicated region
        $region197: #{reference_encoder_forward.5} parent=195 // pred_check
          %p485 = pneg %p39
        $region198: #{reference_encoder_forward.5} parent=195 // pred_check_branch
          %487 = sbr.rel (%p485) target = $region200
        $region199: #{reference_encoder_forward.5} parent=195 // pred_region
          _
        $region200: #{reference_encoder_forward.5} parent=195 // pred_fallthru
          _
        %s488 = sand.u32 %s52, 1
        %s489 = sand.u32 %s52, 1
        %s490 = smul.addr %s489, 16
        %s491 = scalar_lea.vmem [#allocation3], %s490
        // Predicated region
        $region201: #{reference_encoder_forward.5} parent=195 // pred_check
          %p492 = pneg %p65
        $region202: #{reference_encoder_forward.5} parent=195 // pred_check_branch
          %494 = sbr.rel (%p492) target = $region204
        $region203: #{reference_encoder_forward.5} parent=195 // pred_region
          _
        $region204: #{reference_encoder_forward.5} parent=195 // pred_fallthru
          _
        %s495 = sand.u32 %s78, 1
        %s496 = sand.u32 %s78, 1
        %s497 = smul.addr %s496, 16
        %s498 = scalar_lea.vmem [#allocation4], %s497
        // Predicated region
        $region205: #{reference_encoder_forward.5} parent=195 // pred_check
          %p499 = pneg %p91
        $region206: #{reference_encoder_forward.5} parent=195 // pred_check_branch
          %501 = sbr.rel (%p499) target = $region208
        $region207: #{reference_encoder_forward.5} parent=195 // pred_region
          _
        $region208: #{reference_encoder_forward.5} parent=195 // pred_fallthru
          _
        %s502 = sand.u32 %s104, 1
        %s503 = sand.u32 %s104, 1
        %s504 = smul.addr %s503, 16
        %s505 = scalar_lea.vmem [#allocation5], %s504
        // Predicated region
        $region209: #{reference_encoder_forward.5} parent=195 // pred_check
          %p506 = pneg %p117
        $region210: #{reference_encoder_forward.5} parent=195 // pred_check_branch
          %508 = sbr.rel (%p506) target = $region212
        $region211: #{reference_encoder_forward.5} parent=195 // pred_region
          _
        $region212: #{reference_encoder_forward.5} parent=195 // pred_fallthru
          _
        %s509 = sand.u32 %s26, 1
        %s510 = sand.u32 %s26, 1
        %s511 = smul.addr %s510, 16
        %s512 = scalar_lea.vmem [#allocation2], %s511
        %p513 = pneg %p39
        %p514 = pneg %p36
        %s515 = sand.u32 %s52, 1
        %s516 = sand.u32 %s52, 1
        %s517 = smul.addr %s516, 16
        %s518 = scalar_lea.vmem [#allocation3], %s517
        %p519 = pneg %p65
        %p520 = pneg %p62
        %s521 = sand.u32 %s78, 1
        %s522 = sand.u32 %s78, 1
        %s523 = smul.addr %s522, 16
        %s524 = scalar_lea.vmem [#allocation4], %s523
        %p525 = pneg %p91
        %p526 = pneg %p88
        %s527 = sand.u32 %s104, 1
        %s528 = sand.u32 %s104, 1
        %s529 = smul.addr %s528, 16
        %s530 = scalar_lea.vmem [#allocation5], %s529
        %p531 = pneg %p117
        %p532 = pneg %p114
        %p533 = pneg %p138
        %p534 = pneg %p135
        %p535 = pneg %p159
        %p536 = pneg %p156
        %p537 = pneg %p180
        %p538 = pneg %p177
        %p539 = pneg %p206
        %p540 = pneg %p203
        %s541 = sand.u32 %s193, 1
        %s542 = sand.u32 %s193, 1
        %s543 = smul.addr %s542, 16
        %s544 = scalar_lea.vmem [#allocation6], %s543
        %v545 = vld [vmem:[%s484] sm:$0x3]
        %v546 = vld [vmem:[%s484 + $0x4] sm:$0x3]
        %v547 = vld [vmem:[%s484 + $0x8] sm:$0x3]
        %v548 = vld [vmem:[%s484 + $0xc] sm:$0x3]
        %v549 = vld [vmem:[%s4] sm:$0x1]
        %v550 = vld [vmem:[%s4 + $0x1] sm:$0x1]
        %v551 = vld [vmem:[%s4 + $0x2] sm:$0x1]
        %v552 = vld [vmem:[%s4 + $0x3] sm:$0x1]
        %v553 = vld [vmem:[%s4 + $0x4] sm:$0x1]
        %v554 = vld [vmem:[%s4 + $0x5] sm:$0x1]
        %v555 = vld [vmem:[%s4 + $0x6] sm:$0x1]
        %v556 = vld [vmem:[%s4 + $0x7] sm:$0x1]
        %v565 = vlaneseq
        %v566 = vshrl.u32 %v565, 7
        %v567 = vsub.s32 0, %v566
        %v568 = vrot.slane %v549, %v567
        %v569 = vlaneseq
        %v570 = vshrl.u32 %v569, 7
        %v571 = vsub.s32 0, %v570
        %v572 = vrot.slane %v550, %v571
        %v573 = vlaneseq
        %v574 = vshrl.u32 %v573, 7
        %v575 = vsub.s32 0, %v574
        %v576 = vrot.slane %v551, %v575
        %v577 = vlaneseq
        %v578 = vshrl.u32 %v577, 7
        %v579 = vsub.s32 0, %v578
        %v580 = vrot.slane %v552, %v579
        %v581 = vlaneseq
        %v582 = vshrl.u32 %v581, 7
        %v583 = vsub.s32 0, %v582
        %v584 = vrot.slane %v553, %v583
        %v585 = vlaneseq
        %v586 = vshrl.u32 %v585, 7
        %v587 = vsub.s32 0, %v586
        %v588 = vrot.slane %v554, %v587
        %v589 = vlaneseq
        %v590 = vshrl.u32 %v589, 7
        %v591 = vsub.s32 0, %v590
        %v592 = vrot.slane %v555, %v591
        %v593 = vlaneseq
        %v594 = vshrl.u32 %v593, 7
        %v595 = vsub.s32 0, %v594
        %v596 = vrot.slane %v556, %v595
        %597 = vset.pattern.permute.xlu0 0
        %598 = vperm.xlu0 %597, %v568
        %v599 = vpop.permute.xlu0 %598
        %601 = vset.pattern.permute.xlu0 0
        %602 = vperm.xlu0 %601, %v572
        %v603 = vpop.permute.xlu0 %602
        %605 = vset.pattern.permute.xlu0 0
        %606 = vperm.xlu0 %605, %v576
        %v607 = vpop.permute.xlu0 %606
        %609 = vset.pattern.permute.xlu0 0
        %610 = vperm.xlu0 %609, %v580
        %v611 = vpop.permute.xlu0 %610
        %613 = vset.pattern.permute.xlu0 0
        %614 = vperm.xlu0 %613, %v584
        %v615 = vpop.permute.xlu0 %614
        %617 = vset.pattern.permute.xlu0 0
        %618 = vperm.xlu0 %617, %v588
        %v619 = vpop.permute.xlu0 %618
        %621 = vset.pattern.permute.xlu0 0
        %622 = vperm.xlu0 %621, %v592
        %v623 = vpop.permute.xlu0 %622
        %625 = vset.pattern.permute.xlu0 0
        %626 = vperm.xlu0 %625, %v596
        %v627 = vpop.permute.xlu0 %626
        %v629 = vmul.f32 %v599, %v545
        %v630 = vmul.f32 %v603, %v545
        %v631 = vmul.f32 %v607, %v545
        %v632 = vmul.f32 %v611, %v545
        %v633 = vmul.f32 %v615, %v545
        %v634 = vmul.f32 %v619, %v545
        %v635 = vmul.f32 %v623, %v545
        %v636 = vmul.f32 %v627, %v545
        %v637 = vadd.f32 %v629, 0.0
        %v638 = vadd.f32 %v630, 0.0
        %v639 = vadd.f32 %v631, 0.0
        %v640 = vadd.f32 %v632, 0.0
        %v641 = vadd.f32 %v633, 0.0
        %v642 = vadd.f32 %v634, 0.0
        %v643 = vadd.f32 %v635, 0.0
        %v644 = vadd.f32 %v636, 0.0
        %s645 = scalar_lea.vmem %s4, 8
        %v646 = vld [vmem:[%s645] sm:$0x1]
        %v647 = vld [vmem:[%s645 + $0x1] sm:$0x1]
        %v648 = vld [vmem:[%s645 + $0x2] sm:$0x1]
        %v649 = vld [vmem:[%s645 + $0x3] sm:$0x1]
        %v650 = vld [vmem:[%s645 + $0x4] sm:$0x1]
        %v651 = vld [vmem:[%s645 + $0x5] sm:$0x1]
        %v652 = vld [vmem:[%s645 + $0x6] sm:$0x1]
        %v653 = vld [vmem:[%s645 + $0x7] sm:$0x1]
        %v662 = vlaneseq
        %v663 = vshrl.u32 %v662, 7
        %v664 = vsub.s32 0, %v663
        %v665 = vrot.slane %v646, %v664
        %v666 = vlaneseq
        %v667 = vshrl.u32 %v666, 7
        %v668 = vsub.s32 0, %v667
        %v669 = vrot.slane %v647, %v668
        %v670 = vlaneseq
        %v671 = vshrl.u32 %v670, 7
        %v672 = vsub.s32 0, %v671
        %v673 = vrot.slane %v648, %v672
        %v674 = vlaneseq
        %v675 = vshrl.u32 %v674, 7
        %v676 = vsub.s32 0, %v675
        %v677 = vrot.slane %v649, %v676
        %v678 = vlaneseq
        %v679 = vshrl.u32 %v678, 7
        %v680 = vsub.s32 0, %v679
        %v681 = vrot.slane %v650, %v680
        %v682 = vlaneseq
        %v683 = vshrl.u32 %v682, 7
        %v684 = vsub.s32 0, %v683
        %v685 = vrot.slane %v651, %v684
        %v686 = vlaneseq
        %v687 = vshrl.u32 %v686, 7
        %v688 = vsub.s32 0, %v687
        %v689 = vrot.slane %v652, %v688
        %v690 = vlaneseq
        %v691 = vshrl.u32 %v690, 7
        %v692 = vsub.s32 0, %v691
        %v693 = vrot.slane %v653, %v692
        %694 = vset.pattern.permute.xlu0 0
        %695 = vperm.xlu0 %694, %v665
        %v696 = vpop.permute.xlu0 %695
        %698 = vset.pattern.permute.xlu0 0
        %699 = vperm.xlu0 %698, %v669
        %v700 = vpop.permute.xlu0 %699
        %702 = vset.pattern.permute.xlu0 0
        %703 = vperm.xlu0 %702, %v673
        %v704 = vpop.permute.xlu0 %703
        %706 = vset.pattern.permute.xlu0 0
        %707 = vperm.xlu0 %706, %v677
        %v708 = vpop.permute.xlu0 %707
        %710 = vset.pattern.permute.xlu0 0
        %711 = vperm.xlu0 %710, %v681
        %v712 = vpop.permute.xlu0 %711
        %714 = vset.pattern.permute.xlu0 0
        %715 = vperm.xlu0 %714, %v685
        %v716 = vpop.permute.xlu0 %715
        %718 = vset.pattern.permute.xlu0 0
        %719 = vperm.xlu0 %718, %v689
        %v720 = vpop.permute.xlu0 %719
        %722 = vset.pattern.permute.xlu0 0
        %723 = vperm.xlu0 %722, %v693
        %v724 = vpop.permute.xlu0 %723
        %v726 = vmul.f32 %v696, %v546
        %v727 = vmul.f32 %v700, %v546
        %v728 = vmul.f32 %v704, %v546
        %v729 = vmul.f32 %v708, %v546
        %v730 = vmul.f32 %v712, %v546
        %v731 = vmul.f32 %v716, %v546
        %v732 = vmul.f32 %v720, %v546
        %v733 = vmul.f32 %v724, %v546
        %v734 = vadd.f32 %v637, %v726
        %v735 = vadd.f32 %v638, %v727
        %v736 = vadd.f32 %v639, %v728
        %v737 = vadd.f32 %v640, %v729
        %v738 = vadd.f32 %v641, %v730
        %v739 = vadd.f32 %v642, %v731
        %v740 = vadd.f32 %v643, %v732
        %v741 = vadd.f32 %v644, %v733
        %s742 = scalar_lea.vmem %s4, 16
        %v743 = vld [vmem:[%s742] sm:$0x1]
        %v744 = vld [vmem:[%s742 + $0x1] sm:$0x1]
        %v745 = vld [vmem:[%s742 + $0x2] sm:$0x1]
        %v746 = vld [vmem:[%s742 + $0x3] sm:$0x1]
        %v747 = vld [vmem:[%s742 + $0x4] sm:$0x1]
        %v748 = vld [vmem:[%s742 + $0x5] sm:$0x1]
        %v749 = vld [vmem:[%s742 + $0x6] sm:$0x1]
        %v750 = vld [vmem:[%s742 + $0x7] sm:$0x1]
        %v759 = vlaneseq
        %v760 = vshrl.u32 %v759, 7
        %v761 = vsub.s32 0, %v760
        %v762 = vrot.slane %v743, %v761
        %v763 = vlaneseq
        %v764 = vshrl.u32 %v763, 7
        %v765 = vsub.s32 0, %v764
        %v766 = vrot.slane %v744, %v765
        %v767 = vlaneseq
        %v768 = vshrl.u32 %v767, 7
        %v769 = vsub.s32 0, %v768
        %v770 = vrot.slane %v745, %v769
        %v771 = vlaneseq
        %v772 = vshrl.u32 %v771, 7
        %v773 = vsub.s32 0, %v772
        %v774 = vrot.slane %v746, %v773
        %v775 = vlaneseq
        %v776 = vshrl.u32 %v775, 7
        %v777 = vsub.s32 0, %v776
        %v778 = vrot.slane %v747, %v777
        %v779 = vlaneseq
        %v780 = vshrl.u32 %v779, 7
        %v781 = vsub.s32 0, %v780
        %v782 = vrot.slane %v748, %v781
        %v783 = vlaneseq
        %v784 = vshrl.u32 %v783, 7
        %v785 = vsub.s32 0, %v784
        %v786 = vrot.slane %v749, %v785
        %v787 = vlaneseq
        %v788 = vshrl.u32 %v787, 7
        %v789 = vsub.s32 0, %v788
        %v790 = vrot.slane %v750, %v789
        %791 = vset.pattern.permute.xlu0 0
        %792 = vperm.xlu0 %791, %v762
        %v793 = vpop.permute.xlu0 %792
        %795 = vset.pattern.permute.xlu0 0
        %796 = vperm.xlu0 %795, %v766
        %v797 = vpop.permute.xlu0 %796
        %799 = vset.pattern.permute.xlu0 0
        %800 = vperm.xlu0 %799, %v770
        %v801 = vpop.permute.xlu0 %800
        %803 = vset.pattern.permute.xlu0 0
        %804 = vperm.xlu0 %803, %v774
        %v805 = vpop.permute.xlu0 %804
        %807 = vset.pattern.permute.xlu0 0
        %808 = vperm.xlu0 %807, %v778
        %v809 = vpop.permute.xlu0 %808
        %811 = vset.pattern.permute.xlu0 0
        %812 = vperm.xlu0 %811, %v782
        %v813 = vpop.permute.xlu0 %812
        %815 = vset.pattern.permute.xlu0 0
        %816 = vperm.xlu0 %815, %v786
        %v817 = vpop.permute.xlu0 %816
        %819 = vset.pattern.permute.xlu0 0
        %820 = vperm.xlu0 %819, %v790
        %v821 = vpop.permute.xlu0 %820
        %v823 = vmul.f32 %v793, %v547
        %v824 = vmul.f32 %v797, %v547
        %v825 = vmul.f32 %v801, %v547
        %v826 = vmul.f32 %v805, %v547
        %v827 = vmul.f32 %v809, %v547
        %v828 = vmul.f32 %v813, %v547
        %v829 = vmul.f32 %v817, %v547
        %v830 = vmul.f32 %v821, %v547
        %v831 = vadd.f32 %v734, %v823
        %v832 = vadd.f32 %v735, %v824
        %v833 = vadd.f32 %v736, %v825
        %v834 = vadd.f32 %v737, %v826
        %v835 = vadd.f32 %v738, %v827
        %v836 = vadd.f32 %v739, %v828
        %v837 = vadd.f32 %v740, %v829
        %v838 = vadd.f32 %v741, %v830
        %s839 = scalar_lea.vmem %s4, 24
        %v840 = vld [vmem:[%s839] sm:$0x1]
        %v841 = vld [vmem:[%s839 + $0x1] sm:$0x1]
        %v842 = vld [vmem:[%s839 + $0x2] sm:$0x1]
        %v843 = vld [vmem:[%s839 + $0x3] sm:$0x1]
        %v844 = vld [vmem:[%s839 + $0x4] sm:$0x1]
        %v845 = vld [vmem:[%s839 + $0x5] sm:$0x1]
        %v846 = vld [vmem:[%s839 + $0x6] sm:$0x1]
        %v847 = vld [vmem:[%s839 + $0x7] sm:$0x1]
        %v856 = vlaneseq
        %v857 = vshrl.u32 %v856, 7
        %v858 = vsub.s32 0, %v857
        %v859 = vrot.slane %v840, %v858
        %v860 = vlaneseq
        %v861 = vshrl.u32 %v860, 7
        %v862 = vsub.s32 0, %v861
        %v863 = vrot.slane %v841, %v862
        %v864 = vlaneseq
        %v865 = vshrl.u32 %v864, 7
        %v866 = vsub.s32 0, %v865
        %v867 = vrot.slane %v842, %v866
        %v868 = vlaneseq
        %v869 = vshrl.u32 %v868, 7
        %v870 = vsub.s32 0, %v869
        %v871 = vrot.slane %v843, %v870
        %v872 = vlaneseq
        %v873 = vshrl.u32 %v872, 7
        %v874 = vsub.s32 0, %v873
        %v875 = vrot.slane %v844, %v874
        %v876 = vlaneseq
        %v877 = vshrl.u32 %v876, 7
        %v878 = vsub.s32 0, %v877
        %v879 = vrot.slane %v845, %v878
        %v880 = vlaneseq
        %v881 = vshrl.u32 %v880, 7
        %v882 = vsub.s32 0, %v881
        %v883 = vrot.slane %v846, %v882
        %v884 = vlaneseq
        %v885 = vshrl.u32 %v884, 7
        %v886 = vsub.s32 0, %v885
        %v887 = vrot.slane %v847, %v886
        %888 = vset.pattern.permute.xlu0 0
        %889 = vperm.xlu0 %888, %v859
        %v890 = vpop.permute.xlu0 %889
        %892 = vset.pattern.permute.xlu0 0
        %893 = vperm.xlu0 %892, %v863
        %v894 = vpop.permute.xlu0 %893
        %896 = vset.pattern.permute.xlu0 0
        %897 = vperm.xlu0 %896, %v867
        %v898 = vpop.permute.xlu0 %897
        %900 = vset.pattern.permute.xlu0 0
        %901 = vperm.xlu0 %900, %v871
        %v902 = vpop.permute.xlu0 %901
        %904 = vset.pattern.permute.xlu0 0
        %905 = vperm.xlu0 %904, %v875
        %v906 = vpop.permute.xlu0 %905
        %908 = vset.pattern.permute.xlu0 0
        %909 = vperm.xlu0 %908, %v879
        %v910 = vpop.permute.xlu0 %909
        %912 = vset.pattern.permute.xlu0 0
        %913 = vperm.xlu0 %912, %v883
        %v914 = vpop.permute.xlu0 %913
        %916 = vset.pattern.permute.xlu0 0
        %917 = vperm.xlu0 %916, %v887
        %v918 = vpop.permute.xlu0 %917
        %v920 = vmul.f32 %v890, %v548
        %v921 = vmul.f32 %v894, %v548
        %v922 = vmul.f32 %v898, %v548
        %v923 = vmul.f32 %v902, %v548
        %v924 = vmul.f32 %v906, %v548
        %v925 = vmul.f32 %v910, %v548
        %v926 = vmul.f32 %v914, %v548
        %v927 = vmul.f32 %v918, %v548
        %v928 = vadd.f32 %v831, %v920
        %v929 = vadd.f32 %v832, %v921
        %v930 = vadd.f32 %v833, %v922
        %v931 = vadd.f32 %v834, %v923
        %v932 = vadd.f32 %v835, %v924
        %v933 = vadd.f32 %v836, %v925
        %v934 = vadd.f32 %v837, %v926
        %v935 = vadd.f32 %v838, %v927
        %v936 = vld [vmem:[%s491] sm:$0x3]
        %v937 = vld [vmem:[%s491 + $0x4] sm:$0x3]
        %v938 = vld [vmem:[%s491 + $0x8] sm:$0x3]
        %v939 = vld [vmem:[%s491 + $0xc] sm:$0x3]
        %s940 = scalar_lea.vmem %s4, 32
        %v941 = vld [vmem:[%s940] sm:$0x1]
        %v942 = vld [vmem:[%s940 + $0x1] sm:$0x1]
        %v943 = vld [vmem:[%s940 + $0x2] sm:$0x1]
        %v944 = vld [vmem:[%s940 + $0x3] sm:$0x1]
        %v945 = vld [vmem:[%s940 + $0x4] sm:$0x1]
        %v946 = vld [vmem:[%s940 + $0x5] sm:$0x1]
        %v947 = vld [vmem:[%s940 + $0x6] sm:$0x1]
        %v948 = vld [vmem:[%s940 + $0x7] sm:$0x1]
        %v957 = vlaneseq
        %v958 = vshrl.u32 %v957, 7
        %v959 = vsub.s32 0, %v958
        %v960 = vrot.slane %v941, %v959
        %v961 = vlaneseq
        %v962 = vshrl.u32 %v961, 7
        %v963 = vsub.s32 0, %v962
        %v964 = vrot.slane %v942, %v963
        %v965 = vlaneseq
        %v966 = vshrl.u32 %v965, 7
        %v967 = vsub.s32 0, %v966
        %v968 = vrot.slane %v943, %v967
        %v969 = vlaneseq
        %v970 = vshrl.u32 %v969, 7
        %v971 = vsub.s32 0, %v970
        %v972 = vrot.slane %v944, %v971
        %v973 = vlaneseq
        %v974 = vshrl.u32 %v973, 7
        %v975 = vsub.s32 0, %v974
        %v976 = vrot.slane %v945, %v975
        %v977 = vlaneseq
        %v978 = vshrl.u32 %v977, 7
        %v979 = vsub.s32 0, %v978
        %v980 = vrot.slane %v946, %v979
        %v981 = vlaneseq
        %v982 = vshrl.u32 %v981, 7
        %v983 = vsub.s32 0, %v982
        %v984 = vrot.slane %v947, %v983
        %v985 = vlaneseq
        %v986 = vshrl.u32 %v985, 7
        %v987 = vsub.s32 0, %v986
        %v988 = vrot.slane %v948, %v987
        %989 = vset.pattern.permute.xlu0 0
        %990 = vperm.xlu0 %989, %v960
        %v991 = vpop.permute.xlu0 %990
        %993 = vset.pattern.permute.xlu0 0
        %994 = vperm.xlu0 %993, %v964
        %v995 = vpop.permute.xlu0 %994
        %997 = vset.pattern.permute.xlu0 0
        %998 = vperm.xlu0 %997, %v968
        %v999 = vpop.permute.xlu0 %998
        %1001 = vset.pattern.permute.xlu0 0
        %1002 = vperm.xlu0 %1001, %v972
        %v1003 = vpop.permute.xlu0 %1002
        %1005 = vset.pattern.permute.xlu0 0
        %1006 = vperm.xlu0 %1005, %v976
        %v1007 = vpop.permute.xlu0 %1006
        %1009 = vset.pattern.permute.xlu0 0
        %1010 = vperm.xlu0 %1009, %v980
        %v1011 = vpop.permute.xlu0 %1010
        %1013 = vset.pattern.permute.xlu0 0
        %1014 = vperm.xlu0 %1013, %v984
        %v1015 = vpop.permute.xlu0 %1014
        %1017 = vset.pattern.permute.xlu0 0
        %1018 = vperm.xlu0 %1017, %v988
        %v1019 = vpop.permute.xlu0 %1018
        %v1021 = vmul.f32 %v991, %v936
        %v1022 = vmul.f32 %v995, %v936
        %v1023 = vmul.f32 %v999, %v936
        %v1024 = vmul.f32 %v1003, %v936
        %v1025 = vmul.f32 %v1007, %v936
        %v1026 = vmul.f32 %v1011, %v936
        %v1027 = vmul.f32 %v1015, %v936
        %v1028 = vmul.f32 %v1019, %v936
        %v1029 = vadd.f32 %v928, %v1021
        %v1030 = vadd.f32 %v929, %v1022
        %v1031 = vadd.f32 %v930, %v1023
        %v1032 = vadd.f32 %v931, %v1024
        %v1033 = vadd.f32 %v932, %v1025
        %v1034 = vadd.f32 %v933, %v1026
        %v1035 = vadd.f32 %v934, %v1027
        %v1036 = vadd.f32 %v935, %v1028
        %s1037 = scalar_lea.vmem %s4, 40
        %v1038 = vld [vmem:[%s1037] sm:$0x1]
        %v1039 = vld [vmem:[%s1037 + $0x1] sm:$0x1]
        %v1040 = vld [vmem:[%s1037 + $0x2] sm:$0x1]
        %v1041 = vld [vmem:[%s1037 + $0x3] sm:$0x1]
        %v1042 = vld [vmem:[%s1037 + $0x4] sm:$0x1]
        %v1043 = vld [vmem:[%s1037 + $0x5] sm:$0x1]
        %v1044 = vld [vmem:[%s1037 + $0x6] sm:$0x1]
        %v1045 = vld [vmem:[%s1037 + $0x7] sm:$0x1]
        %v1054 = vlaneseq
        %v1055 = vshrl.u32 %v1054, 7
        %v1056 = vsub.s32 0, %v1055
        %v1057 = vrot.slane %v1038, %v1056
        %v1058 = vlaneseq
        %v1059 = vshrl.u32 %v1058, 7
        %v1060 = vsub.s32 0, %v1059
        %v1061 = vrot.slane %v1039, %v1060
        %v1062 = vlaneseq
        %v1063 = vshrl.u32 %v1062, 7
        %v1064 = vsub.s32 0, %v1063
        %v1065 = vrot.slane %v1040, %v1064
        %v1066 = vlaneseq
        %v1067 = vshrl.u32 %v1066, 7
        %v1068 = vsub.s32 0, %v1067
        %v1069 = vrot.slane %v1041, %v1068
        %v1070 = vlaneseq
        %v1071 = vshrl.u32 %v1070, 7
        %v1072 = vsub.s32 0, %v1071
        %v1073 = vrot.slane %v1042, %v1072
        %v1074 = vlaneseq
        %v1075 = vshrl.u32 %v1074, 7
        %v1076 = vsub.s32 0, %v1075
        %v1077 = vrot.slane %v1043, %v1076
        %v1078 = vlaneseq
        %v1079 = vshrl.u32 %v1078, 7
        %v1080 = vsub.s32 0, %v1079
        %v1081 = vrot.slane %v1044, %v1080
        %v1082 = vlaneseq
        %v1083 = vshrl.u32 %v1082, 7
        %v1084 = vsub.s32 0, %v1083
        %v1085 = vrot.slane %v1045, %v1084
        %1086 = vset.pattern.permute.xlu0 0
        %1087 = vperm.xlu0 %1086, %v1057
        %v1088 = vpop.permute.xlu0 %1087
        %1090 = vset.pattern.permute.xlu0 0
        %1091 = vperm.xlu0 %1090, %v1061
        %v1092 = vpop.permute.xlu0 %1091
        %1094 = vset.pattern.permute.xlu0 0
        %1095 = vperm.xlu0 %1094, %v1065
        %v1096 = vpop.permute.xlu0 %1095
        %1098 = vset.pattern.permute.xlu0 0
        %1099 = vperm.xlu0 %1098, %v1069
        %v1100 = vpop.permute.xlu0 %1099
        %1102 = vset.pattern.permute.xlu0 0
        %1103 = vperm.xlu0 %1102, %v1073
        %v1104 = vpop.permute.xlu0 %1103
        %1106 = vset.pattern.permute.xlu0 0
        %1107 = vperm.xlu0 %1106, %v1077
        %v1108 = vpop.permute.xlu0 %1107
        %1110 = vset.pattern.permute.xlu0 0
        %1111 = vperm.xlu0 %1110, %v1081
        %v1112 = vpop.permute.xlu0 %1111
        %1114 = vset.pattern.permute.xlu0 0
        %1115 = vperm.xlu0 %1114, %v1085
        %v1116 = vpop.permute.xlu0 %1115
        %v1118 = vmul.f32 %v1088, %v937
        %v1119 = vmul.f32 %v1092, %v937
        %v1120 = vmul.f32 %v1096, %v937
        %v1121 = vmul.f32 %v1100, %v937
        %v1122 = vmul.f32 %v1104, %v937
        %v1123 = vmul.f32 %v1108, %v937
        %v1124 = vmul.f32 %v1112, %v937
        %v1125 = vmul.f32 %v1116, %v937
        %v1126 = vadd.f32 %v1029, %v1118
        %v1127 = vadd.f32 %v1030, %v1119
        %v1128 = vadd.f32 %v1031, %v1120
        %v1129 = vadd.f32 %v1032, %v1121
        %v1130 = vadd.f32 %v1033, %v1122
        %v1131 = vadd.f32 %v1034, %v1123
        %v1132 = vadd.f32 %v1035, %v1124
        %v1133 = vadd.f32 %v1036, %v1125
        %s1134 = scalar_lea.vmem %s4, 48
        %v1135 = vld [vmem:[%s1134] sm:$0x1]
        %v1136 = vld [vmem:[%s1134 + $0x1] sm:$0x1]
        %v1137 = vld [vmem:[%s1134 + $0x2] sm:$0x1]
        %v1138 = vld [vmem:[%s1134 + $0x3] sm:$0x1]
        %v1139 = vld [vmem:[%s1134 + $0x4] sm:$0x1]
        %v1140 = vld [vmem:[%s1134 + $0x5] sm:$0x1]
        %v1141 = vld [vmem:[%s1134 + $0x6] sm:$0x1]
        %v1142 = vld [vmem:[%s1134 + $0x7] sm:$0x1]
        %v1151 = vlaneseq
        %v1152 = vshrl.u32 %v1151, 7
        %v1153 = vsub.s32 0, %v1152
        %v1154 = vrot.slane %v1135, %v1153
        %v1155 = vlaneseq
        %v1156 = vshrl.u32 %v1155, 7
        %v1157 = vsub.s32 0, %v1156
        %v1158 = vrot.slane %v1136, %v1157
        %v1159 = vlaneseq
        %v1160 = vshrl.u32 %v1159, 7
        %v1161 = vsub.s32 0, %v1160
        %v1162 = vrot.slane %v1137, %v1161
        %v1163 = vlaneseq
        %v1164 = vshrl.u32 %v1163, 7
        %v1165 = vsub.s32 0, %v1164
        %v1166 = vrot.slane %v1138, %v1165
        %v1167 = vlaneseq
        %v1168 = vshrl.u32 %v1167, 7
        %v1169 = vsub.s32 0, %v1168
        %v1170 = vrot.slane %v1139, %v1169
        %v1171 = vlaneseq
        %v1172 = vshrl.u32 %v1171, 7
        %v1173 = vsub.s32 0, %v1172
        %v1174 = vrot.slane %v1140, %v1173
        %v1175 = vlaneseq
        %v1176 = vshrl.u32 %v1175, 7
        %v1177 = vsub.s32 0, %v1176
        %v1178 = vrot.slane %v1141, %v1177
        %v1179 = vlaneseq
        %v1180 = vshrl.u32 %v1179, 7
        %v1181 = vsub.s32 0, %v1180
        %v1182 = vrot.slane %v1142, %v1181
        %1183 = vset.pattern.permute.xlu0 0
        %1184 = vperm.xlu0 %1183, %v1154
        %v1185 = vpop.permute.xlu0 %1184
        %1187 = vset.pattern.permute.xlu0 0
        %1188 = vperm.xlu0 %1187, %v1158
        %v1189 = vpop.permute.xlu0 %1188
        %1191 = vset.pattern.permute.xlu0 0
        %1192 = vperm.xlu0 %1191, %v1162
        %v1193 = vpop.permute.xlu0 %1192
        %1195 = vset.pattern.permute.xlu0 0
        %1196 = vperm.xlu0 %1195, %v1166
        %v1197 = vpop.permute.xlu0 %1196
        %1199 = vset.pattern.permute.xlu0 0
        %1200 = vperm.xlu0 %1199, %v1170
        %v1201 = vpop.permute.xlu0 %1200
        %1203 = vset.pattern.permute.xlu0 0
        %1204 = vperm.xlu0 %1203, %v1174
        %v1205 = vpop.permute.xlu0 %1204
        %1207 = vset.pattern.permute.xlu0 0
        %1208 = vperm.xlu0 %1207, %v1178
        %v1209 = vpop.permute.xlu0 %1208
        %1211 = vset.pattern.permute.xlu0 0
        %1212 = vperm.xlu0 %1211, %v1182
        %v1213 = vpop.permute.xlu0 %1212
        %v1215 = vmul.f32 %v1185, %v938
        %v1216 = vmul.f32 %v1189, %v938
        %v1217 = vmul.f32 %v1193, %v938
        %v1218 = vmul.f32 %v1197, %v938
        %v1219 = vmul.f32 %v1201, %v938
        %v1220 = vmul.f32 %v1205, %v938
        %v1221 = vmul.f32 %v1209, %v938
        %v1222 = vmul.f32 %v1213, %v938
        %v1223 = vadd.f32 %v1126, %v1215
        %v1224 = vadd.f32 %v1127, %v1216
        %v1225 = vadd.f32 %v1128, %v1217
        %v1226 = vadd.f32 %v1129, %v1218
        %v1227 = vadd.f32 %v1130, %v1219
        %v1228 = vadd.f32 %v1131, %v1220
        %v1229 = vadd.f32 %v1132, %v1221
        %v1230 = vadd.f32 %v1133, %v1222
        %s1231 = scalar_lea.vmem %s4, 56
        %v1232 = vld [vmem:[%s1231] sm:$0x1]
        %v1233 = vld [vmem:[%s1231 + $0x1] sm:$0x1]
        %v1234 = vld [vmem:[%s1231 + $0x2] sm:$0x1]
        %v1235 = vld [vmem:[%s1231 + $0x3] sm:$0x1]
        %v1236 = vld [vmem:[%s1231 + $0x4] sm:$0x1]
        %v1237 = vld [vmem:[%s1231 + $0x5] sm:$0x1]
        %v1238 = vld [vmem:[%s1231 + $0x6] sm:$0x1]
        %v1239 = vld [vmem:[%s1231 + $0x7] sm:$0x1]
        %v1248 = vlaneseq
        %v1249 = vshrl.u32 %v1248, 7
        %v1250 = vsub.s32 0, %v1249
        %v1251 = vrot.slane %v1232, %v1250
        %v1252 = vlaneseq
        %v1253 = vshrl.u32 %v1252, 7
        %v1254 = vsub.s32 0, %v1253
        %v1255 = vrot.slane %v1233, %v1254
        %v1256 = vlaneseq
        %v1257 = vshrl.u32 %v1256, 7
        %v1258 = vsub.s32 0, %v1257
        %v1259 = vrot.slane %v1234, %v1258
        %v1260 = vlaneseq
        %v1261 = vshrl.u32 %v1260, 7
        %v1262 = vsub.s32 0, %v1261
        %v1263 = vrot.slane %v1235, %v1262
        %v1264 = vlaneseq
        %v1265 = vshrl.u32 %v1264, 7
        %v1266 = vsub.s32 0, %v1265
        %v1267 = vrot.slane %v1236, %v1266
        %v1268 = vlaneseq
        %v1269 = vshrl.u32 %v1268, 7
        %v1270 = vsub.s32 0, %v1269
        %v1271 = vrot.slane %v1237, %v1270
        %v1272 = vlaneseq
        %v1273 = vshrl.u32 %v1272, 7
        %v1274 = vsub.s32 0, %v1273
        %v1275 = vrot.slane %v1238, %v1274
        %v1276 = vlaneseq
        %v1277 = vshrl.u32 %v1276, 7
        %v1278 = vsub.s32 0, %v1277
        %v1279 = vrot.slane %v1239, %v1278
        %1280 = vset.pattern.permute.xlu0 0
        %1281 = vperm.xlu0 %1280, %v1251
        %v1282 = vpop.permute.xlu0 %1281
        %1284 = vset.pattern.permute.xlu0 0
        %1285 = vperm.xlu0 %1284, %v1255
        %v1286 = vpop.permute.xlu0 %1285
        %1288 = vset.pattern.permute.xlu0 0
        %1289 = vperm.xlu0 %1288, %v1259
        %v1290 = vpop.permute.xlu0 %1289
        %1292 = vset.pattern.permute.xlu0 0
        %1293 = vperm.xlu0 %1292, %v1263
        %v1294 = vpop.permute.xlu0 %1293
        %1296 = vset.pattern.permute.xlu0 0
        %1297 = vperm.xlu0 %1296, %v1267
        %v1298 = vpop.permute.xlu0 %1297
        %1300 = vset.pattern.permute.xlu0 0
        %1301 = vperm.xlu0 %1300, %v1271
        %v1302 = vpop.permute.xlu0 %1301
        %1304 = vset.pattern.permute.xlu0 0
        %1305 = vperm.xlu0 %1304, %v1275
        %v1306 = vpop.permute.xlu0 %1305
        %1308 = vset.pattern.permute.xlu0 0
        %1309 = vperm.xlu0 %1308, %v1279
        %v1310 = vpop.permute.xlu0 %1309
        %v1312 = vmul.f32 %v1282, %v939
        %v1313 = vmul.f32 %v1286, %v939
        %v1314 = vmul.f32 %v1290, %v939
        %v1315 = vmul.f32 %v1294, %v939
        %v1316 = vmul.f32 %v1298, %v939
        %v1317 = vmul.f32 %v1302, %v939
        %v1318 = vmul.f32 %v1306, %v939
        %v1319 = vmul.f32 %v1310, %v939
        %v1320 = vadd.f32 %v1223, %v1312
        %v1321 = vadd.f32 %v1224, %v1313
        %v1322 = vadd.f32 %v1225, %v1314
        %v1323 = vadd.f32 %v1226, %v1315
        %v1324 = vadd.f32 %v1227, %v1316
        %v1325 = vadd.f32 %v1228, %v1317
        %v1326 = vadd.f32 %v1229, %v1318
        %v1327 = vadd.f32 %v1230, %v1319
        %s1328 = scalar_lea.vmem %s4, 64
        %v1329 = vld [vmem:[%s1328] sm:$0x1]
        %v1330 = vld [vmem:[%s1328 + $0x1] sm:$0x1]
        %v1331 = vld [vmem:[%s1328 + $0x2] sm:$0x1]
        %v1332 = vld [vmem:[%s1328 + $0x3] sm:$0x1]
        %v1333 = vld [vmem:[%s1328 + $0x4] sm:$0x1]
        %v1334 = vld [vmem:[%s1328 + $0x5] sm:$0x1]
        %v1335 = vld [vmem:[%s1328 + $0x6] sm:$0x1]
        %v1336 = vld [vmem:[%s1328 + $0x7] sm:$0x1]
        %v1345 = vlaneseq
        %v1346 = vshrl.u32 %v1345, 7
        %v1347 = vsub.s32 0, %v1346
        %v1348 = vrot.slane %v1329, %v1347
        %v1349 = vlaneseq
        %v1350 = vshrl.u32 %v1349, 7
        %v1351 = vsub.s32 0, %v1350
        %v1352 = vrot.slane %v1330, %v1351
        %v1353 = vlaneseq
        %v1354 = vshrl.u32 %v1353, 7
        %v1355 = vsub.s32 0, %v1354
        %v1356 = vrot.slane %v1331, %v1355
        %v1357 = vlaneseq
        %v1358 = vshrl.u32 %v1357, 7
        %v1359 = vsub.s32 0, %v1358
        %v1360 = vrot.slane %v1332, %v1359
        %v1361 = vlaneseq
        %v1362 = vshrl.u32 %v1361, 7
        %v1363 = vsub.s32 0, %v1362
        %v1364 = vrot.slane %v1333, %v1363
        %v1365 = vlaneseq
        %v1366 = vshrl.u32 %v1365, 7
        %v1367 = vsub.s32 0, %v1366
        %v1368 = vrot.slane %v1334, %v1367
        %v1369 = vlaneseq
        %v1370 = vshrl.u32 %v1369, 7
        %v1371 = vsub.s32 0, %v1370
        %v1372 = vrot.slane %v1335, %v1371
        %v1373 = vlaneseq
        %v1374 = vshrl.u32 %v1373, 7
        %v1375 = vsub.s32 0, %v1374
        %v1376 = vrot.slane %v1336, %v1375
        %1377 = vset.pattern.permute.xlu0 0
        %1378 = vperm.xlu0 %1377, %v1348
        %v1379 = vpop.permute.xlu0 %1378
        %1381 = vset.pattern.permute.xlu0 0
        %1382 = vperm.xlu0 %1381, %v1352
        %v1383 = vpop.permute.xlu0 %1382
        %1385 = vset.pattern.permute.xlu0 0
        %1386 = vperm.xlu0 %1385, %v1356
        %v1387 = vpop.permute.xlu0 %1386
        %1389 = vset.pattern.permute.xlu0 0
        %1390 = vperm.xlu0 %1389, %v1360
        %v1391 = vpop.permute.xlu0 %1390
        %1393 = vset.pattern.permute.xlu0 0
        %1394 = vperm.xlu0 %1393, %v1364
        %v1395 = vpop.permute.xlu0 %1394
        %1397 = vset.pattern.permute.xlu0 0
        %1398 = vperm.xlu0 %1397, %v1368
        %v1399 = vpop.permute.xlu0 %1398
        %1401 = vset.pattern.permute.xlu0 0
        %1402 = vperm.xlu0 %1401, %v1372
        %v1403 = vpop.permute.xlu0 %1402
        %1405 = vset.pattern.permute.xlu0 0
        %1406 = vperm.xlu0 %1405, %v1376
        %v1407 = vpop.permute.xlu0 %1406
        %v1409 = vmul.f32 %v1379, %v545
        %v1410 = vmul.f32 %v1383, %v545
        %v1411 = vmul.f32 %v1387, %v545
        %v1412 = vmul.f32 %v1391, %v545
        %v1413 = vmul.f32 %v1395, %v545
        %v1414 = vmul.f32 %v1399, %v545
        %v1415 = vmul.f32 %v1403, %v545
        %v1416 = vmul.f32 %v1407, %v545
        %1425 = vrot.lane.b32.xlu0 %v1409, 127
        %v1426 = vpop.permute.xlu0 %1425
        %1427 = vrot.lane.b32.xlu0 %v1410, 127
        %v1428 = vpop.permute.xlu0 %1427
        %1429 = vrot.lane.b32.xlu0 %v1411, 127
        %v1430 = vpop.permute.xlu0 %1429
        %1431 = vrot.lane.b32.xlu0 %v1412, 127
        %v1432 = vpop.permute.xlu0 %1431
        %1433 = vrot.lane.b32.xlu0 %v1413, 127
        %v1434 = vpop.permute.xlu0 %1433
        %1435 = vrot.lane.b32.xlu0 %v1414, 127
        %v1436 = vpop.permute.xlu0 %1435
        %1437 = vrot.lane.b32.xlu0 %v1415, 127
        %v1438 = vpop.permute.xlu0 %1437
        %1439 = vrot.lane.b32.xlu0 %v1416, 127
        %v1440 = vpop.permute.xlu0 %1439
        %v1449 = vadd.f32 %v1320, %v1426
        %v1450 = vadd.f32 %v1321, %v1428
        %v1451 = vadd.f32 %v1322, %v1430
        %v1452 = vadd.f32 %v1323, %v1432
        %v1453 = vadd.f32 %v1324, %v1434
        %v1454 = vadd.f32 %v1325, %v1436
        %v1455 = vadd.f32 %v1326, %v1438
        %v1456 = vadd.f32 %v1327, %v1440
        %s1457 = scalar_lea.vmem %s4, 72
        %v1458 = vld [vmem:[%s1457] sm:$0x1]
        %v1459 = vld [vmem:[%s1457 + $0x1] sm:$0x1]
        %v1460 = vld [vmem:[%s1457 + $0x2] sm:$0x1]
        %v1461 = vld [vmem:[%s1457 + $0x3] sm:$0x1]
        %v1462 = vld [vmem:[%s1457 + $0x4] sm:$0x1]
        %v1463 = vld [vmem:[%s1457 + $0x5] sm:$0x1]
        %v1464 = vld [vmem:[%s1457 + $0x6] sm:$0x1]
        %v1465 = vld [vmem:[%s1457 + $0x7] sm:$0x1]
        %v1474 = vlaneseq
        %v1475 = vshrl.u32 %v1474, 7
        %v1476 = vsub.s32 0, %v1475
        %v1477 = vrot.slane %v1458, %v1476
        %v1478 = vlaneseq
        %v1479 = vshrl.u32 %v1478, 7
        %v1480 = vsub.s32 0, %v1479
        %v1481 = vrot.slane %v1459, %v1480
        %v1482 = vlaneseq
        %v1483 = vshrl.u32 %v1482, 7
        %v1484 = vsub.s32 0, %v1483
        %v1485 = vrot.slane %v1460, %v1484
        %v1486 = vlaneseq
        %v1487 = vshrl.u32 %v1486, 7
        %v1488 = vsub.s32 0, %v1487
        %v1489 = vrot.slane %v1461, %v1488
        %v1490 = vlaneseq
        %v1491 = vshrl.u32 %v1490, 7
        %v1492 = vsub.s32 0, %v1491
        %v1493 = vrot.slane %v1462, %v1492
        %v1494 = vlaneseq
        %v1495 = vshrl.u32 %v1494, 7
        %v1496 = vsub.s32 0, %v1495
        %v1497 = vrot.slane %v1463, %v1496
        %v1498 = vlaneseq
        %v1499 = vshrl.u32 %v1498, 7
        %v1500 = vsub.s32 0, %v1499
        %v1501 = vrot.slane %v1464, %v1500
        %v1502 = vlaneseq
        %v1503 = vshrl.u32 %v1502, 7
        %v1504 = vsub.s32 0, %v1503
        %v1505 = vrot.slane %v1465, %v1504
        %1506 = vset.pattern.permute.xlu0 0
        %1507 = vperm.xlu0 %1506, %v1477
        %v1508 = vpop.permute.xlu0 %1507
        %1510 = vset.pattern.permute.xlu0 0
        %1511 = vperm.xlu0 %1510, %v1481
        %v1512 = vpop.permute.xlu0 %1511
        %1514 = vset.pattern.permute.xlu0 0
        %1515 = vperm.xlu0 %1514, %v1485
        %v1516 = vpop.permute.xlu0 %1515
        %1518 = vset.pattern.permute.xlu0 0
        %1519 = vperm.xlu0 %1518, %v1489
        %v1520 = vpop.permute.xlu0 %1519
        %1522 = vset.pattern.permute.xlu0 0
        %1523 = vperm.xlu0 %1522, %v1493
        %v1524 = vpop.permute.xlu0 %1523
        %1526 = vset.pattern.permute.xlu0 0
        %1527 = vperm.xlu0 %1526, %v1497
        %v1528 = vpop.permute.xlu0 %1527
        %1530 = vset.pattern.permute.xlu0 0
        %1531 = vperm.xlu0 %1530, %v1501
        %v1532 = vpop.permute.xlu0 %1531
        %1534 = vset.pattern.permute.xlu0 0
        %1535 = vperm.xlu0 %1534, %v1505
        %v1536 = vpop.permute.xlu0 %1535
        %v1538 = vmul.f32 %v1508, %v546
        %v1539 = vmul.f32 %v1512, %v546
        %v1540 = vmul.f32 %v1516, %v546
        %v1541 = vmul.f32 %v1520, %v546
        %v1542 = vmul.f32 %v1524, %v546
        %v1543 = vmul.f32 %v1528, %v546
        %v1544 = vmul.f32 %v1532, %v546
        %v1545 = vmul.f32 %v1536, %v546
        %1554 = vrot.lane.b32.xlu0 %v1538, 127
        %v1555 = vpop.permute.xlu0 %1554
        %1556 = vrot.lane.b32.xlu0 %v1539, 127
        %v1557 = vpop.permute.xlu0 %1556
        %1558 = vrot.lane.b32.xlu0 %v1540, 127
        %v1559 = vpop.permute.xlu0 %1558
        %1560 = vrot.lane.b32.xlu0 %v1541, 127
        %v1561 = vpop.permute.xlu0 %1560
        %1562 = vrot.lane.b32.xlu0 %v1542, 127
        %v1563 = vpop.permute.xlu0 %1562
        %1564 = vrot.lane.b32.xlu0 %v1543, 127
        %v1565 = vpop.permute.xlu0 %1564
        %1566 = vrot.lane.b32.xlu0 %v1544, 127
        %v1567 = vpop.permute.xlu0 %1566
        %1568 = vrot.lane.b32.xlu0 %v1545, 127
        %v1569 = vpop.permute.xlu0 %1568
        %v1578 = vadd.f32 %v1449, %v1555
        %v1579 = vadd.f32 %v1450, %v1557
        %v1580 = vadd.f32 %v1451, %v1559
        %v1581 = vadd.f32 %v1452, %v1561
        %v1582 = vadd.f32 %v1453, %v1563
        %v1583 = vadd.f32 %v1454, %v1565
        %v1584 = vadd.f32 %v1455, %v1567
        %v1585 = vadd.f32 %v1456, %v1569
        %s1586 = scalar_lea.vmem %s4, 80
        %v1587 = vld [vmem:[%s1586] sm:$0x1]
        %v1588 = vld [vmem:[%s1586 + $0x1] sm:$0x1]
        %v1589 = vld [vmem:[%s1586 + $0x2] sm:$0x1]
        %v1590 = vld [vmem:[%s1586 + $0x3] sm:$0x1]
        %v1591 = vld [vmem:[%s1586 + $0x4] sm:$0x1]
        %v1592 = vld [vmem:[%s1586 + $0x5] sm:$0x1]
        %v1593 = vld [vmem:[%s1586 + $0x6] sm:$0x1]
        %v1594 = vld [vmem:[%s1586 + $0x7] sm:$0x1]
        %v1603 = vlaneseq
        %v1604 = vshrl.u32 %v1603, 7
        %v1605 = vsub.s32 0, %v1604
        %v1606 = vrot.slane %v1587, %v1605
        %v1607 = vlaneseq
        %v1608 = vshrl.u32 %v1607, 7
        %v1609 = vsub.s32 0, %v1608
        %v1610 = vrot.slane %v1588, %v1609
        %v1611 = vlaneseq
        %v1612 = vshrl.u32 %v1611, 7
        %v1613 = vsub.s32 0, %v1612
        %v1614 = vrot.slane %v1589, %v1613
        %v1615 = vlaneseq
        %v1616 = vshrl.u32 %v1615, 7
        %v1617 = vsub.s32 0, %v1616
        %v1618 = vrot.slane %v1590, %v1617
        %v1619 = vlaneseq
        %v1620 = vshrl.u32 %v1619, 7
        %v1621 = vsub.s32 0, %v1620
        %v1622 = vrot.slane %v1591, %v1621
        %v1623 = vlaneseq
        %v1624 = vshrl.u32 %v1623, 7
        %v1625 = vsub.s32 0, %v1624
        %v1626 = vrot.slane %v1592, %v1625
        %v1627 = vlaneseq
        %v1628 = vshrl.u32 %v1627, 7
        %v1629 = vsub.s32 0, %v1628
        %v1630 = vrot.slane %v1593, %v1629
        %v1631 = vlaneseq
        %v1632 = vshrl.u32 %v1631, 7
        %v1633 = vsub.s32 0, %v1632
        %v1634 = vrot.slane %v1594, %v1633
        %1635 = vset.pattern.permute.xlu0 0
        %1636 = vperm.xlu0 %1635, %v1606
        %v1637 = vpop.permute.xlu0 %1636
        %1639 = vset.pattern.permute.xlu0 0
        %1640 = vperm.xlu0 %1639, %v1610
        %v1641 = vpop.permute.xlu0 %1640
        %1643 = vset.pattern.permute.xlu0 0
        %1644 = vperm.xlu0 %1643, %v1614
        %v1645 = vpop.permute.xlu0 %1644
        %1647 = vset.pattern.permute.xlu0 0
        %1648 = vperm.xlu0 %1647, %v1618
        %v1649 = vpop.permute.xlu0 %1648
        %1651 = vset.pattern.permute.xlu0 0
        %1652 = vperm.xlu0 %1651, %v1622
        %v1653 = vpop.permute.xlu0 %1652
        %1655 = vset.pattern.permute.xlu0 0
        %1656 = vperm.xlu0 %1655, %v1626
        %v1657 = vpop.permute.xlu0 %1656
        %1659 = vset.pattern.permute.xlu0 0
        %1660 = vperm.xlu0 %1659, %v1630
        %v1661 = vpop.permute.xlu0 %1660
        %1663 = vset.pattern.permute.xlu0 0
        %1664 = vperm.xlu0 %1663, %v1634
        %v1665 = vpop.permute.xlu0 %1664
        %v1667 = vmul.f32 %v1637, %v547
        %v1668 = vmul.f32 %v1641, %v547
        %v1669 = vmul.f32 %v1645, %v547
        %v1670 = vmul.f32 %v1649, %v547
        %v1671 = vmul.f32 %v1653, %v547
        %v1672 = vmul.f32 %v1657, %v547
        %v1673 = vmul.f32 %v1661, %v547
        %v1674 = vmul.f32 %v1665, %v547
        %1683 = vrot.lane.b32.xlu0 %v1667, 127
        %v1684 = vpop.permute.xlu0 %1683
        %1685 = vrot.lane.b32.xlu0 %v1668, 127
        %v1686 = vpop.permute.xlu0 %1685
        %1687 = vrot.lane.b32.xlu0 %v1669, 127
        %v1688 = vpop.permute.xlu0 %1687
        %1689 = vrot.lane.b32.xlu0 %v1670, 127
        %v1690 = vpop.permute.xlu0 %1689
        %1691 = vrot.lane.b32.xlu0 %v1671, 127
        %v1692 = vpop.permute.xlu0 %1691
        %1693 = vrot.lane.b32.xlu0 %v1672, 127
        %v1694 = vpop.permute.xlu0 %1693
        %1695 = vrot.lane.b32.xlu0 %v1673, 127
        %v1696 = vpop.permute.xlu0 %1695
        %1697 = vrot.lane.b32.xlu0 %v1674, 127
        %v1698 = vpop.permute.xlu0 %1697
        %v1707 = vadd.f32 %v1578, %v1684
        %v1708 = vadd.f32 %v1579, %v1686
        %v1709 = vadd.f32 %v1580, %v1688
        %v1710 = vadd.f32 %v1581, %v1690
        %v1711 = vadd.f32 %v1582, %v1692
        %v1712 = vadd.f32 %v1583, %v1694
        %v1713 = vadd.f32 %v1584, %v1696
        %v1714 = vadd.f32 %v1585, %v1698
        %s1715 = scalar_lea.vmem %s4, 88
        %v1716 = vld [vmem:[%s1715] sm:$0x1]
        %v1717 = vld [vmem:[%s1715 + $0x1] sm:$0x1]
        %v1718 = vld [vmem:[%s1715 + $0x2] sm:$0x1]
        %v1719 = vld [vmem:[%s1715 + $0x3] sm:$0x1]
        %v1720 = vld [vmem:[%s1715 + $0x4] sm:$0x1]
        %v1721 = vld [vmem:[%s1715 + $0x5] sm:$0x1]
        %v1722 = vld [vmem:[%s1715 + $0x6] sm:$0x1]
        %v1723 = vld [vmem:[%s1715 + $0x7] sm:$0x1]
        %v1732 = vlaneseq
        %v1733 = vshrl.u32 %v1732, 7
        %v1734 = vsub.s32 0, %v1733
        %v1735 = vrot.slane %v1716, %v1734
        %v1736 = vlaneseq
        %v1737 = vshrl.u32 %v1736, 7
        %v1738 = vsub.s32 0, %v1737
        %v1739 = vrot.slane %v1717, %v1738
        %v1740 = vlaneseq
        %v1741 = vshrl.u32 %v1740, 7
        %v1742 = vsub.s32 0, %v1741
        %v1743 = vrot.slane %v1718, %v1742
        %v1744 = vlaneseq
        %v1745 = vshrl.u32 %v1744, 7
        %v1746 = vsub.s32 0, %v1745
        %v1747 = vrot.slane %v1719, %v1746
        %v1748 = vlaneseq
        %v1749 = vshrl.u32 %v1748, 7
        %v1750 = vsub.s32 0, %v1749
        %v1751 = vrot.slane %v1720, %v1750
        %v1752 = vlaneseq
        %v1753 = vshrl.u32 %v1752, 7
        %v1754 = vsub.s32 0, %v1753
        %v1755 = vrot.slane %v1721, %v1754
        %v1756 = vlaneseq
        %v1757 = vshrl.u32 %v1756, 7
        %v1758 = vsub.s32 0, %v1757
        %v1759 = vrot.slane %v1722, %v1758
        %v1760 = vlaneseq
        %v1761 = vshrl.u32 %v1760, 7
        %v1762 = vsub.s32 0, %v1761
        %v1763 = vrot.slane %v1723, %v1762
        %1764 = vset.pattern.permute.xlu0 0
        %1765 = vperm.xlu0 %1764, %v1735
        %v1766 = vpop.permute.xlu0 %1765
        %1768 = vset.pattern.permute.xlu0 0
        %1769 = vperm.xlu0 %1768, %v1739
        %v1770 = vpop.permute.xlu0 %1769
        %1772 = vset.pattern.permute.xlu0 0
        %1773 = vperm.xlu0 %1772, %v1743
        %v1774 = vpop.permute.xlu0 %1773
        %1776 = vset.pattern.permute.xlu0 0
        %1777 = vperm.xlu0 %1776, %v1747
        %v1778 = vpop.permute.xlu0 %1777
        %1780 = vset.pattern.permute.xlu0 0
        %1781 = vperm.xlu0 %1780, %v1751
        %v1782 = vpop.permute.xlu0 %1781
        %1784 = vset.pattern.permute.xlu0 0
        %1785 = vperm.xlu0 %1784, %v1755
        %v1786 = vpop.permute.xlu0 %1785
        %1788 = vset.pattern.permute.xlu0 0
        %1789 = vperm.xlu0 %1788, %v1759
        %v1790 = vpop.permute.xlu0 %1789
        %1792 = vset.pattern.permute.xlu0 0
        %1793 = vperm.xlu0 %1792, %v1763
        %v1794 = vpop.permute.xlu0 %1793
        %v1796 = vmul.f32 %v1766, %v548
        %v1797 = vmul.f32 %v1770, %v548
        %v1798 = vmul.f32 %v1774, %v548
        %v1799 = vmul.f32 %v1778, %v548
        %v1800 = vmul.f32 %v1782, %v548
        %v1801 = vmul.f32 %v1786, %v548
        %v1802 = vmul.f32 %v1790, %v548
        %v1803 = vmul.f32 %v1794, %v548
        %1812 = vrot.lane.b32.xlu0 %v1796, 127
        %v1813 = vpop.permute.xlu0 %1812
        %1814 = vrot.lane.b32.xlu0 %v1797, 127
        %v1815 = vpop.permute.xlu0 %1814
        %1816 = vrot.lane.b32.xlu0 %v1798, 127
        %v1817 = vpop.permute.xlu0 %1816
        %1818 = vrot.lane.b32.xlu0 %v1799, 127
        %v1819 = vpop.permute.xlu0 %1818
        %1820 = vrot.lane.b32.xlu0 %v1800, 127
        %v1821 = vpop.permute.xlu0 %1820
        %1822 = vrot.lane.b32.xlu0 %v1801, 127
        %v1823 = vpop.permute.xlu0 %1822
        %1824 = vrot.lane.b32.xlu0 %v1802, 127
        %v1825 = vpop.permute.xlu0 %1824
        %1826 = vrot.lane.b32.xlu0 %v1803, 127
        %v1827 = vpop.permute.xlu0 %1826
        %v1836 = vadd.f32 %v1707, %v1813
        %v1837 = vadd.f32 %v1708, %v1815
        %v1838 = vadd.f32 %v1709, %v1817
        %v1839 = vadd.f32 %v1710, %v1819
        %v1840 = vadd.f32 %v1711, %v1821
        %v1841 = vadd.f32 %v1712, %v1823
        %v1842 = vadd.f32 %v1713, %v1825
        %v1843 = vadd.f32 %v1714, %v1827
        %v1844 = vld [vmem:[%s498] sm:$0x3]
        %v1845 = vld [vmem:[%s498 + $0x4] sm:$0x3]
        %v1846 = vld [vmem:[%s498 + $0x8] sm:$0x3]
        %v1847 = vld [vmem:[%s498 + $0xc] sm:$0x3]
        %s1848 = scalar_lea.vmem %s4, 96
        %v1849 = vld [vmem:[%s1848] sm:$0x1]
        %v1850 = vld [vmem:[%s1848 + $0x1] sm:$0x1]
        %v1851 = vld [vmem:[%s1848 + $0x2] sm:$0x1]
        %v1852 = vld [vmem:[%s1848 + $0x3] sm:$0x1]
        %v1853 = vld [vmem:[%s1848 + $0x4] sm:$0x1]
        %v1854 = vld [vmem:[%s1848 + $0x5] sm:$0x1]
        %v1855 = vld [vmem:[%s1848 + $0x6] sm:$0x1]
        %v1856 = vld [vmem:[%s1848 + $0x7] sm:$0x1]
        %v1865 = vlaneseq
        %v1866 = vshrl.u32 %v1865, 7
        %v1867 = vsub.s32 0, %v1866
        %v1868 = vrot.slane %v1849, %v1867
        %v1869 = vlaneseq
        %v1870 = vshrl.u32 %v1869, 7
        %v1871 = vsub.s32 0, %v1870
        %v1872 = vrot.slane %v1850, %v1871
        %v1873 = vlaneseq
        %v1874 = vshrl.u32 %v1873, 7
        %v1875 = vsub.s32 0, %v1874
        %v1876 = vrot.slane %v1851, %v1875
        %v1877 = vlaneseq
        %v1878 = vshrl.u32 %v1877, 7
        %v1879 = vsub.s32 0, %v1878
        %v1880 = vrot.slane %v1852, %v1879
        %v1881 = vlaneseq
        %v1882 = vshrl.u32 %v1881, 7
        %v1883 = vsub.s32 0, %v1882
        %v1884 = vrot.slane %v1853, %v1883
        %v1885 = vlaneseq
        %v1886 = vshrl.u32 %v1885, 7
        %v1887 = vsub.s32 0, %v1886
        %v1888 = vrot.slane %v1854, %v1887
        %v1889 = vlaneseq
        %v1890 = vshrl.u32 %v1889, 7
        %v1891 = vsub.s32 0, %v1890
        %v1892 = vrot.slane %v1855, %v1891
        %v1893 = vlaneseq
        %v1894 = vshrl.u32 %v1893, 7
        %v1895 = vsub.s32 0, %v1894
        %v1896 = vrot.slane %v1856, %v1895
        %1897 = vset.pattern.permute.xlu0 0
        %1898 = vperm.xlu0 %1897, %v1868
        %v1899 = vpop.permute.xlu0 %1898
        %1901 = vset.pattern.permute.xlu0 0
        %1902 = vperm.xlu0 %1901, %v1872
        %v1903 = vpop.permute.xlu0 %1902
        %1905 = vset.pattern.permute.xlu0 0
        %1906 = vperm.xlu0 %1905, %v1876
        %v1907 = vpop.permute.xlu0 %1906
        %1909 = vset.pattern.permute.xlu0 0
        %1910 = vperm.xlu0 %1909, %v1880
        %v1911 = vpop.permute.xlu0 %1910
        %1913 = vset.pattern.permute.xlu0 0
        %1914 = vperm.xlu0 %1913, %v1884
        %v1915 = vpop.permute.xlu0 %1914
        %1917 = vset.pattern.permute.xlu0 0
        %1918 = vperm.xlu0 %1917, %v1888
        %v1919 = vpop.permute.xlu0 %1918
        %1921 = vset.pattern.permute.xlu0 0
        %1922 = vperm.xlu0 %1921, %v1892
        %v1923 = vpop.permute.xlu0 %1922
        %1925 = vset.pattern.permute.xlu0 0
        %1926 = vperm.xlu0 %1925, %v1896
        %v1927 = vpop.permute.xlu0 %1926
        %v1929 = vmul.f32 %v1899, %v1844
        %v1930 = vmul.f32 %v1903, %v1844
        %v1931 = vmul.f32 %v1907, %v1844
        %v1932 = vmul.f32 %v1911, %v1844
        %v1933 = vmul.f32 %v1915, %v1844
        %v1934 = vmul.f32 %v1919, %v1844
        %v1935 = vmul.f32 %v1923, %v1844
        %v1936 = vmul.f32 %v1927, %v1844
        %v1937 = vadd.f32 %v1836, %v1929
        %v1938 = vadd.f32 %v1837, %v1930
        %v1939 = vadd.f32 %v1838, %v1931
        %v1940 = vadd.f32 %v1839, %v1932
        %v1941 = vadd.f32 %v1840, %v1933
        %v1942 = vadd.f32 %v1841, %v1934
        %v1943 = vadd.f32 %v1842, %v1935
        %v1944 = vadd.f32 %v1843, %v1936
        %s1945 = scalar_lea.vmem %s4, 104
        %v1946 = vld [vmem:[%s1945] sm:$0x1]
        %v1947 = vld [vmem:[%s1945 + $0x1] sm:$0x1]
        %v1948 = vld [vmem:[%s1945 + $0x2] sm:$0x1]
        %v1949 = vld [vmem:[%s1945 + $0x3] sm:$0x1]
        %v1950 = vld [vmem:[%s1945 + $0x4] sm:$0x1]
        %v1951 = vld [vmem:[%s1945 + $0x5] sm:$0x1]
        %v1952 = vld [vmem:[%s1945 + $0x6] sm:$0x1]
        %v1953 = vld [vmem:[%s1945 + $0x7] sm:$0x1]
        %v1962 = vlaneseq
        %v1963 = vshrl.u32 %v1962, 7
        %v1964 = vsub.s32 0, %v1963
        %v1965 = vrot.slane %v1946, %v1964
        %v1966 = vlaneseq
        %v1967 = vshrl.u32 %v1966, 7
        %v1968 = vsub.s32 0, %v1967
        %v1969 = vrot.slane %v1947, %v1968
        %v1970 = vlaneseq
        %v1971 = vshrl.u32 %v1970, 7
        %v1972 = vsub.s32 0, %v1971
        %v1973 = vrot.slane %v1948, %v1972
        %v1974 = vlaneseq
        %v1975 = vshrl.u32 %v1974, 7
        %v1976 = vsub.s32 0, %v1975
        %v1977 = vrot.slane %v1949, %v1976
        %v1978 = vlaneseq
        %v1979 = vshrl.u32 %v1978, 7
        %v1980 = vsub.s32 0, %v1979
        %v1981 = vrot.slane %v1950, %v1980
        %v1982 = vlaneseq
        %v1983 = vshrl.u32 %v1982, 7
        %v1984 = vsub.s32 0, %v1983
        %v1985 = vrot.slane %v1951, %v1984
        %v1986 = vlaneseq
        %v1987 = vshrl.u32 %v1986, 7
        %v1988 = vsub.s32 0, %v1987
        %v1989 = vrot.slane %v1952, %v1988
        %v1990 = vlaneseq
        %v1991 = vshrl.u32 %v1990, 7
        %v1992 = vsub.s32 0, %v1991
        %v1993 = vrot.slane %v1953, %v1992
        %1994 = vset.pattern.permute.xlu0 0
        %1995 = vperm.xlu0 %1994, %v1965
        %v1996 = vpop.permute.xlu0 %1995
        %1998 = vset.pattern.permute.xlu0 0
        %1999 = vperm.xlu0 %1998, %v1969
        %v2000 = vpop.permute.xlu0 %1999
        %2002 = vset.pattern.permute.xlu0 0
        %2003 = vperm.xlu0 %2002, %v1973
        %v2004 = vpop.permute.xlu0 %2003
        %2006 = vset.pattern.permute.xlu0 0
        %2007 = vperm.xlu0 %2006, %v1977
        %v2008 = vpop.permute.xlu0 %2007
        %2010 = vset.pattern.permute.xlu0 0
        %2011 = vperm.xlu0 %2010, %v1981
        %v2012 = vpop.permute.xlu0 %2011
        %2014 = vset.pattern.permute.xlu0 0
        %2015 = vperm.xlu0 %2014, %v1985
        %v2016 = vpop.permute.xlu0 %2015
        %2018 = vset.pattern.permute.xlu0 0
        %2019 = vperm.xlu0 %2018, %v1989
        %v2020 = vpop.permute.xlu0 %2019
        %2022 = vset.pattern.permute.xlu0 0
        %2023 = vperm.xlu0 %2022, %v1993
        %v2024 = vpop.permute.xlu0 %2023
        %v2026 = vmul.f32 %v1996, %v1845
        %v2027 = vmul.f32 %v2000, %v1845
        %v2028 = vmul.f32 %v2004, %v1845
        %v2029 = vmul.f32 %v2008, %v1845
        %v2030 = vmul.f32 %v2012, %v1845
        %v2031 = vmul.f32 %v2016, %v1845
        %v2032 = vmul.f32 %v2020, %v1845
        %v2033 = vmul.f32 %v2024, %v1845
        %v2034 = vadd.f32 %v1937, %v2026
        %v2035 = vadd.f32 %v1938, %v2027
        %v2036 = vadd.f32 %v1939, %v2028
        %v2037 = vadd.f32 %v1940, %v2029
        %v2038 = vadd.f32 %v1941, %v2030
        %v2039 = vadd.f32 %v1942, %v2031
        %v2040 = vadd.f32 %v1943, %v2032
        %v2041 = vadd.f32 %v1944, %v2033
        %s2042 = scalar_lea.vmem %s4, 112
        %v2043 = vld [vmem:[%s2042] sm:$0x1]
        %v2044 = vld [vmem:[%s2042 + $0x1] sm:$0x1]
        %v2045 = vld [vmem:[%s2042 + $0x2] sm:$0x1]
        %v2046 = vld [vmem:[%s2042 + $0x3] sm:$0x1]
        %v2047 = vld [vmem:[%s2042 + $0x4] sm:$0x1]
        %v2048 = vld [vmem:[%s2042 + $0x5] sm:$0x1]
        %v2049 = vld [vmem:[%s2042 + $0x6] sm:$0x1]
        %v2050 = vld [vmem:[%s2042 + $0x7] sm:$0x1]
        %v2059 = vlaneseq
        %v2060 = vshrl.u32 %v2059, 7
        %v2061 = vsub.s32 0, %v2060
        %v2062 = vrot.slane %v2043, %v2061
        %v2063 = vlaneseq
        %v2064 = vshrl.u32 %v2063, 7
        %v2065 = vsub.s32 0, %v2064
        %v2066 = vrot.slane %v2044, %v2065
        %v2067 = vlaneseq
        %v2068 = vshrl.u32 %v2067, 7
        %v2069 = vsub.s32 0, %v2068
        %v2070 = vrot.slane %v2045, %v2069
        %v2071 = vlaneseq
        %v2072 = vshrl.u32 %v2071, 7
        %v2073 = vsub.s32 0, %v2072
        %v2074 = vrot.slane %v2046, %v2073
        %v2075 = vlaneseq
        %v2076 = vshrl.u32 %v2075, 7
        %v2077 = vsub.s32 0, %v2076
        %v2078 = vrot.slane %v2047, %v2077
        %v2079 = vlaneseq
        %v2080 = vshrl.u32 %v2079, 7
        %v2081 = vsub.s32 0, %v2080
        %v2082 = vrot.slane %v2048, %v2081
        %v2083 = vlaneseq
        %v2084 = vshrl.u32 %v2083, 7
        %v2085 = vsub.s32 0, %v2084
        %v2086 = vrot.slane %v2049, %v2085
        %v2087 = vlaneseq
        %v2088 = vshrl.u32 %v2087, 7
        %v2089 = vsub.s32 0, %v2088
        %v2090 = vrot.slane %v2050, %v2089
        %2091 = vset.pattern.permute.xlu0 0
        %2092 = vperm.xlu0 %2091, %v2062
        %v2093 = vpop.permute.xlu0 %2092
        %2095 = vset.pattern.permute.xlu0 0
        %2096 = vperm.xlu0 %2095, %v2066
        %v2097 = vpop.permute.xlu0 %2096
        %2099 = vset.pattern.permute.xlu0 0
        %2100 = vperm.xlu0 %2099, %v2070
        %v2101 = vpop.permute.xlu0 %2100
        %2103 = vset.pattern.permute.xlu0 0
        %2104 = vperm.xlu0 %2103, %v2074
        %v2105 = vpop.permute.xlu0 %2104
        %2107 = vset.pattern.permute.xlu0 0
        %2108 = vperm.xlu0 %2107, %v2078
        %v2109 = vpop.permute.xlu0 %2108
        %2111 = vset.pattern.permute.xlu0 0
        %2112 = vperm.xlu0 %2111, %v2082
        %v2113 = vpop.permute.xlu0 %2112
        %2115 = vset.pattern.permute.xlu0 0
        %2116 = vperm.xlu0 %2115, %v2086
        %v2117 = vpop.permute.xlu0 %2116
        %2119 = vset.pattern.permute.xlu0 0
        %2120 = vperm.xlu0 %2119, %v2090
        %v2121 = vpop.permute.xlu0 %2120
        %v2123 = vmul.f32 %v2093, %v1846
        %v2124 = vmul.f32 %v2097, %v1846
        %v2125 = vmul.f32 %v2101, %v1846
        %v2126 = vmul.f32 %v2105, %v1846
        %v2127 = vmul.f32 %v2109, %v1846
        %v2128 = vmul.f32 %v2113, %v1846
        %v2129 = vmul.f32 %v2117, %v1846
        %v2130 = vmul.f32 %v2121, %v1846
        %v2131 = vadd.f32 %v2034, %v2123
        %v2132 = vadd.f32 %v2035, %v2124
        %v2133 = vadd.f32 %v2036, %v2125
        %v2134 = vadd.f32 %v2037, %v2126
        %v2135 = vadd.f32 %v2038, %v2127
        %v2136 = vadd.f32 %v2039, %v2128
        %v2137 = vadd.f32 %v2040, %v2129
        %v2138 = vadd.f32 %v2041, %v2130
        %s2139 = scalar_lea.vmem %s4, 120
        %v2140 = vld [vmem:[%s2139] sm:$0x1]
        %v2141 = vld [vmem:[%s2139 + $0x1] sm:$0x1]
        %v2142 = vld [vmem:[%s2139 + $0x2] sm:$0x1]
        %v2143 = vld [vmem:[%s2139 + $0x3] sm:$0x1]
        %v2144 = vld [vmem:[%s2139 + $0x4] sm:$0x1]
        %v2145 = vld [vmem:[%s2139 + $0x5] sm:$0x1]
        %v2146 = vld [vmem:[%s2139 + $0x6] sm:$0x1]
        %v2147 = vld [vmem:[%s2139 + $0x7] sm:$0x1]
        %v2156 = vlaneseq
        %v2157 = vshrl.u32 %v2156, 7
        %v2158 = vsub.s32 0, %v2157
        %v2159 = vrot.slane %v2140, %v2158
        %v2160 = vlaneseq
        %v2161 = vshrl.u32 %v2160, 7
        %v2162 = vsub.s32 0, %v2161
        %v2163 = vrot.slane %v2141, %v2162
        %v2164 = vlaneseq
        %v2165 = vshrl.u32 %v2164, 7
        %v2166 = vsub.s32 0, %v2165
        %v2167 = vrot.slane %v2142, %v2166
        %v2168 = vlaneseq
        %v2169 = vshrl.u32 %v2168, 7
        %v2170 = vsub.s32 0, %v2169
        %v2171 = vrot.slane %v2143, %v2170
        %v2172 = vlaneseq
        %v2173 = vshrl.u32 %v2172, 7
        %v2174 = vsub.s32 0, %v2173
        %v2175 = vrot.slane %v2144, %v2174
        %v2176 = vlaneseq
        %v2177 = vshrl.u32 %v2176, 7
        %v2178 = vsub.s32 0, %v2177
        %v2179 = vrot.slane %v2145, %v2178
        %v2180 = vlaneseq
        %v2181 = vshrl.u32 %v2180, 7
        %v2182 = vsub.s32 0, %v2181
        %v2183 = vrot.slane %v2146, %v2182
        %v2184 = vlaneseq
        %v2185 = vshrl.u32 %v2184, 7
        %v2186 = vsub.s32 0, %v2185
        %v2187 = vrot.slane %v2147, %v2186
        %2188 = vset.pattern.permute.xlu0 0
        %2189 = vperm.xlu0 %2188, %v2159
        %v2190 = vpop.permute.xlu0 %2189
        %2192 = vset.pattern.permute.xlu0 0
        %2193 = vperm.xlu0 %2192, %v2163
        %v2194 = vpop.permute.xlu0 %2193
        %2196 = vset.pattern.permute.xlu0 0
        %2197 = vperm.xlu0 %2196, %v2167
        %v2198 = vpop.permute.xlu0 %2197
        %2200 = vset.pattern.permute.xlu0 0
        %2201 = vperm.xlu0 %2200, %v2171
        %v2202 = vpop.permute.xlu0 %2201
        %2204 = vset.pattern.permute.xlu0 0
        %2205 = vperm.xlu0 %2204, %v2175
        %v2206 = vpop.permute.xlu0 %2205
        %2208 = vset.pattern.permute.xlu0 0
        %2209 = vperm.xlu0 %2208, %v2179
        %v2210 = vpop.permute.xlu0 %2209
        %2212 = vset.pattern.permute.xlu0 0
        %2213 = vperm.xlu0 %2212, %v2183
        %v2214 = vpop.permute.xlu0 %2213
        %2216 = vset.pattern.permute.xlu0 0
        %2217 = vperm.xlu0 %2216, %v2187
        %v2218 = vpop.permute.xlu0 %2217
        %v2220 = vmul.f32 %v2190, %v1847
        %v2221 = vmul.f32 %v2194, %v1847
        %v2222 = vmul.f32 %v2198, %v1847
        %v2223 = vmul.f32 %v2202, %v1847
        %v2224 = vmul.f32 %v2206, %v1847
        %v2225 = vmul.f32 %v2210, %v1847
        %v2226 = vmul.f32 %v2214, %v1847
        %v2227 = vmul.f32 %v2218, %v1847
        %v2228 = vadd.f32 %v2131, %v2220
        %v2229 = vadd.f32 %v2132, %v2221
        %v2230 = vadd.f32 %v2133, %v2222
        %v2231 = vadd.f32 %v2134, %v2223
        %v2232 = vadd.f32 %v2135, %v2224
        %v2233 = vadd.f32 %v2136, %v2225
        %v2234 = vadd.f32 %v2137, %v2226
        %v2235 = vadd.f32 %v2138, %v2227
        %v2236 = vld [vmem:[%s505] sm:$0x3]
        %v2237 = vld [vmem:[%s505 + $0x4] sm:$0x3]
        %v2238 = vld [vmem:[%s505 + $0x8] sm:$0x3]
        %v2239 = vld [vmem:[%s505 + $0xc] sm:$0x3]
        %s2240 = scalar_lea.vmem %s4, 128
        %v2241 = vld [vmem:[%s2240] sm:$0x1]
        %v2242 = vld [vmem:[%s2240 + $0x1] sm:$0x1]
        %v2243 = vld [vmem:[%s2240 + $0x2] sm:$0x1]
        %v2244 = vld [vmem:[%s2240 + $0x3] sm:$0x1]
        %v2245 = vld [vmem:[%s2240 + $0x4] sm:$0x1]
        %v2246 = vld [vmem:[%s2240 + $0x5] sm:$0x1]
        %v2247 = vld [vmem:[%s2240 + $0x6] sm:$0x1]
        %v2248 = vld [vmem:[%s2240 + $0x7] sm:$0x1]
        %v2257 = vlaneseq
        %v2258 = vshrl.u32 %v2257, 7
        %v2259 = vsub.s32 0, %v2258
        %v2260 = vrot.slane %v2241, %v2259
        %v2261 = vlaneseq
        %v2262 = vshrl.u32 %v2261, 7
        %v2263 = vsub.s32 0, %v2262
        %v2264 = vrot.slane %v2242, %v2263
        %v2265 = vlaneseq
        %v2266 = vshrl.u32 %v2265, 7
        %v2267 = vsub.s32 0, %v2266
        %v2268 = vrot.slane %v2243, %v2267
        %v2269 = vlaneseq
        %v2270 = vshrl.u32 %v2269, 7
        %v2271 = vsub.s32 0, %v2270
        %v2272 = vrot.slane %v2244, %v2271
        %v2273 = vlaneseq
        %v2274 = vshrl.u32 %v2273, 7
        %v2275 = vsub.s32 0, %v2274
        %v2276 = vrot.slane %v2245, %v2275
        %v2277 = vlaneseq
        %v2278 = vshrl.u32 %v2277, 7
        %v2279 = vsub.s32 0, %v2278
        %v2280 = vrot.slane %v2246, %v2279
        %v2281 = vlaneseq
        %v2282 = vshrl.u32 %v2281, 7
        %v2283 = vsub.s32 0, %v2282
        %v2284 = vrot.slane %v2247, %v2283
        %v2285 = vlaneseq
        %v2286 = vshrl.u32 %v2285, 7
        %v2287 = vsub.s32 0, %v2286
        %v2288 = vrot.slane %v2248, %v2287
        %2289 = vset.pattern.permute.xlu0 0
        %2290 = vperm.xlu0 %2289, %v2260
        %v2291 = vpop.permute.xlu0 %2290
        %2293 = vset.pattern.permute.xlu0 0
        %2294 = vperm.xlu0 %2293, %v2264
        %v2295 = vpop.permute.xlu0 %2294
        %2297 = vset.pattern.permute.xlu0 0
        %2298 = vperm.xlu0 %2297, %v2268
        %v2299 = vpop.permute.xlu0 %2298
        %2301 = vset.pattern.permute.xlu0 0
        %2302 = vperm.xlu0 %2301, %v2272
        %v2303 = vpop.permute.xlu0 %2302
        %2305 = vset.pattern.permute.xlu0 0
        %2306 = vperm.xlu0 %2305, %v2276
        %v2307 = vpop.permute.xlu0 %2306
        %2309 = vset.pattern.permute.xlu0 0
        %2310 = vperm.xlu0 %2309, %v2280
        %v2311 = vpop.permute.xlu0 %2310
        %2313 = vset.pattern.permute.xlu0 0
        %2314 = vperm.xlu0 %2313, %v2284
        %v2315 = vpop.permute.xlu0 %2314
        %2317 = vset.pattern.permute.xlu0 0
        %2318 = vperm.xlu0 %2317, %v2288
        %v2319 = vpop.permute.xlu0 %2318
        %v2321 = vmul.f32 %v2291, %v2236
        %v2322 = vmul.f32 %v2295, %v2236
        %v2323 = vmul.f32 %v2299, %v2236
        %v2324 = vmul.f32 %v2303, %v2236
        %v2325 = vmul.f32 %v2307, %v2236
        %v2326 = vmul.f32 %v2311, %v2236
        %v2327 = vmul.f32 %v2315, %v2236
        %v2328 = vmul.f32 %v2319, %v2236
        %v2329 = vadd.f32 %v2228, %v2321
        %v2330 = vadd.f32 %v2229, %v2322
        %v2331 = vadd.f32 %v2230, %v2323
        %v2332 = vadd.f32 %v2231, %v2324
        %v2333 = vadd.f32 %v2232, %v2325
        %v2334 = vadd.f32 %v2233, %v2326
        %v2335 = vadd.f32 %v2234, %v2327
        %v2336 = vadd.f32 %v2235, %v2328
        %s2337 = scalar_lea.vmem %s4, 136
        %v2338 = vld [vmem:[%s2337] sm:$0x1]
        %v2339 = vld [vmem:[%s2337 + $0x1] sm:$0x1]
        %v2340 = vld [vmem:[%s2337 + $0x2] sm:$0x1]
        %v2341 = vld [vmem:[%s2337 + $0x3] sm:$0x1]
        %v2342 = vld [vmem:[%s2337 + $0x4] sm:$0x1]
        %v2343 = vld [vmem:[%s2337 + $0x5] sm:$0x1]
        %v2344 = vld [vmem:[%s2337 + $0x6] sm:$0x1]
        %v2345 = vld [vmem:[%s2337 + $0x7] sm:$0x1]
        %v2354 = vlaneseq
        %v2355 = vshrl.u32 %v2354, 7
        %v2356 = vsub.s32 0, %v2355
        %v2357 = vrot.slane %v2338, %v2356
        %v2358 = vlaneseq
        %v2359 = vshrl.u32 %v2358, 7
        %v2360 = vsub.s32 0, %v2359
        %v2361 = vrot.slane %v2339, %v2360
        %v2362 = vlaneseq
        %v2363 = vshrl.u32 %v2362, 7
        %v2364 = vsub.s32 0, %v2363
        %v2365 = vrot.slane %v2340, %v2364
        %v2366 = vlaneseq
        %v2367 = vshrl.u32 %v2366, 7
        %v2368 = vsub.s32 0, %v2367
        %v2369 = vrot.slane %v2341, %v2368
        %v2370 = vlaneseq
        %v2371 = vshrl.u32 %v2370, 7
        %v2372 = vsub.s32 0, %v2371
        %v2373 = vrot.slane %v2342, %v2372
        %v2374 = vlaneseq
        %v2375 = vshrl.u32 %v2374, 7
        %v2376 = vsub.s32 0, %v2375
        %v2377 = vrot.slane %v2343, %v2376
        %v2378 = vlaneseq
        %v2379 = vshrl.u32 %v2378, 7
        %v2380 = vsub.s32 0, %v2379
        %v2381 = vrot.slane %v2344, %v2380
        %v2382 = vlaneseq
        %v2383 = vshrl.u32 %v2382, 7
        %v2384 = vsub.s32 0, %v2383
        %v2385 = vrot.slane %v2345, %v2384
        %2386 = vset.pattern.permute.xlu0 0
        %2387 = vperm.xlu0 %2386, %v2357
        %v2388 = vpop.permute.xlu0 %2387
        %2390 = vset.pattern.permute.xlu0 0
        %2391 = vperm.xlu0 %2390, %v2361
        %v2392 = vpop.permute.xlu0 %2391
        %2394 = vset.pattern.permute.xlu0 0
        %2395 = vperm.xlu0 %2394, %v2365
        %v2396 = vpop.permute.xlu0 %2395
        %2398 = vset.pattern.permute.xlu0 0
        %2399 = vperm.xlu0 %2398, %v2369
        %v2400 = vpop.permute.xlu0 %2399
        %2402 = vset.pattern.permute.xlu0 0
        %2403 = vperm.xlu0 %2402, %v2373
        %v2404 = vpop.permute.xlu0 %2403
        %2406 = vset.pattern.permute.xlu0 0
        %2407 = vperm.xlu0 %2406, %v2377
        %v2408 = vpop.permute.xlu0 %2407
        %2410 = vset.pattern.permute.xlu0 0
        %2411 = vperm.xlu0 %2410, %v2381
        %v2412 = vpop.permute.xlu0 %2411
        %2414 = vset.pattern.permute.xlu0 0
        %2415 = vperm.xlu0 %2414, %v2385
        %v2416 = vpop.permute.xlu0 %2415
        %v2418 = vmul.f32 %v2388, %v2237
        %v2419 = vmul.f32 %v2392, %v2237
        %v2420 = vmul.f32 %v2396, %v2237
        %v2421 = vmul.f32 %v2400, %v2237
        %v2422 = vmul.f32 %v2404, %v2237
        %v2423 = vmul.f32 %v2408, %v2237
        %v2424 = vmul.f32 %v2412, %v2237
        %v2425 = vmul.f32 %v2416, %v2237
        %v2426 = vadd.f32 %v2329, %v2418
        %v2427 = vadd.f32 %v2330, %v2419
        %v2428 = vadd.f32 %v2331, %v2420
        %v2429 = vadd.f32 %v2332, %v2421
        %v2430 = vadd.f32 %v2333, %v2422
        %v2431 = vadd.f32 %v2334, %v2423
        %v2432 = vadd.f32 %v2335, %v2424
        %v2433 = vadd.f32 %v2336, %v2425
        %s2434 = scalar_lea.vmem %s4, 144
        %v2435 = vld [vmem:[%s2434] sm:$0x1]
        %v2436 = vld [vmem:[%s2434 + $0x1] sm:$0x1]
        %v2437 = vld [vmem:[%s2434 + $0x2] sm:$0x1]
        %v2438 = vld [vmem:[%s2434 + $0x3] sm:$0x1]
        %v2439 = vld [vmem:[%s2434 + $0x4] sm:$0x1]
        %v2440 = vld [vmem:[%s2434 + $0x5] sm:$0x1]
        %v2441 = vld [vmem:[%s2434 + $0x6] sm:$0x1]
        %v2442 = vld [vmem:[%s2434 + $0x7] sm:$0x1]
        %v2451 = vlaneseq
        %v2452 = vshrl.u32 %v2451, 7
        %v2453 = vsub.s32 0, %v2452
        %v2454 = vrot.slane %v2435, %v2453
        %v2455 = vlaneseq
        %v2456 = vshrl.u32 %v2455, 7
        %v2457 = vsub.s32 0, %v2456
        %v2458 = vrot.slane %v2436, %v2457
        %v2459 = vlaneseq
        %v2460 = vshrl.u32 %v2459, 7
        %v2461 = vsub.s32 0, %v2460
        %v2462 = vrot.slane %v2437, %v2461
        %v2463 = vlaneseq
        %v2464 = vshrl.u32 %v2463, 7
        %v2465 = vsub.s32 0, %v2464
        %v2466 = vrot.slane %v2438, %v2465
        %v2467 = vlaneseq
        %v2468 = vshrl.u32 %v2467, 7
        %v2469 = vsub.s32 0, %v2468
        %v2470 = vrot.slane %v2439, %v2469
        %v2471 = vlaneseq
        %v2472 = vshrl.u32 %v2471, 7
        %v2473 = vsub.s32 0, %v2472
        %v2474 = vrot.slane %v2440, %v2473
        %v2475 = vlaneseq
        %v2476 = vshrl.u32 %v2475, 7
        %v2477 = vsub.s32 0, %v2476
        %v2478 = vrot.slane %v2441, %v2477
        %v2479 = vlaneseq
        %v2480 = vshrl.u32 %v2479, 7
        %v2481 = vsub.s32 0, %v2480
        %v2482 = vrot.slane %v2442, %v2481
        %2483 = vset.pattern.permute.xlu0 0
        %2484 = vperm.xlu0 %2483, %v2454
        %v2485 = vpop.permute.xlu0 %2484
        %2487 = vset.pattern.permute.xlu0 0
        %2488 = vperm.xlu0 %2487, %v2458
        %v2489 = vpop.permute.xlu0 %2488
        %2491 = vset.pattern.permute.xlu0 0
        %2492 = vperm.xlu0 %2491, %v2462
        %v2493 = vpop.permute.xlu0 %2492
        %2495 = vset.pattern.permute.xlu0 0
        %2496 = vperm.xlu0 %2495, %v2466
        %v2497 = vpop.permute.xlu0 %2496
        %2499 = vset.pattern.permute.xlu0 0
        %2500 = vperm.xlu0 %2499, %v2470
        %v2501 = vpop.permute.xlu0 %2500
        %2503 = vset.pattern.permute.xlu0 0
        %2504 = vperm.xlu0 %2503, %v2474
        %v2505 = vpop.permute.xlu0 %2504
        %2507 = vset.pattern.permute.xlu0 0
        %2508 = vperm.xlu0 %2507, %v2478
        %v2509 = vpop.permute.xlu0 %2508
        %2511 = vset.pattern.permute.xlu0 0
        %2512 = vperm.xlu0 %2511, %v2482
        %v2513 = vpop.permute.xlu0 %2512
        %v2515 = vmul.f32 %v2485, %v2238
        %v2516 = vmul.f32 %v2489, %v2238
        %v2517 = vmul.f32 %v2493, %v2238
        %v2518 = vmul.f32 %v2497, %v2238
        %v2519 = vmul.f32 %v2501, %v2238
        %v2520 = vmul.f32 %v2505, %v2238
        %v2521 = vmul.f32 %v2509, %v2238
        %v2522 = vmul.f32 %v2513, %v2238
        %v2523 = vadd.f32 %v2426, %v2515
        %v2524 = vadd.f32 %v2427, %v2516
        %v2525 = vadd.f32 %v2428, %v2517
        %v2526 = vadd.f32 %v2429, %v2518
        %v2527 = vadd.f32 %v2430, %v2519
        %v2528 = vadd.f32 %v2431, %v2520
        %v2529 = vadd.f32 %v2432, %v2521
        %v2530 = vadd.f32 %v2433, %v2522
        %s2531 = scalar_lea.vmem %s4, 152
        %v2532 = vld [vmem:[%s2531] sm:$0x1]
        %v2533 = vld [vmem:[%s2531 + $0x1] sm:$0x1]
        %v2534 = vld [vmem:[%s2531 + $0x2] sm:$0x1]
        %v2535 = vld [vmem:[%s2531 + $0x3] sm:$0x1]
        %v2536 = vld [vmem:[%s2531 + $0x4] sm:$0x1]
        %v2537 = vld [vmem:[%s2531 + $0x5] sm:$0x1]
        %v2538 = vld [vmem:[%s2531 + $0x6] sm:$0x1]
        %v2539 = vld [vmem:[%s2531 + $0x7] sm:$0x1]
        %v2548 = vlaneseq
        %v2549 = vshrl.u32 %v2548, 7
        %v2550 = vsub.s32 0, %v2549
        %v2551 = vrot.slane %v2532, %v2550
        %v2552 = vlaneseq
        %v2553 = vshrl.u32 %v2552, 7
        %v2554 = vsub.s32 0, %v2553
        %v2555 = vrot.slane %v2533, %v2554
        %v2556 = vlaneseq
        %v2557 = vshrl.u32 %v2556, 7
        %v2558 = vsub.s32 0, %v2557
        %v2559 = vrot.slane %v2534, %v2558
        %v2560 = vlaneseq
        %v2561 = vshrl.u32 %v2560, 7
        %v2562 = vsub.s32 0, %v2561
        %v2563 = vrot.slane %v2535, %v2562
        %v2564 = vlaneseq
        %v2565 = vshrl.u32 %v2564, 7
        %v2566 = vsub.s32 0, %v2565
        %v2567 = vrot.slane %v2536, %v2566
        %v2568 = vlaneseq
        %v2569 = vshrl.u32 %v2568, 7
        %v2570 = vsub.s32 0, %v2569
        %v2571 = vrot.slane %v2537, %v2570
        %v2572 = vlaneseq
        %v2573 = vshrl.u32 %v2572, 7
        %v2574 = vsub.s32 0, %v2573
        %v2575 = vrot.slane %v2538, %v2574
        %v2576 = vlaneseq
        %v2577 = vshrl.u32 %v2576, 7
        %v2578 = vsub.s32 0, %v2577
        %v2579 = vrot.slane %v2539, %v2578
        %2580 = vset.pattern.permute.xlu0 0
        %2581 = vperm.xlu0 %2580, %v2551
        %v2582 = vpop.permute.xlu0 %2581
        %2584 = vset.pattern.permute.xlu0 0
        %2585 = vperm.xlu0 %2584, %v2555
        %v2586 = vpop.permute.xlu0 %2585
        %2588 = vset.pattern.permute.xlu0 0
        %2589 = vperm.xlu0 %2588, %v2559
        %v2590 = vpop.permute.xlu0 %2589
        %2592 = vset.pattern.permute.xlu0 0
        %2593 = vperm.xlu0 %2592, %v2563
        %v2594 = vpop.permute.xlu0 %2593
        %2596 = vset.pattern.permute.xlu0 0
        %2597 = vperm.xlu0 %2596, %v2567
        %v2598 = vpop.permute.xlu0 %2597
        %2600 = vset.pattern.permute.xlu0 0
        %2601 = vperm.xlu0 %2600, %v2571
        %v2602 = vpop.permute.xlu0 %2601
        %2604 = vset.pattern.permute.xlu0 0
        %2605 = vperm.xlu0 %2604, %v2575
        %v2606 = vpop.permute.xlu0 %2605
        %2608 = vset.pattern.permute.xlu0 0
        %2609 = vperm.xlu0 %2608, %v2579
        %v2610 = vpop.permute.xlu0 %2609
        %v2612 = vmul.f32 %v2582, %v2239
        %v2613 = vmul.f32 %v2586, %v2239
        %v2614 = vmul.f32 %v2590, %v2239
        %v2615 = vmul.f32 %v2594, %v2239
        %v2616 = vmul.f32 %v2598, %v2239
        %v2617 = vmul.f32 %v2602, %v2239
        %v2618 = vmul.f32 %v2606, %v2239
        %v2619 = vmul.f32 %v2610, %v2239
        %v2620 = vadd.f32 %v2523, %v2612
        %v2621 = vadd.f32 %v2524, %v2613
        %v2622 = vadd.f32 %v2525, %v2614
        %v2623 = vadd.f32 %v2526, %v2615
        %v2624 = vadd.f32 %v2527, %v2616
        %v2625 = vadd.f32 %v2528, %v2617
        %v2626 = vadd.f32 %v2529, %v2618
        %v2627 = vadd.f32 %v2530, %v2619
        %s2628 = scalar_lea.vmem %s4, 160
        %v2629 = vld [vmem:[%s2628] sm:$0x1]
        %v2630 = vld [vmem:[%s2628 + $0x1] sm:$0x1]
        %v2631 = vld [vmem:[%s2628 + $0x2] sm:$0x1]
        %v2632 = vld [vmem:[%s2628 + $0x3] sm:$0x1]
        %v2633 = vld [vmem:[%s2628 + $0x4] sm:$0x1]
        %v2634 = vld [vmem:[%s2628 + $0x5] sm:$0x1]
        %v2635 = vld [vmem:[%s2628 + $0x6] sm:$0x1]
        %v2636 = vld [vmem:[%s2628 + $0x7] sm:$0x1]
        %v2645 = vlaneseq
        %v2646 = vshrl.u32 %v2645, 7
        %v2647 = vsub.s32 0, %v2646
        %v2648 = vrot.slane %v2629, %v2647
        %v2649 = vlaneseq
        %v2650 = vshrl.u32 %v2649, 7
        %v2651 = vsub.s32 0, %v2650
        %v2652 = vrot.slane %v2630, %v2651
        %v2653 = vlaneseq
        %v2654 = vshrl.u32 %v2653, 7
        %v2655 = vsub.s32 0, %v2654
        %v2656 = vrot.slane %v2631, %v2655
        %v2657 = vlaneseq
        %v2658 = vshrl.u32 %v2657, 7
        %v2659 = vsub.s32 0, %v2658
        %v2660 = vrot.slane %v2632, %v2659
        %v2661 = vlaneseq
        %v2662 = vshrl.u32 %v2661, 7
        %v2663 = vsub.s32 0, %v2662
        %v2664 = vrot.slane %v2633, %v2663
        %v2665 = vlaneseq
        %v2666 = vshrl.u32 %v2665, 7
        %v2667 = vsub.s32 0, %v2666
        %v2668 = vrot.slane %v2634, %v2667
        %v2669 = vlaneseq
        %v2670 = vshrl.u32 %v2669, 7
        %v2671 = vsub.s32 0, %v2670
        %v2672 = vrot.slane %v2635, %v2671
        %v2673 = vlaneseq
        %v2674 = vshrl.u32 %v2673, 7
        %v2675 = vsub.s32 0, %v2674
        %v2676 = vrot.slane %v2636, %v2675
        %2677 = vset.pattern.permute.xlu0 0
        %2678 = vperm.xlu0 %2677, %v2648
        %v2679 = vpop.permute.xlu0 %2678
        %2681 = vset.pattern.permute.xlu0 0
        %2682 = vperm.xlu0 %2681, %v2652
        %v2683 = vpop.permute.xlu0 %2682
        %2685 = vset.pattern.permute.xlu0 0
        %2686 = vperm.xlu0 %2685, %v2656
        %v2687 = vpop.permute.xlu0 %2686
        %2689 = vset.pattern.permute.xlu0 0
        %2690 = vperm.xlu0 %2689, %v2660
        %v2691 = vpop.permute.xlu0 %2690
        %2693 = vset.pattern.permute.xlu0 0
        %2694 = vperm.xlu0 %2693, %v2664
        %v2695 = vpop.permute.xlu0 %2694
        %2697 = vset.pattern.permute.xlu0 0
        %2698 = vperm.xlu0 %2697, %v2668
        %v2699 = vpop.permute.xlu0 %2698
        %2701 = vset.pattern.permute.xlu0 0
        %2702 = vperm.xlu0 %2701, %v2672
        %v2703 = vpop.permute.xlu0 %2702
        %2705 = vset.pattern.permute.xlu0 0
        %2706 = vperm.xlu0 %2705, %v2676
        %v2707 = vpop.permute.xlu0 %2706
        %v2709 = vmul.f32 %v2679, %v1844
        %v2710 = vmul.f32 %v2683, %v1844
        %v2711 = vmul.f32 %v2687, %v1844
        %v2712 = vmul.f32 %v2691, %v1844
        %v2713 = vmul.f32 %v2695, %v1844
        %v2714 = vmul.f32 %v2699, %v1844
        %v2715 = vmul.f32 %v2703, %v1844
        %v2716 = vmul.f32 %v2707, %v1844
        %2725 = vrot.lane.b32.xlu0 %v2709, 127
        %v2726 = vpop.permute.xlu0 %2725
        %2727 = vrot.lane.b32.xlu0 %v2710, 127
        %v2728 = vpop.permute.xlu0 %2727
        %2729 = vrot.lane.b32.xlu0 %v2711, 127
        %v2730 = vpop.permute.xlu0 %2729
        %2731 = vrot.lane.b32.xlu0 %v2712, 127
        %v2732 = vpop.permute.xlu0 %2731
        %2733 = vrot.lane.b32.xlu0 %v2713, 127
        %v2734 = vpop.permute.xlu0 %2733
        %2735 = vrot.lane.b32.xlu0 %v2714, 127
        %v2736 = vpop.permute.xlu0 %2735
        %2737 = vrot.lane.b32.xlu0 %v2715, 127
        %v2738 = vpop.permute.xlu0 %2737
        %2739 = vrot.lane.b32.xlu0 %v2716, 127
        %v2740 = vpop.permute.xlu0 %2739
        %v2749 = vadd.f32 %v2620, %v2726
        %v2750 = vadd.f32 %v2621, %v2728
        %v2751 = vadd.f32 %v2622, %v2730
        %v2752 = vadd.f32 %v2623, %v2732
        %v2753 = vadd.f32 %v2624, %v2734
        %v2754 = vadd.f32 %v2625, %v2736
        %v2755 = vadd.f32 %v2626, %v2738
        %v2756 = vadd.f32 %v2627, %v2740
        %s2757 = scalar_lea.vmem %s4, 168
        %v2758 = vld [vmem:[%s2757] sm:$0x1]
        %v2759 = vld [vmem:[%s2757 + $0x1] sm:$0x1]
        %v2760 = vld [vmem:[%s2757 + $0x2] sm:$0x1]
        %v2761 = vld [vmem:[%s2757 + $0x3] sm:$0x1]
        %v2762 = vld [vmem:[%s2757 + $0x4] sm:$0x1]
        %v2763 = vld [vmem:[%s2757 + $0x5] sm:$0x1]
        %v2764 = vld [vmem:[%s2757 + $0x6] sm:$0x1]
        %v2765 = vld [vmem:[%s2757 + $0x7] sm:$0x1]
        %v2774 = vlaneseq
        %v2775 = vshrl.u32 %v2774, 7
        %v2776 = vsub.s32 0, %v2775
        %v2777 = vrot.slane %v2758, %v2776
        %v2778 = vlaneseq
        %v2779 = vshrl.u32 %v2778, 7
        %v2780 = vsub.s32 0, %v2779
        %v2781 = vrot.slane %v2759, %v2780
        %v2782 = vlaneseq
        %v2783 = vshrl.u32 %v2782, 7
        %v2784 = vsub.s32 0, %v2783
        %v2785 = vrot.slane %v2760, %v2784
        %v2786 = vlaneseq
        %v2787 = vshrl.u32 %v2786, 7
        %v2788 = vsub.s32 0, %v2787
        %v2789 = vrot.slane %v2761, %v2788
        %v2790 = vlaneseq
        %v2791 = vshrl.u32 %v2790, 7
        %v2792 = vsub.s32 0, %v2791
        %v2793 = vrot.slane %v2762, %v2792
        %v2794 = vlaneseq
        %v2795 = vshrl.u32 %v2794, 7
        %v2796 = vsub.s32 0, %v2795
        %v2797 = vrot.slane %v2763, %v2796
        %v2798 = vlaneseq
        %v2799 = vshrl.u32 %v2798, 7
        %v2800 = vsub.s32 0, %v2799
        %v2801 = vrot.slane %v2764, %v2800
        %v2802 = vlaneseq
        %v2803 = vshrl.u32 %v2802, 7
        %v2804 = vsub.s32 0, %v2803
        %v2805 = vrot.slane %v2765, %v2804
        %2806 = vset.pattern.permute.xlu0 0
        %2807 = vperm.xlu0 %2806, %v2777
        %v2808 = vpop.permute.xlu0 %2807
        %2810 = vset.pattern.permute.xlu0 0
        %2811 = vperm.xlu0 %2810, %v2781
        %v2812 = vpop.permute.xlu0 %2811
        %2814 = vset.pattern.permute.xlu0 0
        %2815 = vperm.xlu0 %2814, %v2785
        %v2816 = vpop.permute.xlu0 %2815
        %2818 = vset.pattern.permute.xlu0 0
        %2819 = vperm.xlu0 %2818, %v2789
        %v2820 = vpop.permute.xlu0 %2819
        %2822 = vset.pattern.permute.xlu0 0
        %2823 = vperm.xlu0 %2822, %v2793
        %v2824 = vpop.permute.xlu0 %2823
        %2826 = vset.pattern.permute.xlu0 0
        %2827 = vperm.xlu0 %2826, %v2797
        %v2828 = vpop.permute.xlu0 %2827
        %2830 = vset.pattern.permute.xlu0 0
        %2831 = vperm.xlu0 %2830, %v2801
        %v2832 = vpop.permute.xlu0 %2831
        %2834 = vset.pattern.permute.xlu0 0
        %2835 = vperm.xlu0 %2834, %v2805
        %v2836 = vpop.permute.xlu0 %2835
        %v2838 = vmul.f32 %v2808, %v1845
        %v2839 = vmul.f32 %v2812, %v1845
        %v2840 = vmul.f32 %v2816, %v1845
        %v2841 = vmul.f32 %v2820, %v1845
        %v2842 = vmul.f32 %v2824, %v1845
        %v2843 = vmul.f32 %v2828, %v1845
        %v2844 = vmul.f32 %v2832, %v1845
        %v2845 = vmul.f32 %v2836, %v1845
        %2854 = vrot.lane.b32.xlu0 %v2838, 127
        %v2855 = vpop.permute.xlu0 %2854
        %2856 = vrot.lane.b32.xlu0 %v2839, 127
        %v2857 = vpop.permute.xlu0 %2856
        %2858 = vrot.lane.b32.xlu0 %v2840, 127
        %v2859 = vpop.permute.xlu0 %2858
        %2860 = vrot.lane.b32.xlu0 %v2841, 127
        %v2861 = vpop.permute.xlu0 %2860
        %2862 = vrot.lane.b32.xlu0 %v2842, 127
        %v2863 = vpop.permute.xlu0 %2862
        %2864 = vrot.lane.b32.xlu0 %v2843, 127
        %v2865 = vpop.permute.xlu0 %2864
        %2866 = vrot.lane.b32.xlu0 %v2844, 127
        %v2867 = vpop.permute.xlu0 %2866
        %2868 = vrot.lane.b32.xlu0 %v2845, 127
        %v2869 = vpop.permute.xlu0 %2868
        %v2878 = vadd.f32 %v2749, %v2855
        %v2879 = vadd.f32 %v2750, %v2857
        %v2880 = vadd.f32 %v2751, %v2859
        %v2881 = vadd.f32 %v2752, %v2861
        %v2882 = vadd.f32 %v2753, %v2863
        %v2883 = vadd.f32 %v2754, %v2865
        %v2884 = vadd.f32 %v2755, %v2867
        %v2885 = vadd.f32 %v2756, %v2869
        %s2886 = scalar_lea.vmem %s4, 176
        %v2887 = vld [vmem:[%s2886] sm:$0x1]
        %v2888 = vld [vmem:[%s2886 + $0x1] sm:$0x1]
        %v2889 = vld [vmem:[%s2886 + $0x2] sm:$0x1]
        %v2890 = vld [vmem:[%s2886 + $0x3] sm:$0x1]
        %v2891 = vld [vmem:[%s2886 + $0x4] sm:$0x1]
        %v2892 = vld [vmem:[%s2886 + $0x5] sm:$0x1]
        %v2893 = vld [vmem:[%s2886 + $0x6] sm:$0x1]
        %v2894 = vld [vmem:[%s2886 + $0x7] sm:$0x1]
        %v2903 = vlaneseq
        %v2904 = vshrl.u32 %v2903, 7
        %v2905 = vsub.s32 0, %v2904
        %v2906 = vrot.slane %v2887, %v2905
        %v2907 = vlaneseq
        %v2908 = vshrl.u32 %v2907, 7
        %v2909 = vsub.s32 0, %v2908
        %v2910 = vrot.slane %v2888, %v2909
        %v2911 = vlaneseq
        %v2912 = vshrl.u32 %v2911, 7
        %v2913 = vsub.s32 0, %v2912
        %v2914 = vrot.slane %v2889, %v2913
        %v2915 = vlaneseq
        %v2916 = vshrl.u32 %v2915, 7
        %v2917 = vsub.s32 0, %v2916
        %v2918 = vrot.slane %v2890, %v2917
        %v2919 = vlaneseq
        %v2920 = vshrl.u32 %v2919, 7
        %v2921 = vsub.s32 0, %v2920
        %v2922 = vrot.slane %v2891, %v2921
        %v2923 = vlaneseq
        %v2924 = vshrl.u32 %v2923, 7
        %v2925 = vsub.s32 0, %v2924
        %v2926 = vrot.slane %v2892, %v2925
        %v2927 = vlaneseq
        %v2928 = vshrl.u32 %v2927, 7
        %v2929 = vsub.s32 0, %v2928
        %v2930 = vrot.slane %v2893, %v2929
        %v2931 = vlaneseq
        %v2932 = vshrl.u32 %v2931, 7
        %v2933 = vsub.s32 0, %v2932
        %v2934 = vrot.slane %v2894, %v2933
        %2935 = vset.pattern.permute.xlu0 0
        %2936 = vperm.xlu0 %2935, %v2906
        %v2937 = vpop.permute.xlu0 %2936
        %2939 = vset.pattern.permute.xlu0 0
        %2940 = vperm.xlu0 %2939, %v2910
        %v2941 = vpop.permute.xlu0 %2940
        %2943 = vset.pattern.permute.xlu0 0
        %2944 = vperm.xlu0 %2943, %v2914
        %v2945 = vpop.permute.xlu0 %2944
        %2947 = vset.pattern.permute.xlu0 0
        %2948 = vperm.xlu0 %2947, %v2918
        %v2949 = vpop.permute.xlu0 %2948
        %2951 = vset.pattern.permute.xlu0 0
        %2952 = vperm.xlu0 %2951, %v2922
        %v2953 = vpop.permute.xlu0 %2952
        %2955 = vset.pattern.permute.xlu0 0
        %2956 = vperm.xlu0 %2955, %v2926
        %v2957 = vpop.permute.xlu0 %2956
        %2959 = vset.pattern.permute.xlu0 0
        %2960 = vperm.xlu0 %2959, %v2930
        %v2961 = vpop.permute.xlu0 %2960
        %2963 = vset.pattern.permute.xlu0 0
        %2964 = vperm.xlu0 %2963, %v2934
        %v2965 = vpop.permute.xlu0 %2964
        %v2967 = vmul.f32 %v2937, %v1846
        %v2968 = vmul.f32 %v2941, %v1846
        %v2969 = vmul.f32 %v2945, %v1846
        %v2970 = vmul.f32 %v2949, %v1846
        %v2971 = vmul.f32 %v2953, %v1846
        %v2972 = vmul.f32 %v2957, %v1846
        %v2973 = vmul.f32 %v2961, %v1846
        %v2974 = vmul.f32 %v2965, %v1846
        %2983 = vrot.lane.b32.xlu0 %v2967, 127
        %v2984 = vpop.permute.xlu0 %2983
        %2985 = vrot.lane.b32.xlu0 %v2968, 127
        %v2986 = vpop.permute.xlu0 %2985
        %2987 = vrot.lane.b32.xlu0 %v2969, 127
        %v2988 = vpop.permute.xlu0 %2987
        %2989 = vrot.lane.b32.xlu0 %v2970, 127
        %v2990 = vpop.permute.xlu0 %2989
        %2991 = vrot.lane.b32.xlu0 %v2971, 127
        %v2992 = vpop.permute.xlu0 %2991
        %2993 = vrot.lane.b32.xlu0 %v2972, 127
        %v2994 = vpop.permute.xlu0 %2993
        %2995 = vrot.lane.b32.xlu0 %v2973, 127
        %v2996 = vpop.permute.xlu0 %2995
        %2997 = vrot.lane.b32.xlu0 %v2974, 127
        %v2998 = vpop.permute.xlu0 %2997
        %v3007 = vadd.f32 %v2878, %v2984
        %v3008 = vadd.f32 %v2879, %v2986
        %v3009 = vadd.f32 %v2880, %v2988
        %v3010 = vadd.f32 %v2881, %v2990
        %v3011 = vadd.f32 %v2882, %v2992
        %v3012 = vadd.f32 %v2883, %v2994
        %v3013 = vadd.f32 %v2884, %v2996
        %v3014 = vadd.f32 %v2885, %v2998
        %s3015 = scalar_lea.vmem %s4, 184
        %v3016 = vld [vmem:[%s3015] sm:$0x1]
        %v3017 = vld [vmem:[%s3015 + $0x1] sm:$0x1]
        %v3018 = vld [vmem:[%s3015 + $0x2] sm:$0x1]
        %v3019 = vld [vmem:[%s3015 + $0x3] sm:$0x1]
        %v3020 = vld [vmem:[%s3015 + $0x4] sm:$0x1]
        %v3021 = vld [vmem:[%s3015 + $0x5] sm:$0x1]
        %v3022 = vld [vmem:[%s3015 + $0x6] sm:$0x1]
        %v3023 = vld [vmem:[%s3015 + $0x7] sm:$0x1]
        %v3032 = vlaneseq
        %v3033 = vshrl.u32 %v3032, 7
        %v3034 = vsub.s32 0, %v3033
        %v3035 = vrot.slane %v3016, %v3034
        %v3036 = vlaneseq
        %v3037 = vshrl.u32 %v3036, 7
        %v3038 = vsub.s32 0, %v3037
        %v3039 = vrot.slane %v3017, %v3038
        %v3040 = vlaneseq
        %v3041 = vshrl.u32 %v3040, 7
        %v3042 = vsub.s32 0, %v3041
        %v3043 = vrot.slane %v3018, %v3042
        %v3044 = vlaneseq
        %v3045 = vshrl.u32 %v3044, 7
        %v3046 = vsub.s32 0, %v3045
        %v3047 = vrot.slane %v3019, %v3046
        %v3048 = vlaneseq
        %v3049 = vshrl.u32 %v3048, 7
        %v3050 = vsub.s32 0, %v3049
        %v3051 = vrot.slane %v3020, %v3050
        %v3052 = vlaneseq
        %v3053 = vshrl.u32 %v3052, 7
        %v3054 = vsub.s32 0, %v3053
        %v3055 = vrot.slane %v3021, %v3054
        %v3056 = vlaneseq
        %v3057 = vshrl.u32 %v3056, 7
        %v3058 = vsub.s32 0, %v3057
        %v3059 = vrot.slane %v3022, %v3058
        %v3060 = vlaneseq
        %v3061 = vshrl.u32 %v3060, 7
        %v3062 = vsub.s32 0, %v3061
        %v3063 = vrot.slane %v3023, %v3062
        %3064 = vset.pattern.permute.xlu0 0
        %3065 = vperm.xlu0 %3064, %v3035
        %v3066 = vpop.permute.xlu0 %3065
        %3068 = vset.pattern.permute.xlu0 0
        %3069 = vperm.xlu0 %3068, %v3039
        %v3070 = vpop.permute.xlu0 %3069
        %3072 = vset.pattern.permute.xlu0 0
        %3073 = vperm.xlu0 %3072, %v3043
        %v3074 = vpop.permute.xlu0 %3073
        %3076 = vset.pattern.permute.xlu0 0
        %3077 = vperm.xlu0 %3076, %v3047
        %v3078 = vpop.permute.xlu0 %3077
        %3080 = vset.pattern.permute.xlu0 0
        %3081 = vperm.xlu0 %3080, %v3051
        %v3082 = vpop.permute.xlu0 %3081
        %3084 = vset.pattern.permute.xlu0 0
        %3085 = vperm.xlu0 %3084, %v3055
        %v3086 = vpop.permute.xlu0 %3085
        %3088 = vset.pattern.permute.xlu0 0
        %3089 = vperm.xlu0 %3088, %v3059
        %v3090 = vpop.permute.xlu0 %3089
        %3092 = vset.pattern.permute.xlu0 0
        %3093 = vperm.xlu0 %3092, %v3063
        %v3094 = vpop.permute.xlu0 %3093
        %v3096 = vmul.f32 %v3066, %v1847
        %v3097 = vmul.f32 %v3070, %v1847
        %v3098 = vmul.f32 %v3074, %v1847
        %v3099 = vmul.f32 %v3078, %v1847
        %v3100 = vmul.f32 %v3082, %v1847
        %v3101 = vmul.f32 %v3086, %v1847
        %v3102 = vmul.f32 %v3090, %v1847
        %v3103 = vmul.f32 %v3094, %v1847
        %3112 = vrot.lane.b32.xlu0 %v3096, 127
        %v3113 = vpop.permute.xlu0 %3112
        %3114 = vrot.lane.b32.xlu0 %v3097, 127
        %v3115 = vpop.permute.xlu0 %3114
        %3116 = vrot.lane.b32.xlu0 %v3098, 127
        %v3117 = vpop.permute.xlu0 %3116
        %3118 = vrot.lane.b32.xlu0 %v3099, 127
        %v3119 = vpop.permute.xlu0 %3118
        %3120 = vrot.lane.b32.xlu0 %v3100, 127
        %v3121 = vpop.permute.xlu0 %3120
        %3122 = vrot.lane.b32.xlu0 %v3101, 127
        %v3123 = vpop.permute.xlu0 %3122
        %3124 = vrot.lane.b32.xlu0 %v3102, 127
        %v3125 = vpop.permute.xlu0 %3124
        %3126 = vrot.lane.b32.xlu0 %v3103, 127
        %v3127 = vpop.permute.xlu0 %3126
        %v3136 = vadd.f32 %v3007, %v3113
        %v3137 = vadd.f32 %v3008, %v3115
        %v3138 = vadd.f32 %v3009, %v3117
        %v3139 = vadd.f32 %v3010, %v3119
        %v3140 = vadd.f32 %v3011, %v3121
        %v3141 = vadd.f32 %v3012, %v3123
        %v3142 = vadd.f32 %v3013, %v3125
        %v3143 = vadd.f32 %v3014, %v3127
        %v3144 = vld [vmem:[%s484 + $0x1] sm:$0x3]
        %v3145 = vld [vmem:[%s484 + $0x5] sm:$0x3]
        %v3146 = vld [vmem:[%s484 + $0x9] sm:$0x3]
        %v3147 = vld [vmem:[%s484 + $0xd] sm:$0x3]
        %s3148 = scalar_lea.vmem %s4, 192
        %v3149 = vld [vmem:[%s3148] sm:$0x1]
        %v3150 = vld [vmem:[%s3148 + $0x1] sm:$0x1]
        %v3151 = vld [vmem:[%s3148 + $0x2] sm:$0x1]
        %v3152 = vld [vmem:[%s3148 + $0x3] sm:$0x1]
        %v3153 = vld [vmem:[%s3148 + $0x4] sm:$0x1]
        %v3154 = vld [vmem:[%s3148 + $0x5] sm:$0x1]
        %v3155 = vld [vmem:[%s3148 + $0x6] sm:$0x1]
        %v3156 = vld [vmem:[%s3148 + $0x7] sm:$0x1]
        %v3165 = vlaneseq
        %v3166 = vshrl.u32 %v3165, 7
        %v3167 = vsub.s32 0, %v3166
        %v3168 = vrot.slane %v3149, %v3167
        %v3169 = vlaneseq
        %v3170 = vshrl.u32 %v3169, 7
        %v3171 = vsub.s32 0, %v3170
        %v3172 = vrot.slane %v3150, %v3171
        %v3173 = vlaneseq
        %v3174 = vshrl.u32 %v3173, 7
        %v3175 = vsub.s32 0, %v3174
        %v3176 = vrot.slane %v3151, %v3175
        %v3177 = vlaneseq
        %v3178 = vshrl.u32 %v3177, 7
        %v3179 = vsub.s32 0, %v3178
        %v3180 = vrot.slane %v3152, %v3179
        %v3181 = vlaneseq
        %v3182 = vshrl.u32 %v3181, 7
        %v3183 = vsub.s32 0, %v3182
        %v3184 = vrot.slane %v3153, %v3183
        %v3185 = vlaneseq
        %v3186 = vshrl.u32 %v3185, 7
        %v3187 = vsub.s32 0, %v3186
        %v3188 = vrot.slane %v3154, %v3187
        %v3189 = vlaneseq
        %v3190 = vshrl.u32 %v3189, 7
        %v3191 = vsub.s32 0, %v3190
        %v3192 = vrot.slane %v3155, %v3191
        %v3193 = vlaneseq
        %v3194 = vshrl.u32 %v3193, 7
        %v3195 = vsub.s32 0, %v3194
        %v3196 = vrot.slane %v3156, %v3195
        %3197 = vset.pattern.permute.xlu0 0
        %3198 = vperm.xlu0 %3197, %v3168
        %v3199 = vpop.permute.xlu0 %3198
        %3201 = vset.pattern.permute.xlu0 0
        %3202 = vperm.xlu0 %3201, %v3172
        %v3203 = vpop.permute.xlu0 %3202
        %3205 = vset.pattern.permute.xlu0 0
        %3206 = vperm.xlu0 %3205, %v3176
        %v3207 = vpop.permute.xlu0 %3206
        %3209 = vset.pattern.permute.xlu0 0
        %3210 = vperm.xlu0 %3209, %v3180
        %v3211 = vpop.permute.xlu0 %3210
        %3213 = vset.pattern.permute.xlu0 0
        %3214 = vperm.xlu0 %3213, %v3184
        %v3215 = vpop.permute.xlu0 %3214
        %3217 = vset.pattern.permute.xlu0 0
        %3218 = vperm.xlu0 %3217, %v3188
        %v3219 = vpop.permute.xlu0 %3218
        %3221 = vset.pattern.permute.xlu0 0
        %3222 = vperm.xlu0 %3221, %v3192
        %v3223 = vpop.permute.xlu0 %3222
        %3225 = vset.pattern.permute.xlu0 0
        %3226 = vperm.xlu0 %3225, %v3196
        %v3227 = vpop.permute.xlu0 %3226
        %v3229 = vmul.f32 %v3199, %v3144
        %v3230 = vmul.f32 %v3203, %v3144
        %v3231 = vmul.f32 %v3207, %v3144
        %v3232 = vmul.f32 %v3211, %v3144
        %v3233 = vmul.f32 %v3215, %v3144
        %v3234 = vmul.f32 %v3219, %v3144
        %v3235 = vmul.f32 %v3223, %v3144
        %v3236 = vmul.f32 %v3227, %v3144
        %v3237 = vadd.f32 %v3136, %v3229
        %v3238 = vadd.f32 %v3137, %v3230
        %v3239 = vadd.f32 %v3138, %v3231
        %v3240 = vadd.f32 %v3139, %v3232
        %v3241 = vadd.f32 %v3140, %v3233
        %v3242 = vadd.f32 %v3141, %v3234
        %v3243 = vadd.f32 %v3142, %v3235
        %v3244 = vadd.f32 %v3143, %v3236
        %s3245 = scalar_lea.vmem %s4, 200
        %v3246 = vld [vmem:[%s3245] sm:$0x1]
        %v3247 = vld [vmem:[%s3245 + $0x1] sm:$0x1]
        %v3248 = vld [vmem:[%s3245 + $0x2] sm:$0x1]
        %v3249 = vld [vmem:[%s3245 + $0x3] sm:$0x1]
        %v3250 = vld [vmem:[%s3245 + $0x4] sm:$0x1]
        %v3251 = vld [vmem:[%s3245 + $0x5] sm:$0x1]
        %v3252 = vld [vmem:[%s3245 + $0x6] sm:$0x1]
        %v3253 = vld [vmem:[%s3245 + $0x7] sm:$0x1]
        %v3262 = vlaneseq
        %v3263 = vshrl.u32 %v3262, 7
        %v3264 = vsub.s32 0, %v3263
        %v3265 = vrot.slane %v3246, %v3264
        %v3266 = vlaneseq
        %v3267 = vshrl.u32 %v3266, 7
        %v3268 = vsub.s32 0, %v3267
        %v3269 = vrot.slane %v3247, %v3268
        %v3270 = vlaneseq
        %v3271 = vshrl.u32 %v3270, 7
        %v3272 = vsub.s32 0, %v3271
        %v3273 = vrot.slane %v3248, %v3272
        %v3274 = vlaneseq
        %v3275 = vshrl.u32 %v3274, 7
        %v3276 = vsub.s32 0, %v3275
        %v3277 = vrot.slane %v3249, %v3276
        %v3278 = vlaneseq
        %v3279 = vshrl.u32 %v3278, 7
        %v3280 = vsub.s32 0, %v3279
        %v3281 = vrot.slane %v3250, %v3280
        %v3282 = vlaneseq
        %v3283 = vshrl.u32 %v3282, 7
        %v3284 = vsub.s32 0, %v3283
        %v3285 = vrot.slane %v3251, %v3284
        %v3286 = vlaneseq
        %v3287 = vshrl.u32 %v3286, 7
        %v3288 = vsub.s32 0, %v3287
        %v3289 = vrot.slane %v3252, %v3288
        %v3290 = vlaneseq
        %v3291 = vshrl.u32 %v3290, 7
        %v3292 = vsub.s32 0, %v3291
        %v3293 = vrot.slane %v3253, %v3292
        %3294 = vset.pattern.permute.xlu0 0
        %3295 = vperm.xlu0 %3294, %v3265
        %v3296 = vpop.permute.xlu0 %3295
        %3298 = vset.pattern.permute.xlu0 0
        %3299 = vperm.xlu0 %3298, %v3269
        %v3300 = vpop.permute.xlu0 %3299
        %3302 = vset.pattern.permute.xlu0 0
        %3303 = vperm.xlu0 %3302, %v3273
        %v3304 = vpop.permute.xlu0 %3303
        %3306 = vset.pattern.permute.xlu0 0
        %3307 = vperm.xlu0 %3306, %v3277
        %v3308 = vpop.permute.xlu0 %3307
        %3310 = vset.pattern.permute.xlu0 0
        %3311 = vperm.xlu0 %3310, %v3281
        %v3312 = vpop.permute.xlu0 %3311
        %3314 = vset.pattern.permute.xlu0 0
        %3315 = vperm.xlu0 %3314, %v3285
        %v3316 = vpop.permute.xlu0 %3315
        %3318 = vset.pattern.permute.xlu0 0
        %3319 = vperm.xlu0 %3318, %v3289
        %v3320 = vpop.permute.xlu0 %3319
        %3322 = vset.pattern.permute.xlu0 0
        %3323 = vperm.xlu0 %3322, %v3293
        %v3324 = vpop.permute.xlu0 %3323
        %v3326 = vmul.f32 %v3296, %v3145
        %v3327 = vmul.f32 %v3300, %v3145
        %v3328 = vmul.f32 %v3304, %v3145
        %v3329 = vmul.f32 %v3308, %v3145
        %v3330 = vmul.f32 %v3312, %v3145
        %v3331 = vmul.f32 %v3316, %v3145
        %v3332 = vmul.f32 %v3320, %v3145
        %v3333 = vmul.f32 %v3324, %v3145
        %v3334 = vadd.f32 %v3237, %v3326
        %v3335 = vadd.f32 %v3238, %v3327
        %v3336 = vadd.f32 %v3239, %v3328
        %v3337 = vadd.f32 %v3240, %v3329
        %v3338 = vadd.f32 %v3241, %v3330
        %v3339 = vadd.f32 %v3242, %v3331
        %v3340 = vadd.f32 %v3243, %v3332
        %v3341 = vadd.f32 %v3244, %v3333
        %s3342 = scalar_lea.vmem %s4, 208
        %v3343 = vld [vmem:[%s3342] sm:$0x1]
        %v3344 = vld [vmem:[%s3342 + $0x1] sm:$0x1]
        %v3345 = vld [vmem:[%s3342 + $0x2] sm:$0x1]
        %v3346 = vld [vmem:[%s3342 + $0x3] sm:$0x1]
        %v3347 = vld [vmem:[%s3342 + $0x4] sm:$0x1]
        %v3348 = vld [vmem:[%s3342 + $0x5] sm:$0x1]
        %v3349 = vld [vmem:[%s3342 + $0x6] sm:$0x1]
        %v3350 = vld [vmem:[%s3342 + $0x7] sm:$0x1]
        %v3359 = vlaneseq
        %v3360 = vshrl.u32 %v3359, 7
        %v3361 = vsub.s32 0, %v3360
        %v3362 = vrot.slane %v3343, %v3361
        %v3363 = vlaneseq
        %v3364 = vshrl.u32 %v3363, 7
        %v3365 = vsub.s32 0, %v3364
        %v3366 = vrot.slane %v3344, %v3365
        %v3367 = vlaneseq
        %v3368 = vshrl.u32 %v3367, 7
        %v3369 = vsub.s32 0, %v3368
        %v3370 = vrot.slane %v3345, %v3369
        %v3371 = vlaneseq
        %v3372 = vshrl.u32 %v3371, 7
        %v3373 = vsub.s32 0, %v3372
        %v3374 = vrot.slane %v3346, %v3373
        %v3375 = vlaneseq
        %v3376 = vshrl.u32 %v3375, 7
        %v3377 = vsub.s32 0, %v3376
        %v3378 = vrot.slane %v3347, %v3377
        %v3379 = vlaneseq
        %v3380 = vshrl.u32 %v3379, 7
        %v3381 = vsub.s32 0, %v3380
        %v3382 = vrot.slane %v3348, %v3381
        %v3383 = vlaneseq
        %v3384 = vshrl.u32 %v3383, 7
        %v3385 = vsub.s32 0, %v3384
        %v3386 = vrot.slane %v3349, %v3385
        %v3387 = vlaneseq
        %v3388 = vshrl.u32 %v3387, 7
        %v3389 = vsub.s32 0, %v3388
        %v3390 = vrot.slane %v3350, %v3389
        %3391 = vset.pattern.permute.xlu0 0
        %3392 = vperm.xlu0 %3391, %v3362
        %v3393 = vpop.permute.xlu0 %3392
        %3395 = vset.pattern.permute.xlu0 0
        %3396 = vperm.xlu0 %3395, %v3366
        %v3397 = vpop.permute.xlu0 %3396
        %3399 = vset.pattern.permute.xlu0 0
        %3400 = vperm.xlu0 %3399, %v3370
        %v3401 = vpop.permute.xlu0 %3400
        %3403 = vset.pattern.permute.xlu0 0
        %3404 = vperm.xlu0 %3403, %v3374
        %v3405 = vpop.permute.xlu0 %3404
        %3407 = vset.pattern.permute.xlu0 0
        %3408 = vperm.xlu0 %3407, %v3378
        %v3409 = vpop.permute.xlu0 %3408
        %3411 = vset.pattern.permute.xlu0 0
        %3412 = vperm.xlu0 %3411, %v3382
        %v3413 = vpop.permute.xlu0 %3412
        %3415 = vset.pattern.permute.xlu0 0
        %3416 = vperm.xlu0 %3415, %v3386
        %v3417 = vpop.permute.xlu0 %3416
        %3419 = vset.pattern.permute.xlu0 0
        %3420 = vperm.xlu0 %3419, %v3390
        %v3421 = vpop.permute.xlu0 %3420
        %v3423 = vmul.f32 %v3393, %v3146
        %v3424 = vmul.f32 %v3397, %v3146
        %v3425 = vmul.f32 %v3401, %v3146
        %v3426 = vmul.f32 %v3405, %v3146
        %v3427 = vmul.f32 %v3409, %v3146
        %v3428 = vmul.f32 %v3413, %v3146
        %v3429 = vmul.f32 %v3417, %v3146
        %v3430 = vmul.f32 %v3421, %v3146
        %v3431 = vadd.f32 %v3334, %v3423
        %v3432 = vadd.f32 %v3335, %v3424
        %v3433 = vadd.f32 %v3336, %v3425
        %v3434 = vadd.f32 %v3337, %v3426
        %v3435 = vadd.f32 %v3338, %v3427
        %v3436 = vadd.f32 %v3339, %v3428
        %v3437 = vadd.f32 %v3340, %v3429
        %v3438 = vadd.f32 %v3341, %v3430
        %s3439 = scalar_lea.vmem %s4, 216
        %v3440 = vld [vmem:[%s3439] sm:$0x1]
        %v3441 = vld [vmem:[%s3439 + $0x1] sm:$0x1]
        %v3442 = vld [vmem:[%s3439 + $0x2] sm:$0x1]
        %v3443 = vld [vmem:[%s3439 + $0x3] sm:$0x1]
        %v3444 = vld [vmem:[%s3439 + $0x4] sm:$0x1]
        %v3445 = vld [vmem:[%s3439 + $0x5] sm:$0x1]
        %v3446 = vld [vmem:[%s3439 + $0x6] sm:$0x1]
        %v3447 = vld [vmem:[%s3439 + $0x7] sm:$0x1]
        %v3456 = vlaneseq
        %v3457 = vshrl.u32 %v3456, 7
        %v3458 = vsub.s32 0, %v3457
        %v3459 = vrot.slane %v3440, %v3458
        %v3460 = vlaneseq
        %v3461 = vshrl.u32 %v3460, 7
        %v3462 = vsub.s32 0, %v3461
        %v3463 = vrot.slane %v3441, %v3462
        %v3464 = vlaneseq
        %v3465 = vshrl.u32 %v3464, 7
        %v3466 = vsub.s32 0, %v3465
        %v3467 = vrot.slane %v3442, %v3466
        %v3468 = vlaneseq
        %v3469 = vshrl.u32 %v3468, 7
        %v3470 = vsub.s32 0, %v3469
        %v3471 = vrot.slane %v3443, %v3470
        %v3472 = vlaneseq
        %v3473 = vshrl.u32 %v3472, 7
        %v3474 = vsub.s32 0, %v3473
        %v3475 = vrot.slane %v3444, %v3474
        %v3476 = vlaneseq
        %v3477 = vshrl.u32 %v3476, 7
        %v3478 = vsub.s32 0, %v3477
        %v3479 = vrot.slane %v3445, %v3478
        %v3480 = vlaneseq
        %v3481 = vshrl.u32 %v3480, 7
        %v3482 = vsub.s32 0, %v3481
        %v3483 = vrot.slane %v3446, %v3482
        %v3484 = vlaneseq
        %v3485 = vshrl.u32 %v3484, 7
        %v3486 = vsub.s32 0, %v3485
        %v3487 = vrot.slane %v3447, %v3486
        %3488 = vset.pattern.permute.xlu0 0
        %3489 = vperm.xlu0 %3488, %v3459
        %v3490 = vpop.permute.xlu0 %3489
        %3492 = vset.pattern.permute.xlu0 0
        %3493 = vperm.xlu0 %3492, %v3463
        %v3494 = vpop.permute.xlu0 %3493
        %3496 = vset.pattern.permute.xlu0 0
        %3497 = vperm.xlu0 %3496, %v3467
        %v3498 = vpop.permute.xlu0 %3497
        %3500 = vset.pattern.permute.xlu0 0
        %3501 = vperm.xlu0 %3500, %v3471
        %v3502 = vpop.permute.xlu0 %3501
        %3504 = vset.pattern.permute.xlu0 0
        %3505 = vperm.xlu0 %3504, %v3475
        %v3506 = vpop.permute.xlu0 %3505
        %3508 = vset.pattern.permute.xlu0 0
        %3509 = vperm.xlu0 %3508, %v3479
        %v3510 = vpop.permute.xlu0 %3509
        %3512 = vset.pattern.permute.xlu0 0
        %3513 = vperm.xlu0 %3512, %v3483
        %v3514 = vpop.permute.xlu0 %3513
        %3516 = vset.pattern.permute.xlu0 0
        %3517 = vperm.xlu0 %3516, %v3487
        %v3518 = vpop.permute.xlu0 %3517
        %v3520 = vmul.f32 %v3490, %v3147
        %v3521 = vmul.f32 %v3494, %v3147
        %v3522 = vmul.f32 %v3498, %v3147
        %v3523 = vmul.f32 %v3502, %v3147
        %v3524 = vmul.f32 %v3506, %v3147
        %v3525 = vmul.f32 %v3510, %v3147
        %v3526 = vmul.f32 %v3514, %v3147
        %v3527 = vmul.f32 %v3518, %v3147
        %v3528 = vadd.f32 %v3431, %v3520
        %v3529 = vadd.f32 %v3432, %v3521
        %v3530 = vadd.f32 %v3433, %v3522
        %v3531 = vadd.f32 %v3434, %v3523
        %v3532 = vadd.f32 %v3435, %v3524
        %v3533 = vadd.f32 %v3436, %v3525
        %v3534 = vadd.f32 %v3437, %v3526
        %v3535 = vadd.f32 %v3438, %v3527
        %v3536 = vld [vmem:[%s491 + $0x1] sm:$0x3]
        %v3537 = vld [vmem:[%s491 + $0x5] sm:$0x3]
        %v3538 = vld [vmem:[%s491 + $0x9] sm:$0x3]
        %v3539 = vld [vmem:[%s491 + $0xd] sm:$0x3]
        %s3540 = scalar_lea.vmem %s4, 224
        %v3541 = vld [vmem:[%s3540] sm:$0x1]
        %v3542 = vld [vmem:[%s3540 + $0x1] sm:$0x1]
        %v3543 = vld [vmem:[%s3540 + $0x2] sm:$0x1]
        %v3544 = vld [vmem:[%s3540 + $0x3] sm:$0x1]
        %v3545 = vld [vmem:[%s3540 + $0x4] sm:$0x1]
        %v3546 = vld [vmem:[%s3540 + $0x5] sm:$0x1]
        %v3547 = vld [vmem:[%s3540 + $0x6] sm:$0x1]
        %v3548 = vld [vmem:[%s3540 + $0x7] sm:$0x1]
        %v3557 = vlaneseq
        %v3558 = vshrl.u32 %v3557, 7
        %v3559 = vsub.s32 0, %v3558
        %v3560 = vrot.slane %v3541, %v3559
        %v3561 = vlaneseq
        %v3562 = vshrl.u32 %v3561, 7
        %v3563 = vsub.s32 0, %v3562
        %v3564 = vrot.slane %v3542, %v3563
        %v3565 = vlaneseq
        %v3566 = vshrl.u32 %v3565, 7
        %v3567 = vsub.s32 0, %v3566
        %v3568 = vrot.slane %v3543, %v3567
        %v3569 = vlaneseq
        %v3570 = vshrl.u32 %v3569, 7
        %v3571 = vsub.s32 0, %v3570
        %v3572 = vrot.slane %v3544, %v3571
        %v3573 = vlaneseq
        %v3574 = vshrl.u32 %v3573, 7
        %v3575 = vsub.s32 0, %v3574
        %v3576 = vrot.slane %v3545, %v3575
        %v3577 = vlaneseq
        %v3578 = vshrl.u32 %v3577, 7
        %v3579 = vsub.s32 0, %v3578
        %v3580 = vrot.slane %v3546, %v3579
        %v3581 = vlaneseq
        %v3582 = vshrl.u32 %v3581, 7
        %v3583 = vsub.s32 0, %v3582
        %v3584 = vrot.slane %v3547, %v3583
        %v3585 = vlaneseq
        %v3586 = vshrl.u32 %v3585, 7
        %v3587 = vsub.s32 0, %v3586
        %v3588 = vrot.slane %v3548, %v3587
        %3589 = vset.pattern.permute.xlu0 0
        %3590 = vperm.xlu0 %3589, %v3560
        %v3591 = vpop.permute.xlu0 %3590
        %3593 = vset.pattern.permute.xlu0 0
        %3594 = vperm.xlu0 %3593, %v3564
        %v3595 = vpop.permute.xlu0 %3594
        %3597 = vset.pattern.permute.xlu0 0
        %3598 = vperm.xlu0 %3597, %v3568
        %v3599 = vpop.permute.xlu0 %3598
        %3601 = vset.pattern.permute.xlu0 0
        %3602 = vperm.xlu0 %3601, %v3572
        %v3603 = vpop.permute.xlu0 %3602
        %3605 = vset.pattern.permute.xlu0 0
        %3606 = vperm.xlu0 %3605, %v3576
        %v3607 = vpop.permute.xlu0 %3606
        %3609 = vset.pattern.permute.xlu0 0
        %3610 = vperm.xlu0 %3609, %v3580
        %v3611 = vpop.permute.xlu0 %3610
        %3613 = vset.pattern.permute.xlu0 0
        %3614 = vperm.xlu0 %3613, %v3584
        %v3615 = vpop.permute.xlu0 %3614
        %3617 = vset.pattern.permute.xlu0 0
        %3618 = vperm.xlu0 %3617, %v3588
        %v3619 = vpop.permute.xlu0 %3618
        %v3621 = vmul.f32 %v3591, %v3536
        %v3622 = vmul.f32 %v3595, %v3536
        %v3623 = vmul.f32 %v3599, %v3536
        %v3624 = vmul.f32 %v3603, %v3536
        %v3625 = vmul.f32 %v3607, %v3536
        %v3626 = vmul.f32 %v3611, %v3536
        %v3627 = vmul.f32 %v3615, %v3536
        %v3628 = vmul.f32 %v3619, %v3536
        %v3629 = vadd.f32 %v3528, %v3621
        %v3630 = vadd.f32 %v3529, %v3622
        %v3631 = vadd.f32 %v3530, %v3623
        %v3632 = vadd.f32 %v3531, %v3624
        %v3633 = vadd.f32 %v3532, %v3625
        %v3634 = vadd.f32 %v3533, %v3626
        %v3635 = vadd.f32 %v3534, %v3627
        %v3636 = vadd.f32 %v3535, %v3628
        %s3637 = scalar_lea.vmem %s4, 232
        %v3638 = vld [vmem:[%s3637] sm:$0x1]
        %v3639 = vld [vmem:[%s3637 + $0x1] sm:$0x1]
        %v3640 = vld [vmem:[%s3637 + $0x2] sm:$0x1]
        %v3641 = vld [vmem:[%s3637 + $0x3] sm:$0x1]
        %v3642 = vld [vmem:[%s3637 + $0x4] sm:$0x1]
        %v3643 = vld [vmem:[%s3637 + $0x5] sm:$0x1]
        %v3644 = vld [vmem:[%s3637 + $0x6] sm:$0x1]
        %v3645 = vld [vmem:[%s3637 + $0x7] sm:$0x1]
        %v3654 = vlaneseq
        %v3655 = vshrl.u32 %v3654, 7
        %v3656 = vsub.s32 0, %v3655
        %v3657 = vrot.slane %v3638, %v3656
        %v3658 = vlaneseq
        %v3659 = vshrl.u32 %v3658, 7
        %v3660 = vsub.s32 0, %v3659
        %v3661 = vrot.slane %v3639, %v3660
        %v3662 = vlaneseq
        %v3663 = vshrl.u32 %v3662, 7
        %v3664 = vsub.s32 0, %v3663
        %v3665 = vrot.slane %v3640, %v3664
        %v3666 = vlaneseq
        %v3667 = vshrl.u32 %v3666, 7
        %v3668 = vsub.s32 0, %v3667
        %v3669 = vrot.slane %v3641, %v3668
        %v3670 = vlaneseq
        %v3671 = vshrl.u32 %v3670, 7
        %v3672 = vsub.s32 0, %v3671
        %v3673 = vrot.slane %v3642, %v3672
        %v3674 = vlaneseq
        %v3675 = vshrl.u32 %v3674, 7
        %v3676 = vsub.s32 0, %v3675
        %v3677 = vrot.slane %v3643, %v3676
        %v3678 = vlaneseq
        %v3679 = vshrl.u32 %v3678, 7
        %v3680 = vsub.s32 0, %v3679
        %v3681 = vrot.slane %v3644, %v3680
        %v3682 = vlaneseq
        %v3683 = vshrl.u32 %v3682, 7
        %v3684 = vsub.s32 0, %v3683
        %v3685 = vrot.slane %v3645, %v3684
        %3686 = vset.pattern.permute.xlu0 0
        %3687 = vperm.xlu0 %3686, %v3657
        %v3688 = vpop.permute.xlu0 %3687
        %3690 = vset.pattern.permute.xlu0 0
        %3691 = vperm.xlu0 %3690, %v3661
        %v3692 = vpop.permute.xlu0 %3691
        %3694 = vset.pattern.permute.xlu0 0
        %3695 = vperm.xlu0 %3694, %v3665
        %v3696 = vpop.permute.xlu0 %3695
        %3698 = vset.pattern.permute.xlu0 0
        %3699 = vperm.xlu0 %3698, %v3669
        %v3700 = vpop.permute.xlu0 %3699
        %3702 = vset.pattern.permute.xlu0 0
        %3703 = vperm.xlu0 %3702, %v3673
        %v3704 = vpop.permute.xlu0 %3703
        %3706 = vset.pattern.permute.xlu0 0
        %3707 = vperm.xlu0 %3706, %v3677
        %v3708 = vpop.permute.xlu0 %3707
        %3710 = vset.pattern.permute.xlu0 0
        %3711 = vperm.xlu0 %3710, %v3681
        %v3712 = vpop.permute.xlu0 %3711
        %3714 = vset.pattern.permute.xlu0 0
        %3715 = vperm.xlu0 %3714, %v3685
        %v3716 = vpop.permute.xlu0 %3715
        %v3718 = vmul.f32 %v3688, %v3537
        %v3719 = vmul.f32 %v3692, %v3537
        %v3720 = vmul.f32 %v3696, %v3537
        %v3721 = vmul.f32 %v3700, %v3537
        %v3722 = vmul.f32 %v3704, %v3537
        %v3723 = vmul.f32 %v3708, %v3537
        %v3724 = vmul.f32 %v3712, %v3537
        %v3725 = vmul.f32 %v3716, %v3537
        %v3726 = vadd.f32 %v3629, %v3718
        %v3727 = vadd.f32 %v3630, %v3719
        %v3728 = vadd.f32 %v3631, %v3720
        %v3729 = vadd.f32 %v3632, %v3721
        %v3730 = vadd.f32 %v3633, %v3722
        %v3731 = vadd.f32 %v3634, %v3723
        %v3732 = vadd.f32 %v3635, %v3724
        %v3733 = vadd.f32 %v3636, %v3725
        %s3734 = scalar_lea.vmem %s4, 240
        %v3735 = vld [vmem:[%s3734] sm:$0x1]
        %v3736 = vld [vmem:[%s3734 + $0x1] sm:$0x1]
        %v3737 = vld [vmem:[%s3734 + $0x2] sm:$0x1]
        %v3738 = vld [vmem:[%s3734 + $0x3] sm:$0x1]
        %v3739 = vld [vmem:[%s3734 + $0x4] sm:$0x1]
        %v3740 = vld [vmem:[%s3734 + $0x5] sm:$0x1]
        %v3741 = vld [vmem:[%s3734 + $0x6] sm:$0x1]
        %v3742 = vld [vmem:[%s3734 + $0x7] sm:$0x1]
        %v3751 = vlaneseq
        %v3752 = vshrl.u32 %v3751, 7
        %v3753 = vsub.s32 0, %v3752
        %v3754 = vrot.slane %v3735, %v3753
        %v3755 = vlaneseq
        %v3756 = vshrl.u32 %v3755, 7
        %v3757 = vsub.s32 0, %v3756
        %v3758 = vrot.slane %v3736, %v3757
        %v3759 = vlaneseq
        %v3760 = vshrl.u32 %v3759, 7
        %v3761 = vsub.s32 0, %v3760
        %v3762 = vrot.slane %v3737, %v3761
        %v3763 = vlaneseq
        %v3764 = vshrl.u32 %v3763, 7
        %v3765 = vsub.s32 0, %v3764
        %v3766 = vrot.slane %v3738, %v3765
        %v3767 = vlaneseq
        %v3768 = vshrl.u32 %v3767, 7
        %v3769 = vsub.s32 0, %v3768
        %v3770 = vrot.slane %v3739, %v3769
        %v3771 = vlaneseq
        %v3772 = vshrl.u32 %v3771, 7
        %v3773 = vsub.s32 0, %v3772
        %v3774 = vrot.slane %v3740, %v3773
        %v3775 = vlaneseq
        %v3776 = vshrl.u32 %v3775, 7
        %v3777 = vsub.s32 0, %v3776
        %v3778 = vrot.slane %v3741, %v3777
        %v3779 = vlaneseq
        %v3780 = vshrl.u32 %v3779, 7
        %v3781 = vsub.s32 0, %v3780
        %v3782 = vrot.slane %v3742, %v3781
        %3783 = vset.pattern.permute.xlu0 0
        %3784 = vperm.xlu0 %3783, %v3754
        %v3785 = vpop.permute.xlu0 %3784
        %3787 = vset.pattern.permute.xlu0 0
        %3788 = vperm.xlu0 %3787, %v3758
        %v3789 = vpop.permute.xlu0 %3788
        %3791 = vset.pattern.permute.xlu0 0
        %3792 = vperm.xlu0 %3791, %v3762
        %v3793 = vpop.permute.xlu0 %3792
        %3795 = vset.pattern.permute.xlu0 0
        %3796 = vperm.xlu0 %3795, %v3766
        %v3797 = vpop.permute.xlu0 %3796
        %3799 = vset.pattern.permute.xlu0 0
        %3800 = vperm.xlu0 %3799, %v3770
        %v3801 = vpop.permute.xlu0 %3800
        %3803 = vset.pattern.permute.xlu0 0
        %3804 = vperm.xlu0 %3803, %v3774
        %v3805 = vpop.permute.xlu0 %3804
        %3807 = vset.pattern.permute.xlu0 0
        %3808 = vperm.xlu0 %3807, %v3778
        %v3809 = vpop.permute.xlu0 %3808
        %3811 = vset.pattern.permute.xlu0 0
        %3812 = vperm.xlu0 %3811, %v3782
        %v3813 = vpop.permute.xlu0 %3812
        %v3815 = vmul.f32 %v3785, %v3538
        %v3816 = vmul.f32 %v3789, %v3538
        %v3817 = vmul.f32 %v3793, %v3538
        %v3818 = vmul.f32 %v3797, %v3538
        %v3819 = vmul.f32 %v3801, %v3538
        %v3820 = vmul.f32 %v3805, %v3538
        %v3821 = vmul.f32 %v3809, %v3538
        %v3822 = vmul.f32 %v3813, %v3538
        %v3823 = vadd.f32 %v3726, %v3815
        %v3824 = vadd.f32 %v3727, %v3816
        %v3825 = vadd.f32 %v3728, %v3817
        %v3826 = vadd.f32 %v3729, %v3818
        %v3827 = vadd.f32 %v3730, %v3819
        %v3828 = vadd.f32 %v3731, %v3820
        %v3829 = vadd.f32 %v3732, %v3821
        %v3830 = vadd.f32 %v3733, %v3822
        %s3831 = scalar_lea.vmem %s4, 248
        %v3832 = vld [vmem:[%s3831] sm:$0x1]
        %v3833 = vld [vmem:[%s3831 + $0x1] sm:$0x1]
        %v3834 = vld [vmem:[%s3831 + $0x2] sm:$0x1]
        %v3835 = vld [vmem:[%s3831 + $0x3] sm:$0x1]
        %v3836 = vld [vmem:[%s3831 + $0x4] sm:$0x1]
        %v3837 = vld [vmem:[%s3831 + $0x5] sm:$0x1]
        %v3838 = vld [vmem:[%s3831 + $0x6] sm:$0x1]
        %v3839 = vld [vmem:[%s3831 + $0x7] sm:$0x1]
        %v3848 = vlaneseq
        %v3849 = vshrl.u32 %v3848, 7
        %v3850 = vsub.s32 0, %v3849
        %v3851 = vrot.slane %v3832, %v3850
        %v3852 = vlaneseq
        %v3853 = vshrl.u32 %v3852, 7
        %v3854 = vsub.s32 0, %v3853
        %v3855 = vrot.slane %v3833, %v3854
        %v3856 = vlaneseq
        %v3857 = vshrl.u32 %v3856, 7
        %v3858 = vsub.s32 0, %v3857
        %v3859 = vrot.slane %v3834, %v3858
        %v3860 = vlaneseq
        %v3861 = vshrl.u32 %v3860, 7
        %v3862 = vsub.s32 0, %v3861
        %v3863 = vrot.slane %v3835, %v3862
        %v3864 = vlaneseq
        %v3865 = vshrl.u32 %v3864, 7
        %v3866 = vsub.s32 0, %v3865
        %v3867 = vrot.slane %v3836, %v3866
        %v3868 = vlaneseq
        %v3869 = vshrl.u32 %v3868, 7
        %v3870 = vsub.s32 0, %v3869
        %v3871 = vrot.slane %v3837, %v3870
        %v3872 = vlaneseq
        %v3873 = vshrl.u32 %v3872, 7
        %v3874 = vsub.s32 0, %v3873
        %v3875 = vrot.slane %v3838, %v3874
        %v3876 = vlaneseq
        %v3877 = vshrl.u32 %v3876, 7
        %v3878 = vsub.s32 0, %v3877
        %v3879 = vrot.slane %v3839, %v3878
        %3880 = vset.pattern.permute.xlu0 0
        %3881 = vperm.xlu0 %3880, %v3851
        %v3882 = vpop.permute.xlu0 %3881
        %3884 = vset.pattern.permute.xlu0 0
        %3885 = vperm.xlu0 %3884, %v3855
        %v3886 = vpop.permute.xlu0 %3885
        %3888 = vset.pattern.permute.xlu0 0
        %3889 = vperm.xlu0 %3888, %v3859
        %v3890 = vpop.permute.xlu0 %3889
        %3892 = vset.pattern.permute.xlu0 0
        %3893 = vperm.xlu0 %3892, %v3863
        %v3894 = vpop.permute.xlu0 %3893
        %3896 = vset.pattern.permute.xlu0 0
        %3897 = vperm.xlu0 %3896, %v3867
        %v3898 = vpop.permute.xlu0 %3897
        %3900 = vset.pattern.permute.xlu0 0
        %3901 = vperm.xlu0 %3900, %v3871
        %v3902 = vpop.permute.xlu0 %3901
        %3904 = vset.pattern.permute.xlu0 0
        %3905 = vperm.xlu0 %3904, %v3875
        %v3906 = vpop.permute.xlu0 %3905
        %3908 = vset.pattern.permute.xlu0 0
        %3909 = vperm.xlu0 %3908, %v3879
        %v3910 = vpop.permute.xlu0 %3909
        %v3912 = vmul.f32 %v3882, %v3539
        %v3913 = vmul.f32 %v3886, %v3539
        %v3914 = vmul.f32 %v3890, %v3539
        %v3915 = vmul.f32 %v3894, %v3539
        %v3916 = vmul.f32 %v3898, %v3539
        %v3917 = vmul.f32 %v3902, %v3539
        %v3918 = vmul.f32 %v3906, %v3539
        %v3919 = vmul.f32 %v3910, %v3539
        %v3920 = vadd.f32 %v3823, %v3912
        %v3921 = vadd.f32 %v3824, %v3913
        %v3922 = vadd.f32 %v3825, %v3914
        %v3923 = vadd.f32 %v3826, %v3915
        %v3924 = vadd.f32 %v3827, %v3916
        %v3925 = vadd.f32 %v3828, %v3917
        %v3926 = vadd.f32 %v3829, %v3918
        %v3927 = vadd.f32 %v3830, %v3919
        %s3928 = scalar_lea.vmem %s4, 256
        %v3929 = vld [vmem:[%s3928] sm:$0x1]
        %v3930 = vld [vmem:[%s3928 + $0x1] sm:$0x1]
        %v3931 = vld [vmem:[%s3928 + $0x2] sm:$0x1]
        %v3932 = vld [vmem:[%s3928 + $0x3] sm:$0x1]
        %v3933 = vld [vmem:[%s3928 + $0x4] sm:$0x1]
        %v3934 = vld [vmem:[%s3928 + $0x5] sm:$0x1]
        %v3935 = vld [vmem:[%s3928 + $0x6] sm:$0x1]
        %v3936 = vld [vmem:[%s3928 + $0x7] sm:$0x1]
        %v3945 = vlaneseq
        %v3946 = vshrl.u32 %v3945, 7
        %v3947 = vsub.s32 0, %v3946
        %v3948 = vrot.slane %v3929, %v3947
        %v3949 = vlaneseq
        %v3950 = vshrl.u32 %v3949, 7
        %v3951 = vsub.s32 0, %v3950
        %v3952 = vrot.slane %v3930, %v3951
        %v3953 = vlaneseq
        %v3954 = vshrl.u32 %v3953, 7
        %v3955 = vsub.s32 0, %v3954
        %v3956 = vrot.slane %v3931, %v3955
        %v3957 = vlaneseq
        %v3958 = vshrl.u32 %v3957, 7
        %v3959 = vsub.s32 0, %v3958
        %v3960 = vrot.slane %v3932, %v3959
        %v3961 = vlaneseq
        %v3962 = vshrl.u32 %v3961, 7
        %v3963 = vsub.s32 0, %v3962
        %v3964 = vrot.slane %v3933, %v3963
        %v3965 = vlaneseq
        %v3966 = vshrl.u32 %v3965, 7
        %v3967 = vsub.s32 0, %v3966
        %v3968 = vrot.slane %v3934, %v3967
        %v3969 = vlaneseq
        %v3970 = vshrl.u32 %v3969, 7
        %v3971 = vsub.s32 0, %v3970
        %v3972 = vrot.slane %v3935, %v3971
        %v3973 = vlaneseq
        %v3974 = vshrl.u32 %v3973, 7
        %v3975 = vsub.s32 0, %v3974
        %v3976 = vrot.slane %v3936, %v3975
        %3977 = vset.pattern.permute.xlu0 0
        %3978 = vperm.xlu0 %3977, %v3948
        %v3979 = vpop.permute.xlu0 %3978
        %3981 = vset.pattern.permute.xlu0 0
        %3982 = vperm.xlu0 %3981, %v3952
        %v3983 = vpop.permute.xlu0 %3982
        %3985 = vset.pattern.permute.xlu0 0
        %3986 = vperm.xlu0 %3985, %v3956
        %v3987 = vpop.permute.xlu0 %3986
        %3989 = vset.pattern.permute.xlu0 0
        %3990 = vperm.xlu0 %3989, %v3960
        %v3991 = vpop.permute.xlu0 %3990
        %3993 = vset.pattern.permute.xlu0 0
        %3994 = vperm.xlu0 %3993, %v3964
        %v3995 = vpop.permute.xlu0 %3994
        %3997 = vset.pattern.permute.xlu0 0
        %3998 = vperm.xlu0 %3997, %v3968
        %v3999 = vpop.permute.xlu0 %3998
        %4001 = vset.pattern.permute.xlu0 0
        %4002 = vperm.xlu0 %4001, %v3972
        %v4003 = vpop.permute.xlu0 %4002
        %4005 = vset.pattern.permute.xlu0 0
        %4006 = vperm.xlu0 %4005, %v3976
        %v4007 = vpop.permute.xlu0 %4006
        %v4009 = vmul.f32 %v3979, %v3144
        %v4010 = vmul.f32 %v3983, %v3144
        %v4011 = vmul.f32 %v3987, %v3144
        %v4012 = vmul.f32 %v3991, %v3144
        %v4013 = vmul.f32 %v3995, %v3144
        %v4014 = vmul.f32 %v3999, %v3144
        %v4015 = vmul.f32 %v4003, %v3144
        %v4016 = vmul.f32 %v4007, %v3144
        %4025 = vrot.lane.b32.xlu0 %v4009, 127
        %v4026 = vpop.permute.xlu0 %4025
        %4027 = vrot.lane.b32.xlu0 %v4010, 127
        %v4028 = vpop.permute.xlu0 %4027
        %4029 = vrot.lane.b32.xlu0 %v4011, 127
        %v4030 = vpop.permute.xlu0 %4029
        %4031 = vrot.lane.b32.xlu0 %v4012, 127
        %v4032 = vpop.permute.xlu0 %4031
        %4033 = vrot.lane.b32.xlu0 %v4013, 127
        %v4034 = vpop.permute.xlu0 %4033
        %4035 = vrot.lane.b32.xlu0 %v4014, 127
        %v4036 = vpop.permute.xlu0 %4035
        %4037 = vrot.lane.b32.xlu0 %v4015, 127
        %v4038 = vpop.permute.xlu0 %4037
        %4039 = vrot.lane.b32.xlu0 %v4016, 127
        %v4040 = vpop.permute.xlu0 %4039
        %v4049 = vadd.f32 %v3920, %v4026
        %v4050 = vadd.f32 %v3921, %v4028
        %v4051 = vadd.f32 %v3922, %v4030
        %v4052 = vadd.f32 %v3923, %v4032
        %v4053 = vadd.f32 %v3924, %v4034
        %v4054 = vadd.f32 %v3925, %v4036
        %v4055 = vadd.f32 %v3926, %v4038
        %v4056 = vadd.f32 %v3927, %v4040
        %s4057 = scalar_lea.vmem %s4, 264
        %v4058 = vld [vmem:[%s4057] sm:$0x1]
        %v4059 = vld [vmem:[%s4057 + $0x1] sm:$0x1]
        %v4060 = vld [vmem:[%s4057 + $0x2] sm:$0x1]
        %v4061 = vld [vmem:[%s4057 + $0x3] sm:$0x1]
        %v4062 = vld [vmem:[%s4057 + $0x4] sm:$0x1]
        %v4063 = vld [vmem:[%s4057 + $0x5] sm:$0x1]
        %v4064 = vld [vmem:[%s4057 + $0x6] sm:$0x1]
        %v4065 = vld [vmem:[%s4057 + $0x7] sm:$0x1]
        %v4074 = vlaneseq
        %v4075 = vshrl.u32 %v4074, 7
        %v4076 = vsub.s32 0, %v4075
        %v4077 = vrot.slane %v4058, %v4076
        %v4078 = vlaneseq
        %v4079 = vshrl.u32 %v4078, 7
        %v4080 = vsub.s32 0, %v4079
        %v4081 = vrot.slane %v4059, %v4080
        %v4082 = vlaneseq
        %v4083 = vshrl.u32 %v4082, 7
        %v4084 = vsub.s32 0, %v4083
        %v4085 = vrot.slane %v4060, %v4084
        %v4086 = vlaneseq
        %v4087 = vshrl.u32 %v4086, 7
        %v4088 = vsub.s32 0, %v4087
        %v4089 = vrot.slane %v4061, %v4088
        %v4090 = vlaneseq
        %v4091 = vshrl.u32 %v4090, 7
        %v4092 = vsub.s32 0, %v4091
        %v4093 = vrot.slane %v4062, %v4092
        %v4094 = vlaneseq
        %v4095 = vshrl.u32 %v4094, 7
        %v4096 = vsub.s32 0, %v4095
        %v4097 = vrot.slane %v4063, %v4096
        %v4098 = vlaneseq
        %v4099 = vshrl.u32 %v4098, 7
        %v4100 = vsub.s32 0, %v4099
        %v4101 = vrot.slane %v4064, %v4100
        %v4102 = vlaneseq
        %v4103 = vshrl.u32 %v4102, 7
        %v4104 = vsub.s32 0, %v4103
        %v4105 = vrot.slane %v4065, %v4104
        %4106 = vset.pattern.permute.xlu0 0
        %4107 = vperm.xlu0 %4106, %v4077
        %v4108 = vpop.permute.xlu0 %4107
        %4110 = vset.pattern.permute.xlu0 0
        %4111 = vperm.xlu0 %4110, %v4081
        %v4112 = vpop.permute.xlu0 %4111
        %4114 = vset.pattern.permute.xlu0 0
        %4115 = vperm.xlu0 %4114, %v4085
        %v4116 = vpop.permute.xlu0 %4115
        %4118 = vset.pattern.permute.xlu0 0
        %4119 = vperm.xlu0 %4118, %v4089
        %v4120 = vpop.permute.xlu0 %4119
        %4122 = vset.pattern.permute.xlu0 0
        %4123 = vperm.xlu0 %4122, %v4093
        %v4124 = vpop.permute.xlu0 %4123
        %4126 = vset.pattern.permute.xlu0 0
        %4127 = vperm.xlu0 %4126, %v4097
        %v4128 = vpop.permute.xlu0 %4127
        %4130 = vset.pattern.permute.xlu0 0
        %4131 = vperm.xlu0 %4130, %v4101
        %v4132 = vpop.permute.xlu0 %4131
        %4134 = vset.pattern.permute.xlu0 0
        %4135 = vperm.xlu0 %4134, %v4105
        %v4136 = vpop.permute.xlu0 %4135
        %v4138 = vmul.f32 %v4108, %v3145
        %v4139 = vmul.f32 %v4112, %v3145
        %v4140 = vmul.f32 %v4116, %v3145
        %v4141 = vmul.f32 %v4120, %v3145
        %v4142 = vmul.f32 %v4124, %v3145
        %v4143 = vmul.f32 %v4128, %v3145
        %v4144 = vmul.f32 %v4132, %v3145
        %v4145 = vmul.f32 %v4136, %v3145
        %4154 = vrot.lane.b32.xlu0 %v4138, 127
        %v4155 = vpop.permute.xlu0 %4154
        %4156 = vrot.lane.b32.xlu0 %v4139, 127
        %v4157 = vpop.permute.xlu0 %4156
        %4158 = vrot.lane.b32.xlu0 %v4140, 127
        %v4159 = vpop.permute.xlu0 %4158
        %4160 = vrot.lane.b32.xlu0 %v4141, 127
        %v4161 = vpop.permute.xlu0 %4160
        %4162 = vrot.lane.b32.xlu0 %v4142, 127
        %v4163 = vpop.permute.xlu0 %4162
        %4164 = vrot.lane.b32.xlu0 %v4143, 127
        %v4165 = vpop.permute.xlu0 %4164
        %4166 = vrot.lane.b32.xlu0 %v4144, 127
        %v4167 = vpop.permute.xlu0 %4166
        %4168 = vrot.lane.b32.xlu0 %v4145, 127
        %v4169 = vpop.permute.xlu0 %4168
        %v4178 = vadd.f32 %v4049, %v4155
        %v4179 = vadd.f32 %v4050, %v4157
        %v4180 = vadd.f32 %v4051, %v4159
        %v4181 = vadd.f32 %v4052, %v4161
        %v4182 = vadd.f32 %v4053, %v4163
        %v4183 = vadd.f32 %v4054, %v4165
        %v4184 = vadd.f32 %v4055, %v4167
        %v4185 = vadd.f32 %v4056, %v4169
        %s4186 = scalar_lea.vmem %s4, 272
        %v4187 = vld [vmem:[%s4186] sm:$0x1]
        %v4188 = vld [vmem:[%s4186 + $0x1] sm:$0x1]
        %v4189 = vld [vmem:[%s4186 + $0x2] sm:$0x1]
        %v4190 = vld [vmem:[%s4186 + $0x3] sm:$0x1]
        %v4191 = vld [vmem:[%s4186 + $0x4] sm:$0x1]
        %v4192 = vld [vmem:[%s4186 + $0x5] sm:$0x1]
        %v4193 = vld [vmem:[%s4186 + $0x6] sm:$0x1]
        %v4194 = vld [vmem:[%s4186 + $0x7] sm:$0x1]
        %v4203 = vlaneseq
        %v4204 = vshrl.u32 %v4203, 7
        %v4205 = vsub.s32 0, %v4204
        %v4206 = vrot.slane %v4187, %v4205
        %v4207 = vlaneseq
        %v4208 = vshrl.u32 %v4207, 7
        %v4209 = vsub.s32 0, %v4208
        %v4210 = vrot.slane %v4188, %v4209
        %v4211 = vlaneseq
        %v4212 = vshrl.u32 %v4211, 7
        %v4213 = vsub.s32 0, %v4212
        %v4214 = vrot.slane %v4189, %v4213
        %v4215 = vlaneseq
        %v4216 = vshrl.u32 %v4215, 7
        %v4217 = vsub.s32 0, %v4216
        %v4218 = vrot.slane %v4190, %v4217
        %v4219 = vlaneseq
        %v4220 = vshrl.u32 %v4219, 7
        %v4221 = vsub.s32 0, %v4220
        %v4222 = vrot.slane %v4191, %v4221
        %v4223 = vlaneseq
        %v4224 = vshrl.u32 %v4223, 7
        %v4225 = vsub.s32 0, %v4224
        %v4226 = vrot.slane %v4192, %v4225
        %v4227 = vlaneseq
        %v4228 = vshrl.u32 %v4227, 7
        %v4229 = vsub.s32 0, %v4228
        %v4230 = vrot.slane %v4193, %v4229
        %v4231 = vlaneseq
        %v4232 = vshrl.u32 %v4231, 7
        %v4233 = vsub.s32 0, %v4232
        %v4234 = vrot.slane %v4194, %v4233
        %4235 = vset.pattern.permute.xlu0 0
        %4236 = vperm.xlu0 %4235, %v4206
        %v4237 = vpop.permute.xlu0 %4236
        %4239 = vset.pattern.permute.xlu0 0
        %4240 = vperm.xlu0 %4239, %v4210
        %v4241 = vpop.permute.xlu0 %4240
        %4243 = vset.pattern.permute.xlu0 0
        %4244 = vperm.xlu0 %4243, %v4214
        %v4245 = vpop.permute.xlu0 %4244
        %4247 = vset.pattern.permute.xlu0 0
        %4248 = vperm.xlu0 %4247, %v4218
        %v4249 = vpop.permute.xlu0 %4248
        %4251 = vset.pattern.permute.xlu0 0
        %4252 = vperm.xlu0 %4251, %v4222
        %v4253 = vpop.permute.xlu0 %4252
        %4255 = vset.pattern.permute.xlu0 0
        %4256 = vperm.xlu0 %4255, %v4226
        %v4257 = vpop.permute.xlu0 %4256
        %4259 = vset.pattern.permute.xlu0 0
        %4260 = vperm.xlu0 %4259, %v4230
        %v4261 = vpop.permute.xlu0 %4260
        %4263 = vset.pattern.permute.xlu0 0
        %4264 = vperm.xlu0 %4263, %v4234
        %v4265 = vpop.permute.xlu0 %4264
        %v4267 = vmul.f32 %v4237, %v3146
        %v4268 = vmul.f32 %v4241, %v3146
        %v4269 = vmul.f32 %v4245, %v3146
        %v4270 = vmul.f32 %v4249, %v3146
        %v4271 = vmul.f32 %v4253, %v3146
        %v4272 = vmul.f32 %v4257, %v3146
        %v4273 = vmul.f32 %v4261, %v3146
        %v4274 = vmul.f32 %v4265, %v3146
        %4283 = vrot.lane.b32.xlu0 %v4267, 127
        %v4284 = vpop.permute.xlu0 %4283
        %4285 = vrot.lane.b32.xlu0 %v4268, 127
        %v4286 = vpop.permute.xlu0 %4285
        %4287 = vrot.lane.b32.xlu0 %v4269, 127
        %v4288 = vpop.permute.xlu0 %4287
        %4289 = vrot.lane.b32.xlu0 %v4270, 127
        %v4290 = vpop.permute.xlu0 %4289
        %4291 = vrot.lane.b32.xlu0 %v4271, 127
        %v4292 = vpop.permute.xlu0 %4291
        %4293 = vrot.lane.b32.xlu0 %v4272, 127
        %v4294 = vpop.permute.xlu0 %4293
        %4295 = vrot.lane.b32.xlu0 %v4273, 127
        %v4296 = vpop.permute.xlu0 %4295
        %4297 = vrot.lane.b32.xlu0 %v4274, 127
        %v4298 = vpop.permute.xlu0 %4297
        %v4307 = vadd.f32 %v4178, %v4284
        %v4308 = vadd.f32 %v4179, %v4286
        %v4309 = vadd.f32 %v4180, %v4288
        %v4310 = vadd.f32 %v4181, %v4290
        %v4311 = vadd.f32 %v4182, %v4292
        %v4312 = vadd.f32 %v4183, %v4294
        %v4313 = vadd.f32 %v4184, %v4296
        %v4314 = vadd.f32 %v4185, %v4298
        %s4315 = scalar_lea.vmem %s4, 280
        %v4316 = vld [vmem:[%s4315] sm:$0x1]
        %v4317 = vld [vmem:[%s4315 + $0x1] sm:$0x1]
        %v4318 = vld [vmem:[%s4315 + $0x2] sm:$0x1]
        %v4319 = vld [vmem:[%s4315 + $0x3] sm:$0x1]
        %v4320 = vld [vmem:[%s4315 + $0x4] sm:$0x1]
        %v4321 = vld [vmem:[%s4315 + $0x5] sm:$0x1]
        %v4322 = vld [vmem:[%s4315 + $0x6] sm:$0x1]
        %v4323 = vld [vmem:[%s4315 + $0x7] sm:$0x1]
        %v4332 = vlaneseq
        %v4333 = vshrl.u32 %v4332, 7
        %v4334 = vsub.s32 0, %v4333
        %v4335 = vrot.slane %v4316, %v4334
        %v4336 = vlaneseq
        %v4337 = vshrl.u32 %v4336, 7
        %v4338 = vsub.s32 0, %v4337
        %v4339 = vrot.slane %v4317, %v4338
        %v4340 = vlaneseq
        %v4341 = vshrl.u32 %v4340, 7
        %v4342 = vsub.s32 0, %v4341
        %v4343 = vrot.slane %v4318, %v4342
        %v4344 = vlaneseq
        %v4345 = vshrl.u32 %v4344, 7
        %v4346 = vsub.s32 0, %v4345
        %v4347 = vrot.slane %v4319, %v4346
        %v4348 = vlaneseq
        %v4349 = vshrl.u32 %v4348, 7
        %v4350 = vsub.s32 0, %v4349
        %v4351 = vrot.slane %v4320, %v4350
        %v4352 = vlaneseq
        %v4353 = vshrl.u32 %v4352, 7
        %v4354 = vsub.s32 0, %v4353
        %v4355 = vrot.slane %v4321, %v4354
        %v4356 = vlaneseq
        %v4357 = vshrl.u32 %v4356, 7
        %v4358 = vsub.s32 0, %v4357
        %v4359 = vrot.slane %v4322, %v4358
        %v4360 = vlaneseq
        %v4361 = vshrl.u32 %v4360, 7
        %v4362 = vsub.s32 0, %v4361
        %v4363 = vrot.slane %v4323, %v4362
        %4364 = vset.pattern.permute.xlu0 0
        %4365 = vperm.xlu0 %4364, %v4335
        %v4366 = vpop.permute.xlu0 %4365
        %4368 = vset.pattern.permute.xlu0 0
        %4369 = vperm.xlu0 %4368, %v4339
        %v4370 = vpop.permute.xlu0 %4369
        %4372 = vset.pattern.permute.xlu0 0
        %4373 = vperm.xlu0 %4372, %v4343
        %v4374 = vpop.permute.xlu0 %4373
        %4376 = vset.pattern.permute.xlu0 0
        %4377 = vperm.xlu0 %4376, %v4347
        %v4378 = vpop.permute.xlu0 %4377
        %4380 = vset.pattern.permute.xlu0 0
        %4381 = vperm.xlu0 %4380, %v4351
        %v4382 = vpop.permute.xlu0 %4381
        %4384 = vset.pattern.permute.xlu0 0
        %4385 = vperm.xlu0 %4384, %v4355
        %v4386 = vpop.permute.xlu0 %4385
        %4388 = vset.pattern.permute.xlu0 0
        %4389 = vperm.xlu0 %4388, %v4359
        %v4390 = vpop.permute.xlu0 %4389
        %4392 = vset.pattern.permute.xlu0 0
        %4393 = vperm.xlu0 %4392, %v4363
        %v4394 = vpop.permute.xlu0 %4393
        %v4396 = vmul.f32 %v4366, %v3147
        %v4397 = vmul.f32 %v4370, %v3147
        %v4398 = vmul.f32 %v4374, %v3147
        %v4399 = vmul.f32 %v4378, %v3147
        %v4400 = vmul.f32 %v4382, %v3147
        %v4401 = vmul.f32 %v4386, %v3147
        %v4402 = vmul.f32 %v4390, %v3147
        %v4403 = vmul.f32 %v4394, %v3147
        %4412 = vrot.lane.b32.xlu0 %v4396, 127
        %v4413 = vpop.permute.xlu0 %4412
        %4414 = vrot.lane.b32.xlu0 %v4397, 127
        %v4415 = vpop.permute.xlu0 %4414
        %4416 = vrot.lane.b32.xlu0 %v4398, 127
        %v4417 = vpop.permute.xlu0 %4416
        %4418 = vrot.lane.b32.xlu0 %v4399, 127
        %v4419 = vpop.permute.xlu0 %4418
        %4420 = vrot.lane.b32.xlu0 %v4400, 127
        %v4421 = vpop.permute.xlu0 %4420
        %4422 = vrot.lane.b32.xlu0 %v4401, 127
        %v4423 = vpop.permute.xlu0 %4422
        %4424 = vrot.lane.b32.xlu0 %v4402, 127
        %v4425 = vpop.permute.xlu0 %4424
        %4426 = vrot.lane.b32.xlu0 %v4403, 127
        %v4427 = vpop.permute.xlu0 %4426
        %v4436 = vadd.f32 %v4307, %v4413
        %v4437 = vadd.f32 %v4308, %v4415
        %v4438 = vadd.f32 %v4309, %v4417
        %v4439 = vadd.f32 %v4310, %v4419
        %v4440 = vadd.f32 %v4311, %v4421
        %v4441 = vadd.f32 %v4312, %v4423
        %v4442 = vadd.f32 %v4313, %v4425
        %v4443 = vadd.f32 %v4314, %v4427
        %v4444 = vld [vmem:[%s5] sm:$0x1]
        %v4445 = vld [vmem:[%s5 + $0x1] sm:$0x1]
        %v4446 = vld [vmem:[%s5 + $0x2] sm:$0x1]
        %v4447 = vld [vmem:[%s5 + $0x3] sm:$0x1]
        %v4448 = vld [vmem:[%s5 + $0x4] sm:$0x1]
        %v4449 = vld [vmem:[%s5 + $0x5] sm:$0x1]
        %v4450 = vld [vmem:[%s5 + $0x6] sm:$0x1]
        %v4451 = vld [vmem:[%s5 + $0x7] sm:$0x1]
        %v4460 = vlaneseq
        %v4461 = vshrl.u32 %v4460, 7
        %v4462 = vsub.s32 0, %v4461
        %v4463 = vrot.slane %v4444, %v4462
        %v4464 = vlaneseq
        %v4465 = vshrl.u32 %v4464, 7
        %v4466 = vsub.s32 0, %v4465
        %v4467 = vrot.slane %v4445, %v4466
        %v4468 = vlaneseq
        %v4469 = vshrl.u32 %v4468, 7
        %v4470 = vsub.s32 0, %v4469
        %v4471 = vrot.slane %v4446, %v4470
        %v4472 = vlaneseq
        %v4473 = vshrl.u32 %v4472, 7
        %v4474 = vsub.s32 0, %v4473
        %v4475 = vrot.slane %v4447, %v4474
        %v4476 = vlaneseq
        %v4477 = vshrl.u32 %v4476, 7
        %v4478 = vsub.s32 0, %v4477
        %v4479 = vrot.slane %v4448, %v4478
        %v4480 = vlaneseq
        %v4481 = vshrl.u32 %v4480, 7
        %v4482 = vsub.s32 0, %v4481
        %v4483 = vrot.slane %v4449, %v4482
        %v4484 = vlaneseq
        %v4485 = vshrl.u32 %v4484, 7
        %v4486 = vsub.s32 0, %v4485
        %v4487 = vrot.slane %v4450, %v4486
        %v4488 = vlaneseq
        %v4489 = vshrl.u32 %v4488, 7
        %v4490 = vsub.s32 0, %v4489
        %v4491 = vrot.slane %v4451, %v4490
        %4492 = vset.pattern.permute.xlu0 0
        %4493 = vperm.xlu0 %4492, %v4463
        %v4494 = vpop.permute.xlu0 %4493
        %4496 = vset.pattern.permute.xlu0 0
        %4497 = vperm.xlu0 %4496, %v4467
        %v4498 = vpop.permute.xlu0 %4497
        %4500 = vset.pattern.permute.xlu0 0
        %4501 = vperm.xlu0 %4500, %v4471
        %v4502 = vpop.permute.xlu0 %4501
        %4504 = vset.pattern.permute.xlu0 0
        %4505 = vperm.xlu0 %4504, %v4475
        %v4506 = vpop.permute.xlu0 %4505
        %4508 = vset.pattern.permute.xlu0 0
        %4509 = vperm.xlu0 %4508, %v4479
        %v4510 = vpop.permute.xlu0 %4509
        %4512 = vset.pattern.permute.xlu0 0
        %4513 = vperm.xlu0 %4512, %v4483
        %v4514 = vpop.permute.xlu0 %4513
        %4516 = vset.pattern.permute.xlu0 0
        %4517 = vperm.xlu0 %4516, %v4487
        %v4518 = vpop.permute.xlu0 %4517
        %4520 = vset.pattern.permute.xlu0 0
        %4521 = vperm.xlu0 %4520, %v4491
        %v4522 = vpop.permute.xlu0 %4521
        %v4524 = vmul.f32 %v4436, %v4494
        %v4525 = vmul.f32 %v4437, %v4498
        %v4526 = vmul.f32 %v4438, %v4502
        %v4527 = vmul.f32 %v4439, %v4506
        %v4528 = vmul.f32 %v4440, %v4510
        %v4529 = vmul.f32 %v4441, %v4514
        %v4530 = vmul.f32 %v4442, %v4518
        %v4531 = vmul.f32 %v4443, %v4522
        %v4532 = vld [vmem:[%s6] sm:$0x1]
        %v4533 = vld [vmem:[%s6 + $0x1] sm:$0x1]
        %v4534 = vld [vmem:[%s6 + $0x2] sm:$0x1]
        %v4535 = vld [vmem:[%s6 + $0x3] sm:$0x1]
        %v4536 = vld [vmem:[%s6 + $0x4] sm:$0x1]
        %v4537 = vld [vmem:[%s6 + $0x5] sm:$0x1]
        %v4538 = vld [vmem:[%s6 + $0x6] sm:$0x1]
        %v4539 = vld [vmem:[%s6 + $0x7] sm:$0x1]
        %v4548 = vlaneseq
        %v4549 = vshrl.u32 %v4548, 7
        %v4550 = vsub.s32 0, %v4549
        %v4551 = vrot.slane %v4532, %v4550
        %v4552 = vlaneseq
        %v4553 = vshrl.u32 %v4552, 7
        %v4554 = vsub.s32 0, %v4553
        %v4555 = vrot.slane %v4533, %v4554
        %v4556 = vlaneseq
        %v4557 = vshrl.u32 %v4556, 7
        %v4558 = vsub.s32 0, %v4557
        %v4559 = vrot.slane %v4534, %v4558
        %v4560 = vlaneseq
        %v4561 = vshrl.u32 %v4560, 7
        %v4562 = vsub.s32 0, %v4561
        %v4563 = vrot.slane %v4535, %v4562
        %v4564 = vlaneseq
        %v4565 = vshrl.u32 %v4564, 7
        %v4566 = vsub.s32 0, %v4565
        %v4567 = vrot.slane %v4536, %v4566
        %v4568 = vlaneseq
        %v4569 = vshrl.u32 %v4568, 7
        %v4570 = vsub.s32 0, %v4569
        %v4571 = vrot.slane %v4537, %v4570
        %v4572 = vlaneseq
        %v4573 = vshrl.u32 %v4572, 7
        %v4574 = vsub.s32 0, %v4573
        %v4575 = vrot.slane %v4538, %v4574
        %v4576 = vlaneseq
        %v4577 = vshrl.u32 %v4576, 7
        %v4578 = vsub.s32 0, %v4577
        %v4579 = vrot.slane %v4539, %v4578
        %4580 = vset.pattern.permute.xlu0 0
        %4581 = vperm.xlu0 %4580, %v4551
        %v4582 = vpop.permute.xlu0 %4581
        %4584 = vset.pattern.permute.xlu0 0
        %4585 = vperm.xlu0 %4584, %v4555
        %v4586 = vpop.permute.xlu0 %4585
        %4588 = vset.pattern.permute.xlu0 0
        %4589 = vperm.xlu0 %4588, %v4559
        %v4590 = vpop.permute.xlu0 %4589
        %4592 = vset.pattern.permute.xlu0 0
        %4593 = vperm.xlu0 %4592, %v4563
        %v4594 = vpop.permute.xlu0 %4593
        %4596 = vset.pattern.permute.xlu0 0
        %4597 = vperm.xlu0 %4596, %v4567
        %v4598 = vpop.permute.xlu0 %4597
        %4600 = vset.pattern.permute.xlu0 0
        %4601 = vperm.xlu0 %4600, %v4571
        %v4602 = vpop.permute.xlu0 %4601
        %4604 = vset.pattern.permute.xlu0 0
        %4605 = vperm.xlu0 %4604, %v4575
        %v4606 = vpop.permute.xlu0 %4605
        %4608 = vset.pattern.permute.xlu0 0
        %4609 = vperm.xlu0 %4608, %v4579
        %v4610 = vpop.permute.xlu0 %4609
        %v4612 = vadd.f32 %v4524, %v4582
        %v4613 = vadd.f32 %v4525, %v4586
        %v4614 = vadd.f32 %v4526, %v4590
        %v4615 = vadd.f32 %v4527, %v4594
        %v4616 = vadd.f32 %v4528, %v4598
        %v4617 = vadd.f32 %v4529, %v4602
        %v4618 = vadd.f32 %v4530, %v4606
        %v4619 = vadd.f32 %v4531, %v4610
        %v4620 = vmax.f32 %v4612, 0.0
        %v4621 = vmax.f32 %v4613, 0.0
        %v4622 = vmax.f32 %v4614, 0.0
        %v4623 = vmax.f32 %v4615, 0.0
        %v4624 = vmax.f32 %v4616, 0.0
        %v4625 = vmax.f32 %v4617, 0.0
        %v4626 = vmax.f32 %v4618, 0.0
        %v4627 = vmax.f32 %v4619, 0.0
        %vm4628 = vcmask 25600
        %4629 = vst.msk [vmem:[%s544] sm:$0x3] %vm4628, %v4620
        %4630 = vst.msk [vmem:[%s544 + $0x2] sm:$0x3] %vm4628, %v4621
        %4631 = vst.msk [vmem:[%s544 + $0x4] sm:$0x3] %vm4628, %v4622
        %4632 = vst.msk [vmem:[%s544 + $0x6] sm:$0x3] %vm4628, %v4623
        %4633 = vst.msk [vmem:[%s544 + $0x8] sm:$0x3] %vm4628, %v4624
        %4634 = vst.msk [vmem:[%s544 + $0xa] sm:$0x3] %vm4628, %v4625
        %4635 = vst.msk [vmem:[%s544 + $0xc] sm:$0x3] %vm4628, %v4626
        %4636 = vst.msk [vmem:[%s544 + $0xe] sm:$0x3] %vm4628, %v4627
        %s4637 = sand.u32 %s193, 1
        %s4638 = sand.u32 %s193, 1
        %s4639 = smul.addr %s4638, 16
        %s4640 = scalar_lea.vmem [#allocation6], %s4639
        // Predicated region
        $region213: #{reference_encoder_forward.5} parent=195 // pred_check
          %p4641 = pneg %p203
        $region214: #{reference_encoder_forward.5} parent=195 // pred_check_branch
          %4643 = sbr.rel (%p4641) target = $region216
        $region215: #{reference_encoder_forward.5} parent=195 // pred_region
          %s4644 = smul.addr %s18, 2
          %s4645 = scalar_lea.vmem %s7, %s4644
          // Predicated region
          $region217: #{reference_encoder_forward.5} parent=215 // pred_check
            _
          $region218: #{reference_encoder_forward.5} parent=215 // pred_check_branch
            %4647 = sbr.rel (0) target = $region220
          $region219: #{reference_encoder_forward.5} parent=215 // pred_region
            // Predicated region
            $region221: #{reference_encoder_forward.5} parent=219 // pred_check
              _
            $region222: #{reference_encoder_forward.5} parent=219 // pred_check_branch
              %4649 = sbr.rel target = $region224
            $region223: #{reference_encoder_forward.5} parent=219 // pred_region
              // Predicated region
              $region236: #{reference_encoder_forward.5} parent=223 // pred_check
                _
              $region237: #{reference_encoder_forward.5} parent=223 // pred_check_branch
                %4678 = sbr.rel (0) target = $region239
              $region238: #{reference_encoder_forward.5} parent=223 // pred_region
                loop: start=0, step=1, limit=1
                $region240: #{reference_encoder_forward.5} parent=238 // loop_pre_header
                  _
                $region241: #{reference_encoder_forward.5} parent=238 // loop_header
                  %s4680 = sphi 0, %s4684
                  %p4681 = scmp.ge.s32.totalorder %s4680, 1
                  %s4685 = sphi %s4640, %s4640
                  %s4686 = sphi %s4645, %s4645
                $region242: #{reference_encoder_forward.5} parent=238 // loop_header_branch
                  %4683 = sbr.rel (%p4681) target = $region246
                $region243: #{reference_encoder_forward.5} parent=238 // loop_body
                  _
                $region244: #{reference_encoder_forward.5} parent=238 // loop_footer
                  %s4684 = sadd.s32 1, %s4680
                $region245: #{reference_encoder_forward.5} parent=238 // loop_footer_branch
                  %4679 = sbr.rel target = $region241
                $region246: #{reference_encoder_forward.5} parent=238 // loop_exit
                  _
                loop: start=0, step=1, limit=1
                $region247: #{reference_encoder_forward.5} parent=238 // loop_pre_header
                  _
                $region248: #{reference_encoder_forward.5} parent=238 // loop_header
                  %s4689 = sphi 0, %s4693
                  %p4690 = scmp.ge.s32.totalorder %s4689, 1
                  %s4694 = sphi %s4640, %s4640
                  %s4695 = sphi %s4645, %s4645
                $region249: #{reference_encoder_forward.5} parent=238 // loop_header_branch
                  %4692 = sbr.rel (%p4690) target = $region253
                $region250: #{reference_encoder_forward.5} parent=238 // loop_body
                  %v4696 = vld [vmem:[%s4694] sm:$0x3]
                  %4697 = vst [vmem:[%s4695] sm:$0x3] %v4696
                  %v4698 = vld [vmem:[%s4694 + $0x2] sm:$0x3]
                  %4699 = vst [vmem:[%s4695 + $0x4] sm:$0x3] %v4698
                  %v4700 = vld [vmem:[%s4694 + $0x4] sm:$0x3]
                  %4701 = vst [vmem:[%s4695 + $0x8] sm:$0x3] %v4700
                  %v4702 = vld [vmem:[%s4694 + $0x6] sm:$0x3]
                  %4703 = vst [vmem:[%s4695 + $0xc] sm:$0x3] %v4702
                  %v4704 = vld [vmem:[%s4694 + $0x8] sm:$0x3]
                  %4705 = vst [vmem:[%s4695 + $0x10] sm:$0x3] %v4704
                  %v4706 = vld [vmem:[%s4694 + $0xa] sm:$0x3]
                  %4707 = vst [vmem:[%s4695 + $0x14] sm:$0x3] %v4706
                  %v4708 = vld [vmem:[%s4694 + $0xc] sm:$0x3]
                  %4709 = vst [vmem:[%s4695 + $0x18] sm:$0x3] %v4708
                  %v4710 = vld [vmem:[%s4694 + $0xe] sm:$0x3]
                  %4711 = vst [vmem:[%s4695 + $0x1c] sm:$0x3] %v4710
                $region251: #{reference_encoder_forward.5} parent=238 // loop_footer
                  %s4693 = sadd.s32 1, %s4689
                $region252: #{reference_encoder_forward.5} parent=238 // loop_footer_branch
                  %4688 = sbr.rel target = $region248
                $region253: #{reference_encoder_forward.5} parent=238 // loop_exit
                  _
              $region239: #{reference_encoder_forward.5} parent=223 // pred_fallthru
                _
            $region224: #{reference_encoder_forward.5} parent=219 // pred_fallthru
              _
            // Predicated region
            $region225: #{reference_encoder_forward.5} parent=219 // pred_check
              _
            $region226: #{reference_encoder_forward.5} parent=219 // pred_check_branch
              %4651 = sbr.rel (0) target = $region228
            $region227: #{reference_encoder_forward.5} parent=219 // pred_region
              loop: start=0, step=1, limit=1
              $region229: #{reference_encoder_forward.5} parent=227 // loop_pre_header
                _
              $region230: #{reference_encoder_forward.5} parent=227 // loop_header
                %s4654 = sphi 0, %s4658
                %p4655 = scmp.ge.s32.totalorder %s4654, 1
                %s4659 = sphi %s4640, %s4640
                %s4660 = sphi %s4645, %s4645
              $region231: #{reference_encoder_forward.5} parent=227 // loop_header_branch
                %4657 = sbr.rel (%p4655) target = $region235
              $region232: #{reference_encoder_forward.5} parent=227 // loop_body
                %v4661 = vld [vmem:[%s4659] sm:$0x3]
                %4662 = vst [vmem:[%s4660] sm:$0x3] %v4661
                %v4663 = vld [vmem:[%s4659 + $0x2] sm:$0x3]
                %4664 = vst [vmem:[%s4660 + $0x4] sm:$0x3] %v4663
                %v4665 = vld [vmem:[%s4659 + $0x4] sm:$0x3]
                %4666 = vst [vmem:[%s4660 + $0x8] sm:$0x3] %v4665
                %v4667 = vld [vmem:[%s4659 + $0x6] sm:$0x3]
                %4668 = vst [vmem:[%s4660 + $0xc] sm:$0x3] %v4667
                %v4669 = vld [vmem:[%s4659 + $0x8] sm:$0x3]
                %4670 = vst [vmem:[%s4660 + $0x10] sm:$0x3] %v4669
                %v4671 = vld [vmem:[%s4659 + $0xa] sm:$0x3]
                %4672 = vst [vmem:[%s4660 + $0x14] sm:$0x3] %v4671
                %v4673 = vld [vmem:[%s4659 + $0xc] sm:$0x3]
                %4674 = vst [vmem:[%s4660 + $0x18] sm:$0x3] %v4673
                %v4675 = vld [vmem:[%s4659 + $0xe] sm:$0x3]
                %4676 = vst [vmem:[%s4660 + $0x1c] sm:$0x3] %v4675
              $region233: #{reference_encoder_forward.5} parent=227 // loop_footer
                %s4658 = sadd.s32 1, %s4654
              $region234: #{reference_encoder_forward.5} parent=227 // loop_footer_branch
                %4653 = sbr.rel target = $region230
              $region235: #{reference_encoder_forward.5} parent=227 // loop_exit
                _
            $region228: #{reference_encoder_forward.5} parent=219 // pred_fallthru
              _
          $region220: #{reference_encoder_forward.5} parent=215 // pred_fallthru
            _
          %4712 = vnop
        $region216: #{reference_encoder_forward.5} parent=195 // pred_fallthru
          _
      $region196: #{reference_encoder_forward.5} parent=5 // pred_fallthru
        _
      %p4713 = scmp.le.s32.totalorder 2, %s13
      // Predicated region
      $region254: #{reference_encoder_forward.5} parent=5 // pred_check
        %p4714 = pneg %p4713
      $region255: #{reference_encoder_forward.5} parent=5 // pred_check_branch
        %4716 = sbr.rel (%p4714) target = $region257
      $region256: #{reference_encoder_forward.5} parent=5 // pred_region
        %s4717 = ssub.s32 %s13, 2
        // Predicated region
        $region258: #{reference_encoder_forward.5} parent=256 // pred_check
          %p4718 = pneg %p209
        $region259: #{reference_encoder_forward.5} parent=256 // pred_check_branch
          %4720 = sbr.rel (%p4718) target = $region261
        $region260: #{reference_encoder_forward.5} parent=256 // pred_region
          %s4721 = sand.u32 %s194, 1
          %s4722 = sand.u32 %s194, 1
          %s4723 = smul.addr %s4722, 16
          %s4724 = scalar_lea.vmem [#allocation6], %s4723
        $region261: #{reference_encoder_forward.5} parent=256 // pred_fallthru
          _
      $region257: #{reference_encoder_forward.5} parent=5 // pred_fallthru
        _
    $region6: #{reference_encoder_forward.5} parent=1 // loop_footer
      %s17 = sadd.s32 1, %s13
    $region7: #{reference_encoder_forward.5} parent=1 // loop_footer_branch
      %12 = sbr.rel target = $region3
    $region8: #{reference_encoder_forward.5} parent=1 // loop_exit
      _

</llo_original>
